<compile_context>
chip_gen: v5e
topology: v5e:2x2
jax: 0.10.0
libtpu: 0.0.40
codegen_flags: <defaults>
</compile_context>

<pallas_src>
import functools

import jax
import jax.numpy as jnp
from jax.experimental import pallas as pl
from jax.experimental.pallas import tpu as pltpu


# -----------------------------------------------------------------------------
# Fused kernel A: all Conv2d(3x3, stride 1, pad 1)+ReLU layers + MaxPool2d(2,2),
# one image per grid step, activations resident in VMEM scratch.
# -----------------------------------------------------------------------------
def _make_fused_conv_pool_kernel(n_hidden, H, W, C):
    Hh, Wh = H // 2, W // 2

    def zero_borders(buf):
        # Zero only the halo strips (not the full padded tile); the interior is fully
        # overwritten each layer.  Done every grid step so correctness does not rely
        # on scratch persistence when the batch axis is sharded across TensorCores.
        zrow = jnp.zeros((1, W + 2, C), jnp.float32)
        zcol = jnp.zeros((H + 2, 1, C), jnp.float32)
        buf[pl.ds(0, 1), :, :] = zrow
        buf[pl.ds(H + 1, 1), :, :] = zrow
        buf[:, pl.ds(0, 1), :] = zcol
        buf[:, pl.ds(W + 1, 1), :] = zcol

    def conv_from_padded(src, w_ref, b_ref):
        # 9 shifted (H,W,C)x(C,C) MXU matmuls; accumulator initialized from tap 0.
        acc = None
        for t in range(9):  # static, fully unrolled taps
            dy, dx = divmod(t, 3)
            xs = src[pl.ds(dy, H), pl.ds(dx, W), :]                 # (H, W, Cin)
            part = jax.lax.dot_general(
                xs, w_ref[t],
                dimension_numbers=(((2,), (0,)), ((), ())),
                preferred_element_type=jnp.float32)                 # (H, W, Cout)
            acc = part if acc is None else acc + part
        return jnp.maximum(acc + b_ref[...][None, :, :], 0.0)       # fused bias + ReLU

    def kernel(*refs):
        x_ref = refs[0]                         # (1, H, W, 9) im2col of 1-channel input
        w1_ref, b1_ref = refs[1], refs[2]       # (9, C), (1, C)
        wb = refs[3:3 + 2 * n_hidden]           # per hidden conv: (9, C, C), (1, C)
        o_ref = refs[3 + 2 * n_hidden]          # (1, Hh, Wh, C)
        pad_a, pad_b, pool_buf = refs[3 + 2 * n_hidden + 1:]

        zero_borders(pad_a)
        zero_borders(pad_b)

        # Layer 1 (Cin=1): one K=9 MXU contraction on the wrapper-built im2col.
        y = jax.lax.dot_general(
            x_ref[0], w1_ref[...],
            dimension_numbers=(((2,), (0,)), ((), ())),
            preferred_element_type=jnp.float32)
        y = jnp.maximum(y + b1_ref[...][None, :, :], 0.0)            # (H, W, C)
        pad_a[pl.ds(1, H), pl.ds(1, W), :] = y

        # Remaining conv layers: ping-pong between the two padded VMEM buffers; the
        # last layer's output stays in registers and feeds the fused max-pool.
        src, dst = pad_a, pad_b
        for l in range(n_hidden):
            w_ref, b_ref = wb[2 * l], wb[2 * l + 1]
            y = conv_from_padded(src, w_ref, b_ref)                  # (H, W, C)
            if l != n_hidden - 1:
                dst[pl.ds(1, H), pl.ds(1, W), :] = y
                src, dst = dst, src

        # MaxPool2d(2, 2), fused.  Row pairs via a layout-preserving leading-dim
        # split; column pairs via strided loads from a small VMEM staging buffer.
        yp = y.reshape(Hh, 2, W, C)
        pool_buf[...] = jnp.maximum(yp[:, 0], yp[:, 1])              # (Hh, W, C)
        p = jnp.maximum(pool_buf[:, pl.ds(0, Wh, 2), :],
                        pool_buf[:, pl.ds(1, Wh, 2), :])             # (Hh, Wh, C)
        o_ref[0] = p.astype(o_ref.dtype)

    return kernel


def fused_conv_pool(x9, conv1_w, conv1_b, convs_w, convs_b):
    """x9: (N, H, W, 9) im2col of the single input channel.  Returns (N, H/2, W/2, C)."""
    N, H, W, _ = x9.shape
    C = conv1_w.shape[1]
    Hh, Wh = H // 2, W // 2
    n_hidden = len(convs_w)

    in_specs = [pl.BlockSpec((1, H, W, 9), lambda n: (n, 0, 0, 0)),
                pl.BlockSpec((9, C), lambda n: (0, 0)),
                pl.BlockSpec((1, C), lambda n: (0, 0))]
    args = [x9, conv1_w, conv1_b]
    for w, b in zip(convs_w, convs_b):
        in_specs.append(pl.BlockSpec((9, C, C), lambda n: (0, 0, 0)))
        in_specs.append(pl.BlockSpec((1, C), lambda n: (0, 0)))
        args.append(w)
        args.append(b)

    kernel = _make_fused_conv_pool_kernel(n_hidden, H, W, C)
    return pl.pallas_call(
        kernel,
        grid=(N,),
        out_shape=jax.ShapeDtypeStruct((N, Hh, Wh, C), jnp.float32),
        in_specs=in_specs,
        out_specs=pl.BlockSpec((1, Hh, Wh, C), lambda n: (n, 0, 0, 0)),
        scratch_shapes=[pltpu.VMEM((H + 2, W + 2, C), jnp.float32),
                        pltpu.VMEM((H + 2, W + 2, C), jnp.float32),
                        pltpu.VMEM((Hh, W, C), jnp.float32)],
        compiler_params=pltpu.CompilerParams(
            dimension_semantics=("parallel",),
            vmem_limit_bytes=32 * 1024 * 1024),
    )(*args)


# -----------------------------------------------------------------------------
# Fused dense head: Flatten -> Linear -> ReLU -> Linear in one kernel.
# -----------------------------------------------------------------------------
def _dense_head_kernel(x_ref, w1_ref, b1_ref, w2_ref, b2_ref, o_ref):
    h = jax.lax.dot_general(x_ref[...], w1_ref[...],
                            dimension_numbers=(((1,), (0,)), ((), ())),
                            preferred_element_type=jnp.float32) + b1_ref[...]
    h = jnp.maximum(h, 0.0)
    o_ref[...] = (jax.lax.dot_general(h, w2_ref[...],
                                      dimension_numbers=(((1,), (0,)), ((), ())),
                                      preferred_element_type=jnp.float32)
                  + b2_ref[...]).astype(o_ref.dtype)


def dense_head(x_flat, fc1_w_t, fc1_b, fc2_w_t, fc2_b):
    """x_flat: (N, F); fc1_w_t: (F, hidden); fc2_w_t: (hidden, num_classes)."""
    N, F = x_flat.shape
    hidden = fc1_w_t.shape[1]
    ncls = fc2_w_t.shape[1]
    return pl.pallas_call(
        _dense_head_kernel,
        out_shape=jax.ShapeDtypeStruct((N, ncls), jnp.float32),
        in_specs=[
            pl.BlockSpec((N, F), lambda: (0, 0)),
            pl.BlockSpec((F, hidden), lambda: (0, 0)),
            pl.BlockSpec((1, hidden), lambda: (0, 0)),
            pl.BlockSpec((hidden, ncls), lambda: (0, 0)),
            pl.BlockSpec((1, ncls), lambda: (0, 0)),
        ],
        out_specs=pl.BlockSpec((N, ncls), lambda: (0, 0)),
        compiler_params=pltpu.CompilerParams(vmem_limit_bytes=32 * 1024 * 1024),
    )(x_flat, fc1_w_t, fc1_b, fc2_w_t, fc2_b)


# -----------------------------------------------------------------------------
# One-time parameter re-layout (hoisted out of the per-forward path).
# -----------------------------------------------------------------------------
def prepare_params(params, H, W):
    convs = params["convs"]
    w1, b1 = convs[0]
    C = w1.shape[0]
    conv1_w = jnp.transpose(w1, (2, 3, 1, 0)).reshape(9, C).astype(jnp.float32)
    conv1_b = b1.reshape(1, C).astype(jnp.float32)
    convs_w, convs_b = [], []
    for (w, b) in convs[1:]:
        convs_w.append(jnp.transpose(w, (2, 3, 1, 0)).reshape(9, C, C).astype(jnp.float32))
        convs_b.append(b.reshape(1, C).astype(jnp.float32))

    Hh, Wh = H // 2, W // 2
    fc1_w, fc1_b = params["fc1_w"], params["fc1_b"]
    fc2_w, fc2_b = params["fc2_w"], params["fc2_b"]
    hidden = fc1_w.shape[0]
    ncls = fc2_w.shape[0]
    # Torch flattens pooled activations in (c, h, w) order; our features are (h, w, c).
    fc1_w_t = (fc1_w.reshape(hidden, C, Hh, Wh)
               .transpose(0, 2, 3, 1)
               .reshape(hidden, Hh * Wh * C)).T.astype(jnp.float32)
    fc2_w_t = fc2_w.T.astype(jnp.float32)
    return {"conv1_w": conv1_w, "conv1_b": conv1_b,
            "convs_w": convs_w, "convs_b": convs_b,
            "fc1_w_t": fc1_w_t, "fc1_b": fc1_b.reshape(1, hidden).astype(jnp.float32),
            "fc2_w_t": fc2_w_t, "fc2_b": fc2_b.reshape(1, ncls).astype(jnp.float32)}


# -----------------------------------------------------------------------------
# Full forward pass (matches PyTorch CNN.forward semantics).
# -----------------------------------------------------------------------------
def cnn_forward(x_nchw, prep):
    """x_nchw: (N, 1, H, W) like PyTorch.  Returns (N, num_classes) logits."""
    N, _, H, W = x_nchw.shape
    # im2col of the single input channel (boundary op, tiny): channel t = dy*3 + dx
    # holds the pad-1 input shifted so tap (dy, dx) becomes a per-pixel product.
    x = x_nchw[:, 0, :, :].astype(jnp.float32)
    xp = jnp.pad(x, ((0, 0), (1, 1), (1, 1)))
    x9 = jnp.stack([xp[:, dy:dy + H, dx:dx + W]
                    for dy in range(3) for dx in range(3)], axis=-1)   # (N, H, W, 9)

    feat = fused_conv_pool(x9, prep["conv1_w"], prep["conv1_b"],
                           prep["convs_w"], prep["convs_b"])           # (N, H/2, W/2, C)
    n, Hh, Wh, C = feat.shape
    x_flat = feat.reshape(n, Hh * Wh * C)                              # free reshape, (h, w, c)
    return dense_head(x_flat, prep["fc1_w_t"], prep["fc1_b"],
                      prep["fc2_w_t"], prep["fc2_b"])


# -----------------------------------------------------------------------------
# Plain-JAX reference and parameter construction.
# -----------------------------------------------------------------------------
def _reference_cnn(x_nchw, params):
    y = x_nchw.astype(jnp.float32)
    for (w, b) in params["convs"]:
        y = jax.lax.conv_general_dilated(
            y, w, window_strides=(1, 1), padding=[(1, 1), (1, 1)],
            dimension_numbers=("NCHW", "OIHW", "NCHW"),
            precision=jax.lax.Precision.HIGHEST)
        y = jnp.maximum(y + b[None, :, None, None], 0.0)
    y = jax.lax.reduce_window(y, -jnp.inf, jax.lax.max,
                              window_dimensions=(1, 1, 2, 2),
                              window_strides=(1, 1, 2, 2), padding="VALID")
    N = y.shape[0]
    y = y.reshape(N, -1)                            # torch Flatten on NCHW
    y = jnp.maximum(jnp.dot(y, params["fc1_w"].T,
                            precision=jax.lax.Precision.HIGHEST) + params["fc1_b"], 0.0)
    return jnp.dot(y, params["fc2_w"].T,
                   precision=jax.lax.Precision.HIGHEST) + params["fc2_b"]


def init_params(key, *, hidden, num_blocks, num_classes, H, W):
    n_conv = 2 * (num_blocks + 1)
    keys = jax.random.split(key, 2 * n_conv + 4)
    convs = []
    in_c, ki = 1, 0
    for _ in range(num_blocks + 1):          # ConvBlock(1, hidden) then ConvBlock(hidden, hidden)*num_blocks
        for _ in range(2):                   # two Conv2d(.,.,3,pad=1) per block
            fan_in = in_c * 9
            bound = 1.0 / (fan_in ** 0.5)
            w = jax.random.uniform(keys[ki], (hidden, in_c, 3, 3), jnp.float32, -bound, bound); ki += 1
            b = jax.random.uniform(keys[ki], (hidden,), jnp.float32, -bound, bound); ki += 1
            convs.append((w, b))
            in_c = hidden
    F = (H // 2) * (W // 2) * hidden
    bound = 1.0 / (F ** 0.5)
    fc1_w = jax.random.uniform(keys[ki], (hidden, F), jnp.float32, -bound, bound); ki += 1
    fc1_b = jax.random.uniform(keys[ki], (hidden,), jnp.float32, -bound, bound); ki += 1
    bound = 1.0 / (hidden ** 0.5)
    fc2_w = jax.random.uniform(keys[ki], (num_classes, hidden), jnp.float32, -bound, bound); ki += 1
    fc2_b = jax.random.uniform(keys[ki], (num_classes,), jnp.float32, -bound, bound); ki += 1
    return {"convs": convs, "fc1_w": fc1_w, "fc1_b": fc1_b, "fc2_w": fc2_w, "fc2_b": fc2_b}


if __name__ == "__main__":
    config = {"hidden": 32, "num_blocks": 1, "shape": (16, 16), "num_classes": 10}
    N = 2
    H, W = config["shape"]

    key = jax.random.PRNGKey(0)
    kp, kx = jax.random.split(key)
    params = init_params(kp, hidden=config["hidden"], num_blocks=config["num_blocks"],
                         num_classes=config["num_classes"], H=H, W=W)
    x = jax.random.normal(kx, (N, 1, H, W), jnp.float32)

    prep = prepare_params(params, H, W)              # one-time weight re-layout
    forward = jax.jit(cnn_forward)
    out = jax.block_until_ready(forward(x, prep))

    ref = _reference_cnn(x, params)
    assert out.shape == (N, config["num_classes"])
    max_err = float(jnp.max(jnp.abs(out - ref)))
    assert jnp.allclose(out, ref, atol=5e-3, rtol=5e-3), f"max abs err {max_err}"

    print("KERNEL_OK")
</pallas_src>

<mosaic_0001>
module attributes {stable_mosaic.version = 11 : i64} {
  func.func @kernel(%arg0: i32, %arg1: memref<1x16x16x9xf32, #tpu.memory_space<vmem>>, %arg2: memref<9x32xf32, #tpu.memory_space<vmem>>, %arg3: memref<1x32xf32, #tpu.memory_space<vmem>>, %arg4: memref<9x32x32xf32, #tpu.memory_space<vmem>>, %arg5: memref<1x32xf32, #tpu.memory_space<vmem>>, %arg6: memref<9x32x32xf32, #tpu.memory_space<vmem>>, %arg7: memref<1x32xf32, #tpu.memory_space<vmem>>, %arg8: memref<9x32x32xf32, #tpu.memory_space<vmem>>, %arg9: memref<1x32xf32, #tpu.memory_space<vmem>>, %arg10: memref<1x8x8x32xf32, #tpu.memory_space<vmem>>, %arg11: memref<18x18x32xf32, #tpu.memory_space<vmem>>, %arg12: memref<18x18x32xf32, #tpu.memory_space<vmem>>, %arg13: memref<8x16x32xf32, #tpu.memory_space<vmem>>) attributes {dimension_semantics = [#tpu.dimension_semantics<parallel>], iteration_bounds = array<i64: 2>, scalar_prefetch = 0 : i64, scratch_operands = 3 : i64, tpu.core_type = #tpu.core_type<tc>, window_params = [{transform_indices = @transform_0, window_bounds = array<i64: 1, 16, 16, 9>}, {pipeline_mode = #tpu.pipeline_mode<synchronous>, transform_indices = @transform_1, window_bounds = array<i64: 9, 32>}, {pipeline_mode = #tpu.pipeline_mode<synchronous>, transform_indices = @transform_2, window_bounds = array<i64: 1, 32>}, {pipeline_mode = #tpu.pipeline_mode<synchronous>, transform_indices = @transform_3, window_bounds = array<i64: 9, 32, 32>}, {pipeline_mode = #tpu.pipeline_mode<synchronous>, transform_indices = @transform_4, window_bounds = array<i64: 1, 32>}, {pipeline_mode = #tpu.pipeline_mode<synchronous>, transform_indices = @transform_5, window_bounds = array<i64: 9, 32, 32>}, {pipeline_mode = #tpu.pipeline_mode<synchronous>, transform_indices = @transform_6, window_bounds = array<i64: 1, 32>}, {pipeline_mode = #tpu.pipeline_mode<synchronous>, transform_indices = @transform_7, window_bounds = array<i64: 9, 32, 32>}, {pipeline_mode = #tpu.pipeline_mode<synchronous>, transform_indices = @transform_8, window_bounds = array<i64: 1, 32>}, {transform_indices = @transform_9, window_bounds = array<i64: 1, 8, 8, 32>}]} {
    %cst = arith.constant 0.000000e+00 : f32
    %0 = vector.broadcast %cst : f32 to vector<1x18x32xf32>
    %cst_0 = arith.constant 0.000000e+00 : f32
    %1 = vector.broadcast %cst_0 : f32 to vector<18x1x32xf32>
    %c0 = arith.constant 0 : index
    %c0_1 = arith.constant 0 : index
    %c0_2 = arith.constant 0 : index
    %2 = vector.load %arg11[%c0, %c0_1, %c0_2] : memref<18x18x32xf32, #tpu.memory_space<vmem>>, vector<1x18x32xf32>
    tpu.vector_store %arg11[%c0, %c0_1, %c0_2], %0 {strides = array<i32>} : memref<18x18x32xf32, #tpu.memory_space<vmem>>, vector<1x18x32xf32>,
    %c17 = arith.constant 17 : index
    %c0_3 = arith.constant 0 : index
    %c0_4 = arith.constant 0 : index
    %3 = vector.load %arg11[%c17, %c0_3, %c0_4] : memref<18x18x32xf32, #tpu.memory_space<vmem>>, vector<1x18x32xf32>
    tpu.vector_store %arg11[%c17, %c0_3, %c0_4], %0 {strides = array<i32>} : memref<18x18x32xf32, #tpu.memory_space<vmem>>, vector<1x18x32xf32>,
    %c0_5 = arith.constant 0 : index
    %c0_6 = arith.constant 0 : index
    %c0_7 = arith.constant 0 : index
    %4 = vector.load %arg11[%c0_5, %c0_6, %c0_7] : memref<18x18x32xf32, #tpu.memory_space<vmem>>, vector<18x1x32xf32>
    tpu.vector_store %arg11[%c0_5, %c0_6, %c0_7], %1 {strides = array<i32>} : memref<18x18x32xf32, #tpu.memory_space<vmem>>, vector<18x1x32xf32>,
    %c0_8 = arith.constant 0 : index
    %c17_9 = arith.constant 17 : index
    %c0_10 = arith.constant 0 : index
    %5 = vector.load %arg11[%c0_8, %c17_9, %c0_10] : memref<18x18x32xf32, #tpu.memory_space<vmem>>, vector<18x1x32xf32>
    tpu.vector_store %arg11[%c0_8, %c17_9, %c0_10], %1 {strides = array<i32>} : memref<18x18x32xf32, #tpu.memory_space<vmem>>, vector<18x1x32xf32>,
    %cst_11 = arith.constant 0.000000e+00 : f32
    %6 = vector.broadcast %cst_11 : f32 to vector<1x18x32xf32>
    %cst_12 = arith.constant 0.000000e+00 : f32
    %7 = vector.broadcast %cst_12 : f32 to vector<18x1x32xf32>
    %c0_13 = arith.constant 0 : index
    %c0_14 = arith.constant 0 : index
    %c0_15 = arith.constant 0 : index
    %8 = vector.load %arg12[%c0_13, %c0_14, %c0_15] : memref<18x18x32xf32, #tpu.memory_space<vmem>>, vector<1x18x32xf32>
    tpu.vector_store %arg12[%c0_13, %c0_14, %c0_15], %6 {strides = array<i32>} : memref<18x18x32xf32, #tpu.memory_space<vmem>>, vector<1x18x32xf32>,
    %c17_16 = arith.constant 17 : index
    %c0_17 = arith.constant 0 : index
    %c0_18 = arith.constant 0 : index
    %9 = vector.load %arg12[%c17_16, %c0_17, %c0_18] : memref<18x18x32xf32, #tpu.memory_space<vmem>>, vector<1x18x32xf32>
    tpu.vector_store %arg12[%c17_16, %c0_17, %c0_18], %6 {strides = array<i32>} : memref<18x18x32xf32, #tpu.memory_space<vmem>>, vector<1x18x32xf32>,
    %c0_19 = arith.constant 0 : index
    %c0_20 = arith.constant 0 : index
    %c0_21 = arith.constant 0 : index
    %10 = vector.load %arg12[%c0_19, %c0_20, %c0_21] : memref<18x18x32xf32, #tpu.memory_space<vmem>>, vector<18x1x32xf32>
    tpu.vector_store %arg12[%c0_19, %c0_20, %c0_21], %7 {strides = array<i32>} : memref<18x18x32xf32, #tpu.memory_space<vmem>>, vector<18x1x32xf32>,
    %c0_22 = arith.constant 0 : index
    %c17_23 = arith.constant 17 : index
    %c0_24 = arith.constant 0 : index
    %11 = vector.load %arg12[%c0_22, %c17_23, %c0_24] : memref<18x18x32xf32, #tpu.memory_space<vmem>>, vector<18x1x32xf32>
    tpu.vector_store %arg12[%c0_22, %c17_23, %c0_24], %7 {strides = array<i32>} : memref<18x18x32xf32, #tpu.memory_space<vmem>>, vector<18x1x32xf32>,
    %c0_25 = arith.constant 0 : index
    %c0_26 = arith.constant 0 : index
    %c0_27 = arith.constant 0 : index
    %c0_28 = arith.constant 0 : index
    %12 = vector.load %arg1[%c0_25, %c0_26, %c0_27, %c0_28] : memref<1x16x16x9xf32, #tpu.memory_space<vmem>>, vector<1x16x16x9xf32>
    %13 = vector.shape_cast %12 : vector<1x16x16x9xf32> to vector<16x16x9xf32>
    %c0_29 = arith.constant 0 : index
    %c0_30 = arith.constant 0 : index
    %14 = vector.load %arg2[%c0_29, %c0_30] : memref<9x32xf32, #tpu.memory_space<vmem>>, vector<9x32xf32>
    %cst_31 = arith.constant dense<0.000000e+00> : vector<16x16x32xf32>
    %15 = tpu.matmul %13, %14, %cst_31 {dimension_numbers = #tpu.dot_dimension_numbers<[2], [0], [0, 1], [1], [0, 0, 0, 1, 1, 1], [], []>} : vector<16x16x9xf32>, vector<9x32xf32>, vector<16x16x32xf32> -> vector<16x16x32xf32>
    %c0_32 = arith.constant 0 : index
    %c0_33 = arith.constant 0 : index
    %16 = vector.load %arg3[%c0_32, %c0_33] : memref<1x32xf32, #tpu.memory_space<vmem>>, vector<1x32xf32>
    %17 = vector.shape_cast %16 : vector<1x32xf32> to vector<1x1x32xf32>
    %18 = vector.broadcast %17 : vector<1x1x32xf32> to vector<16x16x32xf32>
    %19 = arith.addf %15, %18 : vector<16x16x32xf32>
    %cst_34 = arith.constant 0.000000e+00 : f32
    %20 = vector.broadcast %cst_34 : f32 to vector<16x16x32xf32>
    %21 = arith.maximumf %19, %20 : vector<16x16x32xf32>
    %c1 = arith.constant 1 : index
    %c1_35 = arith.constant 1 : index
    %c0_36 = arith.constant 0 : index
    %22 = vector.load %arg11[%c1, %c1_35, %c0_36] : memref<18x18x32xf32, #tpu.memory_space<vmem>>, vector<16x16x32xf32>
    tpu.vector_store %arg11[%c1, %c1_35, %c0_36], %21 {strides = array<i32>} : memref<18x18x32xf32, #tpu.memory_space<vmem>>, vector<16x16x32xf32>,
    %c0_37 = arith.constant 0 : index
    %c0_38 = arith.constant 0 : index
    %c0_39 = arith.constant 0 : index
    %23 = vector.load %arg11[%c0_37, %c0_38, %c0_39] : memref<18x18x32xf32, #tpu.memory_space<vmem>>, vector<16x16x32xf32>
    %c0_40 = arith.constant 0 : index
    %c0_41 = arith.constant 0 : index
    %c0_42 = arith.constant 0 : index
    %24 = vector.load %arg4[%c0_40, %c0_41, %c0_42] : memref<9x32x32xf32, #tpu.memory_space<vmem>>, vector<1x32x32xf32>
    %25 = vector.shape_cast %24 : vector<1x32x32xf32> to vector<32x32xf32>
    %cst_43 = arith.constant dense<0.000000e+00> : vector<16x16x32xf32>
    %26 = tpu.matmul %23, %25, %cst_43 {dimension_numbers = #tpu.dot_dimension_numbers<[2], [0], [0, 1], [1], [0, 0, 0, 1, 1, 1], [], []>} : vector<16x16x32xf32>, vector<32x32xf32>, vector<16x16x32xf32> -> vector<16x16x32xf32>
    %c0_44 = arith.constant 0 : index
    %c1_45 = arith.constant 1 : index
    %c0_46 = arith.constant 0 : index
    %27 = vector.load %arg11[%c0_44, %c1_45, %c0_46] : memref<18x18x32xf32, #tpu.memory_space<vmem>>, vector<16x16x32xf32>
    %c1_47 = arith.constant 1 : index
    %c0_48 = arith.constant 0 : index
    %c0_49 = arith.constant 0 : index
    %28 = vector.load %arg4[%c1_47, %c0_48, %c0_49] : memref<9x32x32xf32, #tpu.memory_space<vmem>>, vector<1x32x32xf32>
    %29 = vector.shape_cast %28 : vector<1x32x32xf32> to vector<32x32xf32>
    %cst_50 = arith.constant dense<0.000000e+00> : vector<16x16x32xf32>
    %30 = tpu.matmul %27, %29, %cst_50 {dimension_numbers = #tpu.dot_dimension_numbers<[2], [0], [0, 1], [1], [0, 0, 0, 1, 1, 1], [], []>} : vector<16x16x32xf32>, vector<32x32xf32>, vector<16x16x32xf32> -> vector<16x16x32xf32>
    %31 = arith.addf %26, %30 : vector<16x16x32xf32>
    %c0_51 = arith.constant 0 : index
    %c2 = arith.constant 2 : index
    %c0_52 = arith.constant 0 : index
    %32 = vector.load %arg11[%c0_51, %c2, %c0_52] : memref<18x18x32xf32, #tpu.memory_space<vmem>>, vector<16x16x32xf32>
    %c2_53 = arith.constant 2 : index
    %c0_54 = arith.constant 0 : index
    %c0_55 = arith.constant 0 : index
    %33 = vector.load %arg4[%c2_53, %c0_54, %c0_55] : memref<9x32x32xf32, #tpu.memory_space<vmem>>, vector<1x32x32xf32>
    %34 = vector.shape_cast %33 : vector<1x32x32xf32> to vector<32x32xf32>
    %cst_56 = arith.constant dense<0.000000e+00> : vector<16x16x32xf32>
    %35 = tpu.matmul %32, %34, %cst_56 {dimension_numbers = #tpu.dot_dimension_numbers<[2], [0], [0, 1], [1], [0, 0, 0, 1, 1, 1], [], []>} : vector<16x16x32xf32>, vector<32x32xf32>, vector<16x16x32xf32> -> vector<16x16x32xf32>
    %36 = arith.addf %31, %35 : vector<16x16x32xf32>
    %c1_57 = arith.constant 1 : index
    %c0_58 = arith.constant 0 : index
    %c0_59 = arith.constant 0 : index
    %37 = vector.load %arg11[%c1_57, %c0_58, %c0_59] : memref<18x18x32xf32, #tpu.memory_space<vmem>>, vector<16x16x32xf32>
    %c3 = arith.constant 3 : index
    %c0_60 = arith.constant 0 : index
    %c0_61 = arith.constant 0 : index
    %38 = vector.load %arg4[%c3, %c0_60, %c0_61] : memref<9x32x32xf32, #tpu.memory_space<vmem>>, vector<1x32x32xf32>
    %39 = vector.shape_cast %38 : vector<1x32x32xf32> to vector<32x32xf32>
    %cst_62 = arith.constant dense<0.000000e+00> : vector<16x16x32xf32>
    %40 = tpu.matmul %37, %39, %cst_62 {dimension_numbers = #tpu.dot_dimension_numbers<[2], [0], [0, 1], [1], [0, 0, 0, 1, 1, 1], [], []>} : vector<16x16x32xf32>, vector<32x32xf32>, vector<16x16x32xf32> -> vector<16x16x32xf32>
    %41 = arith.addf %36, %40 : vector<16x16x32xf32>
    %c1_63 = arith.constant 1 : index
    %c1_64 = arith.constant 1 : index
    %c0_65 = arith.constant 0 : index
    %42 = vector.load %arg11[%c1_63, %c1_64, %c0_65] : memref<18x18x32xf32, #tpu.memory_space<vmem>>, vector<16x16x32xf32>
    %c4 = arith.constant 4 : index
    %c0_66 = arith.constant 0 : index
    %c0_67 = arith.constant 0 : index
    %43 = vector.load %arg4[%c4, %c0_66, %c0_67] : memref<9x32x32xf32, #tpu.memory_space<vmem>>, vector<1x32x32xf32>
    %44 = vector.shape_cast %43 : vector<1x32x32xf32> to vector<32x32xf32>
    %cst_68 = arith.constant dense<0.000000e+00> : vector<16x16x32xf32>
    %45 = tpu.matmul %42, %44, %cst_68 {dimension_numbers = #tpu.dot_dimension_numbers<[2], [0], [0, 1], [1], [0, 0, 0, 1, 1, 1], [], []>} : vector<16x16x32xf32>, vector<32x32xf32>, vector<16x16x32xf32> -> vector<16x16x32xf32>
    %46 = arith.addf %41, %45 : vector<16x16x32xf32>
    %c1_69 = arith.constant 1 : index
    %c2_70 = arith.constant 2 : index
    %c0_71 = arith.constant 0 : index
    %47 = vector.load %arg11[%c1_69, %c2_70, %c0_71] : memref<18x18x32xf32, #tpu.memory_space<vmem>>, vector<16x16x32xf32>
    %c5 = arith.constant 5 : index
    %c0_72 = arith.constant 0 : index
    %c0_73 = arith.constant 0 : index
    %48 = vector.load %arg4[%c5, %c0_72, %c0_73] : memref<9x32x32xf32, #tpu.memory_space<vmem>>, vector<1x32x32xf32>
    %49 = vector.shape_cast %48 : vector<1x32x32xf32> to vector<32x32xf32>
    %cst_74 = arith.constant dense<0.000000e+00> : vector<16x16x32xf32>
    %50 = tpu.matmul %47, %49, %cst_74 {dimension_numbers = #tpu.dot_dimension_numbers<[2], [0], [0, 1], [1], [0, 0, 0, 1, 1, 1], [], []>} : vector<16x16x32xf32>, vector<32x32xf32>, vector<16x16x32xf32> -> vector<16x16x32xf32>
    %51 = arith.addf %46, %50 : vector<16x16x32xf32>
    %c2_75 = arith.constant 2 : index
    %c0_76 = arith.constant 0 : index
    %c0_77 = arith.constant 0 : index
    %52 = vector.load %arg11[%c2_75, %c0_76, %c0_77] : memref<18x18x32xf32, #tpu.memory_space<vmem>>, vector<16x16x32xf32>
    %c6 = arith.constant 6 : index
    %c0_78 = arith.constant 0 : index
    %c0_79 = arith.constant 0 : index
    %53 = vector.load %arg4[%c6, %c0_78, %c0_79] : memref<9x32x32xf32, #tpu.memory_space<vmem>>, vector<1x32x32xf32>
    %54 = vector.shape_cast %53 : vector<1x32x32xf32> to vector<32x32xf32>
    %cst_80 = arith.constant dense<0.000000e+00> : vector<16x16x32xf32>
    %55 = tpu.matmul %52, %54, %cst_80 {dimension_numbers = #tpu.dot_dimension_numbers<[2], [0], [0, 1], [1], [0, 0, 0, 1, 1, 1], [], []>} : vector<16x16x32xf32>, vector<32x32xf32>, vector<16x16x32xf32> -> vector<16x16x32xf32>
    %56 = arith.addf %51, %55 : vector<16x16x32xf32>
    %c2_81 = arith.constant 2 : index
    %c1_82 = arith.constant 1 : index
    %c0_83 = arith.constant 0 : index
    %57 = vector.load %arg11[%c2_81, %c1_82, %c0_83] : memref<18x18x32xf32, #tpu.memory_space<vmem>>, vector<16x16x32xf32>
    %c7 = arith.constant 7 : index
    %c0_84 = arith.constant 0 : index
    %c0_85 = arith.constant 0 : index
    %58 = vector.load %arg4[%c7, %c0_84, %c0_85] : memref<9x32x32xf32, #tpu.memory_space<vmem>>, vector<1x32x32xf32>
    %59 = vector.shape_cast %58 : vector<1x32x32xf32> to vector<32x32xf32>
    %cst_86 = arith.constant dense<0.000000e+00> : vector<16x16x32xf32>
    %60 = tpu.matmul %57, %59, %cst_86 {dimension_numbers = #tpu.dot_dimension_numbers<[2], [0], [0, 1], [1], [0, 0, 0, 1, 1, 1], [], []>} : vector<16x16x32xf32>, vector<32x32xf32>, vector<16x16x32xf32> -> vector<16x16x32xf32>
    %61 = arith.addf %56, %60 : vector<16x16x32xf32>
    %c2_87 = arith.constant 2 : index
    %c2_88 = arith.constant 2 : index
    %c0_89 = arith.constant 0 : index
    %62 = vector.load %arg11[%c2_87, %c2_88, %c0_89] : memref<18x18x32xf32, #tpu.memory_space<vmem>>, vector<16x16x32xf32>
    %c8 = arith.constant 8 : index
    %c0_90 = arith.constant 0 : index
    %c0_91 = arith.constant 0 : index
    %63 = vector.load %arg4[%c8, %c0_90, %c0_91] : memref<9x32x32xf32, #tpu.memory_space<vmem>>, vector<1x32x32xf32>
    %64 = vector.shape_cast %63 : vector<1x32x32xf32> to vector<32x32xf32>
    %cst_92 = arith.constant dense<0.000000e+00> : vector<16x16x32xf32>
    %65 = tpu.matmul %62, %64, %cst_92 {dimension_numbers = #tpu.dot_dimension_numbers<[2], [0], [0, 1], [1], [0, 0, 0, 1, 1, 1], [], []>} : vector<16x16x32xf32>, vector<32x32xf32>, vector<16x16x32xf32> -> vector<16x16x32xf32>
    %66 = arith.addf %61, %65 : vector<16x16x32xf32>
    %c0_93 = arith.constant 0 : index
    %c0_94 = arith.constant 0 : index
    %67 = vector.load %arg5[%c0_93, %c0_94] : memref<1x32xf32, #tpu.memory_space<vmem>>, vector<1x32xf32>
    %68 = vector.shape_cast %67 : vector<1x32xf32> to vector<1x1x32xf32>
    %69 = vector.broadcast %68 : vector<1x1x32xf32> to vector<16x16x32xf32>
    %70 = arith.addf %66, %69 : vector<16x16x32xf32>
    %cst_95 = arith.constant 0.000000e+00 : f32
    %71 = vector.broadcast %cst_95 : f32 to vector<16x16x32xf32>
    %72 = arith.maximumf %70, %71 : vector<16x16x32xf32>
    %c1_96 = arith.constant 1 : index
    %c1_97 = arith.constant 1 : index
    %c0_98 = arith.constant 0 : index
    %73 = vector.load %arg12[%c1_96, %c1_97, %c0_98] : memref<18x18x32xf32, #tpu.memory_space<vmem>>, vector<16x16x32xf32>
    tpu.vector_store %arg12[%c1_96, %c1_97, %c0_98], %72 {strides = array<i32>} : memref<18x18x32xf32, #tpu.memory_space<vmem>>, vector<16x16x32xf32>,
    %c0_99 = arith.constant 0 : index
    %c0_100 = arith.constant 0 : index
    %c0_101 = arith.constant 0 : index
    %74 = vector.load %arg12[%c0_99, %c0_100, %c0_101] : memref<18x18x32xf32, #tpu.memory_space<vmem>>, vector<16x16x32xf32>
    %c0_102 = arith.constant 0 : index
    %c0_103 = arith.constant 0 : index
    %c0_104 = arith.constant 0 : index
    %75 = vector.load %arg6[%c0_102, %c0_103, %c0_104] : memref<9x32x32xf32, #tpu.memory_space<vmem>>, vector<1x32x32xf32>
    %76 = vector.shape_cast %75 : vector<1x32x32xf32> to vector<32x32xf32>
    %cst_105 = arith.constant dense<0.000000e+00> : vector<16x16x32xf32>
    %77 = tpu.matmul %74, %76, %cst_105 {dimension_numbers = #tpu.dot_dimension_numbers<[2], [0], [0, 1], [1], [0, 0, 0, 1, 1, 1], [], []>} : vector<16x16x32xf32>, vector<32x32xf32>, vector<16x16x32xf32> -> vector<16x16x32xf32>
    %c0_106 = arith.constant 0 : index
    %c1_107 = arith.constant 1 : index
    %c0_108 = arith.constant 0 : index
    %78 = vector.load %arg12[%c0_106, %c1_107, %c0_108] : memref<18x18x32xf32, #tpu.memory_space<vmem>>, vector<16x16x32xf32>
    %c1_109 = arith.constant 1 : index
    %c0_110 = arith.constant 0 : index
    %c0_111 = arith.constant 0 : index
    %79 = vector.load %arg6[%c1_109, %c0_110, %c0_111] : memref<9x32x32xf32, #tpu.memory_space<vmem>>, vector<1x32x32xf32>
    %80 = vector.shape_cast %79 : vector<1x32x32xf32> to vector<32x32xf32>
    %cst_112 = arith.constant dense<0.000000e+00> : vector<16x16x32xf32>
    %81 = tpu.matmul %78, %80, %cst_112 {dimension_numbers = #tpu.dot_dimension_numbers<[2], [0], [0, 1], [1], [0, 0, 0, 1, 1, 1], [], []>} : vector<16x16x32xf32>, vector<32x32xf32>, vector<16x16x32xf32> -> vector<16x16x32xf32>
    %82 = arith.addf %77, %81 : vector<16x16x32xf32>
    %c0_113 = arith.constant 0 : index
    %c2_114 = arith.constant 2 : index
    %c0_115 = arith.constant 0 : index
    %83 = vector.load %arg12[%c0_113, %c2_114, %c0_115] : memref<18x18x32xf32, #tpu.memory_space<vmem>>, vector<16x16x32xf32>
    %c2_116 = arith.constant 2 : index
    %c0_117 = arith.constant 0 : index
    %c0_118 = arith.constant 0 : index
    %84 = vector.load %arg6[%c2_116, %c0_117, %c0_118] : memref<9x32x32xf32, #tpu.memory_space<vmem>>, vector<1x32x32xf32>
    %85 = vector.shape_cast %84 : vector<1x32x32xf32> to vector<32x32xf32>
    %cst_119 = arith.constant dense<0.000000e+00> : vector<16x16x32xf32>
    %86 = tpu.matmul %83, %85, %cst_119 {dimension_numbers = #tpu.dot_dimension_numbers<[2], [0], [0, 1], [1], [0, 0, 0, 1, 1, 1], [], []>} : vector<16x16x32xf32>, vector<32x32xf32>, vector<16x16x32xf32> -> vector<16x16x32xf32>
    %87 = arith.addf %82, %86 : vector<16x16x32xf32>
    %c1_120 = arith.constant 1 : index
    %c0_121 = arith.constant 0 : index
    %c0_122 = arith.constant 0 : index
    %88 = vector.load %arg12[%c1_120, %c0_121, %c0_122] : memref<18x18x32xf32, #tpu.memory_space<vmem>>, vector<16x16x32xf32>
    %c3_123 = arith.constant 3 : index
    %c0_124 = arith.constant 0 : index
    %c0_125 = arith.constant 0 : index
    %89 = vector.load %arg6[%c3_123, %c0_124, %c0_125] : memref<9x32x32xf32, #tpu.memory_space<vmem>>, vector<1x32x32xf32>
    %90 = vector.shape_cast %89 : vector<1x32x32xf32> to vector<32x32xf32>
    %cst_126 = arith.constant dense<0.000000e+00> : vector<16x16x32xf32>
    %91 = tpu.matmul %88, %90, %cst_126 {dimension_numbers = #tpu.dot_dimension_numbers<[2], [0], [0, 1], [1], [0, 0, 0, 1, 1, 1], [], []>} : vector<16x16x32xf32>, vector<32x32xf32>, vector<16x16x32xf32> -> vector<16x16x32xf32>
    %92 = arith.addf %87, %91 : vector<16x16x32xf32>
    %c1_127 = arith.constant 1 : index
    %c1_128 = arith.constant 1 : index
    %c0_129 = arith.constant 0 : index
    %93 = vector.load %arg12[%c1_127, %c1_128, %c0_129] : memref<18x18x32xf32, #tpu.memory_space<vmem>>, vector<16x16x32xf32>
    %c4_130 = arith.constant 4 : index
    %c0_131 = arith.constant 0 : index
    %c0_132 = arith.constant 0 : index
    %94 = vector.load %arg6[%c4_130, %c0_131, %c0_132] : memref<9x32x32xf32, #tpu.memory_space<vmem>>, vector<1x32x32xf32>
    %95 = vector.shape_cast %94 : vector<1x32x32xf32> to vector<32x32xf32>
    %cst_133 = arith.constant dense<0.000000e+00> : vector<16x16x32xf32>
    %96 = tpu.matmul %93, %95, %cst_133 {dimension_numbers = #tpu.dot_dimension_numbers<[2], [0], [0, 1], [1], [0, 0, 0, 1, 1, 1], [], []>} : vector<16x16x32xf32>, vector<32x32xf32>, vector<16x16x32xf32> -> vector<16x16x32xf32>
    %97 = arith.addf %92, %96 : vector<16x16x32xf32>
    %c1_134 = arith.constant 1 : index
    %c2_135 = arith.constant 2 : index
    %c0_136 = arith.constant 0 : index
    %98 = vector.load %arg12[%c1_134, %c2_135, %c0_136] : memref<18x18x32xf32, #tpu.memory_space<vmem>>, vector<16x16x32xf32>
    %c5_137 = arith.constant 5 : index
    %c0_138 = arith.constant 0 : index
    %c0_139 = arith.constant 0 : index
    %99 = vector.load %arg6[%c5_137, %c0_138, %c0_139] : memref<9x32x32xf32, #tpu.memory_space<vmem>>, vector<1x32x32xf32>
    %100 = vector.shape_cast %99 : vector<1x32x32xf32> to vector<32x32xf32>
    %cst_140 = arith.constant dense<0.000000e+00> : vector<16x16x32xf32>
    %101 = tpu.matmul %98, %100, %cst_140 {dimension_numbers = #tpu.dot_dimension_numbers<[2], [0], [0, 1], [1], [0, 0, 0, 1, 1, 1], [], []>} : vector<16x16x32xf32>, vector<32x32xf32>, vector<16x16x32xf32> -> vector<16x16x32xf32>
    %102 = arith.addf %97, %101 : vector<16x16x32xf32>
    %c2_141 = arith.constant 2 : index
    %c0_142 = arith.constant 0 : index
    %c0_143 = arith.constant 0 : index
    %103 = vector.load %arg12[%c2_141, %c0_142, %c0_143] : memref<18x18x32xf32, #tpu.memory_space<vmem>>, vector<16x16x32xf32>
    %c6_144 = arith.constant 6 : index
    %c0_145 = arith.constant 0 : index
    %c0_146 = arith.constant 0 : index
    %104 = vector.load %arg6[%c6_144, %c0_145, %c0_146] : memref<9x32x32xf32, #tpu.memory_space<vmem>>, vector<1x32x32xf32>
    %105 = vector.shape_cast %104 : vector<1x32x32xf32> to vector<32x32xf32>
    %cst_147 = arith.constant dense<0.000000e+00> : vector<16x16x32xf32>
    %106 = tpu.matmul %103, %105, %cst_147 {dimension_numbers = #tpu.dot_dimension_numbers<[2], [0], [0, 1], [1], [0, 0, 0, 1, 1, 1], [], []>} : vector<16x16x32xf32>, vector<32x32xf32>, vector<16x16x32xf32> -> vector<16x16x32xf32>
    %107 = arith.addf %102, %106 : vector<16x16x32xf32>
    %c2_148 = arith.constant 2 : index
    %c1_149 = arith.constant 1 : index
    %c0_150 = arith.constant 0 : index
    %108 = vector.load %arg12[%c2_148, %c1_149, %c0_150] : memref<18x18x32xf32, #tpu.memory_space<vmem>>, vector<16x16x32xf32>
    %c7_151 = arith.constant 7 : index
    %c0_152 = arith.constant 0 : index
    %c0_153 = arith.constant 0 : index
    %109 = vector.load %arg6[%c7_151, %c0_152, %c0_153] : memref<9x32x32xf32, #tpu.memory_space<vmem>>, vector<1x32x32xf32>
    %110 = vector.shape_cast %109 : vector<1x32x32xf32> to vector<32x32xf32>
    %cst_154 = arith.constant dense<0.000000e+00> : vector<16x16x32xf32>
    %111 = tpu.matmul %108, %110, %cst_154 {dimension_numbers = #tpu.dot_dimension_numbers<[2], [0], [0, 1], [1], [0, 0, 0, 1, 1, 1], [], []>} : vector<16x16x32xf32>, vector<32x32xf32>, vector<16x16x32xf32> -> vector<16x16x32xf32>
    %112 = arith.addf %107, %111 : vector<16x16x32xf32>
    %c2_155 = arith.constant 2 : index
    %c2_156 = arith.constant 2 : index
    %c0_157 = arith.constant 0 : index
    %113 = vector.load %arg12[%c2_155, %c2_156, %c0_157] : memref<18x18x32xf32, #tpu.memory_space<vmem>>, vector<16x16x32xf32>
    %c8_158 = arith.constant 8 : index
    %c0_159 = arith.constant 0 : index
    %c0_160 = arith.constant 0 : index
    %114 = vector.load %arg6[%c8_158, %c0_159, %c0_160] : memref<9x32x32xf32, #tpu.memory_space<vmem>>, vector<1x32x32xf32>
    %115 = vector.shape_cast %114 : vector<1x32x32xf32> to vector<32x32xf32>
    %cst_161 = arith.constant dense<0.000000e+00> : vector<16x16x32xf32>
    %116 = tpu.matmul %113, %115, %cst_161 {dimension_numbers = #tpu.dot_dimension_numbers<[2], [0], [0, 1], [1], [0, 0, 0, 1, 1, 1], [], []>} : vector<16x16x32xf32>, vector<32x32xf32>, vector<16x16x32xf32> -> vector<16x16x32xf32>
    %117 = arith.addf %112, %116 : vector<16x16x32xf32>
    %c0_162 = arith.constant 0 : index
    %c0_163 = arith.constant 0 : index
    %118 = vector.load %arg7[%c0_162, %c0_163] : memref<1x32xf32, #tpu.memory_space<vmem>>, vector<1x32xf32>
    %119 = vector.shape_cast %118 : vector<1x32xf32> to vector<1x1x32xf32>
    %120 = vector.broadcast %119 : vector<1x1x32xf32> to vector<16x16x32xf32>
    %121 = arith.addf %117, %120 : vector<16x16x32xf32>
    %cst_164 = arith.constant 0.000000e+00 : f32
    %122 = vector.broadcast %cst_164 : f32 to vector<16x16x32xf32>
    %123 = arith.maximumf %121, %122 : vector<16x16x32xf32>
    %c1_165 = arith.constant 1 : index
    %c1_166 = arith.constant 1 : index
    %c0_167 = arith.constant 0 : index
    %124 = vector.load %arg11[%c1_165, %c1_166, %c0_167] : memref<18x18x32xf32, #tpu.memory_space<vmem>>, vector<16x16x32xf32>
    tpu.vector_store %arg11[%c1_165, %c1_166, %c0_167], %123 {strides = array<i32>} : memref<18x18x32xf32, #tpu.memory_space<vmem>>, vector<16x16x32xf32>,
    %c0_168 = arith.constant 0 : index
    %c0_169 = arith.constant 0 : index
    %c0_170 = arith.constant 0 : index
    %125 = vector.load %arg11[%c0_168, %c0_169, %c0_170] : memref<18x18x32xf32, #tpu.memory_space<vmem>>, vector<16x16x32xf32>
    %c0_171 = arith.constant 0 : index
    %c0_172 = arith.constant 0 : index
    %c0_173 = arith.constant 0 : index
    %126 = vector.load %arg8[%c0_171, %c0_172, %c0_173] : memref<9x32x32xf32, #tpu.memory_space<vmem>>, vector<1x32x32xf32>
    %127 = vector.shape_cast %126 : vector<1x32x32xf32> to vector<32x32xf32>
    %cst_174 = arith.constant dense<0.000000e+00> : vector<16x16x32xf32>
    %128 = tpu.matmul %125, %127, %cst_174 {dimension_numbers = #tpu.dot_dimension_numbers<[2], [0], [0, 1], [1], [0, 0, 0, 1, 1, 1], [], []>} : vector<16x16x32xf32>, vector<32x32xf32>, vector<16x16x32xf32> -> vector<16x16x32xf32>
    %c0_175 = arith.constant 0 : index
    %c1_176 = arith.constant 1 : index
    %c0_177 = arith.constant 0 : index
    %129 = vector.load %arg11[%c0_175, %c1_176, %c0_177] : memref<18x18x32xf32, #tpu.memory_space<vmem>>, vector<16x16x32xf32>
    %c1_178 = arith.constant 1 : index
    %c0_179 = arith.constant 0 : index
    %c0_180 = arith.constant 0 : index
    %130 = vector.load %arg8[%c1_178, %c0_179, %c0_180] : memref<9x32x32xf32, #tpu.memory_space<vmem>>, vector<1x32x32xf32>
    %131 = vector.shape_cast %130 : vector<1x32x32xf32> to vector<32x32xf32>
    %cst_181 = arith.constant dense<0.000000e+00> : vector<16x16x32xf32>
    %132 = tpu.matmul %129, %131, %cst_181 {dimension_numbers = #tpu.dot_dimension_numbers<[2], [0], [0, 1], [1], [0, 0, 0, 1, 1, 1], [], []>} : vector<16x16x32xf32>, vector<32x32xf32>, vector<16x16x32xf32> -> vector<16x16x32xf32>
    %133 = arith.addf %128, %132 : vector<16x16x32xf32>
    %c0_182 = arith.constant 0 : index
    %c2_183 = arith.constant 2 : index
    %c0_184 = arith.constant 0 : index
    %134 = vector.load %arg11[%c0_182, %c2_183, %c0_184] : memref<18x18x32xf32, #tpu.memory_space<vmem>>, vector<16x16x32xf32>
    %c2_185 = arith.constant 2 : index
    %c0_186 = arith.constant 0 : index
    %c0_187 = arith.constant 0 : index
    %135 = vector.load %arg8[%c2_185, %c0_186, %c0_187] : memref<9x32x32xf32, #tpu.memory_space<vmem>>, vector<1x32x32xf32>
    %136 = vector.shape_cast %135 : vector<1x32x32xf32> to vector<32x32xf32>
    %cst_188 = arith.constant dense<0.000000e+00> : vector<16x16x32xf32>
    %137 = tpu.matmul %134, %136, %cst_188 {dimension_numbers = #tpu.dot_dimension_numbers<[2], [0], [0, 1], [1], [0, 0, 0, 1, 1, 1], [], []>} : vector<16x16x32xf32>, vector<32x32xf32>, vector<16x16x32xf32> -> vector<16x16x32xf32>
    %138 = arith.addf %133, %137 : vector<16x16x32xf32>
    %c1_189 = arith.constant 1 : index
    %c0_190 = arith.constant 0 : index
    %c0_191 = arith.constant 0 : index
    %139 = vector.load %arg11[%c1_189, %c0_190, %c0_191] : memref<18x18x32xf32, #tpu.memory_space<vmem>>, vector<16x16x32xf32>
    %c3_192 = arith.constant 3 : index
    %c0_193 = arith.constant 0 : index
    %c0_194 = arith.constant 0 : index
    %140 = vector.load %arg8[%c3_192, %c0_193, %c0_194] : memref<9x32x32xf32, #tpu.memory_space<vmem>>, vector<1x32x32xf32>
    %141 = vector.shape_cast %140 : vector<1x32x32xf32> to vector<32x32xf32>
    %cst_195 = arith.constant dense<0.000000e+00> : vector<16x16x32xf32>
    %142 = tpu.matmul %139, %141, %cst_195 {dimension_numbers = #tpu.dot_dimension_numbers<[2], [0], [0, 1], [1], [0, 0, 0, 1, 1, 1], [], []>} : vector<16x16x32xf32>, vector<32x32xf32>, vector<16x16x32xf32> -> vector<16x16x32xf32>
    %143 = arith.addf %138, %142 : vector<16x16x32xf32>
    %c1_196 = arith.constant 1 : index
    %c1_197 = arith.constant 1 : index
    %c0_198 = arith.constant 0 : index
    %144 = vector.load %arg11[%c1_196, %c1_197, %c0_198] : memref<18x18x32xf32, #tpu.memory_space<vmem>>, vector<16x16x32xf32>
    %c4_199 = arith.constant 4 : index
    %c0_200 = arith.constant 0 : index
    %c0_201 = arith.constant 0 : index
    %145 = vector.load %arg8[%c4_199, %c0_200, %c0_201] : memref<9x32x32xf32, #tpu.memory_space<vmem>>, vector<1x32x32xf32>
    %146 = vector.shape_cast %145 : vector<1x32x32xf32> to vector<32x32xf32>
    %cst_202 = arith.constant dense<0.000000e+00> : vector<16x16x32xf32>
    %147 = tpu.matmul %144, %146, %cst_202 {dimension_numbers = #tpu.dot_dimension_numbers<[2], [0], [0, 1], [1], [0, 0, 0, 1, 1, 1], [], []>} : vector<16x16x32xf32>, vector<32x32xf32>, vector<16x16x32xf32> -> vector<16x16x32xf32>
    %148 = arith.addf %143, %147 : vector<16x16x32xf32>
    %c1_203 = arith.constant 1 : index
    %c2_204 = arith.constant 2 : index
    %c0_205 = arith.constant 0 : index
    %149 = vector.load %arg11[%c1_203, %c2_204, %c0_205] : memref<18x18x32xf32, #tpu.memory_space<vmem>>, vector<16x16x32xf32>
    %c5_206 = arith.constant 5 : index
    %c0_207 = arith.constant 0 : index
    %c0_208 = arith.constant 0 : index
    %150 = vector.load %arg8[%c5_206, %c0_207, %c0_208] : memref<9x32x32xf32, #tpu.memory_space<vmem>>, vector<1x32x32xf32>
    %151 = vector.shape_cast %150 : vector<1x32x32xf32> to vector<32x32xf32>
    %cst_209 = arith.constant dense<0.000000e+00> : vector<16x16x32xf32>
    %152 = tpu.matmul %149, %151, %cst_209 {dimension_numbers = #tpu.dot_dimension_numbers<[2], [0], [0, 1], [1], [0, 0, 0, 1, 1, 1], [], []>} : vector<16x16x32xf32>, vector<32x32xf32>, vector<16x16x32xf32> -> vector<16x16x32xf32>
    %153 = arith.addf %148, %152 : vector<16x16x32xf32>
    %c2_210 = arith.constant 2 : index
    %c0_211 = arith.constant 0 : index
    %c0_212 = arith.constant 0 : index
    %154 = vector.load %arg11[%c2_210, %c0_211, %c0_212] : memref<18x18x32xf32, #tpu.memory_space<vmem>>, vector<16x16x32xf32>
    %c6_213 = arith.constant 6 : index
    %c0_214 = arith.constant 0 : index
    %c0_215 = arith.constant 0 : index
    %155 = vector.load %arg8[%c6_213, %c0_214, %c0_215] : memref<9x32x32xf32, #tpu.memory_space<vmem>>, vector<1x32x32xf32>
    %156 = vector.shape_cast %155 : vector<1x32x32xf32> to vector<32x32xf32>
    %cst_216 = arith.constant dense<0.000000e+00> : vector<16x16x32xf32>
    %157 = tpu.matmul %154, %156, %cst_216 {dimension_numbers = #tpu.dot_dimension_numbers<[2], [0], [0, 1], [1], [0, 0, 0, 1, 1, 1], [], []>} : vector<16x16x32xf32>, vector<32x32xf32>, vector<16x16x32xf32> -> vector<16x16x32xf32>
    %158 = arith.addf %153, %157 : vector<16x16x32xf32>
    %c2_217 = arith.constant 2 : index
    %c1_218 = arith.constant 1 : index
    %c0_219 = arith.constant 0 : index
    %159 = vector.load %arg11[%c2_217, %c1_218, %c0_219] : memref<18x18x32xf32, #tpu.memory_space<vmem>>, vector<16x16x32xf32>
    %c7_220 = arith.constant 7 : index
    %c0_221 = arith.constant 0 : index
    %c0_222 = arith.constant 0 : index
    %160 = vector.load %arg8[%c7_220, %c0_221, %c0_222] : memref<9x32x32xf32, #tpu.memory_space<vmem>>, vector<1x32x32xf32>
    %161 = vector.shape_cast %160 : vector<1x32x32xf32> to vector<32x32xf32>
    %cst_223 = arith.constant dense<0.000000e+00> : vector<16x16x32xf32>
    %162 = tpu.matmul %159, %161, %cst_223 {dimension_numbers = #tpu.dot_dimension_numbers<[2], [0], [0, 1], [1], [0, 0, 0, 1, 1, 1], [], []>} : vector<16x16x32xf32>, vector<32x32xf32>, vector<16x16x32xf32> -> vector<16x16x32xf32>
    %163 = arith.addf %158, %162 : vector<16x16x32xf32>
    %c2_224 = arith.constant 2 : index
    %c2_225 = arith.constant 2 : index
    %c0_226 = arith.constant 0 : index
    %164 = vector.load %arg11[%c2_224, %c2_225, %c0_226] : memref<18x18x32xf32, #tpu.memory_space<vmem>>, vector<16x16x32xf32>
    %c8_227 = arith.constant 8 : index
    %c0_228 = arith.constant 0 : index
    %c0_229 = arith.constant 0 : index
    %165 = vector.load %arg8[%c8_227, %c0_228, %c0_229] : memref<9x32x32xf32, #tpu.memory_space<vmem>>, vector<1x32x32xf32>
    %166 = vector.shape_cast %165 : vector<1x32x32xf32> to vector<32x32xf32>
    %cst_230 = arith.constant dense<0.000000e+00> : vector<16x16x32xf32>
    %167 = tpu.matmul %164, %166, %cst_230 {dimension_numbers = #tpu.dot_dimension_numbers<[2], [0], [0, 1], [1], [0, 0, 0, 1, 1, 1], [], []>} : vector<16x16x32xf32>, vector<32x32xf32>, vector<16x16x32xf32> -> vector<16x16x32xf32>
    %168 = arith.addf %163, %167 : vector<16x16x32xf32>
    %c0_231 = arith.constant 0 : index
    %c0_232 = arith.constant 0 : index
    %169 = vector.load %arg9[%c0_231, %c0_232] : memref<1x32xf32, #tpu.memory_space<vmem>>, vector<1x32xf32>
    %170 = vector.shape_cast %169 : vector<1x32xf32> to vector<1x1x32xf32>
    %171 = vector.broadcast %170 : vector<1x1x32xf32> to vector<16x16x32xf32>
    %172 = arith.addf %168, %171 : vector<16x16x32xf32>
    %cst_233 = arith.constant 0.000000e+00 : f32
    %173 = vector.broadcast %cst_233 : f32 to vector<16x16x32xf32>
    %174 = arith.maximumf %172, %173 : vector<16x16x32xf32>
    %175 = vector.shape_cast %174 : vector<16x16x32xf32> to vector<8x2x16x32xf32>
    %176 = vector.extract_strided_slice %175 {offsets = [0, 0, 0, 0], sizes = [8, 1, 16, 32], strides = [1, 1, 1, 1]} : vector<8x2x16x32xf32> to vector<8x1x16x32xf32>
    %177 = vector.shape_cast %176 : vector<8x1x16x32xf32> to vector<8x16x32xf32>
    %178 = vector.extract_strided_slice %175 {offsets = [0, 1, 0, 0], sizes = [8, 1, 16, 32], strides = [1, 1, 1, 1]} : vector<8x2x16x32xf32> to vector<8x1x16x32xf32>
    %179 = vector.shape_cast %178 : vector<8x1x16x32xf32> to vector<8x16x32xf32>
    %180 = arith.maximumf %177, %179 : vector<8x16x32xf32>
    %c0_234 = arith.constant 0 : index
    %c0_235 = arith.constant 0 : index
    %c0_236 = arith.constant 0 : index
    %181 = vector.load %arg13[%c0_234, %c0_235, %c0_236] : memref<8x16x32xf32, #tpu.memory_space<vmem>>, vector<8x16x32xf32>
    tpu.vector_store %arg13[%c0_234, %c0_235, %c0_236], %180 {strides = array<i32>} : memref<8x16x32xf32, #tpu.memory_space<vmem>>, vector<8x16x32xf32>,
    %c0_237 = arith.constant 0 : index
    %c0_238 = arith.constant 0 : index
    %c0_239 = arith.constant 0 : index
    %182 = tpu.strided_load %arg13[%c0_237, %c0_238, %c0_239] {strides = array<i32: 1, 2, 1>} : memref<8x16x32xf32, #tpu.memory_space<vmem>>, vector<8x8x32xf32>
    %c0_240 = arith.constant 0 : index
    %c1_241 = arith.constant 1 : index
    %c0_242 = arith.constant 0 : index
    %183 = tpu.strided_load %arg13[%c0_240, %c1_241, %c0_242] {strides = array<i32: 1, 2, 1>} : memref<8x16x32xf32, #tpu.memory_space<vmem>>, vector<8x8x32xf32>
    %184 = arith.maximumf %182, %183 : vector<8x8x32xf32>
    %c0_243 = arith.constant 0 : index
    %c0_244 = arith.constant 0 : index
    %c0_245 = arith.constant 0 : index
    %c0_246 = arith.constant 0 : index
    %185 = vector.load %arg10[%c0_243, %c0_244, %c0_245, %c0_246] : memref<1x8x8x32xf32, #tpu.memory_space<vmem>>, vector<1x8x8x32xf32>
    %186 = vector.shape_cast %185 : vector<1x8x8x32xf32> to vector<8x8x32xf32>
    %187 = vector.shape_cast %184 : vector<8x8x32xf32> to vector<1x8x8x32xf32>
    tpu.vector_store %arg10[%c0_243, %c0_244, %c0_245, %c0_246], %187 {strides = array<i32>} : memref<1x8x8x32xf32, #tpu.memory_space<vmem>>, vector<1x8x8x32xf32>,
    return
  }
  func.func @transform_0(%arg0: i32) -> (i32, i32, i32, i32) {
    %c0_i32 = arith.constant 0 : i32
    %c0_i32_0 = arith.constant 0 : i32
    %c0_i32_1 = arith.constant 0 : i32
    %c0_i32_2 = arith.constant 0 : i32
    return %arg0, %c0_i32, %c0_i32_0, %c0_i32_1 : i32, i32, i32, i32
  }
  func.func @transform_1(%arg0: i32) -> (i32, i32) {
    %c0_i32 = arith.constant 0 : i32
    %c0_i32_0 = arith.constant 0 : i32
    %c0_i32_1 = arith.constant 0 : i32
    return %c0_i32, %c0_i32_0 : i32, i32
  }
  func.func @transform_2(%arg0: i32) -> (i32, i32) {
    %c0_i32 = arith.constant 0 : i32
    %c0_i32_0 = arith.constant 0 : i32
    %c0_i32_1 = arith.constant 0 : i32
    return %c0_i32, %c0_i32_0 : i32, i32
  }
  func.func @transform_3(%arg0: i32) -> (i32, i32, i32) {
    %c0_i32 = arith.constant 0 : i32
    %c0_i32_0 = arith.constant 0 : i32
    %c0_i32_1 = arith.constant 0 : i32
    %c0_i32_2 = arith.constant 0 : i32
    return %c0_i32, %c0_i32_0, %c0_i32_1 : i32, i32, i32
  }
  func.func @transform_4(%arg0: i32) -> (i32, i32) {
    %c0_i32 = arith.constant 0 : i32
    %c0_i32_0 = arith.constant 0 : i32
    %c0_i32_1 = arith.constant 0 : i32
    return %c0_i32, %c0_i32_0 : i32, i32
  }
  func.func @transform_5(%arg0: i32) -> (i32, i32, i32) {
    %c0_i32 = arith.constant 0 : i32
    %c0_i32_0 = arith.constant 0 : i32
    %c0_i32_1 = arith.constant 0 : i32
    %c0_i32_2 = arith.constant 0 : i32
    return %c0_i32, %c0_i32_0, %c0_i32_1 : i32, i32, i32
  }
  func.func @transform_6(%arg0: i32) -> (i32, i32) {
    %c0_i32 = arith.constant 0 : i32
    %c0_i32_0 = arith.constant 0 : i32
    %c0_i32_1 = arith.constant 0 : i32
    return %c0_i32, %c0_i32_0 : i32, i32
  }
  func.func @transform_7(%arg0: i32) -> (i32, i32, i32) {
    %c0_i32 = arith.constant 0 : i32
    %c0_i32_0 = arith.constant 0 : i32
    %c0_i32_1 = arith.constant 0 : i32
    %c0_i32_2 = arith.constant 0 : i32
    return %c0_i32, %c0_i32_0, %c0_i32_1 : i32, i32, i32
  }
  func.func @transform_8(%arg0: i32) -> (i32, i32) {
    %c0_i32 = arith.constant 0 : i32
    %c0_i32_0 = arith.constant 0 : i32
    %c0_i32_1 = arith.constant 0 : i32
    return %c0_i32, %c0_i32_0 : i32, i32
  }
  func.func @transform_9(%arg0: i32) -> (i32, i32, i32, i32) {
    %c0_i32 = arith.constant 0 : i32
    %c0_i32_0 = arith.constant 0 : i32
    %c0_i32_1 = arith.constant 0 : i32
    %c0_i32_2 = arith.constant 0 : i32
    return %arg0, %c0_i32, %c0_i32_0, %c0_i32_1 : i32, i32, i32, i32
  }
}

module attributes {stable_mosaic.version = 11 : i64} {
  func.func @_dense_head_kernel(%arg0: memref<2x2048xf32, #tpu.memory_space<vmem>>, %arg1: memref<2048x32xf32, #tpu.memory_space<vmem>>, %arg2: memref<1x32xf32, #tpu.memory_space<vmem>>, %arg3: memref<32x10xf32, #tpu.memory_space<vmem>>, %arg4: memref<1x10xf32, #tpu.memory_space<vmem>>, %arg5: memref<2x10xf32, #tpu.memory_space<vmem>>) attributes {dimension_semantics = [], scalar_prefetch = 0 : i64, scratch_operands = 0 : i64, tpu.core_type = #tpu.core_type<tc>} {
    %c0 = arith.constant 0 : index
    %c0_0 = arith.constant 0 : index
    %0 = vector.load %arg0[%c0, %c0_0] : memref<2x2048xf32, #tpu.memory_space<vmem>>, vector<2x2048xf32>
    %c0_1 = arith.constant 0 : index
    %c0_2 = arith.constant 0 : index
    %1 = vector.load %arg1[%c0_1, %c0_2] : memref<2048x32xf32, #tpu.memory_space<vmem>>, vector<2048x32xf32>
    %cst = arith.constant dense<0.000000e+00> : vector<2x32xf32>
    %2 = tpu.matmul %0, %1, %cst {dimension_numbers = #tpu.dot_dimension_numbers<[1], [0], [0], [1], [0, 0, 1, 1], [], []>} : vector<2x2048xf32>, vector<2048x32xf32>, vector<2x32xf32> -> vector<2x32xf32>
    %c0_3 = arith.constant 0 : index
    %c0_4 = arith.constant 0 : index
    %3 = vector.load %arg2[%c0_3, %c0_4] : memref<1x32xf32, #tpu.memory_space<vmem>>, vector<1x32xf32>
    %4 = vector.broadcast %3 : vector<1x32xf32> to vector<2x32xf32>
    %5 = arith.addf %2, %4 : vector<2x32xf32>
    %cst_5 = arith.constant 0.000000e+00 : f32
    %6 = vector.broadcast %cst_5 : f32 to vector<2x32xf32>
    %7 = arith.maximumf %5, %6 : vector<2x32xf32>
    %c0_6 = arith.constant 0 : index
    %c0_7 = arith.constant 0 : index
    %8 = vector.load %arg3[%c0_6, %c0_7] : memref<32x10xf32, #tpu.memory_space<vmem>>, vector<32x10xf32>
    %cst_8 = arith.constant dense<0.000000e+00> : vector<2x10xf32>
    %9 = tpu.matmul %7, %8, %cst_8 {dimension_numbers = #tpu.dot_dimension_numbers<[1], [0], [0], [1], [0, 0, 1, 1], [], []>} : vector<2x32xf32>, vector<32x10xf32>, vector<2x10xf32> -> vector<2x10xf32>
    %c0_9 = arith.constant 0 : index
    %c0_10 = arith.constant 0 : index
    %10 = vector.load %arg4[%c0_9, %c0_10] : memref<1x10xf32, #tpu.memory_space<vmem>>, vector<1x10xf32>
    %11 = vector.broadcast %10 : vector<1x10xf32> to vector<2x10xf32>
    %12 = arith.addf %9, %11 : vector<2x10xf32>
    %c0_11 = arith.constant 0 : index
    %c0_12 = arith.constant 0 : index
    %13 = vector.load %arg5[%c0_11, %c0_12] : memref<2x10xf32, #tpu.memory_space<vmem>>, vector<2x10xf32>
    tpu.vector_store %arg5[%c0_11, %c0_12], %12 {strides = array<i32>} : memref<2x10xf32, #tpu.memory_space<vmem>>, vector<2x10xf32>,
    return
  }
}

</mosaic_0001>

<llo_original>
// kernel: cnn_forward.3
$region0: #{cnn_forward.3}
  #allocation0 [shape = 'u32[]', space=smem, size = 0x4, offset = 0x4, fixed_abs, tag = 'smem constant byte address 0x4 - core index']
  #allocation1 [shape = 'u32[72,128]{1,0:T(1,128)}', space=vmem, size = 0x9000, scoped, tag = 'internal scratch']
  %s0 = inlined_call_operand.vmem [shape: f32[2,2048], index: 0, kind: input, shape index: {}]
  %s1 = inlined_call_operand.vmem [shape: f32[2048,32], index: 1, kind: input, shape index: {}]
  %s2 = inlined_call_operand.vmem [shape: f32[1,32], index: 2, kind: input, shape index: {}]
  %s3 = inlined_call_operand.vmem [shape: f32[32,10], index: 3, kind: input, shape index: {}]
  %s4 = inlined_call_operand.vmem [shape: f32[1,10], index: 4, kind: input, shape index: {}]
  %s5 = inlined_call_operand.hbm [shape: f32[2,10], index: 5, kind: output, shape index: {}]
  %s6 = sld [smem:[#allocation0]]
  $region30: #{cnn_forward.3} parent=0
    _
  %s8 = ssub.s32 1, %s6
  %s9 = scalar_select 0, %s8, %s6
  $region1: #{cnn_forward.3} parent=0
    #allocation2 [shape = 'u8[1024]{0}', space=vmem, size = 0x400, scoped, tag = 'output window, operand 0, single buffered']
    #allocation3 [shape = 's32[1]{0}', space=sflag, size = 0x4, scoped, tag = 'scoped memory for cnn_forward.3']
    %10 = vsyncpa [#allocation3], 0
    // Predicated region
    $region2: #{cnn_forward.3} parent=1 // pred_check
      _
    $region3: #{cnn_forward.3} parent=1 // pred_check_branch
      %12 = sbr.rel (0) target = $region5
    $region4: #{cnn_forward.3} parent=1 // pred_region
      _
    $region5: #{cnn_forward.3} parent=1 // pred_fallthru
      _
    // Predicated region
    $region6: #{cnn_forward.3} parent=1 // pred_check
      _
    $region7: #{cnn_forward.3} parent=1 // pred_check_branch
      %14 = sbr.rel (0) target = $region9
    $region8: #{cnn_forward.3} parent=1 // pred_region
      _
    $region9: #{cnn_forward.3} parent=1 // pred_fallthru
      _
    // Predicated region
    $region10: #{cnn_forward.3} parent=1 // pred_check
      _
    $region11: #{cnn_forward.3} parent=1 // pred_check_branch
      %16 = sbr.rel (0) target = $region13
    $region12: #{cnn_forward.3} parent=1 // pred_region
      _
    $region13: #{cnn_forward.3} parent=1 // pred_fallthru
      _
    // Predicated region
    $region14: #{cnn_forward.3} parent=1 // pred_check
      _
    $region15: #{cnn_forward.3} parent=1 // pred_check_branch
      %18 = sbr.rel (0) target = $region17
    $region16: #{cnn_forward.3} parent=1 // pred_region
      _
    $region17: #{cnn_forward.3} parent=1 // pred_fallthru
      _
    // Predicated region
    $region18: #{cnn_forward.3} parent=1 // pred_check
      _
    $region19: #{cnn_forward.3} parent=1 // pred_check_branch
      %20 = sbr.rel (0) target = $region21
    $region20: #{cnn_forward.3} parent=1 // pred_region
      _
    $region21: #{cnn_forward.3} parent=1 // pred_fallthru
      _
    %v21 = vld [vmem:[%s0] sm:$0xff]
    %v22 = vld [vmem:[%s0 + $0x8] sm:$0xff]
    %v23 = vld [vmem:[%s0 + $0x10] sm:$0xff]
    %v24 = vld [vmem:[%s0 + $0x18] sm:$0xff]
    %v25 = vld [vmem:[%s1] sm:$0xff]
    %v26 = vld [vmem:[%s1 + $0x8] sm:$0xff]
    %v27 = vld [vmem:[%s1 + $0x10] sm:$0xff]
    %v28 = vld [vmem:[%s1 + $0x18] sm:$0xff]
    %v29 = vld [vmem:[%s1 + $0x20] sm:$0xff]
    %v30 = vld [vmem:[%s1 + $0x28] sm:$0xff]
    %v31 = vld [vmem:[%s1 + $0x30] sm:$0xff]
    %v32 = vld [vmem:[%s1 + $0x38] sm:$0xff]
    %v33 = vld [vmem:[%s1 + $0x40] sm:$0xff]
    %v34 = vld [vmem:[%s1 + $0x48] sm:$0xff]
    %v35 = vld [vmem:[%s1 + $0x50] sm:$0xff]
    %v36 = vld [vmem:[%s1 + $0x58] sm:$0xff]
    %v37 = vld [vmem:[%s1 + $0x60] sm:$0xff]
    %v38 = vld [vmem:[%s1 + $0x68] sm:$0xff]
    %v39 = vld [vmem:[%s1 + $0x70] sm:$0xff]
    %v40 = vld [vmem:[%s1 + $0x78] sm:$0xff]
    %v41 = vld [vmem:[%s1 + $0x80] sm:$0xff]
    %v42 = vld [vmem:[%s1 + $0x88] sm:$0xff]
    %v43 = vld [vmem:[%s1 + $0x90] sm:$0xff]
    %v44 = vld [vmem:[%s1 + $0x98] sm:$0xff]
    %v45 = vld [vmem:[%s1 + $0xa0] sm:$0xff]
    %v46 = vld [vmem:[%s1 + $0xa8] sm:$0xff]
    %v47 = vld [vmem:[%s1 + $0xb0] sm:$0xff]
    %v48 = vld [vmem:[%s1 + $0xb8] sm:$0xff]
    %v49 = vld [vmem:[%s1 + $0xc0] sm:$0xff]
    %v50 = vld [vmem:[%s1 + $0xc8] sm:$0xff]
    %v51 = vld [vmem:[%s1 + $0xd0] sm:$0xff]
    %v52 = vld [vmem:[%s1 + $0xd8] sm:$0xff]
    %v53 = vld [vmem:[%s1 + $0xe0] sm:$0xff]
    %v54 = vld [vmem:[%s1 + $0xe8] sm:$0xff]
    %v55 = vld [vmem:[%s1 + $0xf0] sm:$0xff]
    %v56 = vld [vmem:[%s1 + $0xf8] sm:$0xff]
    %v57 = vld [vmem:[%s1 + $0x100] sm:$0xff]
    %v58 = vld [vmem:[%s1 + $0x108] sm:$0xff]
    %v59 = vld [vmem:[%s1 + $0x110] sm:$0xff]
    %v60 = vld [vmem:[%s1 + $0x118] sm:$0xff]
    %v61 = vld [vmem:[%s1 + $0x120] sm:$0xff]
    %v62 = vld [vmem:[%s1 + $0x128] sm:$0xff]
    %v63 = vld [vmem:[%s1 + $0x130] sm:$0xff]
    %v64 = vld [vmem:[%s1 + $0x138] sm:$0xff]
    %v65 = vld [vmem:[%s1 + $0x140] sm:$0xff]
    %v66 = vld [vmem:[%s1 + $0x148] sm:$0xff]
    %v67 = vld [vmem:[%s1 + $0x150] sm:$0xff]
    %v68 = vld [vmem:[%s1 + $0x158] sm:$0xff]
    %v69 = vld [vmem:[%s1 + $0x160] sm:$0xff]
    %v70 = vld [vmem:[%s1 + $0x168] sm:$0xff]
    %v71 = vld [vmem:[%s1 + $0x170] sm:$0xff]
    %v72 = vld [vmem:[%s1 + $0x178] sm:$0xff]
    %v73 = vld [vmem:[%s1 + $0x180] sm:$0xff]
    %v74 = vld [vmem:[%s1 + $0x188] sm:$0xff]
    %v75 = vld [vmem:[%s1 + $0x190] sm:$0xff]
    %v76 = vld [vmem:[%s1 + $0x198] sm:$0xff]
    %v77 = vld [vmem:[%s1 + $0x1a0] sm:$0xff]
    %v78 = vld [vmem:[%s1 + $0x1a8] sm:$0xff]
    %v79 = vld [vmem:[%s1 + $0x1b0] sm:$0xff]
    %v80 = vld [vmem:[%s1 + $0x1b8] sm:$0xff]
    %v81 = vld [vmem:[%s1 + $0x1c0] sm:$0xff]
    %v82 = vld [vmem:[%s1 + $0x1c8] sm:$0xff]
    %v83 = vld [vmem:[%s1 + $0x1d0] sm:$0xff]
    %v84 = vld [vmem:[%s1 + $0x1d8] sm:$0xff]
    %v85 = vld [vmem:[%s1 + $0x1e0] sm:$0xff]
    %v86 = vld [vmem:[%s1 + $0x1e8] sm:$0xff]
    %v87 = vld [vmem:[%s1 + $0x1f0] sm:$0xff]
    %v88 = vld [vmem:[%s1 + $0x1f8] sm:$0xff]
    %v89 = vld [vmem:[%s1 + $0x200] sm:$0xff]
    %v90 = vld [vmem:[%s1 + $0x208] sm:$0xff]
    %v91 = vld [vmem:[%s1 + $0x210] sm:$0xff]
    %v92 = vld [vmem:[%s1 + $0x218] sm:$0xff]
    %v93 = vld [vmem:[%s1 + $0x220] sm:$0xff]
    %v94 = vld [vmem:[%s1 + $0x228] sm:$0xff]
    %v95 = vld [vmem:[%s1 + $0x230] sm:$0xff]
    %v96 = vld [vmem:[%s1 + $0x238] sm:$0xff]
    %v97 = vld [vmem:[%s1 + $0x240] sm:$0xff]
    %v98 = vld [vmem:[%s1 + $0x248] sm:$0xff]
    %v99 = vld [vmem:[%s1 + $0x250] sm:$0xff]
    %v100 = vld [vmem:[%s1 + $0x258] sm:$0xff]
    %v101 = vld [vmem:[%s1 + $0x260] sm:$0xff]
    %v102 = vld [vmem:[%s1 + $0x268] sm:$0xff]
    %v103 = vld [vmem:[%s1 + $0x270] sm:$0xff]
    %v104 = vld [vmem:[%s1 + $0x278] sm:$0xff]
    %v105 = vld [vmem:[%s1 + $0x280] sm:$0xff]
    %v106 = vld [vmem:[%s1 + $0x288] sm:$0xff]
    %v107 = vld [vmem:[%s1 + $0x290] sm:$0xff]
    %v108 = vld [vmem:[%s1 + $0x298] sm:$0xff]
    %v109 = vld [vmem:[%s1 + $0x2a0] sm:$0xff]
    %v110 = vld [vmem:[%s1 + $0x2a8] sm:$0xff]
    %v111 = vld [vmem:[%s1 + $0x2b0] sm:$0xff]
    %v112 = vld [vmem:[%s1 + $0x2b8] sm:$0xff]
    %v113 = vld [vmem:[%s1 + $0x2c0] sm:$0xff]
    %v114 = vld [vmem:[%s1 + $0x2c8] sm:$0xff]
    %v115 = vld [vmem:[%s1 + $0x2d0] sm:$0xff]
    %v116 = vld [vmem:[%s1 + $0x2d8] sm:$0xff]
    %v117 = vld [vmem:[%s1 + $0x2e0] sm:$0xff]
    %v118 = vld [vmem:[%s1 + $0x2e8] sm:$0xff]
    %v119 = vld [vmem:[%s1 + $0x2f0] sm:$0xff]
    %v120 = vld [vmem:[%s1 + $0x2f8] sm:$0xff]
    %v121 = vld [vmem:[%s1 + $0x300] sm:$0xff]
    %v122 = vld [vmem:[%s1 + $0x308] sm:$0xff]
    %v123 = vld [vmem:[%s1 + $0x310] sm:$0xff]
    %v124 = vld [vmem:[%s1 + $0x318] sm:$0xff]
    %v125 = vld [vmem:[%s1 + $0x320] sm:$0xff]
    %v126 = vld [vmem:[%s1 + $0x328] sm:$0xff]
    %v127 = vld [vmem:[%s1 + $0x330] sm:$0xff]
    %v128 = vld [vmem:[%s1 + $0x338] sm:$0xff]
    %v129 = vld [vmem:[%s1 + $0x340] sm:$0xff]
    %v130 = vld [vmem:[%s1 + $0x348] sm:$0xff]
    %v131 = vld [vmem:[%s1 + $0x350] sm:$0xff]
    %v132 = vld [vmem:[%s1 + $0x358] sm:$0xff]
    %v133 = vld [vmem:[%s1 + $0x360] sm:$0xff]
    %v134 = vld [vmem:[%s1 + $0x368] sm:$0xff]
    %v135 = vld [vmem:[%s1 + $0x370] sm:$0xff]
    %v136 = vld [vmem:[%s1 + $0x378] sm:$0xff]
    %v137 = vld [vmem:[%s1 + $0x380] sm:$0xff]
    %v138 = vld [vmem:[%s1 + $0x388] sm:$0xff]
    %v139 = vld [vmem:[%s1 + $0x390] sm:$0xff]
    %v140 = vld [vmem:[%s1 + $0x398] sm:$0xff]
    %v141 = vld [vmem:[%s1 + $0x3a0] sm:$0xff]
    %v142 = vld [vmem:[%s1 + $0x3a8] sm:$0xff]
    %v143 = vld [vmem:[%s1 + $0x3b0] sm:$0xff]
    %v144 = vld [vmem:[%s1 + $0x3b8] sm:$0xff]
    %v145 = vld [vmem:[%s1 + $0x3c0] sm:$0xff]
    %v146 = vld [vmem:[%s1 + $0x3c8] sm:$0xff]
    %v147 = vld [vmem:[%s1 + $0x3d0] sm:$0xff]
    %v148 = vld [vmem:[%s1 + $0x3d8] sm:$0xff]
    %v149 = vld [vmem:[%s1 + $0x3e0] sm:$0xff]
    %v150 = vld [vmem:[%s1 + $0x3e8] sm:$0xff]
    %v151 = vld [vmem:[%s1 + $0x3f0] sm:$0xff]
    %v152 = vld [vmem:[%s1 + $0x3f8] sm:$0xff]
    %v153 = vld [vmem:[%s1 + $0x400] sm:$0xff]
    %v154 = vld [vmem:[%s1 + $0x408] sm:$0xff]
    %v155 = vld [vmem:[%s1 + $0x410] sm:$0xff]
    %v156 = vld [vmem:[%s1 + $0x418] sm:$0xff]
    %v157 = vld [vmem:[%s1 + $0x420] sm:$0xff]
    %v158 = vld [vmem:[%s1 + $0x428] sm:$0xff]
    %v159 = vld [vmem:[%s1 + $0x430] sm:$0xff]
    %v160 = vld [vmem:[%s1 + $0x438] sm:$0xff]
    %v161 = vld [vmem:[%s1 + $0x440] sm:$0xff]
    %v162 = vld [vmem:[%s1 + $0x448] sm:$0xff]
    %v163 = vld [vmem:[%s1 + $0x450] sm:$0xff]
    %v164 = vld [vmem:[%s1 + $0x458] sm:$0xff]
    %v165 = vld [vmem:[%s1 + $0x460] sm:$0xff]
    %v166 = vld [vmem:[%s1 + $0x468] sm:$0xff]
    %v167 = vld [vmem:[%s1 + $0x470] sm:$0xff]
    %v168 = vld [vmem:[%s1 + $0x478] sm:$0xff]
    %v169 = vld [vmem:[%s1 + $0x480] sm:$0xff]
    %v170 = vld [vmem:[%s1 + $0x488] sm:$0xff]
    %v171 = vld [vmem:[%s1 + $0x490] sm:$0xff]
    %v172 = vld [vmem:[%s1 + $0x498] sm:$0xff]
    %v173 = vld [vmem:[%s1 + $0x4a0] sm:$0xff]
    %v174 = vld [vmem:[%s1 + $0x4a8] sm:$0xff]
    %v175 = vld [vmem:[%s1 + $0x4b0] sm:$0xff]
    %v176 = vld [vmem:[%s1 + $0x4b8] sm:$0xff]
    %v177 = vld [vmem:[%s1 + $0x4c0] sm:$0xff]
    %v178 = vld [vmem:[%s1 + $0x4c8] sm:$0xff]
    %v179 = vld [vmem:[%s1 + $0x4d0] sm:$0xff]
    %v180 = vld [vmem:[%s1 + $0x4d8] sm:$0xff]
    %v181 = vld [vmem:[%s1 + $0x4e0] sm:$0xff]
    %v182 = vld [vmem:[%s1 + $0x4e8] sm:$0xff]
    %v183 = vld [vmem:[%s1 + $0x4f0] sm:$0xff]
    %v184 = vld [vmem:[%s1 + $0x4f8] sm:$0xff]
    %v185 = vld [vmem:[%s1 + $0x500] sm:$0xff]
    %v186 = vld [vmem:[%s1 + $0x508] sm:$0xff]
    %v187 = vld [vmem:[%s1 + $0x510] sm:$0xff]
    %v188 = vld [vmem:[%s1 + $0x518] sm:$0xff]
    %v189 = vld [vmem:[%s1 + $0x520] sm:$0xff]
    %v190 = vld [vmem:[%s1 + $0x528] sm:$0xff]
    %v191 = vld [vmem:[%s1 + $0x530] sm:$0xff]
    %v192 = vld [vmem:[%s1 + $0x538] sm:$0xff]
    %v193 = vld [vmem:[%s1 + $0x540] sm:$0xff]
    %v194 = vld [vmem:[%s1 + $0x548] sm:$0xff]
    %v195 = vld [vmem:[%s1 + $0x550] sm:$0xff]
    %v196 = vld [vmem:[%s1 + $0x558] sm:$0xff]
    %v197 = vld [vmem:[%s1 + $0x560] sm:$0xff]
    %v198 = vld [vmem:[%s1 + $0x568] sm:$0xff]
    %v199 = vld [vmem:[%s1 + $0x570] sm:$0xff]
    %v200 = vld [vmem:[%s1 + $0x578] sm:$0xff]
    %v201 = vld [vmem:[%s1 + $0x580] sm:$0xff]
    %v202 = vld [vmem:[%s1 + $0x588] sm:$0xff]
    %v203 = vld [vmem:[%s1 + $0x590] sm:$0xff]
    %v204 = vld [vmem:[%s1 + $0x598] sm:$0xff]
    %v205 = vld [vmem:[%s1 + $0x5a0] sm:$0xff]
    %v206 = vld [vmem:[%s1 + $0x5a8] sm:$0xff]
    %v207 = vld [vmem:[%s1 + $0x5b0] sm:$0xff]
    %v208 = vld [vmem:[%s1 + $0x5b8] sm:$0xff]
    %v209 = vld [vmem:[%s1 + $0x5c0] sm:$0xff]
    %v210 = vld [vmem:[%s1 + $0x5c8] sm:$0xff]
    %v211 = vld [vmem:[%s1 + $0x5d0] sm:$0xff]
    %v212 = vld [vmem:[%s1 + $0x5d8] sm:$0xff]
    %v213 = vld [vmem:[%s1 + $0x5e0] sm:$0xff]
    %v214 = vld [vmem:[%s1 + $0x5e8] sm:$0xff]
    %v215 = vld [vmem:[%s1 + $0x5f0] sm:$0xff]
    %v216 = vld [vmem:[%s1 + $0x5f8] sm:$0xff]
    %v217 = vld [vmem:[%s1 + $0x600] sm:$0xff]
    %v218 = vld [vmem:[%s1 + $0x608] sm:$0xff]
    %v219 = vld [vmem:[%s1 + $0x610] sm:$0xff]
    %v220 = vld [vmem:[%s1 + $0x618] sm:$0xff]
    %v221 = vld [vmem:[%s1 + $0x620] sm:$0xff]
    %v222 = vld [vmem:[%s1 + $0x628] sm:$0xff]
    %v223 = vld [vmem:[%s1 + $0x630] sm:$0xff]
    %v224 = vld [vmem:[%s1 + $0x638] sm:$0xff]
    %v225 = vld [vmem:[%s1 + $0x640] sm:$0xff]
    %v226 = vld [vmem:[%s1 + $0x648] sm:$0xff]
    %v227 = vld [vmem:[%s1 + $0x650] sm:$0xff]
    %v228 = vld [vmem:[%s1 + $0x658] sm:$0xff]
    %v229 = vld [vmem:[%s1 + $0x660] sm:$0xff]
    %v230 = vld [vmem:[%s1 + $0x668] sm:$0xff]
    %v231 = vld [vmem:[%s1 + $0x670] sm:$0xff]
    %v232 = vld [vmem:[%s1 + $0x678] sm:$0xff]
    %v233 = vld [vmem:[%s1 + $0x680] sm:$0xff]
    %v234 = vld [vmem:[%s1 + $0x688] sm:$0xff]
    %v235 = vld [vmem:[%s1 + $0x690] sm:$0xff]
    %v236 = vld [vmem:[%s1 + $0x698] sm:$0xff]
    %v237 = vld [vmem:[%s1 + $0x6a0] sm:$0xff]
    %v238 = vld [vmem:[%s1 + $0x6a8] sm:$0xff]
    %v239 = vld [vmem:[%s1 + $0x6b0] sm:$0xff]
    %v240 = vld [vmem:[%s1 + $0x6b8] sm:$0xff]
    %v241 = vld [vmem:[%s1 + $0x6c0] sm:$0xff]
    %v242 = vld [vmem:[%s1 + $0x6c8] sm:$0xff]
    %v243 = vld [vmem:[%s1 + $0x6d0] sm:$0xff]
    %v244 = vld [vmem:[%s1 + $0x6d8] sm:$0xff]
    %v245 = vld [vmem:[%s1 + $0x6e0] sm:$0xff]
    %v246 = vld [vmem:[%s1 + $0x6e8] sm:$0xff]
    %v247 = vld [vmem:[%s1 + $0x6f0] sm:$0xff]
    %v248 = vld [vmem:[%s1 + $0x6f8] sm:$0xff]
    %v249 = vld [vmem:[%s1 + $0x700] sm:$0xff]
    %v250 = vld [vmem:[%s1 + $0x708] sm:$0xff]
    %v251 = vld [vmem:[%s1 + $0x710] sm:$0xff]
    %v252 = vld [vmem:[%s1 + $0x718] sm:$0xff]
    %v253 = vld [vmem:[%s1 + $0x720] sm:$0xff]
    %v254 = vld [vmem:[%s1 + $0x728] sm:$0xff]
    %v255 = vld [vmem:[%s1 + $0x730] sm:$0xff]
    %v256 = vld [vmem:[%s1 + $0x738] sm:$0xff]
    %v257 = vld [vmem:[%s1 + $0x740] sm:$0xff]
    %v258 = vld [vmem:[%s1 + $0x748] sm:$0xff]
    %v259 = vld [vmem:[%s1 + $0x750] sm:$0xff]
    %v260 = vld [vmem:[%s1 + $0x758] sm:$0xff]
    %v261 = vld [vmem:[%s1 + $0x760] sm:$0xff]
    %v262 = vld [vmem:[%s1 + $0x768] sm:$0xff]
    %v263 = vld [vmem:[%s1 + $0x770] sm:$0xff]
    %v264 = vld [vmem:[%s1 + $0x778] sm:$0xff]
    %v265 = vld [vmem:[%s1 + $0x780] sm:$0xff]
    %v266 = vld [vmem:[%s1 + $0x788] sm:$0xff]
    %v267 = vld [vmem:[%s1 + $0x790] sm:$0xff]
    %v268 = vld [vmem:[%s1 + $0x798] sm:$0xff]
    %v269 = vld [vmem:[%s1 + $0x7a0] sm:$0xff]
    %v270 = vld [vmem:[%s1 + $0x7a8] sm:$0xff]
    %v271 = vld [vmem:[%s1 + $0x7b0] sm:$0xff]
    %v272 = vld [vmem:[%s1 + $0x7b8] sm:$0xff]
    %v273 = vld [vmem:[%s1 + $0x7c0] sm:$0xff]
    %v274 = vld [vmem:[%s1 + $0x7c8] sm:$0xff]
    %v275 = vld [vmem:[%s1 + $0x7d0] sm:$0xff]
    %v276 = vld [vmem:[%s1 + $0x7d8] sm:$0xff]
    %v277 = vld [vmem:[%s1 + $0x7e0] sm:$0xff]
    %v278 = vld [vmem:[%s1 + $0x7e8] sm:$0xff]
    %v279 = vld [vmem:[%s1 + $0x7f0] sm:$0xff]
    %v280 = vld [vmem:[%s1 + $0x7f8] sm:$0xff]
    %v281 = vld [vmem:[%s2] sm:$0x1]
    %v283 = vperm.slane %v281, 0
    %289 = vst [vmem:[#allocation1] ss:$4 sm:$0xff] %v21
    %s290 = scalar_lea.vmem [#allocation1], 32
    %291 = vst [vmem:[%s290] ss:$4 sm:$0xff] %v22
    %v292 = vld.sshfl [vmem:[#allocation1] sm:$0xff pattern:$0x73625140]
    %v293 = vld.sshfl [vmem:[#allocation1 + $0x8] sm:$0xff pattern:$0x73625140]
    %v294 = vld.sshfl [vmem:[#allocation1 + $0x10] sm:$0xff pattern:$0x73625140]
    %v295 = vld.sshfl [vmem:[#allocation1 + $0x18] sm:$0xff pattern:$0x73625140]
    %v296 = vld.sshfl [vmem:[#allocation1 + $0x20] sm:$0xff pattern:$0x73625140]
    %v297 = vld.sshfl [vmem:[#allocation1 + $0x28] sm:$0xff pattern:$0x73625140]
    %v298 = vld.sshfl [vmem:[#allocation1 + $0x30] sm:$0xff pattern:$0x73625140]
    %v299 = vld.sshfl [vmem:[#allocation1 + $0x38] sm:$0xff pattern:$0x73625140]
    %300 = vst [vmem:[#allocation1] ss:$4 sm:$0xff] %v23
    %301 = vst [vmem:[%s290] ss:$4 sm:$0xff] %v24
    %v302 = vld.sshfl [vmem:[#allocation1] sm:$0xff pattern:$0x73625140]
    %v303 = vld.sshfl [vmem:[#allocation1 + $0x8] sm:$0xff pattern:$0x73625140]
    %v304 = vld.sshfl [vmem:[#allocation1 + $0x10] sm:$0xff pattern:$0x73625140]
    %v305 = vld.sshfl [vmem:[#allocation1 + $0x18] sm:$0xff pattern:$0x73625140]
    %v306 = vld.sshfl [vmem:[#allocation1 + $0x20] sm:$0xff pattern:$0x73625140]
    %v307 = vld.sshfl [vmem:[#allocation1 + $0x28] sm:$0xff pattern:$0x73625140]
    %v308 = vld.sshfl [vmem:[#allocation1 + $0x30] sm:$0xff pattern:$0x73625140]
    %v309 = vld.sshfl [vmem:[#allocation1 + $0x38] sm:$0xff pattern:$0x73625140]
    %326 = vmatpush.msra.mxu0 %v40
    %327 = vmatpush.msra.mxu0 %v39
    %328 = vmatpush.msra.mxu0 %v38
    %329 = vmatpush.msra.mxu0 %v37
    %330 = vmatpush.msra.mxu0 %v36
    %331 = vmatpush.msra.mxu0 %v35
    %332 = vmatpush.msra.mxu0 %v34
    %333 = vmatpush.msra.mxu0 %v33
    %334 = vmatpush.msra.mxu0 %v32
    %335 = vmatpush.msra.mxu0 %v31
    %336 = vmatpush.msra.mxu0 %v30
    %337 = vmatpush.msra.mxu0 %v29
    %338 = vmatpush.msra.mxu0 %v28
    %339 = vmatpush.msra.mxu0 %v27
    %340 = vmatpush.msra.mxu0 %v26
    %341 = vmatpush.msra.mxu0 %v25
    %342 = vmatmul.f32.gmra.mxu0 %v292
    %v343 = vpop.f32.mrf.mxu0
    %v344 = vadd.f32 %v283, %v343
    %345 = vdwg.mxu0
    %346 = vmatpush.msra.mxu0 %v56
    %347 = vmatpush.msra.mxu0 %v55
    %348 = vmatpush.msra.mxu0 %v54
    %349 = vmatpush.msra.mxu0 %v53
    %350 = vmatpush.msra.mxu0 %v52
    %351 = vmatpush.msra.mxu0 %v51
    %352 = vmatpush.msra.mxu0 %v50
    %353 = vmatpush.msra.mxu0 %v49
    %354 = vmatpush.msra.mxu0 %v48
    %355 = vmatpush.msra.mxu0 %v47
    %356 = vmatpush.msra.mxu0 %v46
    %357 = vmatpush.msra.mxu0 %v45
    %358 = vmatpush.msra.mxu0 %v44
    %359 = vmatpush.msra.mxu0 %v43
    %360 = vmatpush.msra.mxu0 %v42
    %361 = vmatpush.msra.mxu0 %v41
    %362 = vmatmul.f32.gmra.mxu0 %v293
    %v363 = vpop.f32.mrf.mxu0
    %v364 = vadd.f32 %v344, %v363
    %365 = vdwg.mxu0
    %366 = vmatpush.msra.mxu0 %v72
    %367 = vmatpush.msra.mxu0 %v71
    %368 = vmatpush.msra.mxu0 %v70
    %369 = vmatpush.msra.mxu0 %v69
    %370 = vmatpush.msra.mxu0 %v68
    %371 = vmatpush.msra.mxu0 %v67
    %372 = vmatpush.msra.mxu0 %v66
    %373 = vmatpush.msra.mxu0 %v65
    %374 = vmatpush.msra.mxu0 %v64
    %375 = vmatpush.msra.mxu0 %v63
    %376 = vmatpush.msra.mxu0 %v62
    %377 = vmatpush.msra.mxu0 %v61
    %378 = vmatpush.msra.mxu0 %v60
    %379 = vmatpush.msra.mxu0 %v59
    %380 = vmatpush.msra.mxu0 %v58
    %381 = vmatpush.msra.mxu0 %v57
    %382 = vmatmul.f32.gmra.mxu0 %v294
    %v383 = vpop.f32.mrf.mxu0
    %v384 = vadd.f32 %v364, %v383
    %385 = vdwg.mxu0
    %386 = vmatpush.msra.mxu0 %v88
    %387 = vmatpush.msra.mxu0 %v87
    %388 = vmatpush.msra.mxu0 %v86
    %389 = vmatpush.msra.mxu0 %v85
    %390 = vmatpush.msra.mxu0 %v84
    %391 = vmatpush.msra.mxu0 %v83
    %392 = vmatpush.msra.mxu0 %v82
    %393 = vmatpush.msra.mxu0 %v81
    %394 = vmatpush.msra.mxu0 %v80
    %395 = vmatpush.msra.mxu0 %v79
    %396 = vmatpush.msra.mxu0 %v78
    %397 = vmatpush.msra.mxu0 %v77
    %398 = vmatpush.msra.mxu0 %v76
    %399 = vmatpush.msra.mxu0 %v75
    %400 = vmatpush.msra.mxu0 %v74
    %401 = vmatpush.msra.mxu0 %v73
    %402 = vmatmul.f32.gmra.mxu0 %v295
    %v403 = vpop.f32.mrf.mxu0
    %v404 = vadd.f32 %v384, %v403
    %405 = vdwg.mxu0
    %406 = vmatpush.msra.mxu0 %v104
    %407 = vmatpush.msra.mxu0 %v103
    %408 = vmatpush.msra.mxu0 %v102
    %409 = vmatpush.msra.mxu0 %v101
    %410 = vmatpush.msra.mxu0 %v100
    %411 = vmatpush.msra.mxu0 %v99
    %412 = vmatpush.msra.mxu0 %v98
    %413 = vmatpush.msra.mxu0 %v97
    %414 = vmatpush.msra.mxu0 %v96
    %415 = vmatpush.msra.mxu0 %v95
    %416 = vmatpush.msra.mxu0 %v94
    %417 = vmatpush.msra.mxu0 %v93
    %418 = vmatpush.msra.mxu0 %v92
    %419 = vmatpush.msra.mxu0 %v91
    %420 = vmatpush.msra.mxu0 %v90
    %421 = vmatpush.msra.mxu0 %v89
    %422 = vmatmul.f32.gmra.mxu0 %v296
    %v423 = vpop.f32.mrf.mxu0
    %v424 = vadd.f32 %v404, %v423
    %425 = vdwg.mxu0
    %426 = vmatpush.msra.mxu0 %v120
    %427 = vmatpush.msra.mxu0 %v119
    %428 = vmatpush.msra.mxu0 %v118
    %429 = vmatpush.msra.mxu0 %v117
    %430 = vmatpush.msra.mxu0 %v116
    %431 = vmatpush.msra.mxu0 %v115
    %432 = vmatpush.msra.mxu0 %v114
    %433 = vmatpush.msra.mxu0 %v113
    %434 = vmatpush.msra.mxu0 %v112
    %435 = vmatpush.msra.mxu0 %v111
    %436 = vmatpush.msra.mxu0 %v110
    %437 = vmatpush.msra.mxu0 %v109
    %438 = vmatpush.msra.mxu0 %v108
    %439 = vmatpush.msra.mxu0 %v107
    %440 = vmatpush.msra.mxu0 %v106
    %441 = vmatpush.msra.mxu0 %v105
    %442 = vmatmul.f32.gmra.mxu0 %v297
    %v443 = vpop.f32.mrf.mxu0
    %v444 = vadd.f32 %v424, %v443
    %445 = vdwg.mxu0
    %446 = vmatpush.msra.mxu0 %v136
    %447 = vmatpush.msra.mxu0 %v135
    %448 = vmatpush.msra.mxu0 %v134
    %449 = vmatpush.msra.mxu0 %v133
    %450 = vmatpush.msra.mxu0 %v132
    %451 = vmatpush.msra.mxu0 %v131
    %452 = vmatpush.msra.mxu0 %v130
    %453 = vmatpush.msra.mxu0 %v129
    %454 = vmatpush.msra.mxu0 %v128
    %455 = vmatpush.msra.mxu0 %v127
    %456 = vmatpush.msra.mxu0 %v126
    %457 = vmatpush.msra.mxu0 %v125
    %458 = vmatpush.msra.mxu0 %v124
    %459 = vmatpush.msra.mxu0 %v123
    %460 = vmatpush.msra.mxu0 %v122
    %461 = vmatpush.msra.mxu0 %v121
    %462 = vmatmul.f32.gmra.mxu0 %v298
    %v463 = vpop.f32.mrf.mxu0
    %v464 = vadd.f32 %v444, %v463
    %465 = vdwg.mxu0
    %466 = vmatpush.msra.mxu0 %v152
    %467 = vmatpush.msra.mxu0 %v151
    %468 = vmatpush.msra.mxu0 %v150
    %469 = vmatpush.msra.mxu0 %v149
    %470 = vmatpush.msra.mxu0 %v148
    %471 = vmatpush.msra.mxu0 %v147
    %472 = vmatpush.msra.mxu0 %v146
    %473 = vmatpush.msra.mxu0 %v145
    %474 = vmatpush.msra.mxu0 %v144
    %475 = vmatpush.msra.mxu0 %v143
    %476 = vmatpush.msra.mxu0 %v142
    %477 = vmatpush.msra.mxu0 %v141
    %478 = vmatpush.msra.mxu0 %v140
    %479 = vmatpush.msra.mxu0 %v139
    %480 = vmatpush.msra.mxu0 %v138
    %481 = vmatpush.msra.mxu0 %v137
    %482 = vmatmul.f32.gmra.mxu0 %v299
    %v483 = vpop.f32.mrf.mxu0
    %v484 = vadd.f32 %v464, %v483
    %485 = vdwg.mxu0
    %486 = vmatpush.msra.mxu0 %v168
    %487 = vmatpush.msra.mxu0 %v167
    %488 = vmatpush.msra.mxu0 %v166
    %489 = vmatpush.msra.mxu0 %v165
    %490 = vmatpush.msra.mxu0 %v164
    %491 = vmatpush.msra.mxu0 %v163
    %492 = vmatpush.msra.mxu0 %v162
    %493 = vmatpush.msra.mxu0 %v161
    %494 = vmatpush.msra.mxu0 %v160
    %495 = vmatpush.msra.mxu0 %v159
    %496 = vmatpush.msra.mxu0 %v158
    %497 = vmatpush.msra.mxu0 %v157
    %498 = vmatpush.msra.mxu0 %v156
    %499 = vmatpush.msra.mxu0 %v155
    %500 = vmatpush.msra.mxu0 %v154
    %501 = vmatpush.msra.mxu0 %v153
    %502 = vmatmul.f32.gmra.mxu0 %v302
    %v503 = vpop.f32.mrf.mxu0
    %v504 = vadd.f32 %v484, %v503
    %505 = vdwg.mxu0
    %506 = vmatpush.msra.mxu0 %v184
    %507 = vmatpush.msra.mxu0 %v183
    %508 = vmatpush.msra.mxu0 %v182
    %509 = vmatpush.msra.mxu0 %v181
    %510 = vmatpush.msra.mxu0 %v180
    %511 = vmatpush.msra.mxu0 %v179
    %512 = vmatpush.msra.mxu0 %v178
    %513 = vmatpush.msra.mxu0 %v177
    %514 = vmatpush.msra.mxu0 %v176
    %515 = vmatpush.msra.mxu0 %v175
    %516 = vmatpush.msra.mxu0 %v174
    %517 = vmatpush.msra.mxu0 %v173
    %518 = vmatpush.msra.mxu0 %v172
    %519 = vmatpush.msra.mxu0 %v171
    %520 = vmatpush.msra.mxu0 %v170
    %521 = vmatpush.msra.mxu0 %v169
    %522 = vmatmul.f32.gmra.mxu0 %v303
    %v523 = vpop.f32.mrf.mxu0
    %v524 = vadd.f32 %v504, %v523
    %525 = vdwg.mxu0
    %526 = vmatpush.msra.mxu0 %v200
    %527 = vmatpush.msra.mxu0 %v199
    %528 = vmatpush.msra.mxu0 %v198
    %529 = vmatpush.msra.mxu0 %v197
    %530 = vmatpush.msra.mxu0 %v196
    %531 = vmatpush.msra.mxu0 %v195
    %532 = vmatpush.msra.mxu0 %v194
    %533 = vmatpush.msra.mxu0 %v193
    %534 = vmatpush.msra.mxu0 %v192
    %535 = vmatpush.msra.mxu0 %v191
    %536 = vmatpush.msra.mxu0 %v190
    %537 = vmatpush.msra.mxu0 %v189
    %538 = vmatpush.msra.mxu0 %v188
    %539 = vmatpush.msra.mxu0 %v187
    %540 = vmatpush.msra.mxu0 %v186
    %541 = vmatpush.msra.mxu0 %v185
    %542 = vmatmul.f32.gmra.mxu0 %v304
    %v543 = vpop.f32.mrf.mxu0
    %v544 = vadd.f32 %v524, %v543
    %545 = vdwg.mxu0
    %546 = vmatpush.msra.mxu0 %v216
    %547 = vmatpush.msra.mxu0 %v215
    %548 = vmatpush.msra.mxu0 %v214
    %549 = vmatpush.msra.mxu0 %v213
    %550 = vmatpush.msra.mxu0 %v212
    %551 = vmatpush.msra.mxu0 %v211
    %552 = vmatpush.msra.mxu0 %v210
    %553 = vmatpush.msra.mxu0 %v209
    %554 = vmatpush.msra.mxu0 %v208
    %555 = vmatpush.msra.mxu0 %v207
    %556 = vmatpush.msra.mxu0 %v206
    %557 = vmatpush.msra.mxu0 %v205
    %558 = vmatpush.msra.mxu0 %v204
    %559 = vmatpush.msra.mxu0 %v203
    %560 = vmatpush.msra.mxu0 %v202
    %561 = vmatpush.msra.mxu0 %v201
    %562 = vmatmul.f32.gmra.mxu0 %v305
    %v563 = vpop.f32.mrf.mxu0
    %v564 = vadd.f32 %v544, %v563
    %565 = vdwg.mxu0
    %566 = vmatpush.msra.mxu0 %v232
    %567 = vmatpush.msra.mxu0 %v231
    %568 = vmatpush.msra.mxu0 %v230
    %569 = vmatpush.msra.mxu0 %v229
    %570 = vmatpush.msra.mxu0 %v228
    %571 = vmatpush.msra.mxu0 %v227
    %572 = vmatpush.msra.mxu0 %v226
    %573 = vmatpush.msra.mxu0 %v225
    %574 = vmatpush.msra.mxu0 %v224
    %575 = vmatpush.msra.mxu0 %v223
    %576 = vmatpush.msra.mxu0 %v222
    %577 = vmatpush.msra.mxu0 %v221
    %578 = vmatpush.msra.mxu0 %v220
    %579 = vmatpush.msra.mxu0 %v219
    %580 = vmatpush.msra.mxu0 %v218
    %581 = vmatpush.msra.mxu0 %v217
    %582 = vmatmul.f32.gmra.mxu0 %v306
    %v583 = vpop.f32.mrf.mxu0
    %v584 = vadd.f32 %v564, %v583
    %585 = vdwg.mxu0
    %586 = vmatpush.msra.mxu0 %v248
    %587 = vmatpush.msra.mxu0 %v247
    %588 = vmatpush.msra.mxu0 %v246
    %589 = vmatpush.msra.mxu0 %v245
    %590 = vmatpush.msra.mxu0 %v244
    %591 = vmatpush.msra.mxu0 %v243
    %592 = vmatpush.msra.mxu0 %v242
    %593 = vmatpush.msra.mxu0 %v241
    %594 = vmatpush.msra.mxu0 %v240
    %595 = vmatpush.msra.mxu0 %v239
    %596 = vmatpush.msra.mxu0 %v238
    %597 = vmatpush.msra.mxu0 %v237
    %598 = vmatpush.msra.mxu0 %v236
    %599 = vmatpush.msra.mxu0 %v235
    %600 = vmatpush.msra.mxu0 %v234
    %601 = vmatpush.msra.mxu0 %v233
    %602 = vmatmul.f32.gmra.mxu0 %v307
    %v603 = vpop.f32.mrf.mxu0
    %v604 = vadd.f32 %v584, %v603
    %605 = vdwg.mxu0
    %606 = vmatpush.msra.mxu0 %v264
    %607 = vmatpush.msra.mxu0 %v263
    %608 = vmatpush.msra.mxu0 %v262
    %609 = vmatpush.msra.mxu0 %v261
    %610 = vmatpush.msra.mxu0 %v260
    %611 = vmatpush.msra.mxu0 %v259
    %612 = vmatpush.msra.mxu0 %v258
    %613 = vmatpush.msra.mxu0 %v257
    %614 = vmatpush.msra.mxu0 %v256
    %615 = vmatpush.msra.mxu0 %v255
    %616 = vmatpush.msra.mxu0 %v254
    %617 = vmatpush.msra.mxu0 %v253
    %618 = vmatpush.msra.mxu0 %v252
    %619 = vmatpush.msra.mxu0 %v251
    %620 = vmatpush.msra.mxu0 %v250
    %621 = vmatpush.msra.mxu0 %v249
    %622 = vmatmul.f32.gmra.mxu0 %v308
    %v623 = vpop.f32.mrf.mxu0
    %v624 = vadd.f32 %v604, %v623
    %625 = vdwg.mxu0
    %626 = vmatpush.msra.mxu0 %v280
    %627 = vmatpush.msra.mxu0 %v279
    %628 = vmatpush.msra.mxu0 %v278
    %629 = vmatpush.msra.mxu0 %v277
    %630 = vmatpush.msra.mxu0 %v276
    %631 = vmatpush.msra.mxu0 %v275
    %632 = vmatpush.msra.mxu0 %v274
    %633 = vmatpush.msra.mxu0 %v273
    %634 = vmatpush.msra.mxu0 %v272
    %635 = vmatpush.msra.mxu0 %v271
    %636 = vmatpush.msra.mxu0 %v270
    %637 = vmatpush.msra.mxu0 %v269
    %638 = vmatpush.msra.mxu0 %v268
    %639 = vmatpush.msra.mxu0 %v267
    %640 = vmatpush.msra.mxu0 %v266
    %641 = vmatpush.msra.mxu0 %v265
    %642 = vmatmul.f32.gmra.mxu0 %v309
    %v643 = vpop.f32.mrf.mxu0
    %v644 = vadd.f32 %v624, %v643
    %645 = vdwg.mxu0
    %v646 = vmax.f32 %v644, 0.0
    %v647 = vld [vmem:[%s3] sm:$0xff]
    %v648 = vld [vmem:[%s3 + $0x8] sm:$0xff]
    %v649 = vld [vmem:[%s3 + $0x10] sm:$0xff]
    %v650 = vld [vmem:[%s3 + $0x18] sm:$0xff]
    %v651 = vld [vmem:[%s4] sm:$0x1]
    %v653 = vperm.slane %v651, 0
    %vm655 = vcmask 261120
    %v657 = vsel %vm655, %v646, 0
    %659 = vmatpush.msra.mxu0 0.0
    %660 = vmatpush.msra.mxu0 0.0
    %661 = vmatpush.msra.mxu0 0.0
    %662 = vmatpush.msra.mxu0 0.0
    %663 = vmatpush.msra.mxu0 0.0
    %664 = vmatpush.msra.mxu0 0.0
    %665 = vmatpush.msra.mxu0 0.0
    %666 = vmatpush.msra.mxu0 0.0
    %667 = vmatpush.msra.mxu0 0.0
    %668 = vmatpush.msra.mxu0 0.0
    %669 = vmatpush.msra.mxu0 0.0
    %670 = vmatpush.msra.mxu0 0.0
    %671 = vmatpush.msra.mxu0 %v650
    %672 = vmatpush.msra.mxu0 %v649
    %673 = vmatpush.msra.mxu0 %v648
    %674 = vmatpush.msra.mxu0 %v647
    %675 = vmatmul.f32.gmra.mxu0 %v657
    %v676 = vpop.f32.mrf.mxu0
    %v677 = vadd.f32 %v653, %v676
    %678 = vdwg.mxu0
    %vm679 = vcmask 74752
    %680 = vst.msk [vmem:[#allocation2] sm:$0x3] %vm679, %v677
    // Predicated region
    $region22: #{cnn_forward.3} parent=1 // pred_check
      _
    $region23: #{cnn_forward.3} parent=1 // pred_check_branch
      %682 = sbr.rel (0) target = $region25
    $region24: #{cnn_forward.3} parent=1 // pred_region
      %684 = vsyncadd [#allocation3], 0
      %s686 = sshll.u32 [#allocation2], 4
      %s687 = int_to_ptr.vmem [resolvable:$true] %s686
      %s688 = sshll.u32 %s5, 4
      %s689 = int_to_ptr.hbm [resolvable:$true] %s688
      %691 = dma.vmem_to_hbm [thread:$0]  %s687, 32, %s689, [#allocation3]
    $region25: #{cnn_forward.3} parent=1 // pred_fallthru
      _
    // Predicated region
    $region26: #{cnn_forward.3} parent=1 // pred_check
      _
    $region27: #{cnn_forward.3} parent=1 // pred_check_branch
      %693 = sbr.rel (0) target = $region29
    $region28: #{cnn_forward.3} parent=1 // pred_region
      %695 = dma.done [#allocation3], 32
    $region29: #{cnn_forward.3} parent=1 // pred_fallthru
      _
    %696 = vsyncpa [#allocation3], 1

// kernel: cnn_forward.2
$region0: #{cnn_forward.2}
  #allocation0 [shape = 'u32[]', space=smem, size = 0x4, offset = 0x4, fixed_abs, tag = 'smem constant byte address 0x4 - core index']
  #allocation1 [shape = 'u32[72,128]{1,0:T(1,128)}', space=vmem, size = 0x9000, scoped, tag = 'internal scratch']
  #allocation2 [shape = 'f32[18,18,32]{2,1,0:T(8,128)}', space=vmem, size = 0x36000, scoped, tag = 'scratch operand']
  #allocation3 [shape = 'f32[18,18,32]{2,1,0:T(8,128)}', space=vmem, size = 0x36000, scoped, tag = 'scratch operand']
  #allocation4 [shape = 'f32[8,16,32]{2,1,0:T(8,128)}', space=vmem, size = 0x10000, scoped, tag = 'scratch operand']
  %s0 = inlined_call_operand.vmem [shape: f32[2,16,16,9], index: 0, kind: input, shape index: {}]
  %s1 = inlined_call_operand.vmem [shape: f32[9,32], index: 1, kind: input, shape index: {}]
  %s2 = inlined_call_operand.vmem [shape: f32[1,32], index: 2, kind: input, shape index: {}]
  %s3 = inlined_call_operand.vmem [shape: f32[9,32,32], index: 3, kind: input, shape index: {}]
  %s4 = inlined_call_operand.vmem [shape: f32[1,32], index: 4, kind: input, shape index: {}]
  %s5 = inlined_call_operand.vmem [shape: f32[9,32,32], index: 5, kind: input, shape index: {}]
  %s6 = inlined_call_operand.vmem [shape: f32[1,32], index: 6, kind: input, shape index: {}]
  %s7 = inlined_call_operand.vmem [shape: f32[9,32,32], index: 7, kind: input, shape index: {}]
  %s8 = inlined_call_operand.vmem [shape: f32[1,32], index: 8, kind: input, shape index: {}]
  %s9 = inlined_call_operand.vmem [shape: f32[2,8,8,32], index: 9, kind: output, shape index: {}]
  %s10 = sld [smem:[#allocation0]]
  $region69: #{cnn_forward.2} parent=0
    _
  %s12 = ssub.s32 1, %s10
  %s13 = scalar_select 0, %s12, %s10
  loop: start=0, step=1, limit=4
  $region2: #{cnn_forward.2} parent=0 // loop_pre_header
    _
  $region3: #{cnn_forward.2} parent=0 // loop_header
    %s15 = sphi 0, %s19
    %p16 = scmp.ge.s32.totalorder %s15, 4
    %s25 = sphi 0, %s27
    %s28 = sphi 0, %s25
    %s29 = sphi 0, %s28
    %s45 = sphi 0, %s29
    %s49 = sphi 0, %s49
    %s51 = sphi 0, %s49
    %s52 = sphi 0, %s51
    %s66 = sphi 0, %s52
    %s70 = sphi 0, %s70
    %s72 = sphi 0, %s70
    %s73 = sphi 0, %s72
    %s87 = sphi 0, %s73
    %s91 = sphi 0, %s91
    %s93 = sphi 0, %s91
    %s94 = sphi 0, %s93
    %s108 = sphi 0, %s94
    %s112 = sphi 0, %s112
    %s114 = sphi 0, %s112
    %s115 = sphi 0, %s114
    %s129 = sphi 0, %s115
    %s133 = sphi 0, %s133
    %s135 = sphi 0, %s133
    %s136 = sphi 0, %s135
    %s150 = sphi 0, %s136
    %s154 = sphi 0, %s154
    %s156 = sphi 0, %s154
    %s157 = sphi 0, %s156
    %s171 = sphi 0, %s157
    %s175 = sphi 0, %s175
    %s177 = sphi 0, %s175
    %s178 = sphi 0, %s177
    %s192 = sphi 0, %s178
    %s196 = sphi 0, %s196
    %s198 = sphi 0, %s196
    %s199 = sphi 0, %s198
    %s213 = sphi 0, %s199
    %s219 = sphi 0, %s221
    %s222 = sphi 0, %s219
    %s223 = sphi 0, %s222
    %s239 = sphi 0, %s223
  $region4: #{cnn_forward.2} parent=0 // loop_header_branch
    %18 = sbr.rel (%p16) target = $region8
  $region5: #{cnn_forward.2} parent=0 // loop_body
    %s20 = ssub.s32 %s15, 1
    %s21 = ssub.s32 %s15, 2
    %s22 = sadd.s32 %s15, 1
    %s23 = ssub.s32 %s15, %s22
    %p24 = scmp.eq.s32.totalorder %s23, 0
    %s26 = sadd.s32 %s25, 1
    %s27 = scalar_select %p24, %s25, %s26
    %p30 = pneg %p24
    %p31 = scmp.eq.s32.totalorder %s15, 1
    %p32 = por %p30, %p31
    %p33 = scmp.ne.s32.totalorder %s25, %s28
    %p34 = scmp.eq.s32.totalorder %s15, 0
    %p35 = por %p33, %p34
    %p36 = scmp.ne.s32.totalorder %s25, %s28
    %p37 = scmp.eq.s32.totalorder %s20, 1
    %p38 = por %p36, %p37
    %p39 = scmp.ne.s32.totalorder %s28, %s29
    %p40 = scmp.eq.s32.totalorder %s20, 0
    %p41 = por %p39, %p40
    %p42 = scmp.ne.s32.totalorder %s28, %s29
    %p43 = scmp.eq.s32.totalorder %s21, 1
    %p44 = por %p42, %p43
    %p46 = scmp.ne.s32.totalorder %s29, %s45
    %p47 = scmp.eq.s32.totalorder %s21, 0
    %p48 = por %p46, %p47
    %s50 = sadd.s32 %s49, 1
    %p53 = scmp.eq.s32.totalorder %s15, 1
    %p54 = scmp.ne.s32.totalorder %s49, %s51
    %p55 = scmp.eq.s32.totalorder %s15, 0
    %p56 = por %p54, %p55
    %p57 = scmp.ne.s32.totalorder %s49, %s51
    %p58 = scmp.eq.s32.totalorder %s20, 1
    %p59 = por %p57, %p58
    %p60 = scmp.ne.s32.totalorder %s51, %s52
    %p61 = scmp.eq.s32.totalorder %s20, 0
    %p62 = por %p60, %p61
    %p63 = scmp.ne.s32.totalorder %s51, %s52
    %p64 = scmp.eq.s32.totalorder %s21, 1
    %p65 = por %p63, %p64
    %p67 = scmp.ne.s32.totalorder %s52, %s66
    %p68 = scmp.eq.s32.totalorder %s21, 0
    %p69 = por %p67, %p68
    %s71 = sadd.s32 %s70, 1
    %p74 = scmp.eq.s32.totalorder %s15, 1
    %p75 = scmp.ne.s32.totalorder %s70, %s72
    %p76 = scmp.eq.s32.totalorder %s15, 0
    %p77 = por %p75, %p76
    %p78 = scmp.ne.s32.totalorder %s70, %s72
    %p79 = scmp.eq.s32.totalorder %s20, 1
    %p80 = por %p78, %p79
    %p81 = scmp.ne.s32.totalorder %s72, %s73
    %p82 = scmp.eq.s32.totalorder %s20, 0
    %p83 = por %p81, %p82
    %p84 = scmp.ne.s32.totalorder %s72, %s73
    %p85 = scmp.eq.s32.totalorder %s21, 1
    %p86 = por %p84, %p85
    %p88 = scmp.ne.s32.totalorder %s73, %s87
    %p89 = scmp.eq.s32.totalorder %s21, 0
    %p90 = por %p88, %p89
    %s92 = sadd.s32 %s91, 1
    %p95 = scmp.eq.s32.totalorder %s15, 1
    %p96 = scmp.ne.s32.totalorder %s91, %s93
    %p97 = scmp.eq.s32.totalorder %s15, 0
    %p98 = por %p96, %p97
    %p99 = scmp.ne.s32.totalorder %s91, %s93
    %p100 = scmp.eq.s32.totalorder %s20, 1
    %p101 = por %p99, %p100
    %p102 = scmp.ne.s32.totalorder %s93, %s94
    %p103 = scmp.eq.s32.totalorder %s20, 0
    %p104 = por %p102, %p103
    %p105 = scmp.ne.s32.totalorder %s93, %s94
    %p106 = scmp.eq.s32.totalorder %s21, 1
    %p107 = por %p105, %p106
    %p109 = scmp.ne.s32.totalorder %s94, %s108
    %p110 = scmp.eq.s32.totalorder %s21, 0
    %p111 = por %p109, %p110
    %s113 = sadd.s32 %s112, 1
    %p116 = scmp.eq.s32.totalorder %s15, 1
    %p117 = scmp.ne.s32.totalorder %s112, %s114
    %p118 = scmp.eq.s32.totalorder %s15, 0
    %p119 = por %p117, %p118
    %p120 = scmp.ne.s32.totalorder %s112, %s114
    %p121 = scmp.eq.s32.totalorder %s20, 1
    %p122 = por %p120, %p121
    %p123 = scmp.ne.s32.totalorder %s114, %s115
    %p124 = scmp.eq.s32.totalorder %s20, 0
    %p125 = por %p123, %p124
    %p126 = scmp.ne.s32.totalorder %s114, %s115
    %p127 = scmp.eq.s32.totalorder %s21, 1
    %p128 = por %p126, %p127
    %p130 = scmp.ne.s32.totalorder %s115, %s129
    %p131 = scmp.eq.s32.totalorder %s21, 0
    %p132 = por %p130, %p131
    %s134 = sadd.s32 %s133, 1
    %p137 = scmp.eq.s32.totalorder %s15, 1
    %p138 = scmp.ne.s32.totalorder %s133, %s135
    %p139 = scmp.eq.s32.totalorder %s15, 0
    %p140 = por %p138, %p139
    %p141 = scmp.ne.s32.totalorder %s133, %s135
    %p142 = scmp.eq.s32.totalorder %s20, 1
    %p143 = por %p141, %p142
    %p144 = scmp.ne.s32.totalorder %s135, %s136
    %p145 = scmp.eq.s32.totalorder %s20, 0
    %p146 = por %p144, %p145
    %p147 = scmp.ne.s32.totalorder %s135, %s136
    %p148 = scmp.eq.s32.totalorder %s21, 1
    %p149 = por %p147, %p148
    %p151 = scmp.ne.s32.totalorder %s136, %s150
    %p152 = scmp.eq.s32.totalorder %s21, 0
    %p153 = por %p151, %p152
    %s155 = sadd.s32 %s154, 1
    %p158 = scmp.eq.s32.totalorder %s15, 1
    %p159 = scmp.ne.s32.totalorder %s154, %s156
    %p160 = scmp.eq.s32.totalorder %s15, 0
    %p161 = por %p159, %p160
    %p162 = scmp.ne.s32.totalorder %s154, %s156
    %p163 = scmp.eq.s32.totalorder %s20, 1
    %p164 = por %p162, %p163
    %p165 = scmp.ne.s32.totalorder %s156, %s157
    %p166 = scmp.eq.s32.totalorder %s20, 0
    %p167 = por %p165, %p166
    %p168 = scmp.ne.s32.totalorder %s156, %s157
    %p169 = scmp.eq.s32.totalorder %s21, 1
    %p170 = por %p168, %p169
    %p172 = scmp.ne.s32.totalorder %s157, %s171
    %p173 = scmp.eq.s32.totalorder %s21, 0
    %p174 = por %p172, %p173
    %s176 = sadd.s32 %s175, 1
    %p179 = scmp.eq.s32.totalorder %s15, 1
    %p180 = scmp.ne.s32.totalorder %s175, %s177
    %p181 = scmp.eq.s32.totalorder %s15, 0
    %p182 = por %p180, %p181
    %p183 = scmp.ne.s32.totalorder %s175, %s177
    %p184 = scmp.eq.s32.totalorder %s20, 1
    %p185 = por %p183, %p184
    %p186 = scmp.ne.s32.totalorder %s177, %s178
    %p187 = scmp.eq.s32.totalorder %s20, 0
    %p188 = por %p186, %p187
    %p189 = scmp.ne.s32.totalorder %s177, %s178
    %p190 = scmp.eq.s32.totalorder %s21, 1
    %p191 = por %p189, %p190
    %p193 = scmp.ne.s32.totalorder %s178, %s192
    %p194 = scmp.eq.s32.totalorder %s21, 0
    %p195 = por %p193, %p194
    %s197 = sadd.s32 %s196, 1
    %p200 = scmp.eq.s32.totalorder %s15, 1
    %p201 = scmp.ne.s32.totalorder %s196, %s198
    %p202 = scmp.eq.s32.totalorder %s15, 0
    %p203 = por %p201, %p202
    %p204 = scmp.ne.s32.totalorder %s196, %s198
    %p205 = scmp.eq.s32.totalorder %s20, 1
    %p206 = por %p204, %p205
    %p207 = scmp.ne.s32.totalorder %s198, %s199
    %p208 = scmp.eq.s32.totalorder %s20, 0
    %p209 = por %p207, %p208
    %p210 = scmp.ne.s32.totalorder %s198, %s199
    %p211 = scmp.eq.s32.totalorder %s21, 1
    %p212 = por %p210, %p211
    %p214 = scmp.ne.s32.totalorder %s199, %s213
    %p215 = scmp.eq.s32.totalorder %s21, 0
    %p216 = por %p214, %p215
    %s217 = ssub.s32 %s15, %s22
    %p218 = scmp.eq.s32.totalorder %s217, 0
    %s220 = sadd.s32 %s219, 1
    %s221 = scalar_select %p218, %s219, %s220
    %p224 = pneg %p218
    %p225 = scmp.eq.s32.totalorder %s15, 1
    %p226 = por %p224, %p225
    %p227 = scmp.ne.s32.totalorder %s219, %s222
    %p228 = scmp.eq.s32.totalorder %s15, 0
    %p229 = por %p227, %p228
    %p230 = scmp.ne.s32.totalorder %s219, %s222
    %p231 = scmp.eq.s32.totalorder %s20, 1
    %p232 = por %p230, %p231
    %p233 = scmp.ne.s32.totalorder %s222, %s223
    %p234 = scmp.eq.s32.totalorder %s20, 0
    %p235 = por %p233, %p234
    %p236 = scmp.ne.s32.totalorder %s222, %s223
    %p237 = scmp.eq.s32.totalorder %s21, 1
    %p238 = por %p236, %p237
    %p240 = scmp.ne.s32.totalorder %s223, %s239
    %p241 = scmp.eq.s32.totalorder %s21, 0
    %p242 = por %p240, %p241
    %p243 = scmp.le.s32.totalorder 1, %s15
    %p244 = scmp.lt.s32.totalorder %s15, 3
    %p245 = pnand %p243, %p244
    %p246 = pneg %p245
    // Predicated region
    $region9: #{cnn_forward.2} parent=5 // pred_check
      _
    $region10: #{cnn_forward.2} parent=5 // pred_check_branch
      %248 = sbr.rel (%p245) target = $region12
    $region11: #{cnn_forward.2} parent=5 // pred_region
      %s249 = ssub.s32 %s15, 1
      // Predicated region
      $region13: #{cnn_forward.2} parent=11 // pred_check
        %p250 = pneg %p62
      $region14: #{cnn_forward.2} parent=11 // pred_check_branch
        %252 = sbr.rel (%p250) target = $region16
      $region15: #{cnn_forward.2} parent=11 // pred_region
        _
      $region16: #{cnn_forward.2} parent=11 // pred_fallthru
        _
      // Predicated region
      $region17: #{cnn_forward.2} parent=11 // pred_check
        %p253 = pneg %p83
      $region18: #{cnn_forward.2} parent=11 // pred_check_branch
        %255 = sbr.rel (%p253) target = $region20
      $region19: #{cnn_forward.2} parent=11 // pred_region
        _
      $region20: #{cnn_forward.2} parent=11 // pred_fallthru
        _
      // Predicated region
      $region21: #{cnn_forward.2} parent=11 // pred_check
        %p256 = pneg %p104
      $region22: #{cnn_forward.2} parent=11 // pred_check_branch
        %258 = sbr.rel (%p256) target = $region24
      $region23: #{cnn_forward.2} parent=11 // pred_region
        _
      $region24: #{cnn_forward.2} parent=11 // pred_fallthru
        _
      // Predicated region
      $region25: #{cnn_forward.2} parent=11 // pred_check
        %p259 = pneg %p125
      $region26: #{cnn_forward.2} parent=11 // pred_check_branch
        %261 = sbr.rel (%p259) target = $region28
      $region27: #{cnn_forward.2} parent=11 // pred_region
        _
      $region28: #{cnn_forward.2} parent=11 // pred_fallthru
        _
      // Predicated region
      $region29: #{cnn_forward.2} parent=11 // pred_check
        %p262 = pneg %p146
      $region30: #{cnn_forward.2} parent=11 // pred_check_branch
        %264 = sbr.rel (%p262) target = $region32
      $region31: #{cnn_forward.2} parent=11 // pred_region
        _
      $region32: #{cnn_forward.2} parent=11 // pred_fallthru
        _
      // Predicated region
      $region33: #{cnn_forward.2} parent=11 // pred_check
        %p265 = pneg %p167
      $region34: #{cnn_forward.2} parent=11 // pred_check_branch
        %267 = sbr.rel (%p265) target = $region36
      $region35: #{cnn_forward.2} parent=11 // pred_region
        _
      $region36: #{cnn_forward.2} parent=11 // pred_fallthru
        _
      // Predicated region
      $region37: #{cnn_forward.2} parent=11 // pred_check
        %p268 = pneg %p188
      $region38: #{cnn_forward.2} parent=11 // pred_check_branch
        %270 = sbr.rel (%p268) target = $region40
      $region39: #{cnn_forward.2} parent=11 // pred_region
        _
      $region40: #{cnn_forward.2} parent=11 // pred_fallthru
        _
      // Predicated region
      $region41: #{cnn_forward.2} parent=11 // pred_check
        %p271 = pneg %p209
      $region42: #{cnn_forward.2} parent=11 // pred_check_branch
        %273 = sbr.rel (%p271) target = $region44
      $region43: #{cnn_forward.2} parent=11 // pred_region
        _
      $region44: #{cnn_forward.2} parent=11 // pred_fallthru
        _
    $region12: #{cnn_forward.2} parent=5 // pred_fallthru
      _
    %p274 = scmp.lt.s32.totalorder %s15, 2
    // Predicated region
    $region45: #{cnn_forward.2} parent=5 // pred_check
      %p275 = pneg %p274
    $region46: #{cnn_forward.2} parent=5 // pred_check_branch
      %277 = sbr.rel (%p275) target = $region48
    $region47: #{cnn_forward.2} parent=5 // pred_region
      // Predicated region
      $region49: #{cnn_forward.2} parent=47 // pred_check
        %p278 = pneg %p35
      $region50: #{cnn_forward.2} parent=47 // pred_check_branch
        %280 = sbr.rel (%p278) target = $region52
      $region51: #{cnn_forward.2} parent=47 // pred_region
        %p281 = scmp.lt.s32.totalorder %s15, 1
        %s282 = scalar_select %p281, %s15, 1
        %s283 = smul.addr %s282, 32
        %s284 = smul.addr %s283, 8
        %s285 = scalar_lea.vmem %s0, %s284
      $region52: #{cnn_forward.2} parent=47 // pred_fallthru
        _
    $region48: #{cnn_forward.2} parent=5 // pred_fallthru
      _
    %p286 = scmp.le.s32.totalorder 1, %s15
    %p287 = scmp.lt.s32.totalorder %s15, 3
    %p288 = pnand %p286, %p287
    %p289 = pneg %p288
    // Predicated region
    $region53: #{cnn_forward.2} parent=5 // pred_check
      _
    $region54: #{cnn_forward.2} parent=5 // pred_check_branch
      %291 = sbr.rel (%p288) target = $region56
    $region55: #{cnn_forward.2} parent=5 // pred_region
      %s292 = ssub.s32 %s15, 1
      %p293 = scmp.lt.s32.totalorder %s20, 1
      %s294 = scalar_select %p293, %s20, 1
      %s295 = smul.addr %s294, 32
      %s296 = smul.addr %s295, 8
      %s297 = scalar_lea.vmem %s0, %s296
      %p298 = pneg %p41
      %p299 = pneg %p38
      %p300 = pneg %p62
      %p301 = pneg %p59
      %p302 = pneg %p83
      %p303 = pneg %p80
      %p304 = pneg %p104
      %p305 = pneg %p101
      %p306 = pneg %p125
      %p307 = pneg %p122
      %p308 = pneg %p146
      %p309 = pneg %p143
      %p310 = pneg %p167
      %p311 = pneg %p164
      %p312 = pneg %p188
      %p313 = pneg %p185
      %p314 = pneg %p209
      %p315 = pneg %p206
      %p316 = pneg %p235
      %p317 = pneg %p232
      %p318 = scmp.lt.s32.totalorder %s20, 1
      %s319 = scalar_select %p318, %s20, 1
      %s320 = smul.addr %s319, 8
      %s321 = smul.addr %s320, 8
      %s322 = scalar_lea.vmem %s9, %s321
      %p323 = scmp.lt.s32.totalorder %s20, 1
      %s324 = scalar_select %p323, %s20, 1
      %s325 = smul.addr %s324, 32
      %s326 = smul.addr %s325, 8
      %s327 = scalar_lea.vmem %s0, %s326
      %p328 = scmp.lt.s32.totalorder %s20, 1
      %s329 = scalar_select %p328, %s20, 1
      %s330 = smul.addr %s329, 8
      %s331 = smul.addr %s330, 8
      %s332 = scalar_lea.vmem %s9, %s331
      %vm333 = vcmask 261120
      %334 = vst.msk [vmem:[#allocation2] sm:$0xff] %vm333, 0.0
      %335 = vst.msk [vmem:[#allocation2 + $0x8] sm:$0xff] %vm333, 0.0
      %vm336 = vcmask 254976
      %337 = vst.msk [vmem:[#allocation2 + $0x10] sm:$0x3] %vm336, 0.0
      %s338 = scalar_lea.vmem [#allocation2], 408
      %339 = vst.msk [vmem:[%s338] sm:$0xff] %vm333, 0.0
      %340 = vst.msk [vmem:[%s338 + $0x8] sm:$0xff] %vm333, 0.0
      %341 = vst.msk [vmem:[%s338 + $0x10] sm:$0x3] %vm336, 0.0
      %vm342 = vcmask 253952
      %343 = vst.msk [vmem:[#allocation2] sm:$0x1] %vm342, 0.0
      %344 = vst.msk [vmem:[#allocation2 + $0x18] sm:$0x1] %vm342, 0.0
      %345 = vst.msk [vmem:[#allocation2 + $0x30] sm:$0x1] %vm342, 0.0
      %346 = vst.msk [vmem:[#allocation2 + $0x48] sm:$0x1] %vm342, 0.0
      %347 = vst.msk [vmem:[#allocation2 + $0x60] sm:$0x1] %vm342, 0.0
      %348 = vst.msk [vmem:[#allocation2 + $0x78] sm:$0x1] %vm342, 0.0
      %349 = vst.msk [vmem:[#allocation2 + $0x90] sm:$0x1] %vm342, 0.0
      %350 = vst.msk [vmem:[#allocation2 + $0xa8] sm:$0x1] %vm342, 0.0
      %351 = vst.msk [vmem:[#allocation2 + $0xc0] sm:$0x1] %vm342, 0.0
      %352 = vst.msk [vmem:[#allocation2 + $0xd8] sm:$0x1] %vm342, 0.0
      %353 = vst.msk [vmem:[#allocation2 + $0xf0] sm:$0x1] %vm342, 0.0
      %354 = vst.msk [vmem:[#allocation2 + $0x108] sm:$0x1] %vm342, 0.0
      %355 = vst.msk [vmem:[#allocation2 + $0x120] sm:$0x1] %vm342, 0.0
      %356 = vst.msk [vmem:[#allocation2 + $0x138] sm:$0x1] %vm342, 0.0
      %357 = vst.msk [vmem:[#allocation2 + $0x150] sm:$0x1] %vm342, 0.0
      %358 = vst.msk [vmem:[#allocation2 + $0x168] sm:$0x1] %vm342, 0.0
      %359 = vst.msk [vmem:[#allocation2 + $0x180] sm:$0x1] %vm342, 0.0
      %360 = vst.msk [vmem:[#allocation2 + $0x198] sm:$0x1] %vm342, 0.0
      %361 = vst.msk [vmem:[#allocation2 + $0x11] sm:$0x1] %vm342, 0.0
      %362 = vst.msk [vmem:[#allocation2 + $0x29] sm:$0x1] %vm342, 0.0
      %363 = vst.msk [vmem:[#allocation2 + $0x41] sm:$0x1] %vm342, 0.0
      %364 = vst.msk [vmem:[#allocation2 + $0x59] sm:$0x1] %vm342, 0.0
      %365 = vst.msk [vmem:[#allocation2 + $0x71] sm:$0x1] %vm342, 0.0
      %366 = vst.msk [vmem:[#allocation2 + $0x89] sm:$0x1] %vm342, 0.0
      %367 = vst.msk [vmem:[#allocation2 + $0xa1] sm:$0x1] %vm342, 0.0
      %368 = vst.msk [vmem:[#allocation2 + $0xb9] sm:$0x1] %vm342, 0.0
      %369 = vst.msk [vmem:[#allocation2 + $0xd1] sm:$0x1] %vm342, 0.0
      %370 = vst.msk [vmem:[#allocation2 + $0xe9] sm:$0x1] %vm342, 0.0
      %371 = vst.msk [vmem:[#allocation2 + $0x101] sm:$0x1] %vm342, 0.0
      %372 = vst.msk [vmem:[#allocation2 + $0x119] sm:$0x1] %vm342, 0.0
      %373 = vst.msk [vmem:[#allocation2 + $0x131] sm:$0x1] %vm342, 0.0
      %374 = vst.msk [vmem:[#allocation2 + $0x149] sm:$0x1] %vm342, 0.0
      %375 = vst.msk [vmem:[#allocation2 + $0x161] sm:$0x1] %vm342, 0.0
      %376 = vst.msk [vmem:[#allocation2 + $0x179] sm:$0x1] %vm342, 0.0
      %377 = vst.msk [vmem:[#allocation2 + $0x191] sm:$0x1] %vm342, 0.0
      %378 = vst.msk [vmem:[#allocation2 + $0x1a9] sm:$0x1] %vm342, 0.0
      %379 = vst.msk [vmem:[#allocation3] sm:$0xff] %vm333, 0.0
      %380 = vst.msk [vmem:[#allocation3 + $0x8] sm:$0xff] %vm333, 0.0
      %381 = vst.msk [vmem:[#allocation3 + $0x10] sm:$0x3] %vm336, 0.0
      %s382 = scalar_lea.vmem [#allocation3], 408
      %383 = vst.msk [vmem:[%s382] sm:$0xff] %vm333, 0.0
      %384 = vst.msk [vmem:[%s382 + $0x8] sm:$0xff] %vm333, 0.0
      %385 = vst.msk [vmem:[%s382 + $0x10] sm:$0x3] %vm336, 0.0
      %386 = vst.msk [vmem:[#allocation3] sm:$0x1] %vm342, 0.0
      %387 = vst.msk [vmem:[#allocation3 + $0x18] sm:$0x1] %vm342, 0.0
      %388 = vst.msk [vmem:[#allocation3 + $0x30] sm:$0x1] %vm342, 0.0
      %389 = vst.msk [vmem:[#allocation3 + $0x48] sm:$0x1] %vm342, 0.0
      %390 = vst.msk [vmem:[#allocation3 + $0x60] sm:$0x1] %vm342, 0.0
      %391 = vst.msk [vmem:[#allocation3 + $0x78] sm:$0x1] %vm342, 0.0
      %392 = vst.msk [vmem:[#allocation3 + $0x90] sm:$0x1] %vm342, 0.0
      %393 = vst.msk [vmem:[#allocation3 + $0xa8] sm:$0x1] %vm342, 0.0
      %394 = vst.msk [vmem:[#allocation3 + $0xc0] sm:$0x1] %vm342, 0.0
      %395 = vst.msk [vmem:[#allocation3 + $0xd8] sm:$0x1] %vm342, 0.0
      %396 = vst.msk [vmem:[#allocation3 + $0xf0] sm:$0x1] %vm342, 0.0
      %397 = vst.msk [vmem:[#allocation3 + $0x108] sm:$0x1] %vm342, 0.0
      %398 = vst.msk [vmem:[#allocation3 + $0x120] sm:$0x1] %vm342, 0.0
      %399 = vst.msk [vmem:[#allocation3 + $0x138] sm:$0x1] %vm342, 0.0
      %400 = vst.msk [vmem:[#allocation3 + $0x150] sm:$0x1] %vm342, 0.0
      %401 = vst.msk [vmem:[#allocation3 + $0x168] sm:$0x1] %vm342, 0.0
      %402 = vst.msk [vmem:[#allocation3 + $0x180] sm:$0x1] %vm342, 0.0
      %403 = vst.msk [vmem:[#allocation3 + $0x198] sm:$0x1] %vm342, 0.0
      %404 = vst.msk [vmem:[#allocation3 + $0x11] sm:$0x1] %vm342, 0.0
      %405 = vst.msk [vmem:[#allocation3 + $0x29] sm:$0x1] %vm342, 0.0
      %406 = vst.msk [vmem:[#allocation3 + $0x41] sm:$0x1] %vm342, 0.0
      %407 = vst.msk [vmem:[#allocation3 + $0x59] sm:$0x1] %vm342, 0.0
      %408 = vst.msk [vmem:[#allocation3 + $0x71] sm:$0x1] %vm342, 0.0
      %409 = vst.msk [vmem:[#allocation3 + $0x89] sm:$0x1] %vm342, 0.0
      %410 = vst.msk [vmem:[#allocation3 + $0xa1] sm:$0x1] %vm342, 0.0
      %411 = vst.msk [vmem:[#allocation3 + $0xb9] sm:$0x1] %vm342, 0.0
      %412 = vst.msk [vmem:[#allocation3 + $0xd1] sm:$0x1] %vm342, 0.0
      %413 = vst.msk [vmem:[#allocation3 + $0xe9] sm:$0x1] %vm342, 0.0
      %414 = vst.msk [vmem:[#allocation3 + $0x101] sm:$0x1] %vm342, 0.0
      %415 = vst.msk [vmem:[#allocation3 + $0x119] sm:$0x1] %vm342, 0.0
      %416 = vst.msk [vmem:[#allocation3 + $0x131] sm:$0x1] %vm342, 0.0
      %417 = vst.msk [vmem:[#allocation3 + $0x149] sm:$0x1] %vm342, 0.0
      %418 = vst.msk [vmem:[#allocation3 + $0x161] sm:$0x1] %vm342, 0.0
      %419 = vst.msk [vmem:[#allocation3 + $0x179] sm:$0x1] %vm342, 0.0
      %420 = vst.msk [vmem:[#allocation3 + $0x191] sm:$0x1] %vm342, 0.0
      %421 = vst.msk [vmem:[#allocation3 + $0x1a9] sm:$0x1] %vm342, 0.0
      %v422 = vld [vmem:[%s327] sm:$0xff]
      %v423 = vld [vmem:[%s327 + $0x8] sm:$0xff]
      %v424 = vld [vmem:[%s327 + $0x10] sm:$0xff]
      %v425 = vld [vmem:[%s327 + $0x18] sm:$0xff]
      %v426 = vld [vmem:[%s327 + $0x20] sm:$0xff]
      %v427 = vld [vmem:[%s327 + $0x28] sm:$0xff]
      %v428 = vld [vmem:[%s327 + $0x30] sm:$0xff]
      %v429 = vld [vmem:[%s327 + $0x38] sm:$0xff]
      %v430 = vld [vmem:[%s327 + $0x40] sm:$0xff]
      %v431 = vld [vmem:[%s327 + $0x48] sm:$0xff]
      %v432 = vld [vmem:[%s327 + $0x50] sm:$0xff]
      %v433 = vld [vmem:[%s327 + $0x58] sm:$0xff]
      %v434 = vld [vmem:[%s327 + $0x60] sm:$0xff]
      %v435 = vld [vmem:[%s327 + $0x68] sm:$0xff]
      %v436 = vld [vmem:[%s327 + $0x70] sm:$0xff]
      %v437 = vld [vmem:[%s327 + $0x78] sm:$0xff]
      %v438 = vld [vmem:[%s327 + $0x80] sm:$0xff]
      %v439 = vld [vmem:[%s327 + $0x88] sm:$0xff]
      %v440 = vld [vmem:[%s327 + $0x90] sm:$0xff]
      %v441 = vld [vmem:[%s327 + $0x98] sm:$0xff]
      %v442 = vld [vmem:[%s327 + $0xa0] sm:$0xff]
      %v443 = vld [vmem:[%s327 + $0xa8] sm:$0xff]
      %v444 = vld [vmem:[%s327 + $0xb0] sm:$0xff]
      %v445 = vld [vmem:[%s327 + $0xb8] sm:$0xff]
      %v446 = vld [vmem:[%s327 + $0xc0] sm:$0xff]
      %v447 = vld [vmem:[%s327 + $0xc8] sm:$0xff]
      %v448 = vld [vmem:[%s327 + $0xd0] sm:$0xff]
      %v449 = vld [vmem:[%s327 + $0xd8] sm:$0xff]
      %v450 = vld [vmem:[%s327 + $0xe0] sm:$0xff]
      %v451 = vld [vmem:[%s327 + $0xe8] sm:$0xff]
      %v452 = vld [vmem:[%s327 + $0xf0] sm:$0xff]
      %v453 = vld [vmem:[%s327 + $0xf8] sm:$0xff]
      %v454 = vld [vmem:[%s1] sm:$0xff]
      %v455 = vld [vmem:[%s1 + $0x8] sm:$0x1]
      %v456 = vld [vmem:[%s2] sm:$0x1]
      %v458 = vperm.slane %v456, 0
      %vm460 = vcmask 72704
      %v462 = vsel %vm460, %v422, 0
      %v465 = vsel %vm460, %v423, 0
      %v468 = vsel %vm460, %v424, 0
      %v471 = vsel %vm460, %v425, 0
      %v474 = vsel %vm460, %v426, 0
      %v477 = vsel %vm460, %v427, 0
      %v480 = vsel %vm460, %v428, 0
      %v483 = vsel %vm460, %v429, 0
      %v486 = vsel %vm460, %v430, 0
      %v489 = vsel %vm460, %v431, 0
      %v492 = vsel %vm460, %v432, 0
      %v495 = vsel %vm460, %v433, 0
      %v498 = vsel %vm460, %v434, 0
      %v501 = vsel %vm460, %v435, 0
      %v504 = vsel %vm460, %v436, 0
      %v507 = vsel %vm460, %v437, 0
      %v510 = vsel %vm460, %v438, 0
      %v513 = vsel %vm460, %v439, 0
      %v516 = vsel %vm460, %v440, 0
      %v519 = vsel %vm460, %v441, 0
      %v522 = vsel %vm460, %v442, 0
      %v525 = vsel %vm460, %v443, 0
      %v528 = vsel %vm460, %v444, 0
      %v531 = vsel %vm460, %v445, 0
      %v534 = vsel %vm460, %v446, 0
      %v537 = vsel %vm460, %v447, 0
      %v540 = vsel %vm460, %v448, 0
      %v543 = vsel %vm460, %v449, 0
      %v546 = vsel %vm460, %v450, 0
      %v549 = vsel %vm460, %v451, 0
      %v552 = vsel %vm460, %v452, 0
      %v555 = vsel %vm460, %v453, 0
      %vm557 = vcmask 1040384
      %v559 = vsel %vm557, %v455, 0
      %561 = vmatpush.msra.mxu0 0.0
      %562 = vmatpush.msra.mxu0 0.0
      %563 = vmatpush.msra.mxu0 0.0
      %564 = vmatpush.msra.mxu0 0.0
      %565 = vmatpush.msra.mxu0 0.0
      %566 = vmatpush.msra.mxu0 0.0
      %567 = vmatpush.msra.mxu0 0.0
      %568 = vmatpush.msra.mxu0 0.0
      %569 = vmatpush.msra.mxu0 0.0
      %570 = vmatpush.msra.mxu0 0.0
      %571 = vmatpush.msra.mxu0 0.0
      %572 = vmatpush.msra.mxu0 0.0
      %573 = vmatpush.msra.mxu0 0.0
      %574 = vmatpush.msra.mxu0 0.0
      %575 = vmatpush.msra.mxu0 %v559
      %576 = vmatpush.msra.mxu0 %v454
      %577 = vmatmul.f32.gmra.mxu0 %v462
      %v578 = vpop.f32.mrf.mxu0
      %v579 = vadd.f32 %v458, %v578
      %580 = vmatmul.f32.gmra.mxu0 %v465
      %v581 = vpop.f32.mrf.mxu0
      %v582 = vadd.f32 %v458, %v581
      %583 = vmatmul.f32.gmra.mxu0 %v468
      %v584 = vpop.f32.mrf.mxu0
      %v585 = vadd.f32 %v458, %v584
      %586 = vmatmul.f32.gmra.mxu0 %v471
      %v587 = vpop.f32.mrf.mxu0
      %v588 = vadd.f32 %v458, %v587
      %589 = vmatmul.f32.gmra.mxu0 %v474
      %v590 = vpop.f32.mrf.mxu0
      %v591 = vadd.f32 %v458, %v590
      %592 = vmatmul.f32.gmra.mxu0 %v477
      %v593 = vpop.f32.mrf.mxu0
      %v594 = vadd.f32 %v458, %v593
      %595 = vmatmul.f32.gmra.mxu0 %v480
      %v596 = vpop.f32.mrf.mxu0
      %v597 = vadd.f32 %v458, %v596
      %598 = vmatmul.f32.gmra.mxu0 %v483
      %v599 = vpop.f32.mrf.mxu0
      %v600 = vadd.f32 %v458, %v599
      %601 = vmatmul.f32.gmra.mxu0 %v486
      %v602 = vpop.f32.mrf.mxu0
      %v603 = vadd.f32 %v458, %v602
      %604 = vmatmul.f32.gmra.mxu0 %v489
      %v605 = vpop.f32.mrf.mxu0
      %v606 = vadd.f32 %v458, %v605
      %607 = vmatmul.f32.gmra.mxu0 %v492
      %v608 = vpop.f32.mrf.mxu0
      %v609 = vadd.f32 %v458, %v608
      %610 = vmatmul.f32.gmra.mxu0 %v495
      %v611 = vpop.f32.mrf.mxu0
      %v612 = vadd.f32 %v458, %v611
      %613 = vmatmul.f32.gmra.mxu0 %v498
      %v614 = vpop.f32.mrf.mxu0
      %v615 = vadd.f32 %v458, %v614
      %616 = vmatmul.f32.gmra.mxu0 %v501
      %v617 = vpop.f32.mrf.mxu0
      %v618 = vadd.f32 %v458, %v617
      %619 = vmatmul.f32.gmra.mxu0 %v504
      %v620 = vpop.f32.mrf.mxu0
      %v621 = vadd.f32 %v458, %v620
      %622 = vmatmul.f32.gmra.mxu0 %v507
      %v623 = vpop.f32.mrf.mxu0
      %v624 = vadd.f32 %v458, %v623
      %625 = vmatmul.f32.gmra.mxu0 %v510
      %v626 = vpop.f32.mrf.mxu0
      %v627 = vadd.f32 %v458, %v626
      %628 = vmatmul.f32.gmra.mxu0 %v513
      %v629 = vpop.f32.mrf.mxu0
      %v630 = vadd.f32 %v458, %v629
      %631 = vmatmul.f32.gmra.mxu0 %v516
      %v632 = vpop.f32.mrf.mxu0
      %v633 = vadd.f32 %v458, %v632
      %634 = vmatmul.f32.gmra.mxu0 %v519
      %v635 = vpop.f32.mrf.mxu0
      %v636 = vadd.f32 %v458, %v635
      %637 = vmatmul.f32.gmra.mxu0 %v522
      %v638 = vpop.f32.mrf.mxu0
      %v639 = vadd.f32 %v458, %v638
      %640 = vmatmul.f32.gmra.mxu0 %v525
      %v641 = vpop.f32.mrf.mxu0
      %v642 = vadd.f32 %v458, %v641
      %643 = vmatmul.f32.gmra.mxu0 %v528
      %v644 = vpop.f32.mrf.mxu0
      %v645 = vadd.f32 %v458, %v644
      %646 = vmatmul.f32.gmra.mxu0 %v531
      %v647 = vpop.f32.mrf.mxu0
      %v648 = vadd.f32 %v458, %v647
      %649 = vmatmul.f32.gmra.mxu0 %v534
      %v650 = vpop.f32.mrf.mxu0
      %v651 = vadd.f32 %v458, %v650
      %652 = vmatmul.f32.gmra.mxu0 %v537
      %v653 = vpop.f32.mrf.mxu0
      %v654 = vadd.f32 %v458, %v653
      %655 = vmatmul.f32.gmra.mxu0 %v540
      %v656 = vpop.f32.mrf.mxu0
      %v657 = vadd.f32 %v458, %v656
      %658 = vmatmul.f32.gmra.mxu0 %v543
      %v659 = vpop.f32.mrf.mxu0
      %v660 = vadd.f32 %v458, %v659
      %661 = vmatmul.f32.gmra.mxu0 %v546
      %v662 = vpop.f32.mrf.mxu0
      %v663 = vadd.f32 %v458, %v662
      %664 = vmatmul.f32.gmra.mxu0 %v549
      %v665 = vpop.f32.mrf.mxu0
      %v666 = vadd.f32 %v458, %v665
      %667 = vmatmul.f32.gmra.mxu0 %v552
      %v668 = vpop.f32.mrf.mxu0
      %v669 = vadd.f32 %v458, %v668
      %670 = vmatmul.f32.gmra.mxu0 %v555
      %v671 = vpop.f32.mrf.mxu0
      %v672 = vadd.f32 %v458, %v671
      %673 = vdwg.mxu0
      %v674 = vmax.f32 %v579, 0.0
      %v675 = vmax.f32 %v582, 0.0
      %v676 = vmax.f32 %v585, 0.0
      %v677 = vmax.f32 %v588, 0.0
      %v678 = vmax.f32 %v591, 0.0
      %v679 = vmax.f32 %v594, 0.0
      %v680 = vmax.f32 %v597, 0.0
      %v681 = vmax.f32 %v600, 0.0
      %v682 = vmax.f32 %v603, 0.0
      %v683 = vmax.f32 %v606, 0.0
      %v684 = vmax.f32 %v609, 0.0
      %v685 = vmax.f32 %v612, 0.0
      %v686 = vmax.f32 %v615, 0.0
      %v687 = vmax.f32 %v618, 0.0
      %v688 = vmax.f32 %v621, 0.0
      %v689 = vmax.f32 %v624, 0.0
      %v690 = vmax.f32 %v627, 0.0
      %v691 = vmax.f32 %v630, 0.0
      %v692 = vmax.f32 %v633, 0.0
      %v693 = vmax.f32 %v636, 0.0
      %v694 = vmax.f32 %v639, 0.0
      %v695 = vmax.f32 %v642, 0.0
      %v696 = vmax.f32 %v645, 0.0
      %v697 = vmax.f32 %v648, 0.0
      %v698 = vmax.f32 %v651, 0.0
      %v699 = vmax.f32 %v654, 0.0
      %v700 = vmax.f32 %v657, 0.0
      %v701 = vmax.f32 %v660, 0.0
      %v702 = vmax.f32 %v663, 0.0
      %v703 = vmax.f32 %v666, 0.0
      %v704 = vmax.f32 %v669, 0.0
      %v705 = vmax.f32 %v672, 0.0
      %s706 = scalar_lea.vmem [#allocation2], 24
      %707 = vst.msk [vmem:[%s706 + $0x1] sm:$0xff] %vm333, %v674
      %708 = vst.msk [vmem:[%s706 + $0x9] sm:$0xff] %vm333, %v675
      %709 = vst.msk [vmem:[%s706 + $0x19] sm:$0xff] %vm333, %v676
      %710 = vst.msk [vmem:[%s706 + $0x21] sm:$0xff] %vm333, %v677
      %711 = vst.msk [vmem:[%s706 + $0x31] sm:$0xff] %vm333, %v678
      %712 = vst.msk [vmem:[%s706 + $0x39] sm:$0xff] %vm333, %v679
      %713 = vst.msk [vmem:[%s706 + $0x49] sm:$0xff] %vm333, %v680
      %714 = vst.msk [vmem:[%s706 + $0x51] sm:$0xff] %vm333, %v681
      %715 = vst.msk [vmem:[%s706 + $0x61] sm:$0xff] %vm333, %v682
      %716 = vst.msk [vmem:[%s706 + $0x69] sm:$0xff] %vm333, %v683
      %717 = vst.msk [vmem:[%s706 + $0x79] sm:$0xff] %vm333, %v684
      %718 = vst.msk [vmem:[%s706 + $0x81] sm:$0xff] %vm333, %v685
      %719 = vst.msk [vmem:[%s706 + $0x91] sm:$0xff] %vm333, %v686
      %720 = vst.msk [vmem:[%s706 + $0x99] sm:$0xff] %vm333, %v687
      %721 = vst.msk [vmem:[%s706 + $0xa9] sm:$0xff] %vm333, %v688
      %722 = vst.msk [vmem:[%s706 + $0xb1] sm:$0xff] %vm333, %v689
      %723 = vst.msk [vmem:[%s706 + $0xc1] sm:$0xff] %vm333, %v690
      %724 = vst.msk [vmem:[%s706 + $0xc9] sm:$0xff] %vm333, %v691
      %725 = vst.msk [vmem:[%s706 + $0xd9] sm:$0xff] %vm333, %v692
      %726 = vst.msk [vmem:[%s706 + $0xe1] sm:$0xff] %vm333, %v693
      %727 = vst.msk [vmem:[%s706 + $0xf1] sm:$0xff] %vm333, %v694
      %728 = vst.msk [vmem:[%s706 + $0xf9] sm:$0xff] %vm333, %v695
      %729 = vst.msk [vmem:[%s706 + $0x109] sm:$0xff] %vm333, %v696
      %730 = vst.msk [vmem:[%s706 + $0x111] sm:$0xff] %vm333, %v697
      %731 = vst.msk [vmem:[%s706 + $0x121] sm:$0xff] %vm333, %v698
      %732 = vst.msk [vmem:[%s706 + $0x129] sm:$0xff] %vm333, %v699
      %733 = vst.msk [vmem:[%s706 + $0x139] sm:$0xff] %vm333, %v700
      %734 = vst.msk [vmem:[%s706 + $0x141] sm:$0xff] %vm333, %v701
      %735 = vst.msk [vmem:[%s706 + $0x151] sm:$0xff] %vm333, %v702
      %736 = vst.msk [vmem:[%s706 + $0x159] sm:$0xff] %vm333, %v703
      %737 = vst.msk [vmem:[%s706 + $0x169] sm:$0xff] %vm333, %v704
      %738 = vst.msk [vmem:[%s706 + $0x171] sm:$0xff] %vm333, %v705
      %v739 = vld [vmem:[#allocation2] sm:$0xff]
      %v740 = vld [vmem:[#allocation2 + $0x8] sm:$0xff]
      %v741 = vld [vmem:[#allocation2 + $0x18] sm:$0xff]
      %v742 = vld [vmem:[#allocation2 + $0x20] sm:$0xff]
      %v743 = vld [vmem:[#allocation2 + $0x30] sm:$0xff]
      %v744 = vld [vmem:[#allocation2 + $0x38] sm:$0xff]
      %v745 = vld [vmem:[#allocation2 + $0x48] sm:$0xff]
      %v746 = vld [vmem:[#allocation2 + $0x50] sm:$0xff]
      %v747 = vld [vmem:[#allocation2 + $0x60] sm:$0xff]
      %v748 = vld [vmem:[#allocation2 + $0x68] sm:$0xff]
      %v749 = vld [vmem:[#allocation2 + $0x78] sm:$0xff]
      %v750 = vld [vmem:[#allocation2 + $0x80] sm:$0xff]
      %v751 = vld [vmem:[#allocation2 + $0x90] sm:$0xff]
      %v752 = vld [vmem:[#allocation2 + $0x98] sm:$0xff]
      %v753 = vld [vmem:[#allocation2 + $0xa8] sm:$0xff]
      %v754 = vld [vmem:[#allocation2 + $0xb0] sm:$0xff]
      %v755 = vld [vmem:[#allocation2 + $0xc0] sm:$0xff]
      %v756 = vld [vmem:[#allocation2 + $0xc8] sm:$0xff]
      %v757 = vld [vmem:[#allocation2 + $0xd8] sm:$0xff]
      %v758 = vld [vmem:[#allocation2 + $0xe0] sm:$0xff]
      %v759 = vld [vmem:[#allocation2 + $0xf0] sm:$0xff]
      %v760 = vld [vmem:[#allocation2 + $0xf8] sm:$0xff]
      %v761 = vld [vmem:[#allocation2 + $0x108] sm:$0xff]
      %v762 = vld [vmem:[#allocation2 + $0x110] sm:$0xff]
      %v763 = vld [vmem:[#allocation2 + $0x120] sm:$0xff]
      %v764 = vld [vmem:[#allocation2 + $0x128] sm:$0xff]
      %v765 = vld [vmem:[#allocation2 + $0x138] sm:$0xff]
      %v766 = vld [vmem:[#allocation2 + $0x140] sm:$0xff]
      %v767 = vld [vmem:[#allocation2 + $0x150] sm:$0xff]
      %v768 = vld [vmem:[#allocation2 + $0x158] sm:$0xff]
      %v769 = vld [vmem:[#allocation2 + $0x168] sm:$0xff]
      %v770 = vld [vmem:[#allocation2 + $0x170] sm:$0xff]
      %v771 = vld [vmem:[%s3] sm:$0xff]
      %v772 = vld [vmem:[%s3 + $0x8] sm:$0xff]
      %v773 = vld [vmem:[%s3 + $0x10] sm:$0xff]
      %v774 = vld [vmem:[%s3 + $0x18] sm:$0xff]
      %v775 = vld [vmem:[#allocation2 + $0x1] sm:$0xff]
      %v776 = vld [vmem:[#allocation2 + $0x9] sm:$0xff]
      %v777 = vld [vmem:[#allocation2 + $0x19] sm:$0xff]
      %v778 = vld [vmem:[#allocation2 + $0x21] sm:$0xff]
      %v779 = vld [vmem:[#allocation2 + $0x31] sm:$0xff]
      %v780 = vld [vmem:[#allocation2 + $0x39] sm:$0xff]
      %v781 = vld [vmem:[#allocation2 + $0x49] sm:$0xff]
      %v782 = vld [vmem:[#allocation2 + $0x51] sm:$0xff]
      %v783 = vld [vmem:[#allocation2 + $0x61] sm:$0xff]
      %v784 = vld [vmem:[#allocation2 + $0x69] sm:$0xff]
      %v785 = vld [vmem:[#allocation2 + $0x79] sm:$0xff]
      %v786 = vld [vmem:[#allocation2 + $0x81] sm:$0xff]
      %v787 = vld [vmem:[#allocation2 + $0x91] sm:$0xff]
      %v788 = vld [vmem:[#allocation2 + $0x99] sm:$0xff]
      %v789 = vld [vmem:[#allocation2 + $0xa9] sm:$0xff]
      %v790 = vld [vmem:[#allocation2 + $0xb1] sm:$0xff]
      %v791 = vld [vmem:[#allocation2 + $0xc1] sm:$0xff]
      %v792 = vld [vmem:[#allocation2 + $0xc9] sm:$0xff]
      %v793 = vld [vmem:[#allocation2 + $0xd9] sm:$0xff]
      %v794 = vld [vmem:[#allocation2 + $0xe1] sm:$0xff]
      %v795 = vld [vmem:[#allocation2 + $0xf1] sm:$0xff]
      %v796 = vld [vmem:[#allocation2 + $0xf9] sm:$0xff]
      %v797 = vld [vmem:[#allocation2 + $0x109] sm:$0xff]
      %v798 = vld [vmem:[#allocation2 + $0x111] sm:$0xff]
      %v799 = vld [vmem:[#allocation2 + $0x121] sm:$0xff]
      %v800 = vld [vmem:[#allocation2 + $0x129] sm:$0xff]
      %v801 = vld [vmem:[#allocation2 + $0x139] sm:$0xff]
      %v802 = vld [vmem:[#allocation2 + $0x141] sm:$0xff]
      %v803 = vld [vmem:[#allocation2 + $0x151] sm:$0xff]
      %v804 = vld [vmem:[#allocation2 + $0x159] sm:$0xff]
      %v805 = vld [vmem:[#allocation2 + $0x169] sm:$0xff]
      %v806 = vld [vmem:[#allocation2 + $0x171] sm:$0xff]
      %s807 = scalar_lea.vmem %s3, 32
      %v808 = vld [vmem:[%s807] sm:$0xff]
      %v809 = vld [vmem:[%s807 + $0x8] sm:$0xff]
      %v810 = vld [vmem:[%s807 + $0x10] sm:$0xff]
      %v811 = vld [vmem:[%s807 + $0x18] sm:$0xff]
      %v813 = vsel %vm333, %v775, 0
      %v816 = vsel %vm333, %v776, 0
      %v819 = vsel %vm333, %v777, 0
      %v822 = vsel %vm333, %v778, 0
      %v825 = vsel %vm333, %v779, 0
      %v828 = vsel %vm333, %v780, 0
      %v831 = vsel %vm333, %v781, 0
      %v834 = vsel %vm333, %v782, 0
      %v837 = vsel %vm333, %v783, 0
      %v840 = vsel %vm333, %v784, 0
      %v843 = vsel %vm333, %v785, 0
      %v846 = vsel %vm333, %v786, 0
      %v849 = vsel %vm333, %v787, 0
      %v852 = vsel %vm333, %v788, 0
      %v855 = vsel %vm333, %v789, 0
      %v858 = vsel %vm333, %v790, 0
      %v861 = vsel %vm333, %v791, 0
      %v864 = vsel %vm333, %v792, 0
      %v867 = vsel %vm333, %v793, 0
      %v870 = vsel %vm333, %v794, 0
      %v873 = vsel %vm333, %v795, 0
      %v876 = vsel %vm333, %v796, 0
      %v879 = vsel %vm333, %v797, 0
      %v882 = vsel %vm333, %v798, 0
      %v885 = vsel %vm333, %v799, 0
      %v888 = vsel %vm333, %v800, 0
      %v891 = vsel %vm333, %v801, 0
      %v894 = vsel %vm333, %v802, 0
      %v897 = vsel %vm333, %v803, 0
      %v900 = vsel %vm333, %v804, 0
      %v903 = vsel %vm333, %v805, 0
      %v906 = vsel %vm333, %v806, 0
      %908 = vmatpush.msra.mxu0 0.0
      %909 = vmatpush.msra.mxu0 0.0
      %910 = vmatpush.msra.mxu0 0.0
      %911 = vmatpush.msra.mxu0 0.0
      %912 = vmatpush.msra.mxu0 0.0
      %913 = vmatpush.msra.mxu0 0.0
      %914 = vmatpush.msra.mxu0 0.0
      %915 = vmatpush.msra.mxu0 0.0
      %916 = vmatpush.msra.mxu0 0.0
      %917 = vmatpush.msra.mxu0 0.0
      %918 = vmatpush.msra.mxu0 0.0
      %919 = vmatpush.msra.mxu0 0.0
      %920 = vmatpush.msra.mxu0 %v811
      %921 = vmatpush.msra.mxu0 %v810
      %922 = vmatpush.msra.mxu0 %v809
      %923 = vmatpush.msra.mxu0 %v808
      %924 = vmatmul.f32.gmra.mxu0 %v813
      %v925 = vpop.f32.mrf.mxu0
      %v926 = vadd.f32 0.0, %v925
      %927 = vmatmul.f32.gmra.mxu0 %v816
      %v928 = vpop.f32.mrf.mxu0
      %v929 = vadd.f32 0.0, %v928
      %930 = vmatmul.f32.gmra.mxu0 %v819
      %v931 = vpop.f32.mrf.mxu0
      %v932 = vadd.f32 0.0, %v931
      %933 = vmatmul.f32.gmra.mxu0 %v822
      %v934 = vpop.f32.mrf.mxu0
      %v935 = vadd.f32 0.0, %v934
      %936 = vmatmul.f32.gmra.mxu0 %v825
      %v937 = vpop.f32.mrf.mxu0
      %v938 = vadd.f32 0.0, %v937
      %939 = vmatmul.f32.gmra.mxu0 %v828
      %v940 = vpop.f32.mrf.mxu0
      %v941 = vadd.f32 0.0, %v940
      %942 = vmatmul.f32.gmra.mxu0 %v831
      %v943 = vpop.f32.mrf.mxu0
      %v944 = vadd.f32 0.0, %v943
      %945 = vmatmul.f32.gmra.mxu0 %v834
      %v946 = vpop.f32.mrf.mxu0
      %v947 = vadd.f32 0.0, %v946
      %948 = vmatmul.f32.gmra.mxu0 %v837
      %v949 = vpop.f32.mrf.mxu0
      %v950 = vadd.f32 0.0, %v949
      %951 = vmatmul.f32.gmra.mxu0 %v840
      %v952 = vpop.f32.mrf.mxu0
      %v953 = vadd.f32 0.0, %v952
      %954 = vmatmul.f32.gmra.mxu0 %v843
      %v955 = vpop.f32.mrf.mxu0
      %v956 = vadd.f32 0.0, %v955
      %957 = vmatmul.f32.gmra.mxu0 %v846
      %v958 = vpop.f32.mrf.mxu0
      %v959 = vadd.f32 0.0, %v958
      %960 = vmatmul.f32.gmra.mxu0 %v849
      %v961 = vpop.f32.mrf.mxu0
      %v962 = vadd.f32 0.0, %v961
      %963 = vmatmul.f32.gmra.mxu0 %v852
      %v964 = vpop.f32.mrf.mxu0
      %v965 = vadd.f32 0.0, %v964
      %966 = vmatmul.f32.gmra.mxu0 %v855
      %v967 = vpop.f32.mrf.mxu0
      %v968 = vadd.f32 0.0, %v967
      %969 = vmatmul.f32.gmra.mxu0 %v858
      %v970 = vpop.f32.mrf.mxu0
      %v971 = vadd.f32 0.0, %v970
      %972 = vmatmul.f32.gmra.mxu0 %v861
      %v973 = vpop.f32.mrf.mxu0
      %v974 = vadd.f32 0.0, %v973
      %975 = vmatmul.f32.gmra.mxu0 %v864
      %v976 = vpop.f32.mrf.mxu0
      %v977 = vadd.f32 0.0, %v976
      %978 = vmatmul.f32.gmra.mxu0 %v867
      %v979 = vpop.f32.mrf.mxu0
      %v980 = vadd.f32 0.0, %v979
      %981 = vmatmul.f32.gmra.mxu0 %v870
      %v982 = vpop.f32.mrf.mxu0
      %v983 = vadd.f32 0.0, %v982
      %984 = vmatmul.f32.gmra.mxu0 %v873
      %v985 = vpop.f32.mrf.mxu0
      %v986 = vadd.f32 0.0, %v985
      %987 = vmatmul.f32.gmra.mxu0 %v876
      %v988 = vpop.f32.mrf.mxu0
      %v989 = vadd.f32 0.0, %v988
      %990 = vmatmul.f32.gmra.mxu0 %v879
      %v991 = vpop.f32.mrf.mxu0
      %v992 = vadd.f32 0.0, %v991
      %993 = vmatmul.f32.gmra.mxu0 %v882
      %v994 = vpop.f32.mrf.mxu0
      %v995 = vadd.f32 0.0, %v994
      %996 = vmatmul.f32.gmra.mxu0 %v885
      %v997 = vpop.f32.mrf.mxu0
      %v998 = vadd.f32 0.0, %v997
      %999 = vmatmul.f32.gmra.mxu0 %v888
      %v1000 = vpop.f32.mrf.mxu0
      %v1001 = vadd.f32 0.0, %v1000
      %1002 = vmatmul.f32.gmra.mxu0 %v891
      %v1003 = vpop.f32.mrf.mxu0
      %v1004 = vadd.f32 0.0, %v1003
      %1005 = vmatmul.f32.gmra.mxu0 %v894
      %v1006 = vpop.f32.mrf.mxu0
      %v1007 = vadd.f32 0.0, %v1006
      %1008 = vmatmul.f32.gmra.mxu0 %v897
      %v1009 = vpop.f32.mrf.mxu0
      %v1010 = vadd.f32 0.0, %v1009
      %1011 = vmatmul.f32.gmra.mxu0 %v900
      %v1012 = vpop.f32.mrf.mxu0
      %v1013 = vadd.f32 0.0, %v1012
      %1014 = vmatmul.f32.gmra.mxu0 %v903
      %v1015 = vpop.f32.mrf.mxu0
      %v1016 = vadd.f32 0.0, %v1015
      %1017 = vmatmul.f32.gmra.mxu0 %v906
      %v1018 = vpop.f32.mrf.mxu0
      %v1019 = vadd.f32 0.0, %v1018
      %1020 = vdwg.mxu0
      %v1022 = vsel %vm333, %v739, 0
      %v1025 = vsel %vm333, %v740, 0
      %v1028 = vsel %vm333, %v741, 0
      %v1031 = vsel %vm333, %v742, 0
      %v1034 = vsel %vm333, %v743, 0
      %v1037 = vsel %vm333, %v744, 0
      %v1040 = vsel %vm333, %v745, 0
      %v1043 = vsel %vm333, %v746, 0
      %v1046 = vsel %vm333, %v747, 0
      %v1049 = vsel %vm333, %v748, 0
      %v1052 = vsel %vm333, %v749, 0
      %v1055 = vsel %vm333, %v750, 0
      %v1058 = vsel %vm333, %v751, 0
      %v1061 = vsel %vm333, %v752, 0
      %v1064 = vsel %vm333, %v753, 0
      %v1067 = vsel %vm333, %v754, 0
      %v1070 = vsel %vm333, %v755, 0
      %v1073 = vsel %vm333, %v756, 0
      %v1076 = vsel %vm333, %v757, 0
      %v1079 = vsel %vm333, %v758, 0
      %v1082 = vsel %vm333, %v759, 0
      %v1085 = vsel %vm333, %v760, 0
      %v1088 = vsel %vm333, %v761, 0
      %v1091 = vsel %vm333, %v762, 0
      %v1094 = vsel %vm333, %v763, 0
      %v1097 = vsel %vm333, %v764, 0
      %v1100 = vsel %vm333, %v765, 0
      %v1103 = vsel %vm333, %v766, 0
      %v1106 = vsel %vm333, %v767, 0
      %v1109 = vsel %vm333, %v768, 0
      %v1112 = vsel %vm333, %v769, 0
      %v1115 = vsel %vm333, %v770, 0
      %1117 = vmatpush.msra.mxu0 0.0
      %1118 = vmatpush.msra.mxu0 0.0
      %1119 = vmatpush.msra.mxu0 0.0
      %1120 = vmatpush.msra.mxu0 0.0
      %1121 = vmatpush.msra.mxu0 0.0
      %1122 = vmatpush.msra.mxu0 0.0
      %1123 = vmatpush.msra.mxu0 0.0
      %1124 = vmatpush.msra.mxu0 0.0
      %1125 = vmatpush.msra.mxu0 0.0
      %1126 = vmatpush.msra.mxu0 0.0
      %1127 = vmatpush.msra.mxu0 0.0
      %1128 = vmatpush.msra.mxu0 0.0
      %1129 = vmatpush.msra.mxu0 %v774
      %1130 = vmatpush.msra.mxu0 %v773
      %1131 = vmatpush.msra.mxu0 %v772
      %1132 = vmatpush.msra.mxu0 %v771
      %1133 = vmatmul.f32.gmra.mxu0 %v1022
      %v1134 = vpop.f32.mrf.mxu0
      %v1135 = vadd.f32 %v926, %v1134
      %1136 = vmatmul.f32.gmra.mxu0 %v1025
      %v1137 = vpop.f32.mrf.mxu0
      %v1138 = vadd.f32 %v929, %v1137
      %1139 = vmatmul.f32.gmra.mxu0 %v1028
      %v1140 = vpop.f32.mrf.mxu0
      %v1141 = vadd.f32 %v932, %v1140
      %1142 = vmatmul.f32.gmra.mxu0 %v1031
      %v1143 = vpop.f32.mrf.mxu0
      %v1144 = vadd.f32 %v935, %v1143
      %1145 = vmatmul.f32.gmra.mxu0 %v1034
      %v1146 = vpop.f32.mrf.mxu0
      %v1147 = vadd.f32 %v938, %v1146
      %1148 = vmatmul.f32.gmra.mxu0 %v1037
      %v1149 = vpop.f32.mrf.mxu0
      %v1150 = vadd.f32 %v941, %v1149
      %1151 = vmatmul.f32.gmra.mxu0 %v1040
      %v1152 = vpop.f32.mrf.mxu0
      %v1153 = vadd.f32 %v944, %v1152
      %1154 = vmatmul.f32.gmra.mxu0 %v1043
      %v1155 = vpop.f32.mrf.mxu0
      %v1156 = vadd.f32 %v947, %v1155
      %1157 = vmatmul.f32.gmra.mxu0 %v1046
      %v1158 = vpop.f32.mrf.mxu0
      %v1159 = vadd.f32 %v950, %v1158
      %1160 = vmatmul.f32.gmra.mxu0 %v1049
      %v1161 = vpop.f32.mrf.mxu0
      %v1162 = vadd.f32 %v953, %v1161
      %1163 = vmatmul.f32.gmra.mxu0 %v1052
      %v1164 = vpop.f32.mrf.mxu0
      %v1165 = vadd.f32 %v956, %v1164
      %1166 = vmatmul.f32.gmra.mxu0 %v1055
      %v1167 = vpop.f32.mrf.mxu0
      %v1168 = vadd.f32 %v959, %v1167
      %1169 = vmatmul.f32.gmra.mxu0 %v1058
      %v1170 = vpop.f32.mrf.mxu0
      %v1171 = vadd.f32 %v962, %v1170
      %1172 = vmatmul.f32.gmra.mxu0 %v1061
      %v1173 = vpop.f32.mrf.mxu0
      %v1174 = vadd.f32 %v965, %v1173
      %1175 = vmatmul.f32.gmra.mxu0 %v1064
      %v1176 = vpop.f32.mrf.mxu0
      %v1177 = vadd.f32 %v968, %v1176
      %1178 = vmatmul.f32.gmra.mxu0 %v1067
      %v1179 = vpop.f32.mrf.mxu0
      %v1180 = vadd.f32 %v971, %v1179
      %1181 = vmatmul.f32.gmra.mxu0 %v1070
      %v1182 = vpop.f32.mrf.mxu0
      %v1183 = vadd.f32 %v974, %v1182
      %1184 = vmatmul.f32.gmra.mxu0 %v1073
      %v1185 = vpop.f32.mrf.mxu0
      %v1186 = vadd.f32 %v977, %v1185
      %1187 = vmatmul.f32.gmra.mxu0 %v1076
      %v1188 = vpop.f32.mrf.mxu0
      %v1189 = vadd.f32 %v980, %v1188
      %1190 = vmatmul.f32.gmra.mxu0 %v1079
      %v1191 = vpop.f32.mrf.mxu0
      %v1192 = vadd.f32 %v983, %v1191
      %1193 = vmatmul.f32.gmra.mxu0 %v1082
      %v1194 = vpop.f32.mrf.mxu0
      %v1195 = vadd.f32 %v986, %v1194
      %1196 = vmatmul.f32.gmra.mxu0 %v1085
      %v1197 = vpop.f32.mrf.mxu0
      %v1198 = vadd.f32 %v989, %v1197
      %1199 = vmatmul.f32.gmra.mxu0 %v1088
      %v1200 = vpop.f32.mrf.mxu0
      %v1201 = vadd.f32 %v992, %v1200
      %1202 = vmatmul.f32.gmra.mxu0 %v1091
      %v1203 = vpop.f32.mrf.mxu0
      %v1204 = vadd.f32 %v995, %v1203
      %1205 = vmatmul.f32.gmra.mxu0 %v1094
      %v1206 = vpop.f32.mrf.mxu0
      %v1207 = vadd.f32 %v998, %v1206
      %1208 = vmatmul.f32.gmra.mxu0 %v1097
      %v1209 = vpop.f32.mrf.mxu0
      %v1210 = vadd.f32 %v1001, %v1209
      %1211 = vmatmul.f32.gmra.mxu0 %v1100
      %v1212 = vpop.f32.mrf.mxu0
      %v1213 = vadd.f32 %v1004, %v1212
      %1214 = vmatmul.f32.gmra.mxu0 %v1103
      %v1215 = vpop.f32.mrf.mxu0
      %v1216 = vadd.f32 %v1007, %v1215
      %1217 = vmatmul.f32.gmra.mxu0 %v1106
      %v1218 = vpop.f32.mrf.mxu0
      %v1219 = vadd.f32 %v1010, %v1218
      %1220 = vmatmul.f32.gmra.mxu0 %v1109
      %v1221 = vpop.f32.mrf.mxu0
      %v1222 = vadd.f32 %v1013, %v1221
      %1223 = vmatmul.f32.gmra.mxu0 %v1112
      %v1224 = vpop.f32.mrf.mxu0
      %v1225 = vadd.f32 %v1016, %v1224
      %1226 = vmatmul.f32.gmra.mxu0 %v1115
      %v1227 = vpop.f32.mrf.mxu0
      %v1228 = vadd.f32 %v1019, %v1227
      %1229 = vdwg.mxu0
      %v1230 = vld [vmem:[#allocation2 + $0x2] sm:$0xff]
      %v1231 = vld [vmem:[#allocation2 + $0xa] sm:$0xff]
      %v1232 = vld [vmem:[#allocation2 + $0x1a] sm:$0xff]
      %v1233 = vld [vmem:[#allocation2 + $0x22] sm:$0xff]
      %v1234 = vld [vmem:[#allocation2 + $0x32] sm:$0xff]
      %v1235 = vld [vmem:[#allocation2 + $0x3a] sm:$0xff]
      %v1236 = vld [vmem:[#allocation2 + $0x4a] sm:$0xff]
      %v1237 = vld [vmem:[#allocation2 + $0x52] sm:$0xff]
      %v1238 = vld [vmem:[#allocation2 + $0x62] sm:$0xff]
      %v1239 = vld [vmem:[#allocation2 + $0x6a] sm:$0xff]
      %v1240 = vld [vmem:[#allocation2 + $0x7a] sm:$0xff]
      %v1241 = vld [vmem:[#allocation2 + $0x82] sm:$0xff]
      %v1242 = vld [vmem:[#allocation2 + $0x92] sm:$0xff]
      %v1243 = vld [vmem:[#allocation2 + $0x9a] sm:$0xff]
      %v1244 = vld [vmem:[#allocation2 + $0xaa] sm:$0xff]
      %v1245 = vld [vmem:[#allocation2 + $0xb2] sm:$0xff]
      %v1246 = vld [vmem:[#allocation2 + $0xc2] sm:$0xff]
      %v1247 = vld [vmem:[#allocation2 + $0xca] sm:$0xff]
      %v1248 = vld [vmem:[#allocation2 + $0xda] sm:$0xff]
      %v1249 = vld [vmem:[#allocation2 + $0xe2] sm:$0xff]
      %v1250 = vld [vmem:[#allocation2 + $0xf2] sm:$0xff]
      %v1251 = vld [vmem:[#allocation2 + $0xfa] sm:$0xff]
      %v1252 = vld [vmem:[#allocation2 + $0x10a] sm:$0xff]
      %v1253 = vld [vmem:[#allocation2 + $0x112] sm:$0xff]
      %v1254 = vld [vmem:[#allocation2 + $0x122] sm:$0xff]
      %v1255 = vld [vmem:[#allocation2 + $0x12a] sm:$0xff]
      %v1256 = vld [vmem:[#allocation2 + $0x13a] sm:$0xff]
      %v1257 = vld [vmem:[#allocation2 + $0x142] sm:$0xff]
      %v1258 = vld [vmem:[#allocation2 + $0x152] sm:$0xff]
      %v1259 = vld [vmem:[#allocation2 + $0x15a] sm:$0xff]
      %v1260 = vld [vmem:[#allocation2 + $0x16a] sm:$0xff]
      %v1261 = vld [vmem:[#allocation2 + $0x172] sm:$0xff]
      %s1262 = scalar_lea.vmem %s3, 64
      %v1263 = vld [vmem:[%s1262] sm:$0xff]
      %v1264 = vld [vmem:[%s1262 + $0x8] sm:$0xff]
      %v1265 = vld [vmem:[%s1262 + $0x10] sm:$0xff]
      %v1266 = vld [vmem:[%s1262 + $0x18] sm:$0xff]
      %v1268 = vsel %vm333, %v1230, 0
      %v1271 = vsel %vm333, %v1231, 0
      %v1274 = vsel %vm333, %v1232, 0
      %v1277 = vsel %vm333, %v1233, 0
      %v1280 = vsel %vm333, %v1234, 0
      %v1283 = vsel %vm333, %v1235, 0
      %v1286 = vsel %vm333, %v1236, 0
      %v1289 = vsel %vm333, %v1237, 0
      %v1292 = vsel %vm333, %v1238, 0
      %v1295 = vsel %vm333, %v1239, 0
      %v1298 = vsel %vm333, %v1240, 0
      %v1301 = vsel %vm333, %v1241, 0
      %v1304 = vsel %vm333, %v1242, 0
      %v1307 = vsel %vm333, %v1243, 0
      %v1310 = vsel %vm333, %v1244, 0
      %v1313 = vsel %vm333, %v1245, 0
      %v1316 = vsel %vm333, %v1246, 0
      %v1319 = vsel %vm333, %v1247, 0
      %v1322 = vsel %vm333, %v1248, 0
      %v1325 = vsel %vm333, %v1249, 0
      %v1328 = vsel %vm333, %v1250, 0
      %v1331 = vsel %vm333, %v1251, 0
      %v1334 = vsel %vm333, %v1252, 0
      %v1337 = vsel %vm333, %v1253, 0
      %v1340 = vsel %vm333, %v1254, 0
      %v1343 = vsel %vm333, %v1255, 0
      %v1346 = vsel %vm333, %v1256, 0
      %v1349 = vsel %vm333, %v1257, 0
      %v1352 = vsel %vm333, %v1258, 0
      %v1355 = vsel %vm333, %v1259, 0
      %v1358 = vsel %vm333, %v1260, 0
      %v1361 = vsel %vm333, %v1261, 0
      %1363 = vmatpush.msra.mxu0 0.0
      %1364 = vmatpush.msra.mxu0 0.0
      %1365 = vmatpush.msra.mxu0 0.0
      %1366 = vmatpush.msra.mxu0 0.0
      %1367 = vmatpush.msra.mxu0 0.0
      %1368 = vmatpush.msra.mxu0 0.0
      %1369 = vmatpush.msra.mxu0 0.0
      %1370 = vmatpush.msra.mxu0 0.0
      %1371 = vmatpush.msra.mxu0 0.0
      %1372 = vmatpush.msra.mxu0 0.0
      %1373 = vmatpush.msra.mxu0 0.0
      %1374 = vmatpush.msra.mxu0 0.0
      %1375 = vmatpush.msra.mxu0 %v1266
      %1376 = vmatpush.msra.mxu0 %v1265
      %1377 = vmatpush.msra.mxu0 %v1264
      %1378 = vmatpush.msra.mxu0 %v1263
      %1379 = vmatmul.f32.gmra.mxu0 %v1268
      %v1380 = vpop.f32.mrf.mxu0
      %v1381 = vadd.f32 0.0, %v1380
      %1382 = vmatmul.f32.gmra.mxu0 %v1271
      %v1383 = vpop.f32.mrf.mxu0
      %v1384 = vadd.f32 0.0, %v1383
      %1385 = vmatmul.f32.gmra.mxu0 %v1274
      %v1386 = vpop.f32.mrf.mxu0
      %v1387 = vadd.f32 0.0, %v1386
      %1388 = vmatmul.f32.gmra.mxu0 %v1277
      %v1389 = vpop.f32.mrf.mxu0
      %v1390 = vadd.f32 0.0, %v1389
      %1391 = vmatmul.f32.gmra.mxu0 %v1280
      %v1392 = vpop.f32.mrf.mxu0
      %v1393 = vadd.f32 0.0, %v1392
      %1394 = vmatmul.f32.gmra.mxu0 %v1283
      %v1395 = vpop.f32.mrf.mxu0
      %v1396 = vadd.f32 0.0, %v1395
      %1397 = vmatmul.f32.gmra.mxu0 %v1286
      %v1398 = vpop.f32.mrf.mxu0
      %v1399 = vadd.f32 0.0, %v1398
      %1400 = vmatmul.f32.gmra.mxu0 %v1289
      %v1401 = vpop.f32.mrf.mxu0
      %v1402 = vadd.f32 0.0, %v1401
      %1403 = vmatmul.f32.gmra.mxu0 %v1292
      %v1404 = vpop.f32.mrf.mxu0
      %v1405 = vadd.f32 0.0, %v1404
      %1406 = vmatmul.f32.gmra.mxu0 %v1295
      %v1407 = vpop.f32.mrf.mxu0
      %v1408 = vadd.f32 0.0, %v1407
      %1409 = vmatmul.f32.gmra.mxu0 %v1298
      %v1410 = vpop.f32.mrf.mxu0
      %v1411 = vadd.f32 0.0, %v1410
      %1412 = vmatmul.f32.gmra.mxu0 %v1301
      %v1413 = vpop.f32.mrf.mxu0
      %v1414 = vadd.f32 0.0, %v1413
      %1415 = vmatmul.f32.gmra.mxu0 %v1304
      %v1416 = vpop.f32.mrf.mxu0
      %v1417 = vadd.f32 0.0, %v1416
      %1418 = vmatmul.f32.gmra.mxu0 %v1307
      %v1419 = vpop.f32.mrf.mxu0
      %v1420 = vadd.f32 0.0, %v1419
      %1421 = vmatmul.f32.gmra.mxu0 %v1310
      %v1422 = vpop.f32.mrf.mxu0
      %v1423 = vadd.f32 0.0, %v1422
      %1424 = vmatmul.f32.gmra.mxu0 %v1313
      %v1425 = vpop.f32.mrf.mxu0
      %v1426 = vadd.f32 0.0, %v1425
      %1427 = vmatmul.f32.gmra.mxu0 %v1316
      %v1428 = vpop.f32.mrf.mxu0
      %v1429 = vadd.f32 0.0, %v1428
      %1430 = vmatmul.f32.gmra.mxu0 %v1319
      %v1431 = vpop.f32.mrf.mxu0
      %v1432 = vadd.f32 0.0, %v1431
      %1433 = vmatmul.f32.gmra.mxu0 %v1322
      %v1434 = vpop.f32.mrf.mxu0
      %v1435 = vadd.f32 0.0, %v1434
      %1436 = vmatmul.f32.gmra.mxu0 %v1325
      %v1437 = vpop.f32.mrf.mxu0
      %v1438 = vadd.f32 0.0, %v1437
      %1439 = vmatmul.f32.gmra.mxu0 %v1328
      %v1440 = vpop.f32.mrf.mxu0
      %v1441 = vadd.f32 0.0, %v1440
      %1442 = vmatmul.f32.gmra.mxu0 %v1331
      %v1443 = vpop.f32.mrf.mxu0
      %v1444 = vadd.f32 0.0, %v1443
      %1445 = vmatmul.f32.gmra.mxu0 %v1334
      %v1446 = vpop.f32.mrf.mxu0
      %v1447 = vadd.f32 0.0, %v1446
      %1448 = vmatmul.f32.gmra.mxu0 %v1337
      %v1449 = vpop.f32.mrf.mxu0
      %v1450 = vadd.f32 0.0, %v1449
      %1451 = vmatmul.f32.gmra.mxu0 %v1340
      %v1452 = vpop.f32.mrf.mxu0
      %v1453 = vadd.f32 0.0, %v1452
      %1454 = vmatmul.f32.gmra.mxu0 %v1343
      %v1455 = vpop.f32.mrf.mxu0
      %v1456 = vadd.f32 0.0, %v1455
      %1457 = vmatmul.f32.gmra.mxu0 %v1346
      %v1458 = vpop.f32.mrf.mxu0
      %v1459 = vadd.f32 0.0, %v1458
      %1460 = vmatmul.f32.gmra.mxu0 %v1349
      %v1461 = vpop.f32.mrf.mxu0
      %v1462 = vadd.f32 0.0, %v1461
      %1463 = vmatmul.f32.gmra.mxu0 %v1352
      %v1464 = vpop.f32.mrf.mxu0
      %v1465 = vadd.f32 0.0, %v1464
      %1466 = vmatmul.f32.gmra.mxu0 %v1355
      %v1467 = vpop.f32.mrf.mxu0
      %v1468 = vadd.f32 0.0, %v1467
      %1469 = vmatmul.f32.gmra.mxu0 %v1358
      %v1470 = vpop.f32.mrf.mxu0
      %v1471 = vadd.f32 0.0, %v1470
      %1472 = vmatmul.f32.gmra.mxu0 %v1361
      %v1473 = vpop.f32.mrf.mxu0
      %v1474 = vadd.f32 0.0, %v1473
      %1475 = vdwg.mxu0
      %v1476 = vadd.f32 %v1135, %v1381
      %v1477 = vadd.f32 %v1138, %v1384
      %v1478 = vadd.f32 %v1141, %v1387
      %v1479 = vadd.f32 %v1144, %v1390
      %v1480 = vadd.f32 %v1147, %v1393
      %v1481 = vadd.f32 %v1150, %v1396
      %v1482 = vadd.f32 %v1153, %v1399
      %v1483 = vadd.f32 %v1156, %v1402
      %v1484 = vadd.f32 %v1159, %v1405
      %v1485 = vadd.f32 %v1162, %v1408
      %v1486 = vadd.f32 %v1165, %v1411
      %v1487 = vadd.f32 %v1168, %v1414
      %v1488 = vadd.f32 %v1171, %v1417
      %v1489 = vadd.f32 %v1174, %v1420
      %v1490 = vadd.f32 %v1177, %v1423
      %v1491 = vadd.f32 %v1180, %v1426
      %v1492 = vadd.f32 %v1183, %v1429
      %v1493 = vadd.f32 %v1186, %v1432
      %v1494 = vadd.f32 %v1189, %v1435
      %v1495 = vadd.f32 %v1192, %v1438
      %v1496 = vadd.f32 %v1195, %v1441
      %v1497 = vadd.f32 %v1198, %v1444
      %v1498 = vadd.f32 %v1201, %v1447
      %v1499 = vadd.f32 %v1204, %v1450
      %v1500 = vadd.f32 %v1207, %v1453
      %v1501 = vadd.f32 %v1210, %v1456
      %v1502 = vadd.f32 %v1213, %v1459
      %v1503 = vadd.f32 %v1216, %v1462
      %v1504 = vadd.f32 %v1219, %v1465
      %v1505 = vadd.f32 %v1222, %v1468
      %v1506 = vadd.f32 %v1225, %v1471
      %v1507 = vadd.f32 %v1228, %v1474
      %v1508 = vld [vmem:[%s706] sm:$0xff]
      %v1509 = vld [vmem:[%s706 + $0x8] sm:$0xff]
      %v1510 = vld [vmem:[%s706 + $0x18] sm:$0xff]
      %v1511 = vld [vmem:[%s706 + $0x20] sm:$0xff]
      %v1512 = vld [vmem:[%s706 + $0x30] sm:$0xff]
      %v1513 = vld [vmem:[%s706 + $0x38] sm:$0xff]
      %v1514 = vld [vmem:[%s706 + $0x48] sm:$0xff]
      %v1515 = vld [vmem:[%s706 + $0x50] sm:$0xff]
      %v1516 = vld [vmem:[%s706 + $0x60] sm:$0xff]
      %v1517 = vld [vmem:[%s706 + $0x68] sm:$0xff]
      %v1518 = vld [vmem:[%s706 + $0x78] sm:$0xff]
      %v1519 = vld [vmem:[%s706 + $0x80] sm:$0xff]
      %v1520 = vld [vmem:[%s706 + $0x90] sm:$0xff]
      %v1521 = vld [vmem:[%s706 + $0x98] sm:$0xff]
      %v1522 = vld [vmem:[%s706 + $0xa8] sm:$0xff]
      %v1523 = vld [vmem:[%s706 + $0xb0] sm:$0xff]
      %v1524 = vld [vmem:[%s706 + $0xc0] sm:$0xff]
      %v1525 = vld [vmem:[%s706 + $0xc8] sm:$0xff]
      %v1526 = vld [vmem:[%s706 + $0xd8] sm:$0xff]
      %v1527 = vld [vmem:[%s706 + $0xe0] sm:$0xff]
      %v1528 = vld [vmem:[%s706 + $0xf0] sm:$0xff]
      %v1529 = vld [vmem:[%s706 + $0xf8] sm:$0xff]
      %v1530 = vld [vmem:[%s706 + $0x108] sm:$0xff]
      %v1531 = vld [vmem:[%s706 + $0x110] sm:$0xff]
      %v1532 = vld [vmem:[%s706 + $0x120] sm:$0xff]
      %v1533 = vld [vmem:[%s706 + $0x128] sm:$0xff]
      %v1534 = vld [vmem:[%s706 + $0x138] sm:$0xff]
      %v1535 = vld [vmem:[%s706 + $0x140] sm:$0xff]
      %v1536 = vld [vmem:[%s706 + $0x150] sm:$0xff]
      %v1537 = vld [vmem:[%s706 + $0x158] sm:$0xff]
      %v1538 = vld [vmem:[%s706 + $0x168] sm:$0xff]
      %v1539 = vld [vmem:[%s706 + $0x170] sm:$0xff]
      %s1540 = scalar_lea.vmem %s3, 96
      %v1541 = vld [vmem:[%s1540] sm:$0xff]
      %v1542 = vld [vmem:[%s1540 + $0x8] sm:$0xff]
      %v1543 = vld [vmem:[%s1540 + $0x10] sm:$0xff]
      %v1544 = vld [vmem:[%s1540 + $0x18] sm:$0xff]
      %v1546 = vsel %vm333, %v1508, 0
      %v1549 = vsel %vm333, %v1509, 0
      %v1552 = vsel %vm333, %v1510, 0
      %v1555 = vsel %vm333, %v1511, 0
      %v1558 = vsel %vm333, %v1512, 0
      %v1561 = vsel %vm333, %v1513, 0
      %v1564 = vsel %vm333, %v1514, 0
      %v1567 = vsel %vm333, %v1515, 0
      %v1570 = vsel %vm333, %v1516, 0
      %v1573 = vsel %vm333, %v1517, 0
      %v1576 = vsel %vm333, %v1518, 0
      %v1579 = vsel %vm333, %v1519, 0
      %v1582 = vsel %vm333, %v1520, 0
      %v1585 = vsel %vm333, %v1521, 0
      %v1588 = vsel %vm333, %v1522, 0
      %v1591 = vsel %vm333, %v1523, 0
      %v1594 = vsel %vm333, %v1524, 0
      %v1597 = vsel %vm333, %v1525, 0
      %v1600 = vsel %vm333, %v1526, 0
      %v1603 = vsel %vm333, %v1527, 0
      %v1606 = vsel %vm333, %v1528, 0
      %v1609 = vsel %vm333, %v1529, 0
      %v1612 = vsel %vm333, %v1530, 0
      %v1615 = vsel %vm333, %v1531, 0
      %v1618 = vsel %vm333, %v1532, 0
      %v1621 = vsel %vm333, %v1533, 0
      %v1624 = vsel %vm333, %v1534, 0
      %v1627 = vsel %vm333, %v1535, 0
      %v1630 = vsel %vm333, %v1536, 0
      %v1633 = vsel %vm333, %v1537, 0
      %v1636 = vsel %vm333, %v1538, 0
      %v1639 = vsel %vm333, %v1539, 0
      %1641 = vmatpush.msra.mxu0 0.0
      %1642 = vmatpush.msra.mxu0 0.0
      %1643 = vmatpush.msra.mxu0 0.0
      %1644 = vmatpush.msra.mxu0 0.0
      %1645 = vmatpush.msra.mxu0 0.0
      %1646 = vmatpush.msra.mxu0 0.0
      %1647 = vmatpush.msra.mxu0 0.0
      %1648 = vmatpush.msra.mxu0 0.0
      %1649 = vmatpush.msra.mxu0 0.0
      %1650 = vmatpush.msra.mxu0 0.0
      %1651 = vmatpush.msra.mxu0 0.0
      %1652 = vmatpush.msra.mxu0 0.0
      %1653 = vmatpush.msra.mxu0 %v1544
      %1654 = vmatpush.msra.mxu0 %v1543
      %1655 = vmatpush.msra.mxu0 %v1542
      %1656 = vmatpush.msra.mxu0 %v1541
      %1657 = vmatmul.f32.gmra.mxu0 %v1546
      %v1658 = vpop.f32.mrf.mxu0
      %v1659 = vadd.f32 0.0, %v1658
      %1660 = vmatmul.f32.gmra.mxu0 %v1549
      %v1661 = vpop.f32.mrf.mxu0
      %v1662 = vadd.f32 0.0, %v1661
      %1663 = vmatmul.f32.gmra.mxu0 %v1552
      %v1664 = vpop.f32.mrf.mxu0
      %v1665 = vadd.f32 0.0, %v1664
      %1666 = vmatmul.f32.gmra.mxu0 %v1555
      %v1667 = vpop.f32.mrf.mxu0
      %v1668 = vadd.f32 0.0, %v1667
      %1669 = vmatmul.f32.gmra.mxu0 %v1558
      %v1670 = vpop.f32.mrf.mxu0
      %v1671 = vadd.f32 0.0, %v1670
      %1672 = vmatmul.f32.gmra.mxu0 %v1561
      %v1673 = vpop.f32.mrf.mxu0
      %v1674 = vadd.f32 0.0, %v1673
      %1675 = vmatmul.f32.gmra.mxu0 %v1564
      %v1676 = vpop.f32.mrf.mxu0
      %v1677 = vadd.f32 0.0, %v1676
      %1678 = vmatmul.f32.gmra.mxu0 %v1567
      %v1679 = vpop.f32.mrf.mxu0
      %v1680 = vadd.f32 0.0, %v1679
      %1681 = vmatmul.f32.gmra.mxu0 %v1570
      %v1682 = vpop.f32.mrf.mxu0
      %v1683 = vadd.f32 0.0, %v1682
      %1684 = vmatmul.f32.gmra.mxu0 %v1573
      %v1685 = vpop.f32.mrf.mxu0
      %v1686 = vadd.f32 0.0, %v1685
      %1687 = vmatmul.f32.gmra.mxu0 %v1576
      %v1688 = vpop.f32.mrf.mxu0
      %v1689 = vadd.f32 0.0, %v1688
      %1690 = vmatmul.f32.gmra.mxu0 %v1579
      %v1691 = vpop.f32.mrf.mxu0
      %v1692 = vadd.f32 0.0, %v1691
      %1693 = vmatmul.f32.gmra.mxu0 %v1582
      %v1694 = vpop.f32.mrf.mxu0
      %v1695 = vadd.f32 0.0, %v1694
      %1696 = vmatmul.f32.gmra.mxu0 %v1585
      %v1697 = vpop.f32.mrf.mxu0
      %v1698 = vadd.f32 0.0, %v1697
      %1699 = vmatmul.f32.gmra.mxu0 %v1588
      %v1700 = vpop.f32.mrf.mxu0
      %v1701 = vadd.f32 0.0, %v1700
      %1702 = vmatmul.f32.gmra.mxu0 %v1591
      %v1703 = vpop.f32.mrf.mxu0
      %v1704 = vadd.f32 0.0, %v1703
      %1705 = vmatmul.f32.gmra.mxu0 %v1594
      %v1706 = vpop.f32.mrf.mxu0
      %v1707 = vadd.f32 0.0, %v1706
      %1708 = vmatmul.f32.gmra.mxu0 %v1597
      %v1709 = vpop.f32.mrf.mxu0
      %v1710 = vadd.f32 0.0, %v1709
      %1711 = vmatmul.f32.gmra.mxu0 %v1600
      %v1712 = vpop.f32.mrf.mxu0
      %v1713 = vadd.f32 0.0, %v1712
      %1714 = vmatmul.f32.gmra.mxu0 %v1603
      %v1715 = vpop.f32.mrf.mxu0
      %v1716 = vadd.f32 0.0, %v1715
      %1717 = vmatmul.f32.gmra.mxu0 %v1606
      %v1718 = vpop.f32.mrf.mxu0
      %v1719 = vadd.f32 0.0, %v1718
      %1720 = vmatmul.f32.gmra.mxu0 %v1609
      %v1721 = vpop.f32.mrf.mxu0
      %v1722 = vadd.f32 0.0, %v1721
      %1723 = vmatmul.f32.gmra.mxu0 %v1612
      %v1724 = vpop.f32.mrf.mxu0
      %v1725 = vadd.f32 0.0, %v1724
      %1726 = vmatmul.f32.gmra.mxu0 %v1615
      %v1727 = vpop.f32.mrf.mxu0
      %v1728 = vadd.f32 0.0, %v1727
      %1729 = vmatmul.f32.gmra.mxu0 %v1618
      %v1730 = vpop.f32.mrf.mxu0
      %v1731 = vadd.f32 0.0, %v1730
      %1732 = vmatmul.f32.gmra.mxu0 %v1621
      %v1733 = vpop.f32.mrf.mxu0
      %v1734 = vadd.f32 0.0, %v1733
      %1735 = vmatmul.f32.gmra.mxu0 %v1624
      %v1736 = vpop.f32.mrf.mxu0
      %v1737 = vadd.f32 0.0, %v1736
      %1738 = vmatmul.f32.gmra.mxu0 %v1627
      %v1739 = vpop.f32.mrf.mxu0
      %v1740 = vadd.f32 0.0, %v1739
      %1741 = vmatmul.f32.gmra.mxu0 %v1630
      %v1742 = vpop.f32.mrf.mxu0
      %v1743 = vadd.f32 0.0, %v1742
      %1744 = vmatmul.f32.gmra.mxu0 %v1633
      %v1745 = vpop.f32.mrf.mxu0
      %v1746 = vadd.f32 0.0, %v1745
      %1747 = vmatmul.f32.gmra.mxu0 %v1636
      %v1748 = vpop.f32.mrf.mxu0
      %v1749 = vadd.f32 0.0, %v1748
      %1750 = vmatmul.f32.gmra.mxu0 %v1639
      %v1751 = vpop.f32.mrf.mxu0
      %v1752 = vadd.f32 0.0, %v1751
      %1753 = vdwg.mxu0
      %v1754 = vadd.f32 %v1476, %v1659
      %v1755 = vadd.f32 %v1477, %v1662
      %v1756 = vadd.f32 %v1478, %v1665
      %v1757 = vadd.f32 %v1479, %v1668
      %v1758 = vadd.f32 %v1480, %v1671
      %v1759 = vadd.f32 %v1481, %v1674
      %v1760 = vadd.f32 %v1482, %v1677
      %v1761 = vadd.f32 %v1483, %v1680
      %v1762 = vadd.f32 %v1484, %v1683
      %v1763 = vadd.f32 %v1485, %v1686
      %v1764 = vadd.f32 %v1486, %v1689
      %v1765 = vadd.f32 %v1487, %v1692
      %v1766 = vadd.f32 %v1488, %v1695
      %v1767 = vadd.f32 %v1489, %v1698
      %v1768 = vadd.f32 %v1490, %v1701
      %v1769 = vadd.f32 %v1491, %v1704
      %v1770 = vadd.f32 %v1492, %v1707
      %v1771 = vadd.f32 %v1493, %v1710
      %v1772 = vadd.f32 %v1494, %v1713
      %v1773 = vadd.f32 %v1495, %v1716
      %v1774 = vadd.f32 %v1496, %v1719
      %v1775 = vadd.f32 %v1497, %v1722
      %v1776 = vadd.f32 %v1498, %v1725
      %v1777 = vadd.f32 %v1499, %v1728
      %v1778 = vadd.f32 %v1500, %v1731
      %v1779 = vadd.f32 %v1501, %v1734
      %v1780 = vadd.f32 %v1502, %v1737
      %v1781 = vadd.f32 %v1503, %v1740
      %v1782 = vadd.f32 %v1504, %v1743
      %v1783 = vadd.f32 %v1505, %v1746
      %v1784 = vadd.f32 %v1506, %v1749
      %v1785 = vadd.f32 %v1507, %v1752
      %v1786 = vld [vmem:[%s706 + $0x1] sm:$0xff]
      %v1787 = vld [vmem:[%s706 + $0x9] sm:$0xff]
      %v1788 = vld [vmem:[%s706 + $0x19] sm:$0xff]
      %v1789 = vld [vmem:[%s706 + $0x21] sm:$0xff]
      %v1790 = vld [vmem:[%s706 + $0x31] sm:$0xff]
      %v1791 = vld [vmem:[%s706 + $0x39] sm:$0xff]
      %v1792 = vld [vmem:[%s706 + $0x49] sm:$0xff]
      %v1793 = vld [vmem:[%s706 + $0x51] sm:$0xff]
      %v1794 = vld [vmem:[%s706 + $0x61] sm:$0xff]
      %v1795 = vld [vmem:[%s706 + $0x69] sm:$0xff]
      %v1796 = vld [vmem:[%s706 + $0x79] sm:$0xff]
      %v1797 = vld [vmem:[%s706 + $0x81] sm:$0xff]
      %v1798 = vld [vmem:[%s706 + $0x91] sm:$0xff]
      %v1799 = vld [vmem:[%s706 + $0x99] sm:$0xff]
      %v1800 = vld [vmem:[%s706 + $0xa9] sm:$0xff]
      %v1801 = vld [vmem:[%s706 + $0xb1] sm:$0xff]
      %v1802 = vld [vmem:[%s706 + $0xc1] sm:$0xff]
      %v1803 = vld [vmem:[%s706 + $0xc9] sm:$0xff]
      %v1804 = vld [vmem:[%s706 + $0xd9] sm:$0xff]
      %v1805 = vld [vmem:[%s706 + $0xe1] sm:$0xff]
      %v1806 = vld [vmem:[%s706 + $0xf1] sm:$0xff]
      %v1807 = vld [vmem:[%s706 + $0xf9] sm:$0xff]
      %v1808 = vld [vmem:[%s706 + $0x109] sm:$0xff]
      %v1809 = vld [vmem:[%s706 + $0x111] sm:$0xff]
      %v1810 = vld [vmem:[%s706 + $0x121] sm:$0xff]
      %v1811 = vld [vmem:[%s706 + $0x129] sm:$0xff]
      %v1812 = vld [vmem:[%s706 + $0x139] sm:$0xff]
      %v1813 = vld [vmem:[%s706 + $0x141] sm:$0xff]
      %v1814 = vld [vmem:[%s706 + $0x151] sm:$0xff]
      %v1815 = vld [vmem:[%s706 + $0x159] sm:$0xff]
      %v1816 = vld [vmem:[%s706 + $0x169] sm:$0xff]
      %v1817 = vld [vmem:[%s706 + $0x171] sm:$0xff]
      %s1818 = scalar_lea.vmem %s3, 128
      %v1819 = vld [vmem:[%s1818] sm:$0xff]
      %v1820 = vld [vmem:[%s1818 + $0x8] sm:$0xff]
      %v1821 = vld [vmem:[%s1818 + $0x10] sm:$0xff]
      %v1822 = vld [vmem:[%s1818 + $0x18] sm:$0xff]
      %v1824 = vsel %vm333, %v1786, 0
      %v1827 = vsel %vm333, %v1787, 0
      %v1830 = vsel %vm333, %v1788, 0
      %v1833 = vsel %vm333, %v1789, 0
      %v1836 = vsel %vm333, %v1790, 0
      %v1839 = vsel %vm333, %v1791, 0
      %v1842 = vsel %vm333, %v1792, 0
      %v1845 = vsel %vm333, %v1793, 0
      %v1848 = vsel %vm333, %v1794, 0
      %v1851 = vsel %vm333, %v1795, 0
      %v1854 = vsel %vm333, %v1796, 0
      %v1857 = vsel %vm333, %v1797, 0
      %v1860 = vsel %vm333, %v1798, 0
      %v1863 = vsel %vm333, %v1799, 0
      %v1866 = vsel %vm333, %v1800, 0
      %v1869 = vsel %vm333, %v1801, 0
      %v1872 = vsel %vm333, %v1802, 0
      %v1875 = vsel %vm333, %v1803, 0
      %v1878 = vsel %vm333, %v1804, 0
      %v1881 = vsel %vm333, %v1805, 0
      %v1884 = vsel %vm333, %v1806, 0
      %v1887 = vsel %vm333, %v1807, 0
      %v1890 = vsel %vm333, %v1808, 0
      %v1893 = vsel %vm333, %v1809, 0
      %v1896 = vsel %vm333, %v1810, 0
      %v1899 = vsel %vm333, %v1811, 0
      %v1902 = vsel %vm333, %v1812, 0
      %v1905 = vsel %vm333, %v1813, 0
      %v1908 = vsel %vm333, %v1814, 0
      %v1911 = vsel %vm333, %v1815, 0
      %v1914 = vsel %vm333, %v1816, 0
      %v1917 = vsel %vm333, %v1817, 0
      %1919 = vmatpush.msra.mxu0 0.0
      %1920 = vmatpush.msra.mxu0 0.0
      %1921 = vmatpush.msra.mxu0 0.0
      %1922 = vmatpush.msra.mxu0 0.0
      %1923 = vmatpush.msra.mxu0 0.0
      %1924 = vmatpush.msra.mxu0 0.0
      %1925 = vmatpush.msra.mxu0 0.0
      %1926 = vmatpush.msra.mxu0 0.0
      %1927 = vmatpush.msra.mxu0 0.0
      %1928 = vmatpush.msra.mxu0 0.0
      %1929 = vmatpush.msra.mxu0 0.0
      %1930 = vmatpush.msra.mxu0 0.0
      %1931 = vmatpush.msra.mxu0 %v1822
      %1932 = vmatpush.msra.mxu0 %v1821
      %1933 = vmatpush.msra.mxu0 %v1820
      %1934 = vmatpush.msra.mxu0 %v1819
      %1935 = vmatmul.f32.gmra.mxu0 %v1824
      %v1936 = vpop.f32.mrf.mxu0
      %v1937 = vadd.f32 0.0, %v1936
      %1938 = vmatmul.f32.gmra.mxu0 %v1827
      %v1939 = vpop.f32.mrf.mxu0
      %v1940 = vadd.f32 0.0, %v1939
      %1941 = vmatmul.f32.gmra.mxu0 %v1830
      %v1942 = vpop.f32.mrf.mxu0
      %v1943 = vadd.f32 0.0, %v1942
      %1944 = vmatmul.f32.gmra.mxu0 %v1833
      %v1945 = vpop.f32.mrf.mxu0
      %v1946 = vadd.f32 0.0, %v1945
      %1947 = vmatmul.f32.gmra.mxu0 %v1836
      %v1948 = vpop.f32.mrf.mxu0
      %v1949 = vadd.f32 0.0, %v1948
      %1950 = vmatmul.f32.gmra.mxu0 %v1839
      %v1951 = vpop.f32.mrf.mxu0
      %v1952 = vadd.f32 0.0, %v1951
      %1953 = vmatmul.f32.gmra.mxu0 %v1842
      %v1954 = vpop.f32.mrf.mxu0
      %v1955 = vadd.f32 0.0, %v1954
      %1956 = vmatmul.f32.gmra.mxu0 %v1845
      %v1957 = vpop.f32.mrf.mxu0
      %v1958 = vadd.f32 0.0, %v1957
      %1959 = vmatmul.f32.gmra.mxu0 %v1848
      %v1960 = vpop.f32.mrf.mxu0
      %v1961 = vadd.f32 0.0, %v1960
      %1962 = vmatmul.f32.gmra.mxu0 %v1851
      %v1963 = vpop.f32.mrf.mxu0
      %v1964 = vadd.f32 0.0, %v1963
      %1965 = vmatmul.f32.gmra.mxu0 %v1854
      %v1966 = vpop.f32.mrf.mxu0
      %v1967 = vadd.f32 0.0, %v1966
      %1968 = vmatmul.f32.gmra.mxu0 %v1857
      %v1969 = vpop.f32.mrf.mxu0
      %v1970 = vadd.f32 0.0, %v1969
      %1971 = vmatmul.f32.gmra.mxu0 %v1860
      %v1972 = vpop.f32.mrf.mxu0
      %v1973 = vadd.f32 0.0, %v1972
      %1974 = vmatmul.f32.gmra.mxu0 %v1863
      %v1975 = vpop.f32.mrf.mxu0
      %v1976 = vadd.f32 0.0, %v1975
      %1977 = vmatmul.f32.gmra.mxu0 %v1866
      %v1978 = vpop.f32.mrf.mxu0
      %v1979 = vadd.f32 0.0, %v1978
      %1980 = vmatmul.f32.gmra.mxu0 %v1869
      %v1981 = vpop.f32.mrf.mxu0
      %v1982 = vadd.f32 0.0, %v1981
      %1983 = vmatmul.f32.gmra.mxu0 %v1872
      %v1984 = vpop.f32.mrf.mxu0
      %v1985 = vadd.f32 0.0, %v1984
      %1986 = vmatmul.f32.gmra.mxu0 %v1875
      %v1987 = vpop.f32.mrf.mxu0
      %v1988 = vadd.f32 0.0, %v1987
      %1989 = vmatmul.f32.gmra.mxu0 %v1878
      %v1990 = vpop.f32.mrf.mxu0
      %v1991 = vadd.f32 0.0, %v1990
      %1992 = vmatmul.f32.gmra.mxu0 %v1881
      %v1993 = vpop.f32.mrf.mxu0
      %v1994 = vadd.f32 0.0, %v1993
      %1995 = vmatmul.f32.gmra.mxu0 %v1884
      %v1996 = vpop.f32.mrf.mxu0
      %v1997 = vadd.f32 0.0, %v1996
      %1998 = vmatmul.f32.gmra.mxu0 %v1887
      %v1999 = vpop.f32.mrf.mxu0
      %v2000 = vadd.f32 0.0, %v1999
      %2001 = vmatmul.f32.gmra.mxu0 %v1890
      %v2002 = vpop.f32.mrf.mxu0
      %v2003 = vadd.f32 0.0, %v2002
      %2004 = vmatmul.f32.gmra.mxu0 %v1893
      %v2005 = vpop.f32.mrf.mxu0
      %v2006 = vadd.f32 0.0, %v2005
      %2007 = vmatmul.f32.gmra.mxu0 %v1896
      %v2008 = vpop.f32.mrf.mxu0
      %v2009 = vadd.f32 0.0, %v2008
      %2010 = vmatmul.f32.gmra.mxu0 %v1899
      %v2011 = vpop.f32.mrf.mxu0
      %v2012 = vadd.f32 0.0, %v2011
      %2013 = vmatmul.f32.gmra.mxu0 %v1902
      %v2014 = vpop.f32.mrf.mxu0
      %v2015 = vadd.f32 0.0, %v2014
      %2016 = vmatmul.f32.gmra.mxu0 %v1905
      %v2017 = vpop.f32.mrf.mxu0
      %v2018 = vadd.f32 0.0, %v2017
      %2019 = vmatmul.f32.gmra.mxu0 %v1908
      %v2020 = vpop.f32.mrf.mxu0
      %v2021 = vadd.f32 0.0, %v2020
      %2022 = vmatmul.f32.gmra.mxu0 %v1911
      %v2023 = vpop.f32.mrf.mxu0
      %v2024 = vadd.f32 0.0, %v2023
      %2025 = vmatmul.f32.gmra.mxu0 %v1914
      %v2026 = vpop.f32.mrf.mxu0
      %v2027 = vadd.f32 0.0, %v2026
      %2028 = vmatmul.f32.gmra.mxu0 %v1917
      %v2029 = vpop.f32.mrf.mxu0
      %v2030 = vadd.f32 0.0, %v2029
      %2031 = vdwg.mxu0
      %v2032 = vadd.f32 %v1754, %v1937
      %v2033 = vadd.f32 %v1755, %v1940
      %v2034 = vadd.f32 %v1756, %v1943
      %v2035 = vadd.f32 %v1757, %v1946
      %v2036 = vadd.f32 %v1758, %v1949
      %v2037 = vadd.f32 %v1759, %v1952
      %v2038 = vadd.f32 %v1760, %v1955
      %v2039 = vadd.f32 %v1761, %v1958
      %v2040 = vadd.f32 %v1762, %v1961
      %v2041 = vadd.f32 %v1763, %v1964
      %v2042 = vadd.f32 %v1764, %v1967
      %v2043 = vadd.f32 %v1765, %v1970
      %v2044 = vadd.f32 %v1766, %v1973
      %v2045 = vadd.f32 %v1767, %v1976
      %v2046 = vadd.f32 %v1768, %v1979
      %v2047 = vadd.f32 %v1769, %v1982
      %v2048 = vadd.f32 %v1770, %v1985
      %v2049 = vadd.f32 %v1771, %v1988
      %v2050 = vadd.f32 %v1772, %v1991
      %v2051 = vadd.f32 %v1773, %v1994
      %v2052 = vadd.f32 %v1774, %v1997
      %v2053 = vadd.f32 %v1775, %v2000
      %v2054 = vadd.f32 %v1776, %v2003
      %v2055 = vadd.f32 %v1777, %v2006
      %v2056 = vadd.f32 %v1778, %v2009
      %v2057 = vadd.f32 %v1779, %v2012
      %v2058 = vadd.f32 %v1780, %v2015
      %v2059 = vadd.f32 %v1781, %v2018
      %v2060 = vadd.f32 %v1782, %v2021
      %v2061 = vadd.f32 %v1783, %v2024
      %v2062 = vadd.f32 %v1784, %v2027
      %v2063 = vadd.f32 %v1785, %v2030
      %v2064 = vld [vmem:[%s706 + $0x2] sm:$0xff]
      %v2065 = vld [vmem:[%s706 + $0xa] sm:$0xff]
      %v2066 = vld [vmem:[%s706 + $0x1a] sm:$0xff]
      %v2067 = vld [vmem:[%s706 + $0x22] sm:$0xff]
      %v2068 = vld [vmem:[%s706 + $0x32] sm:$0xff]
      %v2069 = vld [vmem:[%s706 + $0x3a] sm:$0xff]
      %v2070 = vld [vmem:[%s706 + $0x4a] sm:$0xff]
      %v2071 = vld [vmem:[%s706 + $0x52] sm:$0xff]
      %v2072 = vld [vmem:[%s706 + $0x62] sm:$0xff]
      %v2073 = vld [vmem:[%s706 + $0x6a] sm:$0xff]
      %v2074 = vld [vmem:[%s706 + $0x7a] sm:$0xff]
      %v2075 = vld [vmem:[%s706 + $0x82] sm:$0xff]
      %v2076 = vld [vmem:[%s706 + $0x92] sm:$0xff]
      %v2077 = vld [vmem:[%s706 + $0x9a] sm:$0xff]
      %v2078 = vld [vmem:[%s706 + $0xaa] sm:$0xff]
      %v2079 = vld [vmem:[%s706 + $0xb2] sm:$0xff]
      %v2080 = vld [vmem:[%s706 + $0xc2] sm:$0xff]
      %v2081 = vld [vmem:[%s706 + $0xca] sm:$0xff]
      %v2082 = vld [vmem:[%s706 + $0xda] sm:$0xff]
      %v2083 = vld [vmem:[%s706 + $0xe2] sm:$0xff]
      %v2084 = vld [vmem:[%s706 + $0xf2] sm:$0xff]
      %v2085 = vld [vmem:[%s706 + $0xfa] sm:$0xff]
      %v2086 = vld [vmem:[%s706 + $0x10a] sm:$0xff]
      %v2087 = vld [vmem:[%s706 + $0x112] sm:$0xff]
      %v2088 = vld [vmem:[%s706 + $0x122] sm:$0xff]
      %v2089 = vld [vmem:[%s706 + $0x12a] sm:$0xff]
      %v2090 = vld [vmem:[%s706 + $0x13a] sm:$0xff]
      %v2091 = vld [vmem:[%s706 + $0x142] sm:$0xff]
      %v2092 = vld [vmem:[%s706 + $0x152] sm:$0xff]
      %v2093 = vld [vmem:[%s706 + $0x15a] sm:$0xff]
      %v2094 = vld [vmem:[%s706 + $0x16a] sm:$0xff]
      %v2095 = vld [vmem:[%s706 + $0x172] sm:$0xff]
      %s2096 = scalar_lea.vmem %s3, 160
      %v2097 = vld [vmem:[%s2096] sm:$0xff]
      %v2098 = vld [vmem:[%s2096 + $0x8] sm:$0xff]
      %v2099 = vld [vmem:[%s2096 + $0x10] sm:$0xff]
      %v2100 = vld [vmem:[%s2096 + $0x18] sm:$0xff]
      %v2102 = vsel %vm333, %v2064, 0
      %v2105 = vsel %vm333, %v2065, 0
      %v2108 = vsel %vm333, %v2066, 0
      %v2111 = vsel %vm333, %v2067, 0
      %v2114 = vsel %vm333, %v2068, 0
      %v2117 = vsel %vm333, %v2069, 0
      %v2120 = vsel %vm333, %v2070, 0
      %v2123 = vsel %vm333, %v2071, 0
      %v2126 = vsel %vm333, %v2072, 0
      %v2129 = vsel %vm333, %v2073, 0
      %v2132 = vsel %vm333, %v2074, 0
      %v2135 = vsel %vm333, %v2075, 0
      %v2138 = vsel %vm333, %v2076, 0
      %v2141 = vsel %vm333, %v2077, 0
      %v2144 = vsel %vm333, %v2078, 0
      %v2147 = vsel %vm333, %v2079, 0
      %v2150 = vsel %vm333, %v2080, 0
      %v2153 = vsel %vm333, %v2081, 0
      %v2156 = vsel %vm333, %v2082, 0
      %v2159 = vsel %vm333, %v2083, 0
      %v2162 = vsel %vm333, %v2084, 0
      %v2165 = vsel %vm333, %v2085, 0
      %v2168 = vsel %vm333, %v2086, 0
      %v2171 = vsel %vm333, %v2087, 0
      %v2174 = vsel %vm333, %v2088, 0
      %v2177 = vsel %vm333, %v2089, 0
      %v2180 = vsel %vm333, %v2090, 0
      %v2183 = vsel %vm333, %v2091, 0
      %v2186 = vsel %vm333, %v2092, 0
      %v2189 = vsel %vm333, %v2093, 0
      %v2192 = vsel %vm333, %v2094, 0
      %v2195 = vsel %vm333, %v2095, 0
      %2197 = vmatpush.msra.mxu0 0.0
      %2198 = vmatpush.msra.mxu0 0.0
      %2199 = vmatpush.msra.mxu0 0.0
      %2200 = vmatpush.msra.mxu0 0.0
      %2201 = vmatpush.msra.mxu0 0.0
      %2202 = vmatpush.msra.mxu0 0.0
      %2203 = vmatpush.msra.mxu0 0.0
      %2204 = vmatpush.msra.mxu0 0.0
      %2205 = vmatpush.msra.mxu0 0.0
      %2206 = vmatpush.msra.mxu0 0.0
      %2207 = vmatpush.msra.mxu0 0.0
      %2208 = vmatpush.msra.mxu0 0.0
      %2209 = vmatpush.msra.mxu0 %v2100
      %2210 = vmatpush.msra.mxu0 %v2099
      %2211 = vmatpush.msra.mxu0 %v2098
      %2212 = vmatpush.msra.mxu0 %v2097
      %2213 = vmatmul.f32.gmra.mxu0 %v2102
      %v2214 = vpop.f32.mrf.mxu0
      %v2215 = vadd.f32 0.0, %v2214
      %2216 = vmatmul.f32.gmra.mxu0 %v2105
      %v2217 = vpop.f32.mrf.mxu0
      %v2218 = vadd.f32 0.0, %v2217
      %2219 = vmatmul.f32.gmra.mxu0 %v2108
      %v2220 = vpop.f32.mrf.mxu0
      %v2221 = vadd.f32 0.0, %v2220
      %2222 = vmatmul.f32.gmra.mxu0 %v2111
      %v2223 = vpop.f32.mrf.mxu0
      %v2224 = vadd.f32 0.0, %v2223
      %2225 = vmatmul.f32.gmra.mxu0 %v2114
      %v2226 = vpop.f32.mrf.mxu0
      %v2227 = vadd.f32 0.0, %v2226
      %2228 = vmatmul.f32.gmra.mxu0 %v2117
      %v2229 = vpop.f32.mrf.mxu0
      %v2230 = vadd.f32 0.0, %v2229
      %2231 = vmatmul.f32.gmra.mxu0 %v2120
      %v2232 = vpop.f32.mrf.mxu0
      %v2233 = vadd.f32 0.0, %v2232
      %2234 = vmatmul.f32.gmra.mxu0 %v2123
      %v2235 = vpop.f32.mrf.mxu0
      %v2236 = vadd.f32 0.0, %v2235
      %2237 = vmatmul.f32.gmra.mxu0 %v2126
      %v2238 = vpop.f32.mrf.mxu0
      %v2239 = vadd.f32 0.0, %v2238
      %2240 = vmatmul.f32.gmra.mxu0 %v2129
      %v2241 = vpop.f32.mrf.mxu0
      %v2242 = vadd.f32 0.0, %v2241
      %2243 = vmatmul.f32.gmra.mxu0 %v2132
      %v2244 = vpop.f32.mrf.mxu0
      %v2245 = vadd.f32 0.0, %v2244
      %2246 = vmatmul.f32.gmra.mxu0 %v2135
      %v2247 = vpop.f32.mrf.mxu0
      %v2248 = vadd.f32 0.0, %v2247
      %2249 = vmatmul.f32.gmra.mxu0 %v2138
      %v2250 = vpop.f32.mrf.mxu0
      %v2251 = vadd.f32 0.0, %v2250
      %2252 = vmatmul.f32.gmra.mxu0 %v2141
      %v2253 = vpop.f32.mrf.mxu0
      %v2254 = vadd.f32 0.0, %v2253
      %2255 = vmatmul.f32.gmra.mxu0 %v2144
      %v2256 = vpop.f32.mrf.mxu0
      %v2257 = vadd.f32 0.0, %v2256
      %2258 = vmatmul.f32.gmra.mxu0 %v2147
      %v2259 = vpop.f32.mrf.mxu0
      %v2260 = vadd.f32 0.0, %v2259
      %2261 = vmatmul.f32.gmra.mxu0 %v2150
      %v2262 = vpop.f32.mrf.mxu0
      %v2263 = vadd.f32 0.0, %v2262
      %2264 = vmatmul.f32.gmra.mxu0 %v2153
      %v2265 = vpop.f32.mrf.mxu0
      %v2266 = vadd.f32 0.0, %v2265
      %2267 = vmatmul.f32.gmra.mxu0 %v2156
      %v2268 = vpop.f32.mrf.mxu0
      %v2269 = vadd.f32 0.0, %v2268
      %2270 = vmatmul.f32.gmra.mxu0 %v2159
      %v2271 = vpop.f32.mrf.mxu0
      %v2272 = vadd.f32 0.0, %v2271
      %2273 = vmatmul.f32.gmra.mxu0 %v2162
      %v2274 = vpop.f32.mrf.mxu0
      %v2275 = vadd.f32 0.0, %v2274
      %2276 = vmatmul.f32.gmra.mxu0 %v2165
      %v2277 = vpop.f32.mrf.mxu0
      %v2278 = vadd.f32 0.0, %v2277
      %2279 = vmatmul.f32.gmra.mxu0 %v2168
      %v2280 = vpop.f32.mrf.mxu0
      %v2281 = vadd.f32 0.0, %v2280
      %2282 = vmatmul.f32.gmra.mxu0 %v2171
      %v2283 = vpop.f32.mrf.mxu0
      %v2284 = vadd.f32 0.0, %v2283
      %2285 = vmatmul.f32.gmra.mxu0 %v2174
      %v2286 = vpop.f32.mrf.mxu0
      %v2287 = vadd.f32 0.0, %v2286
      %2288 = vmatmul.f32.gmra.mxu0 %v2177
      %v2289 = vpop.f32.mrf.mxu0
      %v2290 = vadd.f32 0.0, %v2289
      %2291 = vmatmul.f32.gmra.mxu0 %v2180
      %v2292 = vpop.f32.mrf.mxu0
      %v2293 = vadd.f32 0.0, %v2292
      %2294 = vmatmul.f32.gmra.mxu0 %v2183
      %v2295 = vpop.f32.mrf.mxu0
      %v2296 = vadd.f32 0.0, %v2295
      %2297 = vmatmul.f32.gmra.mxu0 %v2186
      %v2298 = vpop.f32.mrf.mxu0
      %v2299 = vadd.f32 0.0, %v2298
      %2300 = vmatmul.f32.gmra.mxu0 %v2189
      %v2301 = vpop.f32.mrf.mxu0
      %v2302 = vadd.f32 0.0, %v2301
      %2303 = vmatmul.f32.gmra.mxu0 %v2192
      %v2304 = vpop.f32.mrf.mxu0
      %v2305 = vadd.f32 0.0, %v2304
      %2306 = vmatmul.f32.gmra.mxu0 %v2195
      %v2307 = vpop.f32.mrf.mxu0
      %v2308 = vadd.f32 0.0, %v2307
      %2309 = vdwg.mxu0
      %v2310 = vadd.f32 %v2032, %v2215
      %v2311 = vadd.f32 %v2033, %v2218
      %v2312 = vadd.f32 %v2034, %v2221
      %v2313 = vadd.f32 %v2035, %v2224
      %v2314 = vadd.f32 %v2036, %v2227
      %v2315 = vadd.f32 %v2037, %v2230
      %v2316 = vadd.f32 %v2038, %v2233
      %v2317 = vadd.f32 %v2039, %v2236
      %v2318 = vadd.f32 %v2040, %v2239
      %v2319 = vadd.f32 %v2041, %v2242
      %v2320 = vadd.f32 %v2042, %v2245
      %v2321 = vadd.f32 %v2043, %v2248
      %v2322 = vadd.f32 %v2044, %v2251
      %v2323 = vadd.f32 %v2045, %v2254
      %v2324 = vadd.f32 %v2046, %v2257
      %v2325 = vadd.f32 %v2047, %v2260
      %v2326 = vadd.f32 %v2048, %v2263
      %v2327 = vadd.f32 %v2049, %v2266
      %v2328 = vadd.f32 %v2050, %v2269
      %v2329 = vadd.f32 %v2051, %v2272
      %v2330 = vadd.f32 %v2052, %v2275
      %v2331 = vadd.f32 %v2053, %v2278
      %v2332 = vadd.f32 %v2054, %v2281
      %v2333 = vadd.f32 %v2055, %v2284
      %v2334 = vadd.f32 %v2056, %v2287
      %v2335 = vadd.f32 %v2057, %v2290
      %v2336 = vadd.f32 %v2058, %v2293
      %v2337 = vadd.f32 %v2059, %v2296
      %v2338 = vadd.f32 %v2060, %v2299
      %v2339 = vadd.f32 %v2061, %v2302
      %v2340 = vadd.f32 %v2062, %v2305
      %v2341 = vadd.f32 %v2063, %v2308
      %s2342 = scalar_lea.vmem [#allocation2], 48
      %v2343 = vld [vmem:[%s2342] sm:$0xff]
      %v2344 = vld [vmem:[%s2342 + $0x8] sm:$0xff]
      %v2345 = vld [vmem:[%s2342 + $0x18] sm:$0xff]
      %v2346 = vld [vmem:[%s2342 + $0x20] sm:$0xff]
      %v2347 = vld [vmem:[%s2342 + $0x30] sm:$0xff]
      %v2348 = vld [vmem:[%s2342 + $0x38] sm:$0xff]
      %v2349 = vld [vmem:[%s2342 + $0x48] sm:$0xff]
      %v2350 = vld [vmem:[%s2342 + $0x50] sm:$0xff]
      %v2351 = vld [vmem:[%s2342 + $0x60] sm:$0xff]
      %v2352 = vld [vmem:[%s2342 + $0x68] sm:$0xff]
      %v2353 = vld [vmem:[%s2342 + $0x78] sm:$0xff]
      %v2354 = vld [vmem:[%s2342 + $0x80] sm:$0xff]
      %v2355 = vld [vmem:[%s2342 + $0x90] sm:$0xff]
      %v2356 = vld [vmem:[%s2342 + $0x98] sm:$0xff]
      %v2357 = vld [vmem:[%s2342 + $0xa8] sm:$0xff]
      %v2358 = vld [vmem:[%s2342 + $0xb0] sm:$0xff]
      %v2359 = vld [vmem:[%s2342 + $0xc0] sm:$0xff]
      %v2360 = vld [vmem:[%s2342 + $0xc8] sm:$0xff]
      %v2361 = vld [vmem:[%s2342 + $0xd8] sm:$0xff]
      %v2362 = vld [vmem:[%s2342 + $0xe0] sm:$0xff]
      %v2363 = vld [vmem:[%s2342 + $0xf0] sm:$0xff]
      %v2364 = vld [vmem:[%s2342 + $0xf8] sm:$0xff]
      %v2365 = vld [vmem:[%s2342 + $0x108] sm:$0xff]
      %v2366 = vld [vmem:[%s2342 + $0x110] sm:$0xff]
      %v2367 = vld [vmem:[%s2342 + $0x120] sm:$0xff]
      %v2368 = vld [vmem:[%s2342 + $0x128] sm:$0xff]
      %v2369 = vld [vmem:[%s2342 + $0x138] sm:$0xff]
      %v2370 = vld [vmem:[%s2342 + $0x140] sm:$0xff]
      %v2371 = vld [vmem:[%s2342 + $0x150] sm:$0xff]
      %v2372 = vld [vmem:[%s2342 + $0x158] sm:$0xff]
      %v2373 = vld [vmem:[%s2342 + $0x168] sm:$0xff]
      %v2374 = vld [vmem:[%s2342 + $0x170] sm:$0xff]
      %s2375 = scalar_lea.vmem %s3, 192
      %v2376 = vld [vmem:[%s2375] sm:$0xff]
      %v2377 = vld [vmem:[%s2375 + $0x8] sm:$0xff]
      %v2378 = vld [vmem:[%s2375 + $0x10] sm:$0xff]
      %v2379 = vld [vmem:[%s2375 + $0x18] sm:$0xff]
      %v2381 = vsel %vm333, %v2343, 0
      %v2384 = vsel %vm333, %v2344, 0
      %v2387 = vsel %vm333, %v2345, 0
      %v2390 = vsel %vm333, %v2346, 0
      %v2393 = vsel %vm333, %v2347, 0
      %v2396 = vsel %vm333, %v2348, 0
      %v2399 = vsel %vm333, %v2349, 0
      %v2402 = vsel %vm333, %v2350, 0
      %v2405 = vsel %vm333, %v2351, 0
      %v2408 = vsel %vm333, %v2352, 0
      %v2411 = vsel %vm333, %v2353, 0
      %v2414 = vsel %vm333, %v2354, 0
      %v2417 = vsel %vm333, %v2355, 0
      %v2420 = vsel %vm333, %v2356, 0
      %v2423 = vsel %vm333, %v2357, 0
      %v2426 = vsel %vm333, %v2358, 0
      %v2429 = vsel %vm333, %v2359, 0
      %v2432 = vsel %vm333, %v2360, 0
      %v2435 = vsel %vm333, %v2361, 0
      %v2438 = vsel %vm333, %v2362, 0
      %v2441 = vsel %vm333, %v2363, 0
      %v2444 = vsel %vm333, %v2364, 0
      %v2447 = vsel %vm333, %v2365, 0
      %v2450 = vsel %vm333, %v2366, 0
      %v2453 = vsel %vm333, %v2367, 0
      %v2456 = vsel %vm333, %v2368, 0
      %v2459 = vsel %vm333, %v2369, 0
      %v2462 = vsel %vm333, %v2370, 0
      %v2465 = vsel %vm333, %v2371, 0
      %v2468 = vsel %vm333, %v2372, 0
      %v2471 = vsel %vm333, %v2373, 0
      %v2474 = vsel %vm333, %v2374, 0
      %2476 = vmatpush.msra.mxu0 0.0
      %2477 = vmatpush.msra.mxu0 0.0
      %2478 = vmatpush.msra.mxu0 0.0
      %2479 = vmatpush.msra.mxu0 0.0
      %2480 = vmatpush.msra.mxu0 0.0
      %2481 = vmatpush.msra.mxu0 0.0
      %2482 = vmatpush.msra.mxu0 0.0
      %2483 = vmatpush.msra.mxu0 0.0
      %2484 = vmatpush.msra.mxu0 0.0
      %2485 = vmatpush.msra.mxu0 0.0
      %2486 = vmatpush.msra.mxu0 0.0
      %2487 = vmatpush.msra.mxu0 0.0
      %2488 = vmatpush.msra.mxu0 %v2379
      %2489 = vmatpush.msra.mxu0 %v2378
      %2490 = vmatpush.msra.mxu0 %v2377
      %2491 = vmatpush.msra.mxu0 %v2376
      %2492 = vmatmul.f32.gmra.mxu0 %v2381
      %v2493 = vpop.f32.mrf.mxu0
      %v2494 = vadd.f32 0.0, %v2493
      %2495 = vmatmul.f32.gmra.mxu0 %v2384
      %v2496 = vpop.f32.mrf.mxu0
      %v2497 = vadd.f32 0.0, %v2496
      %2498 = vmatmul.f32.gmra.mxu0 %v2387
      %v2499 = vpop.f32.mrf.mxu0
      %v2500 = vadd.f32 0.0, %v2499
      %2501 = vmatmul.f32.gmra.mxu0 %v2390
      %v2502 = vpop.f32.mrf.mxu0
      %v2503 = vadd.f32 0.0, %v2502
      %2504 = vmatmul.f32.gmra.mxu0 %v2393
      %v2505 = vpop.f32.mrf.mxu0
      %v2506 = vadd.f32 0.0, %v2505
      %2507 = vmatmul.f32.gmra.mxu0 %v2396
      %v2508 = vpop.f32.mrf.mxu0
      %v2509 = vadd.f32 0.0, %v2508
      %2510 = vmatmul.f32.gmra.mxu0 %v2399
      %v2511 = vpop.f32.mrf.mxu0
      %v2512 = vadd.f32 0.0, %v2511
      %2513 = vmatmul.f32.gmra.mxu0 %v2402
      %v2514 = vpop.f32.mrf.mxu0
      %v2515 = vadd.f32 0.0, %v2514
      %2516 = vmatmul.f32.gmra.mxu0 %v2405
      %v2517 = vpop.f32.mrf.mxu0
      %v2518 = vadd.f32 0.0, %v2517
      %2519 = vmatmul.f32.gmra.mxu0 %v2408
      %v2520 = vpop.f32.mrf.mxu0
      %v2521 = vadd.f32 0.0, %v2520
      %2522 = vmatmul.f32.gmra.mxu0 %v2411
      %v2523 = vpop.f32.mrf.mxu0
      %v2524 = vadd.f32 0.0, %v2523
      %2525 = vmatmul.f32.gmra.mxu0 %v2414
      %v2526 = vpop.f32.mrf.mxu0
      %v2527 = vadd.f32 0.0, %v2526
      %2528 = vmatmul.f32.gmra.mxu0 %v2417
      %v2529 = vpop.f32.mrf.mxu0
      %v2530 = vadd.f32 0.0, %v2529
      %2531 = vmatmul.f32.gmra.mxu0 %v2420
      %v2532 = vpop.f32.mrf.mxu0
      %v2533 = vadd.f32 0.0, %v2532
      %2534 = vmatmul.f32.gmra.mxu0 %v2423
      %v2535 = vpop.f32.mrf.mxu0
      %v2536 = vadd.f32 0.0, %v2535
      %2537 = vmatmul.f32.gmra.mxu0 %v2426
      %v2538 = vpop.f32.mrf.mxu0
      %v2539 = vadd.f32 0.0, %v2538
      %2540 = vmatmul.f32.gmra.mxu0 %v2429
      %v2541 = vpop.f32.mrf.mxu0
      %v2542 = vadd.f32 0.0, %v2541
      %2543 = vmatmul.f32.gmra.mxu0 %v2432
      %v2544 = vpop.f32.mrf.mxu0
      %v2545 = vadd.f32 0.0, %v2544
      %2546 = vmatmul.f32.gmra.mxu0 %v2435
      %v2547 = vpop.f32.mrf.mxu0
      %v2548 = vadd.f32 0.0, %v2547
      %2549 = vmatmul.f32.gmra.mxu0 %v2438
      %v2550 = vpop.f32.mrf.mxu0
      %v2551 = vadd.f32 0.0, %v2550
      %2552 = vmatmul.f32.gmra.mxu0 %v2441
      %v2553 = vpop.f32.mrf.mxu0
      %v2554 = vadd.f32 0.0, %v2553
      %2555 = vmatmul.f32.gmra.mxu0 %v2444
      %v2556 = vpop.f32.mrf.mxu0
      %v2557 = vadd.f32 0.0, %v2556
      %2558 = vmatmul.f32.gmra.mxu0 %v2447
      %v2559 = vpop.f32.mrf.mxu0
      %v2560 = vadd.f32 0.0, %v2559
      %2561 = vmatmul.f32.gmra.mxu0 %v2450
      %v2562 = vpop.f32.mrf.mxu0
      %v2563 = vadd.f32 0.0, %v2562
      %2564 = vmatmul.f32.gmra.mxu0 %v2453
      %v2565 = vpop.f32.mrf.mxu0
      %v2566 = vadd.f32 0.0, %v2565
      %2567 = vmatmul.f32.gmra.mxu0 %v2456
      %v2568 = vpop.f32.mrf.mxu0
      %v2569 = vadd.f32 0.0, %v2568
      %2570 = vmatmul.f32.gmra.mxu0 %v2459
      %v2571 = vpop.f32.mrf.mxu0
      %v2572 = vadd.f32 0.0, %v2571
      %2573 = vmatmul.f32.gmra.mxu0 %v2462
      %v2574 = vpop.f32.mrf.mxu0
      %v2575 = vadd.f32 0.0, %v2574
      %2576 = vmatmul.f32.gmra.mxu0 %v2465
      %v2577 = vpop.f32.mrf.mxu0
      %v2578 = vadd.f32 0.0, %v2577
      %2579 = vmatmul.f32.gmra.mxu0 %v2468
      %v2580 = vpop.f32.mrf.mxu0
      %v2581 = vadd.f32 0.0, %v2580
      %2582 = vmatmul.f32.gmra.mxu0 %v2471
      %v2583 = vpop.f32.mrf.mxu0
      %v2584 = vadd.f32 0.0, %v2583
      %2585 = vmatmul.f32.gmra.mxu0 %v2474
      %v2586 = vpop.f32.mrf.mxu0
      %v2587 = vadd.f32 0.0, %v2586
      %2588 = vdwg.mxu0
      %v2589 = vadd.f32 %v2310, %v2494
      %v2590 = vadd.f32 %v2311, %v2497
      %v2591 = vadd.f32 %v2312, %v2500
      %v2592 = vadd.f32 %v2313, %v2503
      %v2593 = vadd.f32 %v2314, %v2506
      %v2594 = vadd.f32 %v2315, %v2509
      %v2595 = vadd.f32 %v2316, %v2512
      %v2596 = vadd.f32 %v2317, %v2515
      %v2597 = vadd.f32 %v2318, %v2518
      %v2598 = vadd.f32 %v2319, %v2521
      %v2599 = vadd.f32 %v2320, %v2524
      %v2600 = vadd.f32 %v2321, %v2527
      %v2601 = vadd.f32 %v2322, %v2530
      %v2602 = vadd.f32 %v2323, %v2533
      %v2603 = vadd.f32 %v2324, %v2536
      %v2604 = vadd.f32 %v2325, %v2539
      %v2605 = vadd.f32 %v2326, %v2542
      %v2606 = vadd.f32 %v2327, %v2545
      %v2607 = vadd.f32 %v2328, %v2548
      %v2608 = vadd.f32 %v2329, %v2551
      %v2609 = vadd.f32 %v2330, %v2554
      %v2610 = vadd.f32 %v2331, %v2557
      %v2611 = vadd.f32 %v2332, %v2560
      %v2612 = vadd.f32 %v2333, %v2563
      %v2613 = vadd.f32 %v2334, %v2566
      %v2614 = vadd.f32 %v2335, %v2569
      %v2615 = vadd.f32 %v2336, %v2572
      %v2616 = vadd.f32 %v2337, %v2575
      %v2617 = vadd.f32 %v2338, %v2578
      %v2618 = vadd.f32 %v2339, %v2581
      %v2619 = vadd.f32 %v2340, %v2584
      %v2620 = vadd.f32 %v2341, %v2587
      %v2621 = vld [vmem:[%s2342 + $0x1] sm:$0xff]
      %v2622 = vld [vmem:[%s2342 + $0x9] sm:$0xff]
      %v2623 = vld [vmem:[%s2342 + $0x19] sm:$0xff]
      %v2624 = vld [vmem:[%s2342 + $0x21] sm:$0xff]
      %v2625 = vld [vmem:[%s2342 + $0x31] sm:$0xff]
      %v2626 = vld [vmem:[%s2342 + $0x39] sm:$0xff]
      %v2627 = vld [vmem:[%s2342 + $0x49] sm:$0xff]
      %v2628 = vld [vmem:[%s2342 + $0x51] sm:$0xff]
      %v2629 = vld [vmem:[%s2342 + $0x61] sm:$0xff]
      %v2630 = vld [vmem:[%s2342 + $0x69] sm:$0xff]
      %v2631 = vld [vmem:[%s2342 + $0x79] sm:$0xff]
      %v2632 = vld [vmem:[%s2342 + $0x81] sm:$0xff]
      %v2633 = vld [vmem:[%s2342 + $0x91] sm:$0xff]
      %v2634 = vld [vmem:[%s2342 + $0x99] sm:$0xff]
      %v2635 = vld [vmem:[%s2342 + $0xa9] sm:$0xff]
      %v2636 = vld [vmem:[%s2342 + $0xb1] sm:$0xff]
      %v2637 = vld [vmem:[%s2342 + $0xc1] sm:$0xff]
      %v2638 = vld [vmem:[%s2342 + $0xc9] sm:$0xff]
      %v2639 = vld [vmem:[%s2342 + $0xd9] sm:$0xff]
      %v2640 = vld [vmem:[%s2342 + $0xe1] sm:$0xff]
      %v2641 = vld [vmem:[%s2342 + $0xf1] sm:$0xff]
      %v2642 = vld [vmem:[%s2342 + $0xf9] sm:$0xff]
      %v2643 = vld [vmem:[%s2342 + $0x109] sm:$0xff]
      %v2644 = vld [vmem:[%s2342 + $0x111] sm:$0xff]
      %v2645 = vld [vmem:[%s2342 + $0x121] sm:$0xff]
      %v2646 = vld [vmem:[%s2342 + $0x129] sm:$0xff]
      %v2647 = vld [vmem:[%s2342 + $0x139] sm:$0xff]
      %v2648 = vld [vmem:[%s2342 + $0x141] sm:$0xff]
      %v2649 = vld [vmem:[%s2342 + $0x151] sm:$0xff]
      %v2650 = vld [vmem:[%s2342 + $0x159] sm:$0xff]
      %v2651 = vld [vmem:[%s2342 + $0x169] sm:$0xff]
      %v2652 = vld [vmem:[%s2342 + $0x171] sm:$0xff]
      %s2653 = scalar_lea.vmem %s3, 224
      %v2654 = vld [vmem:[%s2653] sm:$0xff]
      %v2655 = vld [vmem:[%s2653 + $0x8] sm:$0xff]
      %v2656 = vld [vmem:[%s2653 + $0x10] sm:$0xff]
      %v2657 = vld [vmem:[%s2653 + $0x18] sm:$0xff]
      %v2659 = vsel %vm333, %v2621, 0
      %v2662 = vsel %vm333, %v2622, 0
      %v2665 = vsel %vm333, %v2623, 0
      %v2668 = vsel %vm333, %v2624, 0
      %v2671 = vsel %vm333, %v2625, 0
      %v2674 = vsel %vm333, %v2626, 0
      %v2677 = vsel %vm333, %v2627, 0
      %v2680 = vsel %vm333, %v2628, 0
      %v2683 = vsel %vm333, %v2629, 0
      %v2686 = vsel %vm333, %v2630, 0
      %v2689 = vsel %vm333, %v2631, 0
      %v2692 = vsel %vm333, %v2632, 0
      %v2695 = vsel %vm333, %v2633, 0
      %v2698 = vsel %vm333, %v2634, 0
      %v2701 = vsel %vm333, %v2635, 0
      %v2704 = vsel %vm333, %v2636, 0
      %v2707 = vsel %vm333, %v2637, 0
      %v2710 = vsel %vm333, %v2638, 0
      %v2713 = vsel %vm333, %v2639, 0
      %v2716 = vsel %vm333, %v2640, 0
      %v2719 = vsel %vm333, %v2641, 0
      %v2722 = vsel %vm333, %v2642, 0
      %v2725 = vsel %vm333, %v2643, 0
      %v2728 = vsel %vm333, %v2644, 0
      %v2731 = vsel %vm333, %v2645, 0
      %v2734 = vsel %vm333, %v2646, 0
      %v2737 = vsel %vm333, %v2647, 0
      %v2740 = vsel %vm333, %v2648, 0
      %v2743 = vsel %vm333, %v2649, 0
      %v2746 = vsel %vm333, %v2650, 0
      %v2749 = vsel %vm333, %v2651, 0
      %v2752 = vsel %vm333, %v2652, 0
      %2754 = vmatpush.msra.mxu0 0.0
      %2755 = vmatpush.msra.mxu0 0.0
      %2756 = vmatpush.msra.mxu0 0.0
      %2757 = vmatpush.msra.mxu0 0.0
      %2758 = vmatpush.msra.mxu0 0.0
      %2759 = vmatpush.msra.mxu0 0.0
      %2760 = vmatpush.msra.mxu0 0.0
      %2761 = vmatpush.msra.mxu0 0.0
      %2762 = vmatpush.msra.mxu0 0.0
      %2763 = vmatpush.msra.mxu0 0.0
      %2764 = vmatpush.msra.mxu0 0.0
      %2765 = vmatpush.msra.mxu0 0.0
      %2766 = vmatpush.msra.mxu0 %v2657
      %2767 = vmatpush.msra.mxu0 %v2656
      %2768 = vmatpush.msra.mxu0 %v2655
      %2769 = vmatpush.msra.mxu0 %v2654
      %2770 = vmatmul.f32.gmra.mxu0 %v2659
      %v2771 = vpop.f32.mrf.mxu0
      %v2772 = vadd.f32 0.0, %v2771
      %2773 = vmatmul.f32.gmra.mxu0 %v2662
      %v2774 = vpop.f32.mrf.mxu0
      %v2775 = vadd.f32 0.0, %v2774
      %2776 = vmatmul.f32.gmra.mxu0 %v2665
      %v2777 = vpop.f32.mrf.mxu0
      %v2778 = vadd.f32 0.0, %v2777
      %2779 = vmatmul.f32.gmra.mxu0 %v2668
      %v2780 = vpop.f32.mrf.mxu0
      %v2781 = vadd.f32 0.0, %v2780
      %2782 = vmatmul.f32.gmra.mxu0 %v2671
      %v2783 = vpop.f32.mrf.mxu0
      %v2784 = vadd.f32 0.0, %v2783
      %2785 = vmatmul.f32.gmra.mxu0 %v2674
      %v2786 = vpop.f32.mrf.mxu0
      %v2787 = vadd.f32 0.0, %v2786
      %2788 = vmatmul.f32.gmra.mxu0 %v2677
      %v2789 = vpop.f32.mrf.mxu0
      %v2790 = vadd.f32 0.0, %v2789
      %2791 = vmatmul.f32.gmra.mxu0 %v2680
      %v2792 = vpop.f32.mrf.mxu0
      %v2793 = vadd.f32 0.0, %v2792
      %2794 = vmatmul.f32.gmra.mxu0 %v2683
      %v2795 = vpop.f32.mrf.mxu0
      %v2796 = vadd.f32 0.0, %v2795
      %2797 = vmatmul.f32.gmra.mxu0 %v2686
      %v2798 = vpop.f32.mrf.mxu0
      %v2799 = vadd.f32 0.0, %v2798
      %2800 = vmatmul.f32.gmra.mxu0 %v2689
      %v2801 = vpop.f32.mrf.mxu0
      %v2802 = vadd.f32 0.0, %v2801
      %2803 = vmatmul.f32.gmra.mxu0 %v2692
      %v2804 = vpop.f32.mrf.mxu0
      %v2805 = vadd.f32 0.0, %v2804
      %2806 = vmatmul.f32.gmra.mxu0 %v2695
      %v2807 = vpop.f32.mrf.mxu0
      %v2808 = vadd.f32 0.0, %v2807
      %2809 = vmatmul.f32.gmra.mxu0 %v2698
      %v2810 = vpop.f32.mrf.mxu0
      %v2811 = vadd.f32 0.0, %v2810
      %2812 = vmatmul.f32.gmra.mxu0 %v2701
      %v2813 = vpop.f32.mrf.mxu0
      %v2814 = vadd.f32 0.0, %v2813
      %2815 = vmatmul.f32.gmra.mxu0 %v2704
      %v2816 = vpop.f32.mrf.mxu0
      %v2817 = vadd.f32 0.0, %v2816
      %2818 = vmatmul.f32.gmra.mxu0 %v2707
      %v2819 = vpop.f32.mrf.mxu0
      %v2820 = vadd.f32 0.0, %v2819
      %2821 = vmatmul.f32.gmra.mxu0 %v2710
      %v2822 = vpop.f32.mrf.mxu0
      %v2823 = vadd.f32 0.0, %v2822
      %2824 = vmatmul.f32.gmra.mxu0 %v2713
      %v2825 = vpop.f32.mrf.mxu0
      %v2826 = vadd.f32 0.0, %v2825
      %2827 = vmatmul.f32.gmra.mxu0 %v2716
      %v2828 = vpop.f32.mrf.mxu0
      %v2829 = vadd.f32 0.0, %v2828
      %2830 = vmatmul.f32.gmra.mxu0 %v2719
      %v2831 = vpop.f32.mrf.mxu0
      %v2832 = vadd.f32 0.0, %v2831
      %2833 = vmatmul.f32.gmra.mxu0 %v2722
      %v2834 = vpop.f32.mrf.mxu0
      %v2835 = vadd.f32 0.0, %v2834
      %2836 = vmatmul.f32.gmra.mxu0 %v2725
      %v2837 = vpop.f32.mrf.mxu0
      %v2838 = vadd.f32 0.0, %v2837
      %2839 = vmatmul.f32.gmra.mxu0 %v2728
      %v2840 = vpop.f32.mrf.mxu0
      %v2841 = vadd.f32 0.0, %v2840
      %2842 = vmatmul.f32.gmra.mxu0 %v2731
      %v2843 = vpop.f32.mrf.mxu0
      %v2844 = vadd.f32 0.0, %v2843
      %2845 = vmatmul.f32.gmra.mxu0 %v2734
      %v2846 = vpop.f32.mrf.mxu0
      %v2847 = vadd.f32 0.0, %v2846
      %2848 = vmatmul.f32.gmra.mxu0 %v2737
      %v2849 = vpop.f32.mrf.mxu0
      %v2850 = vadd.f32 0.0, %v2849
      %2851 = vmatmul.f32.gmra.mxu0 %v2740
      %v2852 = vpop.f32.mrf.mxu0
      %v2853 = vadd.f32 0.0, %v2852
      %2854 = vmatmul.f32.gmra.mxu0 %v2743
      %v2855 = vpop.f32.mrf.mxu0
      %v2856 = vadd.f32 0.0, %v2855
      %2857 = vmatmul.f32.gmra.mxu0 %v2746
      %v2858 = vpop.f32.mrf.mxu0
      %v2859 = vadd.f32 0.0, %v2858
      %2860 = vmatmul.f32.gmra.mxu0 %v2749
      %v2861 = vpop.f32.mrf.mxu0
      %v2862 = vadd.f32 0.0, %v2861
      %2863 = vmatmul.f32.gmra.mxu0 %v2752
      %v2864 = vpop.f32.mrf.mxu0
      %v2865 = vadd.f32 0.0, %v2864
      %2866 = vdwg.mxu0
      %v2867 = vadd.f32 %v2589, %v2772
      %v2868 = vadd.f32 %v2590, %v2775
      %v2869 = vadd.f32 %v2591, %v2778
      %v2870 = vadd.f32 %v2592, %v2781
      %v2871 = vadd.f32 %v2593, %v2784
      %v2872 = vadd.f32 %v2594, %v2787
      %v2873 = vadd.f32 %v2595, %v2790
      %v2874 = vadd.f32 %v2596, %v2793
      %v2875 = vadd.f32 %v2597, %v2796
      %v2876 = vadd.f32 %v2598, %v2799
      %v2877 = vadd.f32 %v2599, %v2802
      %v2878 = vadd.f32 %v2600, %v2805
      %v2879 = vadd.f32 %v2601, %v2808
      %v2880 = vadd.f32 %v2602, %v2811
      %v2881 = vadd.f32 %v2603, %v2814
      %v2882 = vadd.f32 %v2604, %v2817
      %v2883 = vadd.f32 %v2605, %v2820
      %v2884 = vadd.f32 %v2606, %v2823
      %v2885 = vadd.f32 %v2607, %v2826
      %v2886 = vadd.f32 %v2608, %v2829
      %v2887 = vadd.f32 %v2609, %v2832
      %v2888 = vadd.f32 %v2610, %v2835
      %v2889 = vadd.f32 %v2611, %v2838
      %v2890 = vadd.f32 %v2612, %v2841
      %v2891 = vadd.f32 %v2613, %v2844
      %v2892 = vadd.f32 %v2614, %v2847
      %v2893 = vadd.f32 %v2615, %v2850
      %v2894 = vadd.f32 %v2616, %v2853
      %v2895 = vadd.f32 %v2617, %v2856
      %v2896 = vadd.f32 %v2618, %v2859
      %v2897 = vadd.f32 %v2619, %v2862
      %v2898 = vadd.f32 %v2620, %v2865
      %v2899 = vld [vmem:[%s2342 + $0x2] sm:$0xff]
      %v2900 = vld [vmem:[%s2342 + $0xa] sm:$0xff]
      %v2901 = vld [vmem:[%s2342 + $0x1a] sm:$0xff]
      %v2902 = vld [vmem:[%s2342 + $0x22] sm:$0xff]
      %v2903 = vld [vmem:[%s2342 + $0x32] sm:$0xff]
      %v2904 = vld [vmem:[%s2342 + $0x3a] sm:$0xff]
      %v2905 = vld [vmem:[%s2342 + $0x4a] sm:$0xff]
      %v2906 = vld [vmem:[%s2342 + $0x52] sm:$0xff]
      %v2907 = vld [vmem:[%s2342 + $0x62] sm:$0xff]
      %v2908 = vld [vmem:[%s2342 + $0x6a] sm:$0xff]
      %v2909 = vld [vmem:[%s2342 + $0x7a] sm:$0xff]
      %v2910 = vld [vmem:[%s2342 + $0x82] sm:$0xff]
      %v2911 = vld [vmem:[%s2342 + $0x92] sm:$0xff]
      %v2912 = vld [vmem:[%s2342 + $0x9a] sm:$0xff]
      %v2913 = vld [vmem:[%s2342 + $0xaa] sm:$0xff]
      %v2914 = vld [vmem:[%s2342 + $0xb2] sm:$0xff]
      %v2915 = vld [vmem:[%s2342 + $0xc2] sm:$0xff]
      %v2916 = vld [vmem:[%s2342 + $0xca] sm:$0xff]
      %v2917 = vld [vmem:[%s2342 + $0xda] sm:$0xff]
      %v2918 = vld [vmem:[%s2342 + $0xe2] sm:$0xff]
      %v2919 = vld [vmem:[%s2342 + $0xf2] sm:$0xff]
      %v2920 = vld [vmem:[%s2342 + $0xfa] sm:$0xff]
      %v2921 = vld [vmem:[%s2342 + $0x10a] sm:$0xff]
      %v2922 = vld [vmem:[%s2342 + $0x112] sm:$0xff]
      %v2923 = vld [vmem:[%s2342 + $0x122] sm:$0xff]
      %v2924 = vld [vmem:[%s2342 + $0x12a] sm:$0xff]
      %v2925 = vld [vmem:[%s2342 + $0x13a] sm:$0xff]
      %v2926 = vld [vmem:[%s2342 + $0x142] sm:$0xff]
      %v2927 = vld [vmem:[%s2342 + $0x152] sm:$0xff]
      %v2928 = vld [vmem:[%s2342 + $0x15a] sm:$0xff]
      %v2929 = vld [vmem:[%s2342 + $0x16a] sm:$0xff]
      %v2930 = vld [vmem:[%s2342 + $0x172] sm:$0xff]
      %s2931 = scalar_lea.vmem %s3, 256
      %v2932 = vld [vmem:[%s2931] sm:$0xff]
      %v2933 = vld [vmem:[%s2931 + $0x8] sm:$0xff]
      %v2934 = vld [vmem:[%s2931 + $0x10] sm:$0xff]
      %v2935 = vld [vmem:[%s2931 + $0x18] sm:$0xff]
      %v2937 = vsel %vm333, %v2899, 0
      %v2940 = vsel %vm333, %v2900, 0
      %v2943 = vsel %vm333, %v2901, 0
      %v2946 = vsel %vm333, %v2902, 0
      %v2949 = vsel %vm333, %v2903, 0
      %v2952 = vsel %vm333, %v2904, 0
      %v2955 = vsel %vm333, %v2905, 0
      %v2958 = vsel %vm333, %v2906, 0
      %v2961 = vsel %vm333, %v2907, 0
      %v2964 = vsel %vm333, %v2908, 0
      %v2967 = vsel %vm333, %v2909, 0
      %v2970 = vsel %vm333, %v2910, 0
      %v2973 = vsel %vm333, %v2911, 0
      %v2976 = vsel %vm333, %v2912, 0
      %v2979 = vsel %vm333, %v2913, 0
      %v2982 = vsel %vm333, %v2914, 0
      %v2985 = vsel %vm333, %v2915, 0
      %v2988 = vsel %vm333, %v2916, 0
      %v2991 = vsel %vm333, %v2917, 0
      %v2994 = vsel %vm333, %v2918, 0
      %v2997 = vsel %vm333, %v2919, 0
      %v3000 = vsel %vm333, %v2920, 0
      %v3003 = vsel %vm333, %v2921, 0
      %v3006 = vsel %vm333, %v2922, 0
      %v3009 = vsel %vm333, %v2923, 0
      %v3012 = vsel %vm333, %v2924, 0
      %v3015 = vsel %vm333, %v2925, 0
      %v3018 = vsel %vm333, %v2926, 0
      %v3021 = vsel %vm333, %v2927, 0
      %v3024 = vsel %vm333, %v2928, 0
      %v3027 = vsel %vm333, %v2929, 0
      %v3030 = vsel %vm333, %v2930, 0
      %3032 = vmatpush.msra.mxu0 0.0
      %3033 = vmatpush.msra.mxu0 0.0
      %3034 = vmatpush.msra.mxu0 0.0
      %3035 = vmatpush.msra.mxu0 0.0
      %3036 = vmatpush.msra.mxu0 0.0
      %3037 = vmatpush.msra.mxu0 0.0
      %3038 = vmatpush.msra.mxu0 0.0
      %3039 = vmatpush.msra.mxu0 0.0
      %3040 = vmatpush.msra.mxu0 0.0
      %3041 = vmatpush.msra.mxu0 0.0
      %3042 = vmatpush.msra.mxu0 0.0
      %3043 = vmatpush.msra.mxu0 0.0
      %3044 = vmatpush.msra.mxu0 %v2935
      %3045 = vmatpush.msra.mxu0 %v2934
      %3046 = vmatpush.msra.mxu0 %v2933
      %3047 = vmatpush.msra.mxu0 %v2932
      %3048 = vmatmul.f32.gmra.mxu0 %v2937
      %v3049 = vpop.f32.mrf.mxu0
      %v3050 = vadd.f32 0.0, %v3049
      %3051 = vmatmul.f32.gmra.mxu0 %v2940
      %v3052 = vpop.f32.mrf.mxu0
      %v3053 = vadd.f32 0.0, %v3052
      %3054 = vmatmul.f32.gmra.mxu0 %v2943
      %v3055 = vpop.f32.mrf.mxu0
      %v3056 = vadd.f32 0.0, %v3055
      %3057 = vmatmul.f32.gmra.mxu0 %v2946
      %v3058 = vpop.f32.mrf.mxu0
      %v3059 = vadd.f32 0.0, %v3058
      %3060 = vmatmul.f32.gmra.mxu0 %v2949
      %v3061 = vpop.f32.mrf.mxu0
      %v3062 = vadd.f32 0.0, %v3061
      %3063 = vmatmul.f32.gmra.mxu0 %v2952
      %v3064 = vpop.f32.mrf.mxu0
      %v3065 = vadd.f32 0.0, %v3064
      %3066 = vmatmul.f32.gmra.mxu0 %v2955
      %v3067 = vpop.f32.mrf.mxu0
      %v3068 = vadd.f32 0.0, %v3067
      %3069 = vmatmul.f32.gmra.mxu0 %v2958
      %v3070 = vpop.f32.mrf.mxu0
      %v3071 = vadd.f32 0.0, %v3070
      %3072 = vmatmul.f32.gmra.mxu0 %v2961
      %v3073 = vpop.f32.mrf.mxu0
      %v3074 = vadd.f32 0.0, %v3073
      %3075 = vmatmul.f32.gmra.mxu0 %v2964
      %v3076 = vpop.f32.mrf.mxu0
      %v3077 = vadd.f32 0.0, %v3076
      %3078 = vmatmul.f32.gmra.mxu0 %v2967
      %v3079 = vpop.f32.mrf.mxu0
      %v3080 = vadd.f32 0.0, %v3079
      %3081 = vmatmul.f32.gmra.mxu0 %v2970
      %v3082 = vpop.f32.mrf.mxu0
      %v3083 = vadd.f32 0.0, %v3082
      %3084 = vmatmul.f32.gmra.mxu0 %v2973
      %v3085 = vpop.f32.mrf.mxu0
      %v3086 = vadd.f32 0.0, %v3085
      %3087 = vmatmul.f32.gmra.mxu0 %v2976
      %v3088 = vpop.f32.mrf.mxu0
      %v3089 = vadd.f32 0.0, %v3088
      %3090 = vmatmul.f32.gmra.mxu0 %v2979
      %v3091 = vpop.f32.mrf.mxu0
      %v3092 = vadd.f32 0.0, %v3091
      %3093 = vmatmul.f32.gmra.mxu0 %v2982
      %v3094 = vpop.f32.mrf.mxu0
      %v3095 = vadd.f32 0.0, %v3094
      %3096 = vmatmul.f32.gmra.mxu0 %v2985
      %v3097 = vpop.f32.mrf.mxu0
      %v3098 = vadd.f32 0.0, %v3097
      %3099 = vmatmul.f32.gmra.mxu0 %v2988
      %v3100 = vpop.f32.mrf.mxu0
      %v3101 = vadd.f32 0.0, %v3100
      %3102 = vmatmul.f32.gmra.mxu0 %v2991
      %v3103 = vpop.f32.mrf.mxu0
      %v3104 = vadd.f32 0.0, %v3103
      %3105 = vmatmul.f32.gmra.mxu0 %v2994
      %v3106 = vpop.f32.mrf.mxu0
      %v3107 = vadd.f32 0.0, %v3106
      %3108 = vmatmul.f32.gmra.mxu0 %v2997
      %v3109 = vpop.f32.mrf.mxu0
      %v3110 = vadd.f32 0.0, %v3109
      %3111 = vmatmul.f32.gmra.mxu0 %v3000
      %v3112 = vpop.f32.mrf.mxu0
      %v3113 = vadd.f32 0.0, %v3112
      %3114 = vmatmul.f32.gmra.mxu0 %v3003
      %v3115 = vpop.f32.mrf.mxu0
      %v3116 = vadd.f32 0.0, %v3115
      %3117 = vmatmul.f32.gmra.mxu0 %v3006
      %v3118 = vpop.f32.mrf.mxu0
      %v3119 = vadd.f32 0.0, %v3118
      %3120 = vmatmul.f32.gmra.mxu0 %v3009
      %v3121 = vpop.f32.mrf.mxu0
      %v3122 = vadd.f32 0.0, %v3121
      %3123 = vmatmul.f32.gmra.mxu0 %v3012
      %v3124 = vpop.f32.mrf.mxu0
      %v3125 = vadd.f32 0.0, %v3124
      %3126 = vmatmul.f32.gmra.mxu0 %v3015
      %v3127 = vpop.f32.mrf.mxu0
      %v3128 = vadd.f32 0.0, %v3127
      %3129 = vmatmul.f32.gmra.mxu0 %v3018
      %v3130 = vpop.f32.mrf.mxu0
      %v3131 = vadd.f32 0.0, %v3130
      %3132 = vmatmul.f32.gmra.mxu0 %v3021
      %v3133 = vpop.f32.mrf.mxu0
      %v3134 = vadd.f32 0.0, %v3133
      %3135 = vmatmul.f32.gmra.mxu0 %v3024
      %v3136 = vpop.f32.mrf.mxu0
      %v3137 = vadd.f32 0.0, %v3136
      %3138 = vmatmul.f32.gmra.mxu0 %v3027
      %v3139 = vpop.f32.mrf.mxu0
      %v3140 = vadd.f32 0.0, %v3139
      %3141 = vmatmul.f32.gmra.mxu0 %v3030
      %v3142 = vpop.f32.mrf.mxu0
      %v3143 = vadd.f32 0.0, %v3142
      %3144 = vdwg.mxu0
      %v3145 = vadd.f32 %v2867, %v3050
      %v3146 = vadd.f32 %v2868, %v3053
      %v3147 = vadd.f32 %v2869, %v3056
      %v3148 = vadd.f32 %v2870, %v3059
      %v3149 = vadd.f32 %v2871, %v3062
      %v3150 = vadd.f32 %v2872, %v3065
      %v3151 = vadd.f32 %v2873, %v3068
      %v3152 = vadd.f32 %v2874, %v3071
      %v3153 = vadd.f32 %v2875, %v3074
      %v3154 = vadd.f32 %v2876, %v3077
      %v3155 = vadd.f32 %v2877, %v3080
      %v3156 = vadd.f32 %v2878, %v3083
      %v3157 = vadd.f32 %v2879, %v3086
      %v3158 = vadd.f32 %v2880, %v3089
      %v3159 = vadd.f32 %v2881, %v3092
      %v3160 = vadd.f32 %v2882, %v3095
      %v3161 = vadd.f32 %v2883, %v3098
      %v3162 = vadd.f32 %v2884, %v3101
      %v3163 = vadd.f32 %v2885, %v3104
      %v3164 = vadd.f32 %v2886, %v3107
      %v3165 = vadd.f32 %v2887, %v3110
      %v3166 = vadd.f32 %v2888, %v3113
      %v3167 = vadd.f32 %v2889, %v3116
      %v3168 = vadd.f32 %v2890, %v3119
      %v3169 = vadd.f32 %v2891, %v3122
      %v3170 = vadd.f32 %v2892, %v3125
      %v3171 = vadd.f32 %v2893, %v3128
      %v3172 = vadd.f32 %v2894, %v3131
      %v3173 = vadd.f32 %v2895, %v3134
      %v3174 = vadd.f32 %v2896, %v3137
      %v3175 = vadd.f32 %v2897, %v3140
      %v3176 = vadd.f32 %v2898, %v3143
      %v3177 = vld [vmem:[%s4] sm:$0x1]
      %v3179 = vperm.slane %v3177, 0
      %v3181 = vadd.f32 %v3145, %v3179
      %v3182 = vadd.f32 %v3146, %v3179
      %v3183 = vadd.f32 %v3147, %v3179
      %v3184 = vadd.f32 %v3148, %v3179
      %v3185 = vadd.f32 %v3149, %v3179
      %v3186 = vadd.f32 %v3150, %v3179
      %v3187 = vadd.f32 %v3151, %v3179
      %v3188 = vadd.f32 %v3152, %v3179
      %v3189 = vadd.f32 %v3153, %v3179
      %v3190 = vadd.f32 %v3154, %v3179
      %v3191 = vadd.f32 %v3155, %v3179
      %v3192 = vadd.f32 %v3156, %v3179
      %v3193 = vadd.f32 %v3157, %v3179
      %v3194 = vadd.f32 %v3158, %v3179
      %v3195 = vadd.f32 %v3159, %v3179
      %v3196 = vadd.f32 %v3160, %v3179
      %v3197 = vadd.f32 %v3161, %v3179
      %v3198 = vadd.f32 %v3162, %v3179
      %v3199 = vadd.f32 %v3163, %v3179
      %v3200 = vadd.f32 %v3164, %v3179
      %v3201 = vadd.f32 %v3165, %v3179
      %v3202 = vadd.f32 %v3166, %v3179
      %v3203 = vadd.f32 %v3167, %v3179
      %v3204 = vadd.f32 %v3168, %v3179
      %v3205 = vadd.f32 %v3169, %v3179
      %v3206 = vadd.f32 %v3170, %v3179
      %v3207 = vadd.f32 %v3171, %v3179
      %v3208 = vadd.f32 %v3172, %v3179
      %v3209 = vadd.f32 %v3173, %v3179
      %v3210 = vadd.f32 %v3174, %v3179
      %v3211 = vadd.f32 %v3175, %v3179
      %v3212 = vadd.f32 %v3176, %v3179
      %v3213 = vmax.f32 %v3181, 0.0
      %v3214 = vmax.f32 %v3182, 0.0
      %v3215 = vmax.f32 %v3183, 0.0
      %v3216 = vmax.f32 %v3184, 0.0
      %v3217 = vmax.f32 %v3185, 0.0
      %v3218 = vmax.f32 %v3186, 0.0
      %v3219 = vmax.f32 %v3187, 0.0
      %v3220 = vmax.f32 %v3188, 0.0
      %v3221 = vmax.f32 %v3189, 0.0
      %v3222 = vmax.f32 %v3190, 0.0
      %v3223 = vmax.f32 %v3191, 0.0
      %v3224 = vmax.f32 %v3192, 0.0
      %v3225 = vmax.f32 %v3193, 0.0
      %v3226 = vmax.f32 %v3194, 0.0
      %v3227 = vmax.f32 %v3195, 0.0
      %v3228 = vmax.f32 %v3196, 0.0
      %v3229 = vmax.f32 %v3197, 0.0
      %v3230 = vmax.f32 %v3198, 0.0
      %v3231 = vmax.f32 %v3199, 0.0
      %v3232 = vmax.f32 %v3200, 0.0
      %v3233 = vmax.f32 %v3201, 0.0
      %v3234 = vmax.f32 %v3202, 0.0
      %v3235 = vmax.f32 %v3203, 0.0
      %v3236 = vmax.f32 %v3204, 0.0
      %v3237 = vmax.f32 %v3205, 0.0
      %v3238 = vmax.f32 %v3206, 0.0
      %v3239 = vmax.f32 %v3207, 0.0
      %v3240 = vmax.f32 %v3208, 0.0
      %v3241 = vmax.f32 %v3209, 0.0
      %v3242 = vmax.f32 %v3210, 0.0
      %v3243 = vmax.f32 %v3211, 0.0
      %v3244 = vmax.f32 %v3212, 0.0
      %s3245 = scalar_lea.vmem [#allocation3], 24
      %3246 = vst.msk [vmem:[%s3245 + $0x1] sm:$0xff] %vm333, %v3213
      %3247 = vst.msk [vmem:[%s3245 + $0x9] sm:$0xff] %vm333, %v3214
      %3248 = vst.msk [vmem:[%s3245 + $0x19] sm:$0xff] %vm333, %v3215
      %3249 = vst.msk [vmem:[%s3245 + $0x21] sm:$0xff] %vm333, %v3216
      %3250 = vst.msk [vmem:[%s3245 + $0x31] sm:$0xff] %vm333, %v3217
      %3251 = vst.msk [vmem:[%s3245 + $0x39] sm:$0xff] %vm333, %v3218
      %3252 = vst.msk [vmem:[%s3245 + $0x49] sm:$0xff] %vm333, %v3219
      %3253 = vst.msk [vmem:[%s3245 + $0x51] sm:$0xff] %vm333, %v3220
      %3254 = vst.msk [vmem:[%s3245 + $0x61] sm:$0xff] %vm333, %v3221
      %3255 = vst.msk [vmem:[%s3245 + $0x69] sm:$0xff] %vm333, %v3222
      %3256 = vst.msk [vmem:[%s3245 + $0x79] sm:$0xff] %vm333, %v3223
      %3257 = vst.msk [vmem:[%s3245 + $0x81] sm:$0xff] %vm333, %v3224
      %3258 = vst.msk [vmem:[%s3245 + $0x91] sm:$0xff] %vm333, %v3225
      %3259 = vst.msk [vmem:[%s3245 + $0x99] sm:$0xff] %vm333, %v3226
      %3260 = vst.msk [vmem:[%s3245 + $0xa9] sm:$0xff] %vm333, %v3227
      %3261 = vst.msk [vmem:[%s3245 + $0xb1] sm:$0xff] %vm333, %v3228
      %3262 = vst.msk [vmem:[%s3245 + $0xc1] sm:$0xff] %vm333, %v3229
      %3263 = vst.msk [vmem:[%s3245 + $0xc9] sm:$0xff] %vm333, %v3230
      %3264 = vst.msk [vmem:[%s3245 + $0xd9] sm:$0xff] %vm333, %v3231
      %3265 = vst.msk [vmem:[%s3245 + $0xe1] sm:$0xff] %vm333, %v3232
      %3266 = vst.msk [vmem:[%s3245 + $0xf1] sm:$0xff] %vm333, %v3233
      %3267 = vst.msk [vmem:[%s3245 + $0xf9] sm:$0xff] %vm333, %v3234
      %3268 = vst.msk [vmem:[%s3245 + $0x109] sm:$0xff] %vm333, %v3235
      %3269 = vst.msk [vmem:[%s3245 + $0x111] sm:$0xff] %vm333, %v3236
      %3270 = vst.msk [vmem:[%s3245 + $0x121] sm:$0xff] %vm333, %v3237
      %3271 = vst.msk [vmem:[%s3245 + $0x129] sm:$0xff] %vm333, %v3238
      %3272 = vst.msk [vmem:[%s3245 + $0x139] sm:$0xff] %vm333, %v3239
      %3273 = vst.msk [vmem:[%s3245 + $0x141] sm:$0xff] %vm333, %v3240
      %3274 = vst.msk [vmem:[%s3245 + $0x151] sm:$0xff] %vm333, %v3241
      %3275 = vst.msk [vmem:[%s3245 + $0x159] sm:$0xff] %vm333, %v3242
      %3276 = vst.msk [vmem:[%s3245 + $0x169] sm:$0xff] %vm333, %v3243
      %3277 = vst.msk [vmem:[%s3245 + $0x171] sm:$0xff] %vm333, %v3244
      %v3278 = vld [vmem:[#allocation3] sm:$0xff]
      %v3279 = vld [vmem:[#allocation3 + $0x8] sm:$0xff]
      %v3280 = vld [vmem:[#allocation3 + $0x18] sm:$0xff]
      %v3281 = vld [vmem:[#allocation3 + $0x20] sm:$0xff]
      %v3282 = vld [vmem:[#allocation3 + $0x30] sm:$0xff]
      %v3283 = vld [vmem:[#allocation3 + $0x38] sm:$0xff]
      %v3284 = vld [vmem:[#allocation3 + $0x48] sm:$0xff]
      %v3285 = vld [vmem:[#allocation3 + $0x50] sm:$0xff]
      %v3286 = vld [vmem:[#allocation3 + $0x60] sm:$0xff]
      %v3287 = vld [vmem:[#allocation3 + $0x68] sm:$0xff]
      %v3288 = vld [vmem:[#allocation3 + $0x78] sm:$0xff]
      %v3289 = vld [vmem:[#allocation3 + $0x80] sm:$0xff]
      %v3290 = vld [vmem:[#allocation3 + $0x90] sm:$0xff]
      %v3291 = vld [vmem:[#allocation3 + $0x98] sm:$0xff]
      %v3292 = vld [vmem:[#allocation3 + $0xa8] sm:$0xff]
      %v3293 = vld [vmem:[#allocation3 + $0xb0] sm:$0xff]
      %v3294 = vld [vmem:[#allocation3 + $0xc0] sm:$0xff]
      %v3295 = vld [vmem:[#allocation3 + $0xc8] sm:$0xff]
      %v3296 = vld [vmem:[#allocation3 + $0xd8] sm:$0xff]
      %v3297 = vld [vmem:[#allocation3 + $0xe0] sm:$0xff]
      %v3298 = vld [vmem:[#allocation3 + $0xf0] sm:$0xff]
      %v3299 = vld [vmem:[#allocation3 + $0xf8] sm:$0xff]
      %v3300 = vld [vmem:[#allocation3 + $0x108] sm:$0xff]
      %v3301 = vld [vmem:[#allocation3 + $0x110] sm:$0xff]
      %v3302 = vld [vmem:[#allocation3 + $0x120] sm:$0xff]
      %v3303 = vld [vmem:[#allocation3 + $0x128] sm:$0xff]
      %v3304 = vld [vmem:[#allocation3 + $0x138] sm:$0xff]
      %v3305 = vld [vmem:[#allocation3 + $0x140] sm:$0xff]
      %v3306 = vld [vmem:[#allocation3 + $0x150] sm:$0xff]
      %v3307 = vld [vmem:[#allocation3 + $0x158] sm:$0xff]
      %v3308 = vld [vmem:[#allocation3 + $0x168] sm:$0xff]
      %v3309 = vld [vmem:[#allocation3 + $0x170] sm:$0xff]
      %v3310 = vld [vmem:[%s5] sm:$0xff]
      %v3311 = vld [vmem:[%s5 + $0x8] sm:$0xff]
      %v3312 = vld [vmem:[%s5 + $0x10] sm:$0xff]
      %v3313 = vld [vmem:[%s5 + $0x18] sm:$0xff]
      %v3314 = vld [vmem:[#allocation3 + $0x1] sm:$0xff]
      %v3315 = vld [vmem:[#allocation3 + $0x9] sm:$0xff]
      %v3316 = vld [vmem:[#allocation3 + $0x19] sm:$0xff]
      %v3317 = vld [vmem:[#allocation3 + $0x21] sm:$0xff]
      %v3318 = vld [vmem:[#allocation3 + $0x31] sm:$0xff]
      %v3319 = vld [vmem:[#allocation3 + $0x39] sm:$0xff]
      %v3320 = vld [vmem:[#allocation3 + $0x49] sm:$0xff]
      %v3321 = vld [vmem:[#allocation3 + $0x51] sm:$0xff]
      %v3322 = vld [vmem:[#allocation3 + $0x61] sm:$0xff]
      %v3323 = vld [vmem:[#allocation3 + $0x69] sm:$0xff]
      %v3324 = vld [vmem:[#allocation3 + $0x79] sm:$0xff]
      %v3325 = vld [vmem:[#allocation3 + $0x81] sm:$0xff]
      %v3326 = vld [vmem:[#allocation3 + $0x91] sm:$0xff]
      %v3327 = vld [vmem:[#allocation3 + $0x99] sm:$0xff]
      %v3328 = vld [vmem:[#allocation3 + $0xa9] sm:$0xff]
      %v3329 = vld [vmem:[#allocation3 + $0xb1] sm:$0xff]
      %v3330 = vld [vmem:[#allocation3 + $0xc1] sm:$0xff]
      %v3331 = vld [vmem:[#allocation3 + $0xc9] sm:$0xff]
      %v3332 = vld [vmem:[#allocation3 + $0xd9] sm:$0xff]
      %v3333 = vld [vmem:[#allocation3 + $0xe1] sm:$0xff]
      %v3334 = vld [vmem:[#allocation3 + $0xf1] sm:$0xff]
      %v3335 = vld [vmem:[#allocation3 + $0xf9] sm:$0xff]
      %v3336 = vld [vmem:[#allocation3 + $0x109] sm:$0xff]
      %v3337 = vld [vmem:[#allocation3 + $0x111] sm:$0xff]
      %v3338 = vld [vmem:[#allocation3 + $0x121] sm:$0xff]
      %v3339 = vld [vmem:[#allocation3 + $0x129] sm:$0xff]
      %v3340 = vld [vmem:[#allocation3 + $0x139] sm:$0xff]
      %v3341 = vld [vmem:[#allocation3 + $0x141] sm:$0xff]
      %v3342 = vld [vmem:[#allocation3 + $0x151] sm:$0xff]
      %v3343 = vld [vmem:[#allocation3 + $0x159] sm:$0xff]
      %v3344 = vld [vmem:[#allocation3 + $0x169] sm:$0xff]
      %v3345 = vld [vmem:[#allocation3 + $0x171] sm:$0xff]
      %s3346 = scalar_lea.vmem %s5, 32
      %v3347 = vld [vmem:[%s3346] sm:$0xff]
      %v3348 = vld [vmem:[%s3346 + $0x8] sm:$0xff]
      %v3349 = vld [vmem:[%s3346 + $0x10] sm:$0xff]
      %v3350 = vld [vmem:[%s3346 + $0x18] sm:$0xff]
      %v3352 = vsel %vm333, %v3314, 0
      %v3355 = vsel %vm333, %v3315, 0
      %v3358 = vsel %vm333, %v3316, 0
      %v3361 = vsel %vm333, %v3317, 0
      %v3364 = vsel %vm333, %v3318, 0
      %v3367 = vsel %vm333, %v3319, 0
      %v3370 = vsel %vm333, %v3320, 0
      %v3373 = vsel %vm333, %v3321, 0
      %v3376 = vsel %vm333, %v3322, 0
      %v3379 = vsel %vm333, %v3323, 0
      %v3382 = vsel %vm333, %v3324, 0
      %v3385 = vsel %vm333, %v3325, 0
      %v3388 = vsel %vm333, %v3326, 0
      %v3391 = vsel %vm333, %v3327, 0
      %v3394 = vsel %vm333, %v3328, 0
      %v3397 = vsel %vm333, %v3329, 0
      %v3400 = vsel %vm333, %v3330, 0
      %v3403 = vsel %vm333, %v3331, 0
      %v3406 = vsel %vm333, %v3332, 0
      %v3409 = vsel %vm333, %v3333, 0
      %v3412 = vsel %vm333, %v3334, 0
      %v3415 = vsel %vm333, %v3335, 0
      %v3418 = vsel %vm333, %v3336, 0
      %v3421 = vsel %vm333, %v3337, 0
      %v3424 = vsel %vm333, %v3338, 0
      %v3427 = vsel %vm333, %v3339, 0
      %v3430 = vsel %vm333, %v3340, 0
      %v3433 = vsel %vm333, %v3341, 0
      %v3436 = vsel %vm333, %v3342, 0
      %v3439 = vsel %vm333, %v3343, 0
      %v3442 = vsel %vm333, %v3344, 0
      %v3445 = vsel %vm333, %v3345, 0
      %3447 = vmatpush.msra.mxu0 0.0
      %3448 = vmatpush.msra.mxu0 0.0
      %3449 = vmatpush.msra.mxu0 0.0
      %3450 = vmatpush.msra.mxu0 0.0
      %3451 = vmatpush.msra.mxu0 0.0
      %3452 = vmatpush.msra.mxu0 0.0
      %3453 = vmatpush.msra.mxu0 0.0
      %3454 = vmatpush.msra.mxu0 0.0
      %3455 = vmatpush.msra.mxu0 0.0
      %3456 = vmatpush.msra.mxu0 0.0
      %3457 = vmatpush.msra.mxu0 0.0
      %3458 = vmatpush.msra.mxu0 0.0
      %3459 = vmatpush.msra.mxu0 %v3350
      %3460 = vmatpush.msra.mxu0 %v3349
      %3461 = vmatpush.msra.mxu0 %v3348
      %3462 = vmatpush.msra.mxu0 %v3347
      %3463 = vmatmul.f32.gmra.mxu0 %v3352
      %v3464 = vpop.f32.mrf.mxu0
      %v3465 = vadd.f32 0.0, %v3464
      %3466 = vmatmul.f32.gmra.mxu0 %v3355
      %v3467 = vpop.f32.mrf.mxu0
      %v3468 = vadd.f32 0.0, %v3467
      %3469 = vmatmul.f32.gmra.mxu0 %v3358
      %v3470 = vpop.f32.mrf.mxu0
      %v3471 = vadd.f32 0.0, %v3470
      %3472 = vmatmul.f32.gmra.mxu0 %v3361
      %v3473 = vpop.f32.mrf.mxu0
      %v3474 = vadd.f32 0.0, %v3473
      %3475 = vmatmul.f32.gmra.mxu0 %v3364
      %v3476 = vpop.f32.mrf.mxu0
      %v3477 = vadd.f32 0.0, %v3476
      %3478 = vmatmul.f32.gmra.mxu0 %v3367
      %v3479 = vpop.f32.mrf.mxu0
      %v3480 = vadd.f32 0.0, %v3479
      %3481 = vmatmul.f32.gmra.mxu0 %v3370
      %v3482 = vpop.f32.mrf.mxu0
      %v3483 = vadd.f32 0.0, %v3482
      %3484 = vmatmul.f32.gmra.mxu0 %v3373
      %v3485 = vpop.f32.mrf.mxu0
      %v3486 = vadd.f32 0.0, %v3485
      %3487 = vmatmul.f32.gmra.mxu0 %v3376
      %v3488 = vpop.f32.mrf.mxu0
      %v3489 = vadd.f32 0.0, %v3488
      %3490 = vmatmul.f32.gmra.mxu0 %v3379
      %v3491 = vpop.f32.mrf.mxu0
      %v3492 = vadd.f32 0.0, %v3491
      %3493 = vmatmul.f32.gmra.mxu0 %v3382
      %v3494 = vpop.f32.mrf.mxu0
      %v3495 = vadd.f32 0.0, %v3494
      %3496 = vmatmul.f32.gmra.mxu0 %v3385
      %v3497 = vpop.f32.mrf.mxu0
      %v3498 = vadd.f32 0.0, %v3497
      %3499 = vmatmul.f32.gmra.mxu0 %v3388
      %v3500 = vpop.f32.mrf.mxu0
      %v3501 = vadd.f32 0.0, %v3500
      %3502 = vmatmul.f32.gmra.mxu0 %v3391
      %v3503 = vpop.f32.mrf.mxu0
      %v3504 = vadd.f32 0.0, %v3503
      %3505 = vmatmul.f32.gmra.mxu0 %v3394
      %v3506 = vpop.f32.mrf.mxu0
      %v3507 = vadd.f32 0.0, %v3506
      %3508 = vmatmul.f32.gmra.mxu0 %v3397
      %v3509 = vpop.f32.mrf.mxu0
      %v3510 = vadd.f32 0.0, %v3509
      %3511 = vmatmul.f32.gmra.mxu0 %v3400
      %v3512 = vpop.f32.mrf.mxu0
      %v3513 = vadd.f32 0.0, %v3512
      %3514 = vmatmul.f32.gmra.mxu0 %v3403
      %v3515 = vpop.f32.mrf.mxu0
      %v3516 = vadd.f32 0.0, %v3515
      %3517 = vmatmul.f32.gmra.mxu0 %v3406
      %v3518 = vpop.f32.mrf.mxu0
      %v3519 = vadd.f32 0.0, %v3518
      %3520 = vmatmul.f32.gmra.mxu0 %v3409
      %v3521 = vpop.f32.mrf.mxu0
      %v3522 = vadd.f32 0.0, %v3521
      %3523 = vmatmul.f32.gmra.mxu0 %v3412
      %v3524 = vpop.f32.mrf.mxu0
      %v3525 = vadd.f32 0.0, %v3524
      %3526 = vmatmul.f32.gmra.mxu0 %v3415
      %v3527 = vpop.f32.mrf.mxu0
      %v3528 = vadd.f32 0.0, %v3527
      %3529 = vmatmul.f32.gmra.mxu0 %v3418
      %v3530 = vpop.f32.mrf.mxu0
      %v3531 = vadd.f32 0.0, %v3530
      %3532 = vmatmul.f32.gmra.mxu0 %v3421
      %v3533 = vpop.f32.mrf.mxu0
      %v3534 = vadd.f32 0.0, %v3533
      %3535 = vmatmul.f32.gmra.mxu0 %v3424
      %v3536 = vpop.f32.mrf.mxu0
      %v3537 = vadd.f32 0.0, %v3536
      %3538 = vmatmul.f32.gmra.mxu0 %v3427
      %v3539 = vpop.f32.mrf.mxu0
      %v3540 = vadd.f32 0.0, %v3539
      %3541 = vmatmul.f32.gmra.mxu0 %v3430
      %v3542 = vpop.f32.mrf.mxu0
      %v3543 = vadd.f32 0.0, %v3542
      %3544 = vmatmul.f32.gmra.mxu0 %v3433
      %v3545 = vpop.f32.mrf.mxu0
      %v3546 = vadd.f32 0.0, %v3545
      %3547 = vmatmul.f32.gmra.mxu0 %v3436
      %v3548 = vpop.f32.mrf.mxu0
      %v3549 = vadd.f32 0.0, %v3548
      %3550 = vmatmul.f32.gmra.mxu0 %v3439
      %v3551 = vpop.f32.mrf.mxu0
      %v3552 = vadd.f32 0.0, %v3551
      %3553 = vmatmul.f32.gmra.mxu0 %v3442
      %v3554 = vpop.f32.mrf.mxu0
      %v3555 = vadd.f32 0.0, %v3554
      %3556 = vmatmul.f32.gmra.mxu0 %v3445
      %v3557 = vpop.f32.mrf.mxu0
      %v3558 = vadd.f32 0.0, %v3557
      %3559 = vdwg.mxu0
      %v3561 = vsel %vm333, %v3278, 0
      %v3564 = vsel %vm333, %v3279, 0
      %v3567 = vsel %vm333, %v3280, 0
      %v3570 = vsel %vm333, %v3281, 0
      %v3573 = vsel %vm333, %v3282, 0
      %v3576 = vsel %vm333, %v3283, 0
      %v3579 = vsel %vm333, %v3284, 0
      %v3582 = vsel %vm333, %v3285, 0
      %v3585 = vsel %vm333, %v3286, 0
      %v3588 = vsel %vm333, %v3287, 0
      %v3591 = vsel %vm333, %v3288, 0
      %v3594 = vsel %vm333, %v3289, 0
      %v3597 = vsel %vm333, %v3290, 0
      %v3600 = vsel %vm333, %v3291, 0
      %v3603 = vsel %vm333, %v3292, 0
      %v3606 = vsel %vm333, %v3293, 0
      %v3609 = vsel %vm333, %v3294, 0
      %v3612 = vsel %vm333, %v3295, 0
      %v3615 = vsel %vm333, %v3296, 0
      %v3618 = vsel %vm333, %v3297, 0
      %v3621 = vsel %vm333, %v3298, 0
      %v3624 = vsel %vm333, %v3299, 0
      %v3627 = vsel %vm333, %v3300, 0
      %v3630 = vsel %vm333, %v3301, 0
      %v3633 = vsel %vm333, %v3302, 0
      %v3636 = vsel %vm333, %v3303, 0
      %v3639 = vsel %vm333, %v3304, 0
      %v3642 = vsel %vm333, %v3305, 0
      %v3645 = vsel %vm333, %v3306, 0
      %v3648 = vsel %vm333, %v3307, 0
      %v3651 = vsel %vm333, %v3308, 0
      %v3654 = vsel %vm333, %v3309, 0
      %3656 = vmatpush.msra.mxu0 0.0
      %3657 = vmatpush.msra.mxu0 0.0
      %3658 = vmatpush.msra.mxu0 0.0
      %3659 = vmatpush.msra.mxu0 0.0
      %3660 = vmatpush.msra.mxu0 0.0
      %3661 = vmatpush.msra.mxu0 0.0
      %3662 = vmatpush.msra.mxu0 0.0
      %3663 = vmatpush.msra.mxu0 0.0
      %3664 = vmatpush.msra.mxu0 0.0
      %3665 = vmatpush.msra.mxu0 0.0
      %3666 = vmatpush.msra.mxu0 0.0
      %3667 = vmatpush.msra.mxu0 0.0
      %3668 = vmatpush.msra.mxu0 %v3313
      %3669 = vmatpush.msra.mxu0 %v3312
      %3670 = vmatpush.msra.mxu0 %v3311
      %3671 = vmatpush.msra.mxu0 %v3310
      %3672 = vmatmul.f32.gmra.mxu0 %v3561
      %v3673 = vpop.f32.mrf.mxu0
      %v3674 = vadd.f32 %v3465, %v3673
      %3675 = vmatmul.f32.gmra.mxu0 %v3564
      %v3676 = vpop.f32.mrf.mxu0
      %v3677 = vadd.f32 %v3468, %v3676
      %3678 = vmatmul.f32.gmra.mxu0 %v3567
      %v3679 = vpop.f32.mrf.mxu0
      %v3680 = vadd.f32 %v3471, %v3679
      %3681 = vmatmul.f32.gmra.mxu0 %v3570
      %v3682 = vpop.f32.mrf.mxu0
      %v3683 = vadd.f32 %v3474, %v3682
      %3684 = vmatmul.f32.gmra.mxu0 %v3573
      %v3685 = vpop.f32.mrf.mxu0
      %v3686 = vadd.f32 %v3477, %v3685
      %3687 = vmatmul.f32.gmra.mxu0 %v3576
      %v3688 = vpop.f32.mrf.mxu0
      %v3689 = vadd.f32 %v3480, %v3688
      %3690 = vmatmul.f32.gmra.mxu0 %v3579
      %v3691 = vpop.f32.mrf.mxu0
      %v3692 = vadd.f32 %v3483, %v3691
      %3693 = vmatmul.f32.gmra.mxu0 %v3582
      %v3694 = vpop.f32.mrf.mxu0
      %v3695 = vadd.f32 %v3486, %v3694
      %3696 = vmatmul.f32.gmra.mxu0 %v3585
      %v3697 = vpop.f32.mrf.mxu0
      %v3698 = vadd.f32 %v3489, %v3697
      %3699 = vmatmul.f32.gmra.mxu0 %v3588
      %v3700 = vpop.f32.mrf.mxu0
      %v3701 = vadd.f32 %v3492, %v3700
      %3702 = vmatmul.f32.gmra.mxu0 %v3591
      %v3703 = vpop.f32.mrf.mxu0
      %v3704 = vadd.f32 %v3495, %v3703
      %3705 = vmatmul.f32.gmra.mxu0 %v3594
      %v3706 = vpop.f32.mrf.mxu0
      %v3707 = vadd.f32 %v3498, %v3706
      %3708 = vmatmul.f32.gmra.mxu0 %v3597
      %v3709 = vpop.f32.mrf.mxu0
      %v3710 = vadd.f32 %v3501, %v3709
      %3711 = vmatmul.f32.gmra.mxu0 %v3600
      %v3712 = vpop.f32.mrf.mxu0
      %v3713 = vadd.f32 %v3504, %v3712
      %3714 = vmatmul.f32.gmra.mxu0 %v3603
      %v3715 = vpop.f32.mrf.mxu0
      %v3716 = vadd.f32 %v3507, %v3715
      %3717 = vmatmul.f32.gmra.mxu0 %v3606
      %v3718 = vpop.f32.mrf.mxu0
      %v3719 = vadd.f32 %v3510, %v3718
      %3720 = vmatmul.f32.gmra.mxu0 %v3609
      %v3721 = vpop.f32.mrf.mxu0
      %v3722 = vadd.f32 %v3513, %v3721
      %3723 = vmatmul.f32.gmra.mxu0 %v3612
      %v3724 = vpop.f32.mrf.mxu0
      %v3725 = vadd.f32 %v3516, %v3724
      %3726 = vmatmul.f32.gmra.mxu0 %v3615
      %v3727 = vpop.f32.mrf.mxu0
      %v3728 = vadd.f32 %v3519, %v3727
      %3729 = vmatmul.f32.gmra.mxu0 %v3618
      %v3730 = vpop.f32.mrf.mxu0
      %v3731 = vadd.f32 %v3522, %v3730
      %3732 = vmatmul.f32.gmra.mxu0 %v3621
      %v3733 = vpop.f32.mrf.mxu0
      %v3734 = vadd.f32 %v3525, %v3733
      %3735 = vmatmul.f32.gmra.mxu0 %v3624
      %v3736 = vpop.f32.mrf.mxu0
      %v3737 = vadd.f32 %v3528, %v3736
      %3738 = vmatmul.f32.gmra.mxu0 %v3627
      %v3739 = vpop.f32.mrf.mxu0
      %v3740 = vadd.f32 %v3531, %v3739
      %3741 = vmatmul.f32.gmra.mxu0 %v3630
      %v3742 = vpop.f32.mrf.mxu0
      %v3743 = vadd.f32 %v3534, %v3742
      %3744 = vmatmul.f32.gmra.mxu0 %v3633
      %v3745 = vpop.f32.mrf.mxu0
      %v3746 = vadd.f32 %v3537, %v3745
      %3747 = vmatmul.f32.gmra.mxu0 %v3636
      %v3748 = vpop.f32.mrf.mxu0
      %v3749 = vadd.f32 %v3540, %v3748
      %3750 = vmatmul.f32.gmra.mxu0 %v3639
      %v3751 = vpop.f32.mrf.mxu0
      %v3752 = vadd.f32 %v3543, %v3751
      %3753 = vmatmul.f32.gmra.mxu0 %v3642
      %v3754 = vpop.f32.mrf.mxu0
      %v3755 = vadd.f32 %v3546, %v3754
      %3756 = vmatmul.f32.gmra.mxu0 %v3645
      %v3757 = vpop.f32.mrf.mxu0
      %v3758 = vadd.f32 %v3549, %v3757
      %3759 = vmatmul.f32.gmra.mxu0 %v3648
      %v3760 = vpop.f32.mrf.mxu0
      %v3761 = vadd.f32 %v3552, %v3760
      %3762 = vmatmul.f32.gmra.mxu0 %v3651
      %v3763 = vpop.f32.mrf.mxu0
      %v3764 = vadd.f32 %v3555, %v3763
      %3765 = vmatmul.f32.gmra.mxu0 %v3654
      %v3766 = vpop.f32.mrf.mxu0
      %v3767 = vadd.f32 %v3558, %v3766
      %3768 = vdwg.mxu0
      %v3769 = vld [vmem:[#allocation3 + $0x2] sm:$0xff]
      %v3770 = vld [vmem:[#allocation3 + $0xa] sm:$0xff]
      %v3771 = vld [vmem:[#allocation3 + $0x1a] sm:$0xff]
      %v3772 = vld [vmem:[#allocation3 + $0x22] sm:$0xff]
      %v3773 = vld [vmem:[#allocation3 + $0x32] sm:$0xff]
      %v3774 = vld [vmem:[#allocation3 + $0x3a] sm:$0xff]
      %v3775 = vld [vmem:[#allocation3 + $0x4a] sm:$0xff]
      %v3776 = vld [vmem:[#allocation3 + $0x52] sm:$0xff]
      %v3777 = vld [vmem:[#allocation3 + $0x62] sm:$0xff]
      %v3778 = vld [vmem:[#allocation3 + $0x6a] sm:$0xff]
      %v3779 = vld [vmem:[#allocation3 + $0x7a] sm:$0xff]
      %v3780 = vld [vmem:[#allocation3 + $0x82] sm:$0xff]
      %v3781 = vld [vmem:[#allocation3 + $0x92] sm:$0xff]
      %v3782 = vld [vmem:[#allocation3 + $0x9a] sm:$0xff]
      %v3783 = vld [vmem:[#allocation3 + $0xaa] sm:$0xff]
      %v3784 = vld [vmem:[#allocation3 + $0xb2] sm:$0xff]
      %v3785 = vld [vmem:[#allocation3 + $0xc2] sm:$0xff]
      %v3786 = vld [vmem:[#allocation3 + $0xca] sm:$0xff]
      %v3787 = vld [vmem:[#allocation3 + $0xda] sm:$0xff]
      %v3788 = vld [vmem:[#allocation3 + $0xe2] sm:$0xff]
      %v3789 = vld [vmem:[#allocation3 + $0xf2] sm:$0xff]
      %v3790 = vld [vmem:[#allocation3 + $0xfa] sm:$0xff]
      %v3791 = vld [vmem:[#allocation3 + $0x10a] sm:$0xff]
      %v3792 = vld [vmem:[#allocation3 + $0x112] sm:$0xff]
      %v3793 = vld [vmem:[#allocation3 + $0x122] sm:$0xff]
      %v3794 = vld [vmem:[#allocation3 + $0x12a] sm:$0xff]
      %v3795 = vld [vmem:[#allocation3 + $0x13a] sm:$0xff]
      %v3796 = vld [vmem:[#allocation3 + $0x142] sm:$0xff]
      %v3797 = vld [vmem:[#allocation3 + $0x152] sm:$0xff]
      %v3798 = vld [vmem:[#allocation3 + $0x15a] sm:$0xff]
      %v3799 = vld [vmem:[#allocation3 + $0x16a] sm:$0xff]
      %v3800 = vld [vmem:[#allocation3 + $0x172] sm:$0xff]
      %s3801 = scalar_lea.vmem %s5, 64
      %v3802 = vld [vmem:[%s3801] sm:$0xff]
      %v3803 = vld [vmem:[%s3801 + $0x8] sm:$0xff]
      %v3804 = vld [vmem:[%s3801 + $0x10] sm:$0xff]
      %v3805 = vld [vmem:[%s3801 + $0x18] sm:$0xff]
      %v3807 = vsel %vm333, %v3769, 0
      %v3810 = vsel %vm333, %v3770, 0
      %v3813 = vsel %vm333, %v3771, 0
      %v3816 = vsel %vm333, %v3772, 0
      %v3819 = vsel %vm333, %v3773, 0
      %v3822 = vsel %vm333, %v3774, 0
      %v3825 = vsel %vm333, %v3775, 0
      %v3828 = vsel %vm333, %v3776, 0
      %v3831 = vsel %vm333, %v3777, 0
      %v3834 = vsel %vm333, %v3778, 0
      %v3837 = vsel %vm333, %v3779, 0
      %v3840 = vsel %vm333, %v3780, 0
      %v3843 = vsel %vm333, %v3781, 0
      %v3846 = vsel %vm333, %v3782, 0
      %v3849 = vsel %vm333, %v3783, 0
      %v3852 = vsel %vm333, %v3784, 0
      %v3855 = vsel %vm333, %v3785, 0
      %v3858 = vsel %vm333, %v3786, 0
      %v3861 = vsel %vm333, %v3787, 0
      %v3864 = vsel %vm333, %v3788, 0
      %v3867 = vsel %vm333, %v3789, 0
      %v3870 = vsel %vm333, %v3790, 0
      %v3873 = vsel %vm333, %v3791, 0
      %v3876 = vsel %vm333, %v3792, 0
      %v3879 = vsel %vm333, %v3793, 0
      %v3882 = vsel %vm333, %v3794, 0
      %v3885 = vsel %vm333, %v3795, 0
      %v3888 = vsel %vm333, %v3796, 0
      %v3891 = vsel %vm333, %v3797, 0
      %v3894 = vsel %vm333, %v3798, 0
      %v3897 = vsel %vm333, %v3799, 0
      %v3900 = vsel %vm333, %v3800, 0
      %3902 = vmatpush.msra.mxu0 0.0
      %3903 = vmatpush.msra.mxu0 0.0
      %3904 = vmatpush.msra.mxu0 0.0
      %3905 = vmatpush.msra.mxu0 0.0
      %3906 = vmatpush.msra.mxu0 0.0
      %3907 = vmatpush.msra.mxu0 0.0
      %3908 = vmatpush.msra.mxu0 0.0
      %3909 = vmatpush.msra.mxu0 0.0
      %3910 = vmatpush.msra.mxu0 0.0
      %3911 = vmatpush.msra.mxu0 0.0
      %3912 = vmatpush.msra.mxu0 0.0
      %3913 = vmatpush.msra.mxu0 0.0
      %3914 = vmatpush.msra.mxu0 %v3805
      %3915 = vmatpush.msra.mxu0 %v3804
      %3916 = vmatpush.msra.mxu0 %v3803
      %3917 = vmatpush.msra.mxu0 %v3802
      %3918 = vmatmul.f32.gmra.mxu0 %v3807
      %v3919 = vpop.f32.mrf.mxu0
      %v3920 = vadd.f32 0.0, %v3919
      %3921 = vmatmul.f32.gmra.mxu0 %v3810
      %v3922 = vpop.f32.mrf.mxu0
      %v3923 = vadd.f32 0.0, %v3922
      %3924 = vmatmul.f32.gmra.mxu0 %v3813
      %v3925 = vpop.f32.mrf.mxu0
      %v3926 = vadd.f32 0.0, %v3925
      %3927 = vmatmul.f32.gmra.mxu0 %v3816
      %v3928 = vpop.f32.mrf.mxu0
      %v3929 = vadd.f32 0.0, %v3928
      %3930 = vmatmul.f32.gmra.mxu0 %v3819
      %v3931 = vpop.f32.mrf.mxu0
      %v3932 = vadd.f32 0.0, %v3931
      %3933 = vmatmul.f32.gmra.mxu0 %v3822
      %v3934 = vpop.f32.mrf.mxu0
      %v3935 = vadd.f32 0.0, %v3934
      %3936 = vmatmul.f32.gmra.mxu0 %v3825
      %v3937 = vpop.f32.mrf.mxu0
      %v3938 = vadd.f32 0.0, %v3937
      %3939 = vmatmul.f32.gmra.mxu0 %v3828
      %v3940 = vpop.f32.mrf.mxu0
      %v3941 = vadd.f32 0.0, %v3940
      %3942 = vmatmul.f32.gmra.mxu0 %v3831
      %v3943 = vpop.f32.mrf.mxu0
      %v3944 = vadd.f32 0.0, %v3943
      %3945 = vmatmul.f32.gmra.mxu0 %v3834
      %v3946 = vpop.f32.mrf.mxu0
      %v3947 = vadd.f32 0.0, %v3946
      %3948 = vmatmul.f32.gmra.mxu0 %v3837
      %v3949 = vpop.f32.mrf.mxu0
      %v3950 = vadd.f32 0.0, %v3949
      %3951 = vmatmul.f32.gmra.mxu0 %v3840
      %v3952 = vpop.f32.mrf.mxu0
      %v3953 = vadd.f32 0.0, %v3952
      %3954 = vmatmul.f32.gmra.mxu0 %v3843
      %v3955 = vpop.f32.mrf.mxu0
      %v3956 = vadd.f32 0.0, %v3955
      %3957 = vmatmul.f32.gmra.mxu0 %v3846
      %v3958 = vpop.f32.mrf.mxu0
      %v3959 = vadd.f32 0.0, %v3958
      %3960 = vmatmul.f32.gmra.mxu0 %v3849
      %v3961 = vpop.f32.mrf.mxu0
      %v3962 = vadd.f32 0.0, %v3961
      %3963 = vmatmul.f32.gmra.mxu0 %v3852
      %v3964 = vpop.f32.mrf.mxu0
      %v3965 = vadd.f32 0.0, %v3964
      %3966 = vmatmul.f32.gmra.mxu0 %v3855
      %v3967 = vpop.f32.mrf.mxu0
      %v3968 = vadd.f32 0.0, %v3967
      %3969 = vmatmul.f32.gmra.mxu0 %v3858
      %v3970 = vpop.f32.mrf.mxu0
      %v3971 = vadd.f32 0.0, %v3970
      %3972 = vmatmul.f32.gmra.mxu0 %v3861
      %v3973 = vpop.f32.mrf.mxu0
      %v3974 = vadd.f32 0.0, %v3973
      %3975 = vmatmul.f32.gmra.mxu0 %v3864
      %v3976 = vpop.f32.mrf.mxu0
      %v3977 = vadd.f32 0.0, %v3976
      %3978 = vmatmul.f32.gmra.mxu0 %v3867
      %v3979 = vpop.f32.mrf.mxu0
      %v3980 = vadd.f32 0.0, %v3979
      %3981 = vmatmul.f32.gmra.mxu0 %v3870
      %v3982 = vpop.f32.mrf.mxu0
      %v3983 = vadd.f32 0.0, %v3982
      %3984 = vmatmul.f32.gmra.mxu0 %v3873
      %v3985 = vpop.f32.mrf.mxu0
      %v3986 = vadd.f32 0.0, %v3985
      %3987 = vmatmul.f32.gmra.mxu0 %v3876
      %v3988 = vpop.f32.mrf.mxu0
      %v3989 = vadd.f32 0.0, %v3988
      %3990 = vmatmul.f32.gmra.mxu0 %v3879
      %v3991 = vpop.f32.mrf.mxu0
      %v3992 = vadd.f32 0.0, %v3991
      %3993 = vmatmul.f32.gmra.mxu0 %v3882
      %v3994 = vpop.f32.mrf.mxu0
      %v3995 = vadd.f32 0.0, %v3994
      %3996 = vmatmul.f32.gmra.mxu0 %v3885
      %v3997 = vpop.f32.mrf.mxu0
      %v3998 = vadd.f32 0.0, %v3997
      %3999 = vmatmul.f32.gmra.mxu0 %v3888
      %v4000 = vpop.f32.mrf.mxu0
      %v4001 = vadd.f32 0.0, %v4000
      %4002 = vmatmul.f32.gmra.mxu0 %v3891
      %v4003 = vpop.f32.mrf.mxu0
      %v4004 = vadd.f32 0.0, %v4003
      %4005 = vmatmul.f32.gmra.mxu0 %v3894
      %v4006 = vpop.f32.mrf.mxu0
      %v4007 = vadd.f32 0.0, %v4006
      %4008 = vmatmul.f32.gmra.mxu0 %v3897
      %v4009 = vpop.f32.mrf.mxu0
      %v4010 = vadd.f32 0.0, %v4009
      %4011 = vmatmul.f32.gmra.mxu0 %v3900
      %v4012 = vpop.f32.mrf.mxu0
      %v4013 = vadd.f32 0.0, %v4012
      %4014 = vdwg.mxu0
      %v4015 = vadd.f32 %v3674, %v3920
      %v4016 = vadd.f32 %v3677, %v3923
      %v4017 = vadd.f32 %v3680, %v3926
      %v4018 = vadd.f32 %v3683, %v3929
      %v4019 = vadd.f32 %v3686, %v3932
      %v4020 = vadd.f32 %v3689, %v3935
      %v4021 = vadd.f32 %v3692, %v3938
      %v4022 = vadd.f32 %v3695, %v3941
      %v4023 = vadd.f32 %v3698, %v3944
      %v4024 = vadd.f32 %v3701, %v3947
      %v4025 = vadd.f32 %v3704, %v3950
      %v4026 = vadd.f32 %v3707, %v3953
      %v4027 = vadd.f32 %v3710, %v3956
      %v4028 = vadd.f32 %v3713, %v3959
      %v4029 = vadd.f32 %v3716, %v3962
      %v4030 = vadd.f32 %v3719, %v3965
      %v4031 = vadd.f32 %v3722, %v3968
      %v4032 = vadd.f32 %v3725, %v3971
      %v4033 = vadd.f32 %v3728, %v3974
      %v4034 = vadd.f32 %v3731, %v3977
      %v4035 = vadd.f32 %v3734, %v3980
      %v4036 = vadd.f32 %v3737, %v3983
      %v4037 = vadd.f32 %v3740, %v3986
      %v4038 = vadd.f32 %v3743, %v3989
      %v4039 = vadd.f32 %v3746, %v3992
      %v4040 = vadd.f32 %v3749, %v3995
      %v4041 = vadd.f32 %v3752, %v3998
      %v4042 = vadd.f32 %v3755, %v4001
      %v4043 = vadd.f32 %v3758, %v4004
      %v4044 = vadd.f32 %v3761, %v4007
      %v4045 = vadd.f32 %v3764, %v4010
      %v4046 = vadd.f32 %v3767, %v4013
      %v4047 = vld [vmem:[%s3245] sm:$0xff]
      %v4048 = vld [vmem:[%s3245 + $0x8] sm:$0xff]
      %v4049 = vld [vmem:[%s3245 + $0x18] sm:$0xff]
      %v4050 = vld [vmem:[%s3245 + $0x20] sm:$0xff]
      %v4051 = vld [vmem:[%s3245 + $0x30] sm:$0xff]
      %v4052 = vld [vmem:[%s3245 + $0x38] sm:$0xff]
      %v4053 = vld [vmem:[%s3245 + $0x48] sm:$0xff]
      %v4054 = vld [vmem:[%s3245 + $0x50] sm:$0xff]
      %v4055 = vld [vmem:[%s3245 + $0x60] sm:$0xff]
      %v4056 = vld [vmem:[%s3245 + $0x68] sm:$0xff]
      %v4057 = vld [vmem:[%s3245 + $0x78] sm:$0xff]
      %v4058 = vld [vmem:[%s3245 + $0x80] sm:$0xff]
      %v4059 = vld [vmem:[%s3245 + $0x90] sm:$0xff]
      %v4060 = vld [vmem:[%s3245 + $0x98] sm:$0xff]
      %v4061 = vld [vmem:[%s3245 + $0xa8] sm:$0xff]
      %v4062 = vld [vmem:[%s3245 + $0xb0] sm:$0xff]
      %v4063 = vld [vmem:[%s3245 + $0xc0] sm:$0xff]
      %v4064 = vld [vmem:[%s3245 + $0xc8] sm:$0xff]
      %v4065 = vld [vmem:[%s3245 + $0xd8] sm:$0xff]
      %v4066 = vld [vmem:[%s3245 + $0xe0] sm:$0xff]
      %v4067 = vld [vmem:[%s3245 + $0xf0] sm:$0xff]
      %v4068 = vld [vmem:[%s3245 + $0xf8] sm:$0xff]
      %v4069 = vld [vmem:[%s3245 + $0x108] sm:$0xff]
      %v4070 = vld [vmem:[%s3245 + $0x110] sm:$0xff]
      %v4071 = vld [vmem:[%s3245 + $0x120] sm:$0xff]
      %v4072 = vld [vmem:[%s3245 + $0x128] sm:$0xff]
      %v4073 = vld [vmem:[%s3245 + $0x138] sm:$0xff]
      %v4074 = vld [vmem:[%s3245 + $0x140] sm:$0xff]
      %v4075 = vld [vmem:[%s3245 + $0x150] sm:$0xff]
      %v4076 = vld [vmem:[%s3245 + $0x158] sm:$0xff]
      %v4077 = vld [vmem:[%s3245 + $0x168] sm:$0xff]
      %v4078 = vld [vmem:[%s3245 + $0x170] sm:$0xff]
      %s4079 = scalar_lea.vmem %s5, 96
      %v4080 = vld [vmem:[%s4079] sm:$0xff]
      %v4081 = vld [vmem:[%s4079 + $0x8] sm:$0xff]
      %v4082 = vld [vmem:[%s4079 + $0x10] sm:$0xff]
      %v4083 = vld [vmem:[%s4079 + $0x18] sm:$0xff]
      %v4085 = vsel %vm333, %v4047, 0
      %v4088 = vsel %vm333, %v4048, 0
      %v4091 = vsel %vm333, %v4049, 0
      %v4094 = vsel %vm333, %v4050, 0
      %v4097 = vsel %vm333, %v4051, 0
      %v4100 = vsel %vm333, %v4052, 0
      %v4103 = vsel %vm333, %v4053, 0
      %v4106 = vsel %vm333, %v4054, 0
      %v4109 = vsel %vm333, %v4055, 0
      %v4112 = vsel %vm333, %v4056, 0
      %v4115 = vsel %vm333, %v4057, 0
      %v4118 = vsel %vm333, %v4058, 0
      %v4121 = vsel %vm333, %v4059, 0
      %v4124 = vsel %vm333, %v4060, 0
      %v4127 = vsel %vm333, %v4061, 0
      %v4130 = vsel %vm333, %v4062, 0
      %v4133 = vsel %vm333, %v4063, 0
      %v4136 = vsel %vm333, %v4064, 0
      %v4139 = vsel %vm333, %v4065, 0
      %v4142 = vsel %vm333, %v4066, 0
      %v4145 = vsel %vm333, %v4067, 0
      %v4148 = vsel %vm333, %v4068, 0
      %v4151 = vsel %vm333, %v4069, 0
      %v4154 = vsel %vm333, %v4070, 0
      %v4157 = vsel %vm333, %v4071, 0
      %v4160 = vsel %vm333, %v4072, 0
      %v4163 = vsel %vm333, %v4073, 0
      %v4166 = vsel %vm333, %v4074, 0
      %v4169 = vsel %vm333, %v4075, 0
      %v4172 = vsel %vm333, %v4076, 0
      %v4175 = vsel %vm333, %v4077, 0
      %v4178 = vsel %vm333, %v4078, 0
      %4180 = vmatpush.msra.mxu0 0.0
      %4181 = vmatpush.msra.mxu0 0.0
      %4182 = vmatpush.msra.mxu0 0.0
      %4183 = vmatpush.msra.mxu0 0.0
      %4184 = vmatpush.msra.mxu0 0.0
      %4185 = vmatpush.msra.mxu0 0.0
      %4186 = vmatpush.msra.mxu0 0.0
      %4187 = vmatpush.msra.mxu0 0.0
      %4188 = vmatpush.msra.mxu0 0.0
      %4189 = vmatpush.msra.mxu0 0.0
      %4190 = vmatpush.msra.mxu0 0.0
      %4191 = vmatpush.msra.mxu0 0.0
      %4192 = vmatpush.msra.mxu0 %v4083
      %4193 = vmatpush.msra.mxu0 %v4082
      %4194 = vmatpush.msra.mxu0 %v4081
      %4195 = vmatpush.msra.mxu0 %v4080
      %4196 = vmatmul.f32.gmra.mxu0 %v4085
      %v4197 = vpop.f32.mrf.mxu0
      %v4198 = vadd.f32 0.0, %v4197
      %4199 = vmatmul.f32.gmra.mxu0 %v4088
      %v4200 = vpop.f32.mrf.mxu0
      %v4201 = vadd.f32 0.0, %v4200
      %4202 = vmatmul.f32.gmra.mxu0 %v4091
      %v4203 = vpop.f32.mrf.mxu0
      %v4204 = vadd.f32 0.0, %v4203
      %4205 = vmatmul.f32.gmra.mxu0 %v4094
      %v4206 = vpop.f32.mrf.mxu0
      %v4207 = vadd.f32 0.0, %v4206
      %4208 = vmatmul.f32.gmra.mxu0 %v4097
      %v4209 = vpop.f32.mrf.mxu0
      %v4210 = vadd.f32 0.0, %v4209
      %4211 = vmatmul.f32.gmra.mxu0 %v4100
      %v4212 = vpop.f32.mrf.mxu0
      %v4213 = vadd.f32 0.0, %v4212
      %4214 = vmatmul.f32.gmra.mxu0 %v4103
      %v4215 = vpop.f32.mrf.mxu0
      %v4216 = vadd.f32 0.0, %v4215
      %4217 = vmatmul.f32.gmra.mxu0 %v4106
      %v4218 = vpop.f32.mrf.mxu0
      %v4219 = vadd.f32 0.0, %v4218
      %4220 = vmatmul.f32.gmra.mxu0 %v4109
      %v4221 = vpop.f32.mrf.mxu0
      %v4222 = vadd.f32 0.0, %v4221
      %4223 = vmatmul.f32.gmra.mxu0 %v4112
      %v4224 = vpop.f32.mrf.mxu0
      %v4225 = vadd.f32 0.0, %v4224
      %4226 = vmatmul.f32.gmra.mxu0 %v4115
      %v4227 = vpop.f32.mrf.mxu0
      %v4228 = vadd.f32 0.0, %v4227
      %4229 = vmatmul.f32.gmra.mxu0 %v4118
      %v4230 = vpop.f32.mrf.mxu0
      %v4231 = vadd.f32 0.0, %v4230
      %4232 = vmatmul.f32.gmra.mxu0 %v4121
      %v4233 = vpop.f32.mrf.mxu0
      %v4234 = vadd.f32 0.0, %v4233
      %4235 = vmatmul.f32.gmra.mxu0 %v4124
      %v4236 = vpop.f32.mrf.mxu0
      %v4237 = vadd.f32 0.0, %v4236
      %4238 = vmatmul.f32.gmra.mxu0 %v4127
      %v4239 = vpop.f32.mrf.mxu0
      %v4240 = vadd.f32 0.0, %v4239
      %4241 = vmatmul.f32.gmra.mxu0 %v4130
      %v4242 = vpop.f32.mrf.mxu0
      %v4243 = vadd.f32 0.0, %v4242
      %4244 = vmatmul.f32.gmra.mxu0 %v4133
      %v4245 = vpop.f32.mrf.mxu0
      %v4246 = vadd.f32 0.0, %v4245
      %4247 = vmatmul.f32.gmra.mxu0 %v4136
      %v4248 = vpop.f32.mrf.mxu0
      %v4249 = vadd.f32 0.0, %v4248
      %4250 = vmatmul.f32.gmra.mxu0 %v4139
      %v4251 = vpop.f32.mrf.mxu0
      %v4252 = vadd.f32 0.0, %v4251
      %4253 = vmatmul.f32.gmra.mxu0 %v4142
      %v4254 = vpop.f32.mrf.mxu0
      %v4255 = vadd.f32 0.0, %v4254
      %4256 = vmatmul.f32.gmra.mxu0 %v4145
      %v4257 = vpop.f32.mrf.mxu0
      %v4258 = vadd.f32 0.0, %v4257
      %4259 = vmatmul.f32.gmra.mxu0 %v4148
      %v4260 = vpop.f32.mrf.mxu0
      %v4261 = vadd.f32 0.0, %v4260
      %4262 = vmatmul.f32.gmra.mxu0 %v4151
      %v4263 = vpop.f32.mrf.mxu0
      %v4264 = vadd.f32 0.0, %v4263
      %4265 = vmatmul.f32.gmra.mxu0 %v4154
      %v4266 = vpop.f32.mrf.mxu0
      %v4267 = vadd.f32 0.0, %v4266
      %4268 = vmatmul.f32.gmra.mxu0 %v4157
      %v4269 = vpop.f32.mrf.mxu0
      %v4270 = vadd.f32 0.0, %v4269
      %4271 = vmatmul.f32.gmra.mxu0 %v4160
      %v4272 = vpop.f32.mrf.mxu0
      %v4273 = vadd.f32 0.0, %v4272
      %4274 = vmatmul.f32.gmra.mxu0 %v4163
      %v4275 = vpop.f32.mrf.mxu0
      %v4276 = vadd.f32 0.0, %v4275
      %4277 = vmatmul.f32.gmra.mxu0 %v4166
      %v4278 = vpop.f32.mrf.mxu0
      %v4279 = vadd.f32 0.0, %v4278
      %4280 = vmatmul.f32.gmra.mxu0 %v4169
      %v4281 = vpop.f32.mrf.mxu0
      %v4282 = vadd.f32 0.0, %v4281
      %4283 = vmatmul.f32.gmra.mxu0 %v4172
      %v4284 = vpop.f32.mrf.mxu0
      %v4285 = vadd.f32 0.0, %v4284
      %4286 = vmatmul.f32.gmra.mxu0 %v4175
      %v4287 = vpop.f32.mrf.mxu0
      %v4288 = vadd.f32 0.0, %v4287
      %4289 = vmatmul.f32.gmra.mxu0 %v4178
      %v4290 = vpop.f32.mrf.mxu0
      %v4291 = vadd.f32 0.0, %v4290
      %4292 = vdwg.mxu0
      %v4293 = vadd.f32 %v4015, %v4198
      %v4294 = vadd.f32 %v4016, %v4201
      %v4295 = vadd.f32 %v4017, %v4204
      %v4296 = vadd.f32 %v4018, %v4207
      %v4297 = vadd.f32 %v4019, %v4210
      %v4298 = vadd.f32 %v4020, %v4213
      %v4299 = vadd.f32 %v4021, %v4216
      %v4300 = vadd.f32 %v4022, %v4219
      %v4301 = vadd.f32 %v4023, %v4222
      %v4302 = vadd.f32 %v4024, %v4225
      %v4303 = vadd.f32 %v4025, %v4228
      %v4304 = vadd.f32 %v4026, %v4231
      %v4305 = vadd.f32 %v4027, %v4234
      %v4306 = vadd.f32 %v4028, %v4237
      %v4307 = vadd.f32 %v4029, %v4240
      %v4308 = vadd.f32 %v4030, %v4243
      %v4309 = vadd.f32 %v4031, %v4246
      %v4310 = vadd.f32 %v4032, %v4249
      %v4311 = vadd.f32 %v4033, %v4252
      %v4312 = vadd.f32 %v4034, %v4255
      %v4313 = vadd.f32 %v4035, %v4258
      %v4314 = vadd.f32 %v4036, %v4261
      %v4315 = vadd.f32 %v4037, %v4264
      %v4316 = vadd.f32 %v4038, %v4267
      %v4317 = vadd.f32 %v4039, %v4270
      %v4318 = vadd.f32 %v4040, %v4273
      %v4319 = vadd.f32 %v4041, %v4276
      %v4320 = vadd.f32 %v4042, %v4279
      %v4321 = vadd.f32 %v4043, %v4282
      %v4322 = vadd.f32 %v4044, %v4285
      %v4323 = vadd.f32 %v4045, %v4288
      %v4324 = vadd.f32 %v4046, %v4291
      %v4325 = vld [vmem:[%s3245 + $0x1] sm:$0xff]
      %v4326 = vld [vmem:[%s3245 + $0x9] sm:$0xff]
      %v4327 = vld [vmem:[%s3245 + $0x19] sm:$0xff]
      %v4328 = vld [vmem:[%s3245 + $0x21] sm:$0xff]
      %v4329 = vld [vmem:[%s3245 + $0x31] sm:$0xff]
      %v4330 = vld [vmem:[%s3245 + $0x39] sm:$0xff]
      %v4331 = vld [vmem:[%s3245 + $0x49] sm:$0xff]
      %v4332 = vld [vmem:[%s3245 + $0x51] sm:$0xff]
      %v4333 = vld [vmem:[%s3245 + $0x61] sm:$0xff]
      %v4334 = vld [vmem:[%s3245 + $0x69] sm:$0xff]
      %v4335 = vld [vmem:[%s3245 + $0x79] sm:$0xff]
      %v4336 = vld [vmem:[%s3245 + $0x81] sm:$0xff]
      %v4337 = vld [vmem:[%s3245 + $0x91] sm:$0xff]
      %v4338 = vld [vmem:[%s3245 + $0x99] sm:$0xff]
      %v4339 = vld [vmem:[%s3245 + $0xa9] sm:$0xff]
      %v4340 = vld [vmem:[%s3245 + $0xb1] sm:$0xff]
      %v4341 = vld [vmem:[%s3245 + $0xc1] sm:$0xff]
      %v4342 = vld [vmem:[%s3245 + $0xc9] sm:$0xff]
      %v4343 = vld [vmem:[%s3245 + $0xd9] sm:$0xff]
      %v4344 = vld [vmem:[%s3245 + $0xe1] sm:$0xff]
      %v4345 = vld [vmem:[%s3245 + $0xf1] sm:$0xff]
      %v4346 = vld [vmem:[%s3245 + $0xf9] sm:$0xff]
      %v4347 = vld [vmem:[%s3245 + $0x109] sm:$0xff]
      %v4348 = vld [vmem:[%s3245 + $0x111] sm:$0xff]
      %v4349 = vld [vmem:[%s3245 + $0x121] sm:$0xff]
      %v4350 = vld [vmem:[%s3245 + $0x129] sm:$0xff]
      %v4351 = vld [vmem:[%s3245 + $0x139] sm:$0xff]
      %v4352 = vld [vmem:[%s3245 + $0x141] sm:$0xff]
      %v4353 = vld [vmem:[%s3245 + $0x151] sm:$0xff]
      %v4354 = vld [vmem:[%s3245 + $0x159] sm:$0xff]
      %v4355 = vld [vmem:[%s3245 + $0x169] sm:$0xff]
      %v4356 = vld [vmem:[%s3245 + $0x171] sm:$0xff]
      %s4357 = scalar_lea.vmem %s5, 128
      %v4358 = vld [vmem:[%s4357] sm:$0xff]
      %v4359 = vld [vmem:[%s4357 + $0x8] sm:$0xff]
      %v4360 = vld [vmem:[%s4357 + $0x10] sm:$0xff]
      %v4361 = vld [vmem:[%s4357 + $0x18] sm:$0xff]
      %v4363 = vsel %vm333, %v4325, 0
      %v4366 = vsel %vm333, %v4326, 0
      %v4369 = vsel %vm333, %v4327, 0
      %v4372 = vsel %vm333, %v4328, 0
      %v4375 = vsel %vm333, %v4329, 0
      %v4378 = vsel %vm333, %v4330, 0
      %v4381 = vsel %vm333, %v4331, 0
      %v4384 = vsel %vm333, %v4332, 0
      %v4387 = vsel %vm333, %v4333, 0
      %v4390 = vsel %vm333, %v4334, 0
      %v4393 = vsel %vm333, %v4335, 0
      %v4396 = vsel %vm333, %v4336, 0
      %v4399 = vsel %vm333, %v4337, 0
      %v4402 = vsel %vm333, %v4338, 0
      %v4405 = vsel %vm333, %v4339, 0
      %v4408 = vsel %vm333, %v4340, 0
      %v4411 = vsel %vm333, %v4341, 0
      %v4414 = vsel %vm333, %v4342, 0
      %v4417 = vsel %vm333, %v4343, 0
      %v4420 = vsel %vm333, %v4344, 0
      %v4423 = vsel %vm333, %v4345, 0
      %v4426 = vsel %vm333, %v4346, 0
      %v4429 = vsel %vm333, %v4347, 0
      %v4432 = vsel %vm333, %v4348, 0
      %v4435 = vsel %vm333, %v4349, 0
      %v4438 = vsel %vm333, %v4350, 0
      %v4441 = vsel %vm333, %v4351, 0
      %v4444 = vsel %vm333, %v4352, 0
      %v4447 = vsel %vm333, %v4353, 0
      %v4450 = vsel %vm333, %v4354, 0
      %v4453 = vsel %vm333, %v4355, 0
      %v4456 = vsel %vm333, %v4356, 0
      %4458 = vmatpush.msra.mxu0 0.0
      %4459 = vmatpush.msra.mxu0 0.0
      %4460 = vmatpush.msra.mxu0 0.0
      %4461 = vmatpush.msra.mxu0 0.0
      %4462 = vmatpush.msra.mxu0 0.0
      %4463 = vmatpush.msra.mxu0 0.0
      %4464 = vmatpush.msra.mxu0 0.0
      %4465 = vmatpush.msra.mxu0 0.0
      %4466 = vmatpush.msra.mxu0 0.0
      %4467 = vmatpush.msra.mxu0 0.0
      %4468 = vmatpush.msra.mxu0 0.0
      %4469 = vmatpush.msra.mxu0 0.0
      %4470 = vmatpush.msra.mxu0 %v4361
      %4471 = vmatpush.msra.mxu0 %v4360
      %4472 = vmatpush.msra.mxu0 %v4359
      %4473 = vmatpush.msra.mxu0 %v4358
      %4474 = vmatmul.f32.gmra.mxu0 %v4363
      %v4475 = vpop.f32.mrf.mxu0
      %v4476 = vadd.f32 0.0, %v4475
      %4477 = vmatmul.f32.gmra.mxu0 %v4366
      %v4478 = vpop.f32.mrf.mxu0
      %v4479 = vadd.f32 0.0, %v4478
      %4480 = vmatmul.f32.gmra.mxu0 %v4369
      %v4481 = vpop.f32.mrf.mxu0
      %v4482 = vadd.f32 0.0, %v4481
      %4483 = vmatmul.f32.gmra.mxu0 %v4372
      %v4484 = vpop.f32.mrf.mxu0
      %v4485 = vadd.f32 0.0, %v4484
      %4486 = vmatmul.f32.gmra.mxu0 %v4375
      %v4487 = vpop.f32.mrf.mxu0
      %v4488 = vadd.f32 0.0, %v4487
      %4489 = vmatmul.f32.gmra.mxu0 %v4378
      %v4490 = vpop.f32.mrf.mxu0
      %v4491 = vadd.f32 0.0, %v4490
      %4492 = vmatmul.f32.gmra.mxu0 %v4381
      %v4493 = vpop.f32.mrf.mxu0
      %v4494 = vadd.f32 0.0, %v4493
      %4495 = vmatmul.f32.gmra.mxu0 %v4384
      %v4496 = vpop.f32.mrf.mxu0
      %v4497 = vadd.f32 0.0, %v4496
      %4498 = vmatmul.f32.gmra.mxu0 %v4387
      %v4499 = vpop.f32.mrf.mxu0
      %v4500 = vadd.f32 0.0, %v4499
      %4501 = vmatmul.f32.gmra.mxu0 %v4390
      %v4502 = vpop.f32.mrf.mxu0
      %v4503 = vadd.f32 0.0, %v4502
      %4504 = vmatmul.f32.gmra.mxu0 %v4393
      %v4505 = vpop.f32.mrf.mxu0
      %v4506 = vadd.f32 0.0, %v4505
      %4507 = vmatmul.f32.gmra.mxu0 %v4396
      %v4508 = vpop.f32.mrf.mxu0
      %v4509 = vadd.f32 0.0, %v4508
      %4510 = vmatmul.f32.gmra.mxu0 %v4399
      %v4511 = vpop.f32.mrf.mxu0
      %v4512 = vadd.f32 0.0, %v4511
      %4513 = vmatmul.f32.gmra.mxu0 %v4402
      %v4514 = vpop.f32.mrf.mxu0
      %v4515 = vadd.f32 0.0, %v4514
      %4516 = vmatmul.f32.gmra.mxu0 %v4405
      %v4517 = vpop.f32.mrf.mxu0
      %v4518 = vadd.f32 0.0, %v4517
      %4519 = vmatmul.f32.gmra.mxu0 %v4408
      %v4520 = vpop.f32.mrf.mxu0
      %v4521 = vadd.f32 0.0, %v4520
      %4522 = vmatmul.f32.gmra.mxu0 %v4411
      %v4523 = vpop.f32.mrf.mxu0
      %v4524 = vadd.f32 0.0, %v4523
      %4525 = vmatmul.f32.gmra.mxu0 %v4414
      %v4526 = vpop.f32.mrf.mxu0
      %v4527 = vadd.f32 0.0, %v4526
      %4528 = vmatmul.f32.gmra.mxu0 %v4417
      %v4529 = vpop.f32.mrf.mxu0
      %v4530 = vadd.f32 0.0, %v4529
      %4531 = vmatmul.f32.gmra.mxu0 %v4420
      %v4532 = vpop.f32.mrf.mxu0
      %v4533 = vadd.f32 0.0, %v4532
      %4534 = vmatmul.f32.gmra.mxu0 %v4423
      %v4535 = vpop.f32.mrf.mxu0
      %v4536 = vadd.f32 0.0, %v4535
      %4537 = vmatmul.f32.gmra.mxu0 %v4426
      %v4538 = vpop.f32.mrf.mxu0
      %v4539 = vadd.f32 0.0, %v4538
      %4540 = vmatmul.f32.gmra.mxu0 %v4429
      %v4541 = vpop.f32.mrf.mxu0
      %v4542 = vadd.f32 0.0, %v4541
      %4543 = vmatmul.f32.gmra.mxu0 %v4432
      %v4544 = vpop.f32.mrf.mxu0
      %v4545 = vadd.f32 0.0, %v4544
      %4546 = vmatmul.f32.gmra.mxu0 %v4435
      %v4547 = vpop.f32.mrf.mxu0
      %v4548 = vadd.f32 0.0, %v4547
      %4549 = vmatmul.f32.gmra.mxu0 %v4438
      %v4550 = vpop.f32.mrf.mxu0
      %v4551 = vadd.f32 0.0, %v4550
      %4552 = vmatmul.f32.gmra.mxu0 %v4441
      %v4553 = vpop.f32.mrf.mxu0
      %v4554 = vadd.f32 0.0, %v4553
      %4555 = vmatmul.f32.gmra.mxu0 %v4444
      %v4556 = vpop.f32.mrf.mxu0
      %v4557 = vadd.f32 0.0, %v4556
      %4558 = vmatmul.f32.gmra.mxu0 %v4447
      %v4559 = vpop.f32.mrf.mxu0
      %v4560 = vadd.f32 0.0, %v4559
      %4561 = vmatmul.f32.gmra.mxu0 %v4450
      %v4562 = vpop.f32.mrf.mxu0
      %v4563 = vadd.f32 0.0, %v4562
      %4564 = vmatmul.f32.gmra.mxu0 %v4453
      %v4565 = vpop.f32.mrf.mxu0
      %v4566 = vadd.f32 0.0, %v4565
      %4567 = vmatmul.f32.gmra.mxu0 %v4456
      %v4568 = vpop.f32.mrf.mxu0
      %v4569 = vadd.f32 0.0, %v4568
      %4570 = vdwg.mxu0
      %v4571 = vadd.f32 %v4293, %v4476
      %v4572 = vadd.f32 %v4294, %v4479
      %v4573 = vadd.f32 %v4295, %v4482
      %v4574 = vadd.f32 %v4296, %v4485
      %v4575 = vadd.f32 %v4297, %v4488
      %v4576 = vadd.f32 %v4298, %v4491
      %v4577 = vadd.f32 %v4299, %v4494
      %v4578 = vadd.f32 %v4300, %v4497
      %v4579 = vadd.f32 %v4301, %v4500
      %v4580 = vadd.f32 %v4302, %v4503
      %v4581 = vadd.f32 %v4303, %v4506
      %v4582 = vadd.f32 %v4304, %v4509
      %v4583 = vadd.f32 %v4305, %v4512
      %v4584 = vadd.f32 %v4306, %v4515
      %v4585 = vadd.f32 %v4307, %v4518
      %v4586 = vadd.f32 %v4308, %v4521
      %v4587 = vadd.f32 %v4309, %v4524
      %v4588 = vadd.f32 %v4310, %v4527
      %v4589 = vadd.f32 %v4311, %v4530
      %v4590 = vadd.f32 %v4312, %v4533
      %v4591 = vadd.f32 %v4313, %v4536
      %v4592 = vadd.f32 %v4314, %v4539
      %v4593 = vadd.f32 %v4315, %v4542
      %v4594 = vadd.f32 %v4316, %v4545
      %v4595 = vadd.f32 %v4317, %v4548
      %v4596 = vadd.f32 %v4318, %v4551
      %v4597 = vadd.f32 %v4319, %v4554
      %v4598 = vadd.f32 %v4320, %v4557
      %v4599 = vadd.f32 %v4321, %v4560
      %v4600 = vadd.f32 %v4322, %v4563
      %v4601 = vadd.f32 %v4323, %v4566
      %v4602 = vadd.f32 %v4324, %v4569
      %v4603 = vld [vmem:[%s3245 + $0x2] sm:$0xff]
      %v4604 = vld [vmem:[%s3245 + $0xa] sm:$0xff]
      %v4605 = vld [vmem:[%s3245 + $0x1a] sm:$0xff]
      %v4606 = vld [vmem:[%s3245 + $0x22] sm:$0xff]
      %v4607 = vld [vmem:[%s3245 + $0x32] sm:$0xff]
      %v4608 = vld [vmem:[%s3245 + $0x3a] sm:$0xff]
      %v4609 = vld [vmem:[%s3245 + $0x4a] sm:$0xff]
      %v4610 = vld [vmem:[%s3245 + $0x52] sm:$0xff]
      %v4611 = vld [vmem:[%s3245 + $0x62] sm:$0xff]
      %v4612 = vld [vmem:[%s3245 + $0x6a] sm:$0xff]
      %v4613 = vld [vmem:[%s3245 + $0x7a] sm:$0xff]
      %v4614 = vld [vmem:[%s3245 + $0x82] sm:$0xff]
      %v4615 = vld [vmem:[%s3245 + $0x92] sm:$0xff]
      %v4616 = vld [vmem:[%s3245 + $0x9a] sm:$0xff]
      %v4617 = vld [vmem:[%s3245 + $0xaa] sm:$0xff]
      %v4618 = vld [vmem:[%s3245 + $0xb2] sm:$0xff]
      %v4619 = vld [vmem:[%s3245 + $0xc2] sm:$0xff]
      %v4620 = vld [vmem:[%s3245 + $0xca] sm:$0xff]
      %v4621 = vld [vmem:[%s3245 + $0xda] sm:$0xff]
      %v4622 = vld [vmem:[%s3245 + $0xe2] sm:$0xff]
      %v4623 = vld [vmem:[%s3245 + $0xf2] sm:$0xff]
      %v4624 = vld [vmem:[%s3245 + $0xfa] sm:$0xff]
      %v4625 = vld [vmem:[%s3245 + $0x10a] sm:$0xff]
      %v4626 = vld [vmem:[%s3245 + $0x112] sm:$0xff]
      %v4627 = vld [vmem:[%s3245 + $0x122] sm:$0xff]
      %v4628 = vld [vmem:[%s3245 + $0x12a] sm:$0xff]
      %v4629 = vld [vmem:[%s3245 + $0x13a] sm:$0xff]
      %v4630 = vld [vmem:[%s3245 + $0x142] sm:$0xff]
      %v4631 = vld [vmem:[%s3245 + $0x152] sm:$0xff]
      %v4632 = vld [vmem:[%s3245 + $0x15a] sm:$0xff]
      %v4633 = vld [vmem:[%s3245 + $0x16a] sm:$0xff]
      %v4634 = vld [vmem:[%s3245 + $0x172] sm:$0xff]
      %s4635 = scalar_lea.vmem %s5, 160
      %v4636 = vld [vmem:[%s4635] sm:$0xff]
      %v4637 = vld [vmem:[%s4635 + $0x8] sm:$0xff]
      %v4638 = vld [vmem:[%s4635 + $0x10] sm:$0xff]
      %v4639 = vld [vmem:[%s4635 + $0x18] sm:$0xff]
      %v4641 = vsel %vm333, %v4603, 0
      %v4644 = vsel %vm333, %v4604, 0
      %v4647 = vsel %vm333, %v4605, 0
      %v4650 = vsel %vm333, %v4606, 0
      %v4653 = vsel %vm333, %v4607, 0
      %v4656 = vsel %vm333, %v4608, 0
      %v4659 = vsel %vm333, %v4609, 0
      %v4662 = vsel %vm333, %v4610, 0
      %v4665 = vsel %vm333, %v4611, 0
      %v4668 = vsel %vm333, %v4612, 0
      %v4671 = vsel %vm333, %v4613, 0
      %v4674 = vsel %vm333, %v4614, 0
      %v4677 = vsel %vm333, %v4615, 0
      %v4680 = vsel %vm333, %v4616, 0
      %v4683 = vsel %vm333, %v4617, 0
      %v4686 = vsel %vm333, %v4618, 0
      %v4689 = vsel %vm333, %v4619, 0
      %v4692 = vsel %vm333, %v4620, 0
      %v4695 = vsel %vm333, %v4621, 0
      %v4698 = vsel %vm333, %v4622, 0
      %v4701 = vsel %vm333, %v4623, 0
      %v4704 = vsel %vm333, %v4624, 0
      %v4707 = vsel %vm333, %v4625, 0
      %v4710 = vsel %vm333, %v4626, 0
      %v4713 = vsel %vm333, %v4627, 0
      %v4716 = vsel %vm333, %v4628, 0
      %v4719 = vsel %vm333, %v4629, 0
      %v4722 = vsel %vm333, %v4630, 0
      %v4725 = vsel %vm333, %v4631, 0
      %v4728 = vsel %vm333, %v4632, 0
      %v4731 = vsel %vm333, %v4633, 0
      %v4734 = vsel %vm333, %v4634, 0
      %4736 = vmatpush.msra.mxu0 0.0
      %4737 = vmatpush.msra.mxu0 0.0
      %4738 = vmatpush.msra.mxu0 0.0
      %4739 = vmatpush.msra.mxu0 0.0
      %4740 = vmatpush.msra.mxu0 0.0
      %4741 = vmatpush.msra.mxu0 0.0
      %4742 = vmatpush.msra.mxu0 0.0
      %4743 = vmatpush.msra.mxu0 0.0
      %4744 = vmatpush.msra.mxu0 0.0
      %4745 = vmatpush.msra.mxu0 0.0
      %4746 = vmatpush.msra.mxu0 0.0
      %4747 = vmatpush.msra.mxu0 0.0
      %4748 = vmatpush.msra.mxu0 %v4639
      %4749 = vmatpush.msra.mxu0 %v4638
      %4750 = vmatpush.msra.mxu0 %v4637
      %4751 = vmatpush.msra.mxu0 %v4636
      %4752 = vmatmul.f32.gmra.mxu0 %v4641
      %v4753 = vpop.f32.mrf.mxu0
      %v4754 = vadd.f32 0.0, %v4753
      %4755 = vmatmul.f32.gmra.mxu0 %v4644
      %v4756 = vpop.f32.mrf.mxu0
      %v4757 = vadd.f32 0.0, %v4756
      %4758 = vmatmul.f32.gmra.mxu0 %v4647
      %v4759 = vpop.f32.mrf.mxu0
      %v4760 = vadd.f32 0.0, %v4759
      %4761 = vmatmul.f32.gmra.mxu0 %v4650
      %v4762 = vpop.f32.mrf.mxu0
      %v4763 = vadd.f32 0.0, %v4762
      %4764 = vmatmul.f32.gmra.mxu0 %v4653
      %v4765 = vpop.f32.mrf.mxu0
      %v4766 = vadd.f32 0.0, %v4765
      %4767 = vmatmul.f32.gmra.mxu0 %v4656
      %v4768 = vpop.f32.mrf.mxu0
      %v4769 = vadd.f32 0.0, %v4768
      %4770 = vmatmul.f32.gmra.mxu0 %v4659
      %v4771 = vpop.f32.mrf.mxu0
      %v4772 = vadd.f32 0.0, %v4771
      %4773 = vmatmul.f32.gmra.mxu0 %v4662
      %v4774 = vpop.f32.mrf.mxu0
      %v4775 = vadd.f32 0.0, %v4774
      %4776 = vmatmul.f32.gmra.mxu0 %v4665
      %v4777 = vpop.f32.mrf.mxu0
      %v4778 = vadd.f32 0.0, %v4777
      %4779 = vmatmul.f32.gmra.mxu0 %v4668
      %v4780 = vpop.f32.mrf.mxu0
      %v4781 = vadd.f32 0.0, %v4780
      %4782 = vmatmul.f32.gmra.mxu0 %v4671
      %v4783 = vpop.f32.mrf.mxu0
      %v4784 = vadd.f32 0.0, %v4783
      %4785 = vmatmul.f32.gmra.mxu0 %v4674
      %v4786 = vpop.f32.mrf.mxu0
      %v4787 = vadd.f32 0.0, %v4786
      %4788 = vmatmul.f32.gmra.mxu0 %v4677
      %v4789 = vpop.f32.mrf.mxu0
      %v4790 = vadd.f32 0.0, %v4789
      %4791 = vmatmul.f32.gmra.mxu0 %v4680
      %v4792 = vpop.f32.mrf.mxu0
      %v4793 = vadd.f32 0.0, %v4792
      %4794 = vmatmul.f32.gmra.mxu0 %v4683
      %v4795 = vpop.f32.mrf.mxu0
      %v4796 = vadd.f32 0.0, %v4795
      %4797 = vmatmul.f32.gmra.mxu0 %v4686
      %v4798 = vpop.f32.mrf.mxu0
      %v4799 = vadd.f32 0.0, %v4798
      %4800 = vmatmul.f32.gmra.mxu0 %v4689
      %v4801 = vpop.f32.mrf.mxu0
      %v4802 = vadd.f32 0.0, %v4801
      %4803 = vmatmul.f32.gmra.mxu0 %v4692
      %v4804 = vpop.f32.mrf.mxu0
      %v4805 = vadd.f32 0.0, %v4804
      %4806 = vmatmul.f32.gmra.mxu0 %v4695
      %v4807 = vpop.f32.mrf.mxu0
      %v4808 = vadd.f32 0.0, %v4807
      %4809 = vmatmul.f32.gmra.mxu0 %v4698
      %v4810 = vpop.f32.mrf.mxu0
      %v4811 = vadd.f32 0.0, %v4810
      %4812 = vmatmul.f32.gmra.mxu0 %v4701
      %v4813 = vpop.f32.mrf.mxu0
      %v4814 = vadd.f32 0.0, %v4813
      %4815 = vmatmul.f32.gmra.mxu0 %v4704
      %v4816 = vpop.f32.mrf.mxu0
      %v4817 = vadd.f32 0.0, %v4816
      %4818 = vmatmul.f32.gmra.mxu0 %v4707
      %v4819 = vpop.f32.mrf.mxu0
      %v4820 = vadd.f32 0.0, %v4819
      %4821 = vmatmul.f32.gmra.mxu0 %v4710
      %v4822 = vpop.f32.mrf.mxu0
      %v4823 = vadd.f32 0.0, %v4822
      %4824 = vmatmul.f32.gmra.mxu0 %v4713
      %v4825 = vpop.f32.mrf.mxu0
      %v4826 = vadd.f32 0.0, %v4825
      %4827 = vmatmul.f32.gmra.mxu0 %v4716
      %v4828 = vpop.f32.mrf.mxu0
      %v4829 = vadd.f32 0.0, %v4828
      %4830 = vmatmul.f32.gmra.mxu0 %v4719
      %v4831 = vpop.f32.mrf.mxu0
      %v4832 = vadd.f32 0.0, %v4831
      %4833 = vmatmul.f32.gmra.mxu0 %v4722
      %v4834 = vpop.f32.mrf.mxu0
      %v4835 = vadd.f32 0.0, %v4834
      %4836 = vmatmul.f32.gmra.mxu0 %v4725
      %v4837 = vpop.f32.mrf.mxu0
      %v4838 = vadd.f32 0.0, %v4837
      %4839 = vmatmul.f32.gmra.mxu0 %v4728
      %v4840 = vpop.f32.mrf.mxu0
      %v4841 = vadd.f32 0.0, %v4840
      %4842 = vmatmul.f32.gmra.mxu0 %v4731
      %v4843 = vpop.f32.mrf.mxu0
      %v4844 = vadd.f32 0.0, %v4843
      %4845 = vmatmul.f32.gmra.mxu0 %v4734
      %v4846 = vpop.f32.mrf.mxu0
      %v4847 = vadd.f32 0.0, %v4846
      %4848 = vdwg.mxu0
      %v4849 = vadd.f32 %v4571, %v4754
      %v4850 = vadd.f32 %v4572, %v4757
      %v4851 = vadd.f32 %v4573, %v4760
      %v4852 = vadd.f32 %v4574, %v4763
      %v4853 = vadd.f32 %v4575, %v4766
      %v4854 = vadd.f32 %v4576, %v4769
      %v4855 = vadd.f32 %v4577, %v4772
      %v4856 = vadd.f32 %v4578, %v4775
      %v4857 = vadd.f32 %v4579, %v4778
      %v4858 = vadd.f32 %v4580, %v4781
      %v4859 = vadd.f32 %v4581, %v4784
      %v4860 = vadd.f32 %v4582, %v4787
      %v4861 = vadd.f32 %v4583, %v4790
      %v4862 = vadd.f32 %v4584, %v4793
      %v4863 = vadd.f32 %v4585, %v4796
      %v4864 = vadd.f32 %v4586, %v4799
      %v4865 = vadd.f32 %v4587, %v4802
      %v4866 = vadd.f32 %v4588, %v4805
      %v4867 = vadd.f32 %v4589, %v4808
      %v4868 = vadd.f32 %v4590, %v4811
      %v4869 = vadd.f32 %v4591, %v4814
      %v4870 = vadd.f32 %v4592, %v4817
      %v4871 = vadd.f32 %v4593, %v4820
      %v4872 = vadd.f32 %v4594, %v4823
      %v4873 = vadd.f32 %v4595, %v4826
      %v4874 = vadd.f32 %v4596, %v4829
      %v4875 = vadd.f32 %v4597, %v4832
      %v4876 = vadd.f32 %v4598, %v4835
      %v4877 = vadd.f32 %v4599, %v4838
      %v4878 = vadd.f32 %v4600, %v4841
      %v4879 = vadd.f32 %v4601, %v4844
      %v4880 = vadd.f32 %v4602, %v4847
      %s4881 = scalar_lea.vmem [#allocation3], 48
      %v4882 = vld [vmem:[%s4881] sm:$0xff]
      %v4883 = vld [vmem:[%s4881 + $0x8] sm:$0xff]
      %v4884 = vld [vmem:[%s4881 + $0x18] sm:$0xff]
      %v4885 = vld [vmem:[%s4881 + $0x20] sm:$0xff]
      %v4886 = vld [vmem:[%s4881 + $0x30] sm:$0xff]
      %v4887 = vld [vmem:[%s4881 + $0x38] sm:$0xff]
      %v4888 = vld [vmem:[%s4881 + $0x48] sm:$0xff]
      %v4889 = vld [vmem:[%s4881 + $0x50] sm:$0xff]
      %v4890 = vld [vmem:[%s4881 + $0x60] sm:$0xff]
      %v4891 = vld [vmem:[%s4881 + $0x68] sm:$0xff]
      %v4892 = vld [vmem:[%s4881 + $0x78] sm:$0xff]
      %v4893 = vld [vmem:[%s4881 + $0x80] sm:$0xff]
      %v4894 = vld [vmem:[%s4881 + $0x90] sm:$0xff]
      %v4895 = vld [vmem:[%s4881 + $0x98] sm:$0xff]
      %v4896 = vld [vmem:[%s4881 + $0xa8] sm:$0xff]
      %v4897 = vld [vmem:[%s4881 + $0xb0] sm:$0xff]
      %v4898 = vld [vmem:[%s4881 + $0xc0] sm:$0xff]
      %v4899 = vld [vmem:[%s4881 + $0xc8] sm:$0xff]
      %v4900 = vld [vmem:[%s4881 + $0xd8] sm:$0xff]
      %v4901 = vld [vmem:[%s4881 + $0xe0] sm:$0xff]
      %v4902 = vld [vmem:[%s4881 + $0xf0] sm:$0xff]
      %v4903 = vld [vmem:[%s4881 + $0xf8] sm:$0xff]
      %v4904 = vld [vmem:[%s4881 + $0x108] sm:$0xff]
      %v4905 = vld [vmem:[%s4881 + $0x110] sm:$0xff]
      %v4906 = vld [vmem:[%s4881 + $0x120] sm:$0xff]
      %v4907 = vld [vmem:[%s4881 + $0x128] sm:$0xff]
      %v4908 = vld [vmem:[%s4881 + $0x138] sm:$0xff]
      %v4909 = vld [vmem:[%s4881 + $0x140] sm:$0xff]
      %v4910 = vld [vmem:[%s4881 + $0x150] sm:$0xff]
      %v4911 = vld [vmem:[%s4881 + $0x158] sm:$0xff]
      %v4912 = vld [vmem:[%s4881 + $0x168] sm:$0xff]
      %v4913 = vld [vmem:[%s4881 + $0x170] sm:$0xff]
      %s4914 = scalar_lea.vmem %s5, 192
      %v4915 = vld [vmem:[%s4914] sm:$0xff]
      %v4916 = vld [vmem:[%s4914 + $0x8] sm:$0xff]
      %v4917 = vld [vmem:[%s4914 + $0x10] sm:$0xff]
      %v4918 = vld [vmem:[%s4914 + $0x18] sm:$0xff]
      %v4920 = vsel %vm333, %v4882, 0
      %v4923 = vsel %vm333, %v4883, 0
      %v4926 = vsel %vm333, %v4884, 0
      %v4929 = vsel %vm333, %v4885, 0
      %v4932 = vsel %vm333, %v4886, 0
      %v4935 = vsel %vm333, %v4887, 0
      %v4938 = vsel %vm333, %v4888, 0
      %v4941 = vsel %vm333, %v4889, 0
      %v4944 = vsel %vm333, %v4890, 0
      %v4947 = vsel %vm333, %v4891, 0
      %v4950 = vsel %vm333, %v4892, 0
      %v4953 = vsel %vm333, %v4893, 0
      %v4956 = vsel %vm333, %v4894, 0
      %v4959 = vsel %vm333, %v4895, 0
      %v4962 = vsel %vm333, %v4896, 0
      %v4965 = vsel %vm333, %v4897, 0
      %v4968 = vsel %vm333, %v4898, 0
      %v4971 = vsel %vm333, %v4899, 0
      %v4974 = vsel %vm333, %v4900, 0
      %v4977 = vsel %vm333, %v4901, 0
      %v4980 = vsel %vm333, %v4902, 0
      %v4983 = vsel %vm333, %v4903, 0
      %v4986 = vsel %vm333, %v4904, 0
      %v4989 = vsel %vm333, %v4905, 0
      %v4992 = vsel %vm333, %v4906, 0
      %v4995 = vsel %vm333, %v4907, 0
      %v4998 = vsel %vm333, %v4908, 0
      %v5001 = vsel %vm333, %v4909, 0
      %v5004 = vsel %vm333, %v4910, 0
      %v5007 = vsel %vm333, %v4911, 0
      %v5010 = vsel %vm333, %v4912, 0
      %v5013 = vsel %vm333, %v4913, 0
      %5015 = vmatpush.msra.mxu0 0.0
      %5016 = vmatpush.msra.mxu0 0.0
      %5017 = vmatpush.msra.mxu0 0.0
      %5018 = vmatpush.msra.mxu0 0.0
      %5019 = vmatpush.msra.mxu0 0.0
      %5020 = vmatpush.msra.mxu0 0.0
      %5021 = vmatpush.msra.mxu0 0.0
      %5022 = vmatpush.msra.mxu0 0.0
      %5023 = vmatpush.msra.mxu0 0.0
      %5024 = vmatpush.msra.mxu0 0.0
      %5025 = vmatpush.msra.mxu0 0.0
      %5026 = vmatpush.msra.mxu0 0.0
      %5027 = vmatpush.msra.mxu0 %v4918
      %5028 = vmatpush.msra.mxu0 %v4917
      %5029 = vmatpush.msra.mxu0 %v4916
      %5030 = vmatpush.msra.mxu0 %v4915
      %5031 = vmatmul.f32.gmra.mxu0 %v4920
      %v5032 = vpop.f32.mrf.mxu0
      %v5033 = vadd.f32 0.0, %v5032
      %5034 = vmatmul.f32.gmra.mxu0 %v4923
      %v5035 = vpop.f32.mrf.mxu0
      %v5036 = vadd.f32 0.0, %v5035
      %5037 = vmatmul.f32.gmra.mxu0 %v4926
      %v5038 = vpop.f32.mrf.mxu0
      %v5039 = vadd.f32 0.0, %v5038
      %5040 = vmatmul.f32.gmra.mxu0 %v4929
      %v5041 = vpop.f32.mrf.mxu0
      %v5042 = vadd.f32 0.0, %v5041
      %5043 = vmatmul.f32.gmra.mxu0 %v4932
      %v5044 = vpop.f32.mrf.mxu0
      %v5045 = vadd.f32 0.0, %v5044
      %5046 = vmatmul.f32.gmra.mxu0 %v4935
      %v5047 = vpop.f32.mrf.mxu0
      %v5048 = vadd.f32 0.0, %v5047
      %5049 = vmatmul.f32.gmra.mxu0 %v4938
      %v5050 = vpop.f32.mrf.mxu0
      %v5051 = vadd.f32 0.0, %v5050
      %5052 = vmatmul.f32.gmra.mxu0 %v4941
      %v5053 = vpop.f32.mrf.mxu0
      %v5054 = vadd.f32 0.0, %v5053
      %5055 = vmatmul.f32.gmra.mxu0 %v4944
      %v5056 = vpop.f32.mrf.mxu0
      %v5057 = vadd.f32 0.0, %v5056
      %5058 = vmatmul.f32.gmra.mxu0 %v4947
      %v5059 = vpop.f32.mrf.mxu0
      %v5060 = vadd.f32 0.0, %v5059
      %5061 = vmatmul.f32.gmra.mxu0 %v4950
      %v5062 = vpop.f32.mrf.mxu0
      %v5063 = vadd.f32 0.0, %v5062
      %5064 = vmatmul.f32.gmra.mxu0 %v4953
      %v5065 = vpop.f32.mrf.mxu0
      %v5066 = vadd.f32 0.0, %v5065
      %5067 = vmatmul.f32.gmra.mxu0 %v4956
      %v5068 = vpop.f32.mrf.mxu0
      %v5069 = vadd.f32 0.0, %v5068
      %5070 = vmatmul.f32.gmra.mxu0 %v4959
      %v5071 = vpop.f32.mrf.mxu0
      %v5072 = vadd.f32 0.0, %v5071
      %5073 = vmatmul.f32.gmra.mxu0 %v4962
      %v5074 = vpop.f32.mrf.mxu0
      %v5075 = vadd.f32 0.0, %v5074
      %5076 = vmatmul.f32.gmra.mxu0 %v4965
      %v5077 = vpop.f32.mrf.mxu0
      %v5078 = vadd.f32 0.0, %v5077
      %5079 = vmatmul.f32.gmra.mxu0 %v4968
      %v5080 = vpop.f32.mrf.mxu0
      %v5081 = vadd.f32 0.0, %v5080
      %5082 = vmatmul.f32.gmra.mxu0 %v4971
      %v5083 = vpop.f32.mrf.mxu0
      %v5084 = vadd.f32 0.0, %v5083
      %5085 = vmatmul.f32.gmra.mxu0 %v4974
      %v5086 = vpop.f32.mrf.mxu0
      %v5087 = vadd.f32 0.0, %v5086
      %5088 = vmatmul.f32.gmra.mxu0 %v4977
      %v5089 = vpop.f32.mrf.mxu0
      %v5090 = vadd.f32 0.0, %v5089
      %5091 = vmatmul.f32.gmra.mxu0 %v4980
      %v5092 = vpop.f32.mrf.mxu0
      %v5093 = vadd.f32 0.0, %v5092
      %5094 = vmatmul.f32.gmra.mxu0 %v4983
      %v5095 = vpop.f32.mrf.mxu0
      %v5096 = vadd.f32 0.0, %v5095
      %5097 = vmatmul.f32.gmra.mxu0 %v4986
      %v5098 = vpop.f32.mrf.mxu0
      %v5099 = vadd.f32 0.0, %v5098
      %5100 = vmatmul.f32.gmra.mxu0 %v4989
      %v5101 = vpop.f32.mrf.mxu0
      %v5102 = vadd.f32 0.0, %v5101
      %5103 = vmatmul.f32.gmra.mxu0 %v4992
      %v5104 = vpop.f32.mrf.mxu0
      %v5105 = vadd.f32 0.0, %v5104
      %5106 = vmatmul.f32.gmra.mxu0 %v4995
      %v5107 = vpop.f32.mrf.mxu0
      %v5108 = vadd.f32 0.0, %v5107
      %5109 = vmatmul.f32.gmra.mxu0 %v4998
      %v5110 = vpop.f32.mrf.mxu0
      %v5111 = vadd.f32 0.0, %v5110
      %5112 = vmatmul.f32.gmra.mxu0 %v5001
      %v5113 = vpop.f32.mrf.mxu0
      %v5114 = vadd.f32 0.0, %v5113
      %5115 = vmatmul.f32.gmra.mxu0 %v5004
      %v5116 = vpop.f32.mrf.mxu0
      %v5117 = vadd.f32 0.0, %v5116
      %5118 = vmatmul.f32.gmra.mxu0 %v5007
      %v5119 = vpop.f32.mrf.mxu0
      %v5120 = vadd.f32 0.0, %v5119
      %5121 = vmatmul.f32.gmra.mxu0 %v5010
      %v5122 = vpop.f32.mrf.mxu0
      %v5123 = vadd.f32 0.0, %v5122
      %5124 = vmatmul.f32.gmra.mxu0 %v5013
      %v5125 = vpop.f32.mrf.mxu0
      %v5126 = vadd.f32 0.0, %v5125
      %5127 = vdwg.mxu0
      %v5128 = vadd.f32 %v4849, %v5033
      %v5129 = vadd.f32 %v4850, %v5036
      %v5130 = vadd.f32 %v4851, %v5039
      %v5131 = vadd.f32 %v4852, %v5042
      %v5132 = vadd.f32 %v4853, %v5045
      %v5133 = vadd.f32 %v4854, %v5048
      %v5134 = vadd.f32 %v4855, %v5051
      %v5135 = vadd.f32 %v4856, %v5054
      %v5136 = vadd.f32 %v4857, %v5057
      %v5137 = vadd.f32 %v4858, %v5060
      %v5138 = vadd.f32 %v4859, %v5063
      %v5139 = vadd.f32 %v4860, %v5066
      %v5140 = vadd.f32 %v4861, %v5069
      %v5141 = vadd.f32 %v4862, %v5072
      %v5142 = vadd.f32 %v4863, %v5075
      %v5143 = vadd.f32 %v4864, %v5078
      %v5144 = vadd.f32 %v4865, %v5081
      %v5145 = vadd.f32 %v4866, %v5084
      %v5146 = vadd.f32 %v4867, %v5087
      %v5147 = vadd.f32 %v4868, %v5090
      %v5148 = vadd.f32 %v4869, %v5093
      %v5149 = vadd.f32 %v4870, %v5096
      %v5150 = vadd.f32 %v4871, %v5099
      %v5151 = vadd.f32 %v4872, %v5102
      %v5152 = vadd.f32 %v4873, %v5105
      %v5153 = vadd.f32 %v4874, %v5108
      %v5154 = vadd.f32 %v4875, %v5111
      %v5155 = vadd.f32 %v4876, %v5114
      %v5156 = vadd.f32 %v4877, %v5117
      %v5157 = vadd.f32 %v4878, %v5120
      %v5158 = vadd.f32 %v4879, %v5123
      %v5159 = vadd.f32 %v4880, %v5126
      %v5160 = vld [vmem:[%s4881 + $0x1] sm:$0xff]
      %v5161 = vld [vmem:[%s4881 + $0x9] sm:$0xff]
      %v5162 = vld [vmem:[%s4881 + $0x19] sm:$0xff]
      %v5163 = vld [vmem:[%s4881 + $0x21] sm:$0xff]
      %v5164 = vld [vmem:[%s4881 + $0x31] sm:$0xff]
      %v5165 = vld [vmem:[%s4881 + $0x39] sm:$0xff]
      %v5166 = vld [vmem:[%s4881 + $0x49] sm:$0xff]
      %v5167 = vld [vmem:[%s4881 + $0x51] sm:$0xff]
      %v5168 = vld [vmem:[%s4881 + $0x61] sm:$0xff]
      %v5169 = vld [vmem:[%s4881 + $0x69] sm:$0xff]
      %v5170 = vld [vmem:[%s4881 + $0x79] sm:$0xff]
      %v5171 = vld [vmem:[%s4881 + $0x81] sm:$0xff]
      %v5172 = vld [vmem:[%s4881 + $0x91] sm:$0xff]
      %v5173 = vld [vmem:[%s4881 + $0x99] sm:$0xff]
      %v5174 = vld [vmem:[%s4881 + $0xa9] sm:$0xff]
      %v5175 = vld [vmem:[%s4881 + $0xb1] sm:$0xff]
      %v5176 = vld [vmem:[%s4881 + $0xc1] sm:$0xff]
      %v5177 = vld [vmem:[%s4881 + $0xc9] sm:$0xff]
      %v5178 = vld [vmem:[%s4881 + $0xd9] sm:$0xff]
      %v5179 = vld [vmem:[%s4881 + $0xe1] sm:$0xff]
      %v5180 = vld [vmem:[%s4881 + $0xf1] sm:$0xff]
      %v5181 = vld [vmem:[%s4881 + $0xf9] sm:$0xff]
      %v5182 = vld [vmem:[%s4881 + $0x109] sm:$0xff]
      %v5183 = vld [vmem:[%s4881 + $0x111] sm:$0xff]
      %v5184 = vld [vmem:[%s4881 + $0x121] sm:$0xff]
      %v5185 = vld [vmem:[%s4881 + $0x129] sm:$0xff]
      %v5186 = vld [vmem:[%s4881 + $0x139] sm:$0xff]
      %v5187 = vld [vmem:[%s4881 + $0x141] sm:$0xff]
      %v5188 = vld [vmem:[%s4881 + $0x151] sm:$0xff]
      %v5189 = vld [vmem:[%s4881 + $0x159] sm:$0xff]
      %v5190 = vld [vmem:[%s4881 + $0x169] sm:$0xff]
      %v5191 = vld [vmem:[%s4881 + $0x171] sm:$0xff]
      %s5192 = scalar_lea.vmem %s5, 224
      %v5193 = vld [vmem:[%s5192] sm:$0xff]
      %v5194 = vld [vmem:[%s5192 + $0x8] sm:$0xff]
      %v5195 = vld [vmem:[%s5192 + $0x10] sm:$0xff]
      %v5196 = vld [vmem:[%s5192 + $0x18] sm:$0xff]
      %v5198 = vsel %vm333, %v5160, 0
      %v5201 = vsel %vm333, %v5161, 0
      %v5204 = vsel %vm333, %v5162, 0
      %v5207 = vsel %vm333, %v5163, 0
      %v5210 = vsel %vm333, %v5164, 0
      %v5213 = vsel %vm333, %v5165, 0
      %v5216 = vsel %vm333, %v5166, 0
      %v5219 = vsel %vm333, %v5167, 0
      %v5222 = vsel %vm333, %v5168, 0
      %v5225 = vsel %vm333, %v5169, 0
      %v5228 = vsel %vm333, %v5170, 0
      %v5231 = vsel %vm333, %v5171, 0
      %v5234 = vsel %vm333, %v5172, 0
      %v5237 = vsel %vm333, %v5173, 0
      %v5240 = vsel %vm333, %v5174, 0
      %v5243 = vsel %vm333, %v5175, 0
      %v5246 = vsel %vm333, %v5176, 0
      %v5249 = vsel %vm333, %v5177, 0
      %v5252 = vsel %vm333, %v5178, 0
      %v5255 = vsel %vm333, %v5179, 0
      %v5258 = vsel %vm333, %v5180, 0
      %v5261 = vsel %vm333, %v5181, 0
      %v5264 = vsel %vm333, %v5182, 0
      %v5267 = vsel %vm333, %v5183, 0
      %v5270 = vsel %vm333, %v5184, 0
      %v5273 = vsel %vm333, %v5185, 0
      %v5276 = vsel %vm333, %v5186, 0
      %v5279 = vsel %vm333, %v5187, 0
      %v5282 = vsel %vm333, %v5188, 0
      %v5285 = vsel %vm333, %v5189, 0
      %v5288 = vsel %vm333, %v5190, 0
      %v5291 = vsel %vm333, %v5191, 0
      %5293 = vmatpush.msra.mxu0 0.0
      %5294 = vmatpush.msra.mxu0 0.0
      %5295 = vmatpush.msra.mxu0 0.0
      %5296 = vmatpush.msra.mxu0 0.0
      %5297 = vmatpush.msra.mxu0 0.0
      %5298 = vmatpush.msra.mxu0 0.0
      %5299 = vmatpush.msra.mxu0 0.0
      %5300 = vmatpush.msra.mxu0 0.0
      %5301 = vmatpush.msra.mxu0 0.0
      %5302 = vmatpush.msra.mxu0 0.0
      %5303 = vmatpush.msra.mxu0 0.0
      %5304 = vmatpush.msra.mxu0 0.0
      %5305 = vmatpush.msra.mxu0 %v5196
      %5306 = vmatpush.msra.mxu0 %v5195
      %5307 = vmatpush.msra.mxu0 %v5194
      %5308 = vmatpush.msra.mxu0 %v5193
      %5309 = vmatmul.f32.gmra.mxu0 %v5198
      %v5310 = vpop.f32.mrf.mxu0
      %v5311 = vadd.f32 0.0, %v5310
      %5312 = vmatmul.f32.gmra.mxu0 %v5201
      %v5313 = vpop.f32.mrf.mxu0
      %v5314 = vadd.f32 0.0, %v5313
      %5315 = vmatmul.f32.gmra.mxu0 %v5204
      %v5316 = vpop.f32.mrf.mxu0
      %v5317 = vadd.f32 0.0, %v5316
      %5318 = vmatmul.f32.gmra.mxu0 %v5207
      %v5319 = vpop.f32.mrf.mxu0
      %v5320 = vadd.f32 0.0, %v5319
      %5321 = vmatmul.f32.gmra.mxu0 %v5210
      %v5322 = vpop.f32.mrf.mxu0
      %v5323 = vadd.f32 0.0, %v5322
      %5324 = vmatmul.f32.gmra.mxu0 %v5213
      %v5325 = vpop.f32.mrf.mxu0
      %v5326 = vadd.f32 0.0, %v5325
      %5327 = vmatmul.f32.gmra.mxu0 %v5216
      %v5328 = vpop.f32.mrf.mxu0
      %v5329 = vadd.f32 0.0, %v5328
      %5330 = vmatmul.f32.gmra.mxu0 %v5219
      %v5331 = vpop.f32.mrf.mxu0
      %v5332 = vadd.f32 0.0, %v5331
      %5333 = vmatmul.f32.gmra.mxu0 %v5222
      %v5334 = vpop.f32.mrf.mxu0
      %v5335 = vadd.f32 0.0, %v5334
      %5336 = vmatmul.f32.gmra.mxu0 %v5225
      %v5337 = vpop.f32.mrf.mxu0
      %v5338 = vadd.f32 0.0, %v5337
      %5339 = vmatmul.f32.gmra.mxu0 %v5228
      %v5340 = vpop.f32.mrf.mxu0
      %v5341 = vadd.f32 0.0, %v5340
      %5342 = vmatmul.f32.gmra.mxu0 %v5231
      %v5343 = vpop.f32.mrf.mxu0
      %v5344 = vadd.f32 0.0, %v5343
      %5345 = vmatmul.f32.gmra.mxu0 %v5234
      %v5346 = vpop.f32.mrf.mxu0
      %v5347 = vadd.f32 0.0, %v5346
      %5348 = vmatmul.f32.gmra.mxu0 %v5237
      %v5349 = vpop.f32.mrf.mxu0
      %v5350 = vadd.f32 0.0, %v5349
      %5351 = vmatmul.f32.gmra.mxu0 %v5240
      %v5352 = vpop.f32.mrf.mxu0
      %v5353 = vadd.f32 0.0, %v5352
      %5354 = vmatmul.f32.gmra.mxu0 %v5243
      %v5355 = vpop.f32.mrf.mxu0
      %v5356 = vadd.f32 0.0, %v5355
      %5357 = vmatmul.f32.gmra.mxu0 %v5246
      %v5358 = vpop.f32.mrf.mxu0
      %v5359 = vadd.f32 0.0, %v5358
      %5360 = vmatmul.f32.gmra.mxu0 %v5249
      %v5361 = vpop.f32.mrf.mxu0
      %v5362 = vadd.f32 0.0, %v5361
      %5363 = vmatmul.f32.gmra.mxu0 %v5252
      %v5364 = vpop.f32.mrf.mxu0
      %v5365 = vadd.f32 0.0, %v5364
      %5366 = vmatmul.f32.gmra.mxu0 %v5255
      %v5367 = vpop.f32.mrf.mxu0
      %v5368 = vadd.f32 0.0, %v5367
      %5369 = vmatmul.f32.gmra.mxu0 %v5258
      %v5370 = vpop.f32.mrf.mxu0
      %v5371 = vadd.f32 0.0, %v5370
      %5372 = vmatmul.f32.gmra.mxu0 %v5261
      %v5373 = vpop.f32.mrf.mxu0
      %v5374 = vadd.f32 0.0, %v5373
      %5375 = vmatmul.f32.gmra.mxu0 %v5264
      %v5376 = vpop.f32.mrf.mxu0
      %v5377 = vadd.f32 0.0, %v5376
      %5378 = vmatmul.f32.gmra.mxu0 %v5267
      %v5379 = vpop.f32.mrf.mxu0
      %v5380 = vadd.f32 0.0, %v5379
      %5381 = vmatmul.f32.gmra.mxu0 %v5270
      %v5382 = vpop.f32.mrf.mxu0
      %v5383 = vadd.f32 0.0, %v5382
      %5384 = vmatmul.f32.gmra.mxu0 %v5273
      %v5385 = vpop.f32.mrf.mxu0
      %v5386 = vadd.f32 0.0, %v5385
      %5387 = vmatmul.f32.gmra.mxu0 %v5276
      %v5388 = vpop.f32.mrf.mxu0
      %v5389 = vadd.f32 0.0, %v5388
      %5390 = vmatmul.f32.gmra.mxu0 %v5279
      %v5391 = vpop.f32.mrf.mxu0
      %v5392 = vadd.f32 0.0, %v5391
      %5393 = vmatmul.f32.gmra.mxu0 %v5282
      %v5394 = vpop.f32.mrf.mxu0
      %v5395 = vadd.f32 0.0, %v5394
      %5396 = vmatmul.f32.gmra.mxu0 %v5285
      %v5397 = vpop.f32.mrf.mxu0
      %v5398 = vadd.f32 0.0, %v5397
      %5399 = vmatmul.f32.gmra.mxu0 %v5288
      %v5400 = vpop.f32.mrf.mxu0
      %v5401 = vadd.f32 0.0, %v5400
      %5402 = vmatmul.f32.gmra.mxu0 %v5291
      %v5403 = vpop.f32.mrf.mxu0
      %v5404 = vadd.f32 0.0, %v5403
      %5405 = vdwg.mxu0
      %v5406 = vadd.f32 %v5128, %v5311
      %v5407 = vadd.f32 %v5129, %v5314
      %v5408 = vadd.f32 %v5130, %v5317
      %v5409 = vadd.f32 %v5131, %v5320
      %v5410 = vadd.f32 %v5132, %v5323
      %v5411 = vadd.f32 %v5133, %v5326
      %v5412 = vadd.f32 %v5134, %v5329
      %v5413 = vadd.f32 %v5135, %v5332
      %v5414 = vadd.f32 %v5136, %v5335
      %v5415 = vadd.f32 %v5137, %v5338
      %v5416 = vadd.f32 %v5138, %v5341
      %v5417 = vadd.f32 %v5139, %v5344
      %v5418 = vadd.f32 %v5140, %v5347
      %v5419 = vadd.f32 %v5141, %v5350
      %v5420 = vadd.f32 %v5142, %v5353
      %v5421 = vadd.f32 %v5143, %v5356
      %v5422 = vadd.f32 %v5144, %v5359
      %v5423 = vadd.f32 %v5145, %v5362
      %v5424 = vadd.f32 %v5146, %v5365
      %v5425 = vadd.f32 %v5147, %v5368
      %v5426 = vadd.f32 %v5148, %v5371
      %v5427 = vadd.f32 %v5149, %v5374
      %v5428 = vadd.f32 %v5150, %v5377
      %v5429 = vadd.f32 %v5151, %v5380
      %v5430 = vadd.f32 %v5152, %v5383
      %v5431 = vadd.f32 %v5153, %v5386
      %v5432 = vadd.f32 %v5154, %v5389
      %v5433 = vadd.f32 %v5155, %v5392
      %v5434 = vadd.f32 %v5156, %v5395
      %v5435 = vadd.f32 %v5157, %v5398
      %v5436 = vadd.f32 %v5158, %v5401
      %v5437 = vadd.f32 %v5159, %v5404
      %v5438 = vld [vmem:[%s4881 + $0x2] sm:$0xff]
      %v5439 = vld [vmem:[%s4881 + $0xa] sm:$0xff]
      %v5440 = vld [vmem:[%s4881 + $0x1a] sm:$0xff]
      %v5441 = vld [vmem:[%s4881 + $0x22] sm:$0xff]
      %v5442 = vld [vmem:[%s4881 + $0x32] sm:$0xff]
      %v5443 = vld [vmem:[%s4881 + $0x3a] sm:$0xff]
      %v5444 = vld [vmem:[%s4881 + $0x4a] sm:$0xff]
      %v5445 = vld [vmem:[%s4881 + $0x52] sm:$0xff]
      %v5446 = vld [vmem:[%s4881 + $0x62] sm:$0xff]
      %v5447 = vld [vmem:[%s4881 + $0x6a] sm:$0xff]
      %v5448 = vld [vmem:[%s4881 + $0x7a] sm:$0xff]
      %v5449 = vld [vmem:[%s4881 + $0x82] sm:$0xff]
      %v5450 = vld [vmem:[%s4881 + $0x92] sm:$0xff]
      %v5451 = vld [vmem:[%s4881 + $0x9a] sm:$0xff]
      %v5452 = vld [vmem:[%s4881 + $0xaa] sm:$0xff]
      %v5453 = vld [vmem:[%s4881 + $0xb2] sm:$0xff]
      %v5454 = vld [vmem:[%s4881 + $0xc2] sm:$0xff]
      %v5455 = vld [vmem:[%s4881 + $0xca] sm:$0xff]
      %v5456 = vld [vmem:[%s4881 + $0xda] sm:$0xff]
      %v5457 = vld [vmem:[%s4881 + $0xe2] sm:$0xff]
      %v5458 = vld [vmem:[%s4881 + $0xf2] sm:$0xff]
      %v5459 = vld [vmem:[%s4881 + $0xfa] sm:$0xff]
      %v5460 = vld [vmem:[%s4881 + $0x10a] sm:$0xff]
      %v5461 = vld [vmem:[%s4881 + $0x112] sm:$0xff]
      %v5462 = vld [vmem:[%s4881 + $0x122] sm:$0xff]
      %v5463 = vld [vmem:[%s4881 + $0x12a] sm:$0xff]
      %v5464 = vld [vmem:[%s4881 + $0x13a] sm:$0xff]
      %v5465 = vld [vmem:[%s4881 + $0x142] sm:$0xff]
      %v5466 = vld [vmem:[%s4881 + $0x152] sm:$0xff]
      %v5467 = vld [vmem:[%s4881 + $0x15a] sm:$0xff]
      %v5468 = vld [vmem:[%s4881 + $0x16a] sm:$0xff]
      %v5469 = vld [vmem:[%s4881 + $0x172] sm:$0xff]
      %s5470 = scalar_lea.vmem %s5, 256
      %v5471 = vld [vmem:[%s5470] sm:$0xff]
      %v5472 = vld [vmem:[%s5470 + $0x8] sm:$0xff]
      %v5473 = vld [vmem:[%s5470 + $0x10] sm:$0xff]
      %v5474 = vld [vmem:[%s5470 + $0x18] sm:$0xff]
      %v5476 = vsel %vm333, %v5438, 0
      %v5479 = vsel %vm333, %v5439, 0
      %v5482 = vsel %vm333, %v5440, 0
      %v5485 = vsel %vm333, %v5441, 0
      %v5488 = vsel %vm333, %v5442, 0
      %v5491 = vsel %vm333, %v5443, 0
      %v5494 = vsel %vm333, %v5444, 0
      %v5497 = vsel %vm333, %v5445, 0
      %v5500 = vsel %vm333, %v5446, 0
      %v5503 = vsel %vm333, %v5447, 0
      %v5506 = vsel %vm333, %v5448, 0
      %v5509 = vsel %vm333, %v5449, 0
      %v5512 = vsel %vm333, %v5450, 0
      %v5515 = vsel %vm333, %v5451, 0
      %v5518 = vsel %vm333, %v5452, 0
      %v5521 = vsel %vm333, %v5453, 0
      %v5524 = vsel %vm333, %v5454, 0
      %v5527 = vsel %vm333, %v5455, 0
      %v5530 = vsel %vm333, %v5456, 0
      %v5533 = vsel %vm333, %v5457, 0
      %v5536 = vsel %vm333, %v5458, 0
      %v5539 = vsel %vm333, %v5459, 0
      %v5542 = vsel %vm333, %v5460, 0
      %v5545 = vsel %vm333, %v5461, 0
      %v5548 = vsel %vm333, %v5462, 0
      %v5551 = vsel %vm333, %v5463, 0
      %v5554 = vsel %vm333, %v5464, 0
      %v5557 = vsel %vm333, %v5465, 0
      %v5560 = vsel %vm333, %v5466, 0
      %v5563 = vsel %vm333, %v5467, 0
      %v5566 = vsel %vm333, %v5468, 0
      %v5569 = vsel %vm333, %v5469, 0
      %5571 = vmatpush.msra.mxu0 0.0
      %5572 = vmatpush.msra.mxu0 0.0
      %5573 = vmatpush.msra.mxu0 0.0
      %5574 = vmatpush.msra.mxu0 0.0
      %5575 = vmatpush.msra.mxu0 0.0
      %5576 = vmatpush.msra.mxu0 0.0
      %5577 = vmatpush.msra.mxu0 0.0
      %5578 = vmatpush.msra.mxu0 0.0
      %5579 = vmatpush.msra.mxu0 0.0
      %5580 = vmatpush.msra.mxu0 0.0
      %5581 = vmatpush.msra.mxu0 0.0
      %5582 = vmatpush.msra.mxu0 0.0
      %5583 = vmatpush.msra.mxu0 %v5474
      %5584 = vmatpush.msra.mxu0 %v5473
      %5585 = vmatpush.msra.mxu0 %v5472
      %5586 = vmatpush.msra.mxu0 %v5471
      %5587 = vmatmul.f32.gmra.mxu0 %v5476
      %v5588 = vpop.f32.mrf.mxu0
      %v5589 = vadd.f32 0.0, %v5588
      %5590 = vmatmul.f32.gmra.mxu0 %v5479
      %v5591 = vpop.f32.mrf.mxu0
      %v5592 = vadd.f32 0.0, %v5591
      %5593 = vmatmul.f32.gmra.mxu0 %v5482
      %v5594 = vpop.f32.mrf.mxu0
      %v5595 = vadd.f32 0.0, %v5594
      %5596 = vmatmul.f32.gmra.mxu0 %v5485
      %v5597 = vpop.f32.mrf.mxu0
      %v5598 = vadd.f32 0.0, %v5597
      %5599 = vmatmul.f32.gmra.mxu0 %v5488
      %v5600 = vpop.f32.mrf.mxu0
      %v5601 = vadd.f32 0.0, %v5600
      %5602 = vmatmul.f32.gmra.mxu0 %v5491
      %v5603 = vpop.f32.mrf.mxu0
      %v5604 = vadd.f32 0.0, %v5603
      %5605 = vmatmul.f32.gmra.mxu0 %v5494
      %v5606 = vpop.f32.mrf.mxu0
      %v5607 = vadd.f32 0.0, %v5606
      %5608 = vmatmul.f32.gmra.mxu0 %v5497
      %v5609 = vpop.f32.mrf.mxu0
      %v5610 = vadd.f32 0.0, %v5609
      %5611 = vmatmul.f32.gmra.mxu0 %v5500
      %v5612 = vpop.f32.mrf.mxu0
      %v5613 = vadd.f32 0.0, %v5612
      %5614 = vmatmul.f32.gmra.mxu0 %v5503
      %v5615 = vpop.f32.mrf.mxu0
      %v5616 = vadd.f32 0.0, %v5615
      %5617 = vmatmul.f32.gmra.mxu0 %v5506
      %v5618 = vpop.f32.mrf.mxu0
      %v5619 = vadd.f32 0.0, %v5618
      %5620 = vmatmul.f32.gmra.mxu0 %v5509
      %v5621 = vpop.f32.mrf.mxu0
      %v5622 = vadd.f32 0.0, %v5621
      %5623 = vmatmul.f32.gmra.mxu0 %v5512
      %v5624 = vpop.f32.mrf.mxu0
      %v5625 = vadd.f32 0.0, %v5624
      %5626 = vmatmul.f32.gmra.mxu0 %v5515
      %v5627 = vpop.f32.mrf.mxu0
      %v5628 = vadd.f32 0.0, %v5627
      %5629 = vmatmul.f32.gmra.mxu0 %v5518
      %v5630 = vpop.f32.mrf.mxu0
      %v5631 = vadd.f32 0.0, %v5630
      %5632 = vmatmul.f32.gmra.mxu0 %v5521
      %v5633 = vpop.f32.mrf.mxu0
      %v5634 = vadd.f32 0.0, %v5633
      %5635 = vmatmul.f32.gmra.mxu0 %v5524
      %v5636 = vpop.f32.mrf.mxu0
      %v5637 = vadd.f32 0.0, %v5636
      %5638 = vmatmul.f32.gmra.mxu0 %v5527
      %v5639 = vpop.f32.mrf.mxu0
      %v5640 = vadd.f32 0.0, %v5639
      %5641 = vmatmul.f32.gmra.mxu0 %v5530
      %v5642 = vpop.f32.mrf.mxu0
      %v5643 = vadd.f32 0.0, %v5642
      %5644 = vmatmul.f32.gmra.mxu0 %v5533
      %v5645 = vpop.f32.mrf.mxu0
      %v5646 = vadd.f32 0.0, %v5645
      %5647 = vmatmul.f32.gmra.mxu0 %v5536
      %v5648 = vpop.f32.mrf.mxu0
      %v5649 = vadd.f32 0.0, %v5648
      %5650 = vmatmul.f32.gmra.mxu0 %v5539
      %v5651 = vpop.f32.mrf.mxu0
      %v5652 = vadd.f32 0.0, %v5651
      %5653 = vmatmul.f32.gmra.mxu0 %v5542
      %v5654 = vpop.f32.mrf.mxu0
      %v5655 = vadd.f32 0.0, %v5654
      %5656 = vmatmul.f32.gmra.mxu0 %v5545
      %v5657 = vpop.f32.mrf.mxu0
      %v5658 = vadd.f32 0.0, %v5657
      %5659 = vmatmul.f32.gmra.mxu0 %v5548
      %v5660 = vpop.f32.mrf.mxu0
      %v5661 = vadd.f32 0.0, %v5660
      %5662 = vmatmul.f32.gmra.mxu0 %v5551
      %v5663 = vpop.f32.mrf.mxu0
      %v5664 = vadd.f32 0.0, %v5663
      %5665 = vmatmul.f32.gmra.mxu0 %v5554
      %v5666 = vpop.f32.mrf.mxu0
      %v5667 = vadd.f32 0.0, %v5666
      %5668 = vmatmul.f32.gmra.mxu0 %v5557
      %v5669 = vpop.f32.mrf.mxu0
      %v5670 = vadd.f32 0.0, %v5669
      %5671 = vmatmul.f32.gmra.mxu0 %v5560
      %v5672 = vpop.f32.mrf.mxu0
      %v5673 = vadd.f32 0.0, %v5672
      %5674 = vmatmul.f32.gmra.mxu0 %v5563
      %v5675 = vpop.f32.mrf.mxu0
      %v5676 = vadd.f32 0.0, %v5675
      %5677 = vmatmul.f32.gmra.mxu0 %v5566
      %v5678 = vpop.f32.mrf.mxu0
      %v5679 = vadd.f32 0.0, %v5678
      %5680 = vmatmul.f32.gmra.mxu0 %v5569
      %v5681 = vpop.f32.mrf.mxu0
      %v5682 = vadd.f32 0.0, %v5681
      %5683 = vdwg.mxu0
      %v5684 = vadd.f32 %v5406, %v5589
      %v5685 = vadd.f32 %v5407, %v5592
      %v5686 = vadd.f32 %v5408, %v5595
      %v5687 = vadd.f32 %v5409, %v5598
      %v5688 = vadd.f32 %v5410, %v5601
      %v5689 = vadd.f32 %v5411, %v5604
      %v5690 = vadd.f32 %v5412, %v5607
      %v5691 = vadd.f32 %v5413, %v5610
      %v5692 = vadd.f32 %v5414, %v5613
      %v5693 = vadd.f32 %v5415, %v5616
      %v5694 = vadd.f32 %v5416, %v5619
      %v5695 = vadd.f32 %v5417, %v5622
      %v5696 = vadd.f32 %v5418, %v5625
      %v5697 = vadd.f32 %v5419, %v5628
      %v5698 = vadd.f32 %v5420, %v5631
      %v5699 = vadd.f32 %v5421, %v5634
      %v5700 = vadd.f32 %v5422, %v5637
      %v5701 = vadd.f32 %v5423, %v5640
      %v5702 = vadd.f32 %v5424, %v5643
      %v5703 = vadd.f32 %v5425, %v5646
      %v5704 = vadd.f32 %v5426, %v5649
      %v5705 = vadd.f32 %v5427, %v5652
      %v5706 = vadd.f32 %v5428, %v5655
      %v5707 = vadd.f32 %v5429, %v5658
      %v5708 = vadd.f32 %v5430, %v5661
      %v5709 = vadd.f32 %v5431, %v5664
      %v5710 = vadd.f32 %v5432, %v5667
      %v5711 = vadd.f32 %v5433, %v5670
      %v5712 = vadd.f32 %v5434, %v5673
      %v5713 = vadd.f32 %v5435, %v5676
      %v5714 = vadd.f32 %v5436, %v5679
      %v5715 = vadd.f32 %v5437, %v5682
      %v5716 = vld [vmem:[%s6] sm:$0x1]
      %v5718 = vperm.slane %v5716, 0
      %v5720 = vadd.f32 %v5684, %v5718
      %v5721 = vadd.f32 %v5685, %v5718
      %v5722 = vadd.f32 %v5686, %v5718
      %v5723 = vadd.f32 %v5687, %v5718
      %v5724 = vadd.f32 %v5688, %v5718
      %v5725 = vadd.f32 %v5689, %v5718
      %v5726 = vadd.f32 %v5690, %v5718
      %v5727 = vadd.f32 %v5691, %v5718
      %v5728 = vadd.f32 %v5692, %v5718
      %v5729 = vadd.f32 %v5693, %v5718
      %v5730 = vadd.f32 %v5694, %v5718
      %v5731 = vadd.f32 %v5695, %v5718
      %v5732 = vadd.f32 %v5696, %v5718
      %v5733 = vadd.f32 %v5697, %v5718
      %v5734 = vadd.f32 %v5698, %v5718
      %v5735 = vadd.f32 %v5699, %v5718
      %v5736 = vadd.f32 %v5700, %v5718
      %v5737 = vadd.f32 %v5701, %v5718
      %v5738 = vadd.f32 %v5702, %v5718
      %v5739 = vadd.f32 %v5703, %v5718
      %v5740 = vadd.f32 %v5704, %v5718
      %v5741 = vadd.f32 %v5705, %v5718
      %v5742 = vadd.f32 %v5706, %v5718
      %v5743 = vadd.f32 %v5707, %v5718
      %v5744 = vadd.f32 %v5708, %v5718
      %v5745 = vadd.f32 %v5709, %v5718
      %v5746 = vadd.f32 %v5710, %v5718
      %v5747 = vadd.f32 %v5711, %v5718
      %v5748 = vadd.f32 %v5712, %v5718
      %v5749 = vadd.f32 %v5713, %v5718
      %v5750 = vadd.f32 %v5714, %v5718
      %v5751 = vadd.f32 %v5715, %v5718
      %v5752 = vmax.f32 %v5720, 0.0
      %v5753 = vmax.f32 %v5721, 0.0
      %v5754 = vmax.f32 %v5722, 0.0
      %v5755 = vmax.f32 %v5723, 0.0
      %v5756 = vmax.f32 %v5724, 0.0
      %v5757 = vmax.f32 %v5725, 0.0
      %v5758 = vmax.f32 %v5726, 0.0
      %v5759 = vmax.f32 %v5727, 0.0
      %v5760 = vmax.f32 %v5728, 0.0
      %v5761 = vmax.f32 %v5729, 0.0
      %v5762 = vmax.f32 %v5730, 0.0
      %v5763 = vmax.f32 %v5731, 0.0
      %v5764 = vmax.f32 %v5732, 0.0
      %v5765 = vmax.f32 %v5733, 0.0
      %v5766 = vmax.f32 %v5734, 0.0
      %v5767 = vmax.f32 %v5735, 0.0
      %v5768 = vmax.f32 %v5736, 0.0
      %v5769 = vmax.f32 %v5737, 0.0
      %v5770 = vmax.f32 %v5738, 0.0
      %v5771 = vmax.f32 %v5739, 0.0
      %v5772 = vmax.f32 %v5740, 0.0
      %v5773 = vmax.f32 %v5741, 0.0
      %v5774 = vmax.f32 %v5742, 0.0
      %v5775 = vmax.f32 %v5743, 0.0
      %v5776 = vmax.f32 %v5744, 0.0
      %v5777 = vmax.f32 %v5745, 0.0
      %v5778 = vmax.f32 %v5746, 0.0
      %v5779 = vmax.f32 %v5747, 0.0
      %v5780 = vmax.f32 %v5748, 0.0
      %v5781 = vmax.f32 %v5749, 0.0
      %v5782 = vmax.f32 %v5750, 0.0
      %v5783 = vmax.f32 %v5751, 0.0
      %5784 = vst.msk [vmem:[%s706 + $0x1] sm:$0xff] %vm333, %v5752
      %5785 = vst.msk [vmem:[%s706 + $0x9] sm:$0xff] %vm333, %v5753
      %5786 = vst.msk [vmem:[%s706 + $0x19] sm:$0xff] %vm333, %v5754
      %5787 = vst.msk [vmem:[%s706 + $0x21] sm:$0xff] %vm333, %v5755
      %5788 = vst.msk [vmem:[%s706 + $0x31] sm:$0xff] %vm333, %v5756
      %5789 = vst.msk [vmem:[%s706 + $0x39] sm:$0xff] %vm333, %v5757
      %5790 = vst.msk [vmem:[%s706 + $0x49] sm:$0xff] %vm333, %v5758
      %5791 = vst.msk [vmem:[%s706 + $0x51] sm:$0xff] %vm333, %v5759
      %5792 = vst.msk [vmem:[%s706 + $0x61] sm:$0xff] %vm333, %v5760
      %5793 = vst.msk [vmem:[%s706 + $0x69] sm:$0xff] %vm333, %v5761
      %5794 = vst.msk [vmem:[%s706 + $0x79] sm:$0xff] %vm333, %v5762
      %5795 = vst.msk [vmem:[%s706 + $0x81] sm:$0xff] %vm333, %v5763
      %5796 = vst.msk [vmem:[%s706 + $0x91] sm:$0xff] %vm333, %v5764
      %5797 = vst.msk [vmem:[%s706 + $0x99] sm:$0xff] %vm333, %v5765
      %5798 = vst.msk [vmem:[%s706 + $0xa9] sm:$0xff] %vm333, %v5766
      %5799 = vst.msk [vmem:[%s706 + $0xb1] sm:$0xff] %vm333, %v5767
      %5800 = vst.msk [vmem:[%s706 + $0xc1] sm:$0xff] %vm333, %v5768
      %5801 = vst.msk [vmem:[%s706 + $0xc9] sm:$0xff] %vm333, %v5769
      %5802 = vst.msk [vmem:[%s706 + $0xd9] sm:$0xff] %vm333, %v5770
      %5803 = vst.msk [vmem:[%s706 + $0xe1] sm:$0xff] %vm333, %v5771
      %5804 = vst.msk [vmem:[%s706 + $0xf1] sm:$0xff] %vm333, %v5772
      %5805 = vst.msk [vmem:[%s706 + $0xf9] sm:$0xff] %vm333, %v5773
      %5806 = vst.msk [vmem:[%s706 + $0x109] sm:$0xff] %vm333, %v5774
      %5807 = vst.msk [vmem:[%s706 + $0x111] sm:$0xff] %vm333, %v5775
      %5808 = vst.msk [vmem:[%s706 + $0x121] sm:$0xff] %vm333, %v5776
      %5809 = vst.msk [vmem:[%s706 + $0x129] sm:$0xff] %vm333, %v5777
      %5810 = vst.msk [vmem:[%s706 + $0x139] sm:$0xff] %vm333, %v5778
      %5811 = vst.msk [vmem:[%s706 + $0x141] sm:$0xff] %vm333, %v5779
      %5812 = vst.msk [vmem:[%s706 + $0x151] sm:$0xff] %vm333, %v5780
      %5813 = vst.msk [vmem:[%s706 + $0x159] sm:$0xff] %vm333, %v5781
      %5814 = vst.msk [vmem:[%s706 + $0x169] sm:$0xff] %vm333, %v5782
      %5815 = vst.msk [vmem:[%s706 + $0x171] sm:$0xff] %vm333, %v5783
      %v5816 = vld [vmem:[#allocation2] sm:$0xff]
      %v5817 = vld [vmem:[#allocation2 + $0x8] sm:$0xff]
      %v5818 = vld [vmem:[#allocation2 + $0x18] sm:$0xff]
      %v5819 = vld [vmem:[#allocation2 + $0x20] sm:$0xff]
      %v5820 = vld [vmem:[#allocation2 + $0x30] sm:$0xff]
      %v5821 = vld [vmem:[#allocation2 + $0x38] sm:$0xff]
      %v5822 = vld [vmem:[#allocation2 + $0x48] sm:$0xff]
      %v5823 = vld [vmem:[#allocation2 + $0x50] sm:$0xff]
      %v5824 = vld [vmem:[#allocation2 + $0x60] sm:$0xff]
      %v5825 = vld [vmem:[#allocation2 + $0x68] sm:$0xff]
      %v5826 = vld [vmem:[#allocation2 + $0x78] sm:$0xff]
      %v5827 = vld [vmem:[#allocation2 + $0x80] sm:$0xff]
      %v5828 = vld [vmem:[#allocation2 + $0x90] sm:$0xff]
      %v5829 = vld [vmem:[#allocation2 + $0x98] sm:$0xff]
      %v5830 = vld [vmem:[#allocation2 + $0xa8] sm:$0xff]
      %v5831 = vld [vmem:[#allocation2 + $0xb0] sm:$0xff]
      %v5832 = vld [vmem:[#allocation2 + $0xc0] sm:$0xff]
      %v5833 = vld [vmem:[#allocation2 + $0xc8] sm:$0xff]
      %v5834 = vld [vmem:[#allocation2 + $0xd8] sm:$0xff]
      %v5835 = vld [vmem:[#allocation2 + $0xe0] sm:$0xff]
      %v5836 = vld [vmem:[#allocation2 + $0xf0] sm:$0xff]
      %v5837 = vld [vmem:[#allocation2 + $0xf8] sm:$0xff]
      %v5838 = vld [vmem:[#allocation2 + $0x108] sm:$0xff]
      %v5839 = vld [vmem:[#allocation2 + $0x110] sm:$0xff]
      %v5840 = vld [vmem:[#allocation2 + $0x120] sm:$0xff]
      %v5841 = vld [vmem:[#allocation2 + $0x128] sm:$0xff]
      %v5842 = vld [vmem:[#allocation2 + $0x138] sm:$0xff]
      %v5843 = vld [vmem:[#allocation2 + $0x140] sm:$0xff]
      %v5844 = vld [vmem:[#allocation2 + $0x150] sm:$0xff]
      %v5845 = vld [vmem:[#allocation2 + $0x158] sm:$0xff]
      %v5846 = vld [vmem:[#allocation2 + $0x168] sm:$0xff]
      %v5847 = vld [vmem:[#allocation2 + $0x170] sm:$0xff]
      %v5848 = vld [vmem:[%s7] sm:$0xff]
      %v5849 = vld [vmem:[%s7 + $0x8] sm:$0xff]
      %v5850 = vld [vmem:[%s7 + $0x10] sm:$0xff]
      %v5851 = vld [vmem:[%s7 + $0x18] sm:$0xff]
      %v5852 = vld [vmem:[#allocation2 + $0x1] sm:$0xff]
      %v5853 = vld [vmem:[#allocation2 + $0x9] sm:$0xff]
      %v5854 = vld [vmem:[#allocation2 + $0x19] sm:$0xff]
      %v5855 = vld [vmem:[#allocation2 + $0x21] sm:$0xff]
      %v5856 = vld [vmem:[#allocation2 + $0x31] sm:$0xff]
      %v5857 = vld [vmem:[#allocation2 + $0x39] sm:$0xff]
      %v5858 = vld [vmem:[#allocation2 + $0x49] sm:$0xff]
      %v5859 = vld [vmem:[#allocation2 + $0x51] sm:$0xff]
      %v5860 = vld [vmem:[#allocation2 + $0x61] sm:$0xff]
      %v5861 = vld [vmem:[#allocation2 + $0x69] sm:$0xff]
      %v5862 = vld [vmem:[#allocation2 + $0x79] sm:$0xff]
      %v5863 = vld [vmem:[#allocation2 + $0x81] sm:$0xff]
      %v5864 = vld [vmem:[#allocation2 + $0x91] sm:$0xff]
      %v5865 = vld [vmem:[#allocation2 + $0x99] sm:$0xff]
      %v5866 = vld [vmem:[#allocation2 + $0xa9] sm:$0xff]
      %v5867 = vld [vmem:[#allocation2 + $0xb1] sm:$0xff]
      %v5868 = vld [vmem:[#allocation2 + $0xc1] sm:$0xff]
      %v5869 = vld [vmem:[#allocation2 + $0xc9] sm:$0xff]
      %v5870 = vld [vmem:[#allocation2 + $0xd9] sm:$0xff]
      %v5871 = vld [vmem:[#allocation2 + $0xe1] sm:$0xff]
      %v5872 = vld [vmem:[#allocation2 + $0xf1] sm:$0xff]
      %v5873 = vld [vmem:[#allocation2 + $0xf9] sm:$0xff]
      %v5874 = vld [vmem:[#allocation2 + $0x109] sm:$0xff]
      %v5875 = vld [vmem:[#allocation2 + $0x111] sm:$0xff]
      %v5876 = vld [vmem:[#allocation2 + $0x121] sm:$0xff]
      %v5877 = vld [vmem:[#allocation2 + $0x129] sm:$0xff]
      %v5878 = vld [vmem:[#allocation2 + $0x139] sm:$0xff]
      %v5879 = vld [vmem:[#allocation2 + $0x141] sm:$0xff]
      %v5880 = vld [vmem:[#allocation2 + $0x151] sm:$0xff]
      %v5881 = vld [vmem:[#allocation2 + $0x159] sm:$0xff]
      %v5882 = vld [vmem:[#allocation2 + $0x169] sm:$0xff]
      %v5883 = vld [vmem:[#allocation2 + $0x171] sm:$0xff]
      %s5884 = scalar_lea.vmem %s7, 32
      %v5885 = vld [vmem:[%s5884] sm:$0xff]
      %v5886 = vld [vmem:[%s5884 + $0x8] sm:$0xff]
      %v5887 = vld [vmem:[%s5884 + $0x10] sm:$0xff]
      %v5888 = vld [vmem:[%s5884 + $0x18] sm:$0xff]
      %v5890 = vsel %vm333, %v5852, 0
      %v5893 = vsel %vm333, %v5853, 0
      %v5896 = vsel %vm333, %v5854, 0
      %v5899 = vsel %vm333, %v5855, 0
      %v5902 = vsel %vm333, %v5856, 0
      %v5905 = vsel %vm333, %v5857, 0
      %v5908 = vsel %vm333, %v5858, 0
      %v5911 = vsel %vm333, %v5859, 0
      %v5914 = vsel %vm333, %v5860, 0
      %v5917 = vsel %vm333, %v5861, 0
      %v5920 = vsel %vm333, %v5862, 0
      %v5923 = vsel %vm333, %v5863, 0
      %v5926 = vsel %vm333, %v5864, 0
      %v5929 = vsel %vm333, %v5865, 0
      %v5932 = vsel %vm333, %v5866, 0
      %v5935 = vsel %vm333, %v5867, 0
      %v5938 = vsel %vm333, %v5868, 0
      %v5941 = vsel %vm333, %v5869, 0
      %v5944 = vsel %vm333, %v5870, 0
      %v5947 = vsel %vm333, %v5871, 0
      %v5950 = vsel %vm333, %v5872, 0
      %v5953 = vsel %vm333, %v5873, 0
      %v5956 = vsel %vm333, %v5874, 0
      %v5959 = vsel %vm333, %v5875, 0
      %v5962 = vsel %vm333, %v5876, 0
      %v5965 = vsel %vm333, %v5877, 0
      %v5968 = vsel %vm333, %v5878, 0
      %v5971 = vsel %vm333, %v5879, 0
      %v5974 = vsel %vm333, %v5880, 0
      %v5977 = vsel %vm333, %v5881, 0
      %v5980 = vsel %vm333, %v5882, 0
      %v5983 = vsel %vm333, %v5883, 0
      %5985 = vmatpush.msra.mxu0 0.0
      %5986 = vmatpush.msra.mxu0 0.0
      %5987 = vmatpush.msra.mxu0 0.0
      %5988 = vmatpush.msra.mxu0 0.0
      %5989 = vmatpush.msra.mxu0 0.0
      %5990 = vmatpush.msra.mxu0 0.0
      %5991 = vmatpush.msra.mxu0 0.0
      %5992 = vmatpush.msra.mxu0 0.0
      %5993 = vmatpush.msra.mxu0 0.0
      %5994 = vmatpush.msra.mxu0 0.0
      %5995 = vmatpush.msra.mxu0 0.0
      %5996 = vmatpush.msra.mxu0 0.0
      %5997 = vmatpush.msra.mxu0 %v5888
      %5998 = vmatpush.msra.mxu0 %v5887
      %5999 = vmatpush.msra.mxu0 %v5886
      %6000 = vmatpush.msra.mxu0 %v5885
      %6001 = vmatmul.f32.gmra.mxu0 %v5890
      %v6002 = vpop.f32.mrf.mxu0
      %v6003 = vadd.f32 0.0, %v6002
      %6004 = vmatmul.f32.gmra.mxu0 %v5893
      %v6005 = vpop.f32.mrf.mxu0
      %v6006 = vadd.f32 0.0, %v6005
      %6007 = vmatmul.f32.gmra.mxu0 %v5896
      %v6008 = vpop.f32.mrf.mxu0
      %v6009 = vadd.f32 0.0, %v6008
      %6010 = vmatmul.f32.gmra.mxu0 %v5899
      %v6011 = vpop.f32.mrf.mxu0
      %v6012 = vadd.f32 0.0, %v6011
      %6013 = vmatmul.f32.gmra.mxu0 %v5902
      %v6014 = vpop.f32.mrf.mxu0
      %v6015 = vadd.f32 0.0, %v6014
      %6016 = vmatmul.f32.gmra.mxu0 %v5905
      %v6017 = vpop.f32.mrf.mxu0
      %v6018 = vadd.f32 0.0, %v6017
      %6019 = vmatmul.f32.gmra.mxu0 %v5908
      %v6020 = vpop.f32.mrf.mxu0
      %v6021 = vadd.f32 0.0, %v6020
      %6022 = vmatmul.f32.gmra.mxu0 %v5911
      %v6023 = vpop.f32.mrf.mxu0
      %v6024 = vadd.f32 0.0, %v6023
      %6025 = vmatmul.f32.gmra.mxu0 %v5914
      %v6026 = vpop.f32.mrf.mxu0
      %v6027 = vadd.f32 0.0, %v6026
      %6028 = vmatmul.f32.gmra.mxu0 %v5917
      %v6029 = vpop.f32.mrf.mxu0
      %v6030 = vadd.f32 0.0, %v6029
      %6031 = vmatmul.f32.gmra.mxu0 %v5920
      %v6032 = vpop.f32.mrf.mxu0
      %v6033 = vadd.f32 0.0, %v6032
      %6034 = vmatmul.f32.gmra.mxu0 %v5923
      %v6035 = vpop.f32.mrf.mxu0
      %v6036 = vadd.f32 0.0, %v6035
      %6037 = vmatmul.f32.gmra.mxu0 %v5926
      %v6038 = vpop.f32.mrf.mxu0
      %v6039 = vadd.f32 0.0, %v6038
      %6040 = vmatmul.f32.gmra.mxu0 %v5929
      %v6041 = vpop.f32.mrf.mxu0
      %v6042 = vadd.f32 0.0, %v6041
      %6043 = vmatmul.f32.gmra.mxu0 %v5932
      %v6044 = vpop.f32.mrf.mxu0
      %v6045 = vadd.f32 0.0, %v6044
      %6046 = vmatmul.f32.gmra.mxu0 %v5935
      %v6047 = vpop.f32.mrf.mxu0
      %v6048 = vadd.f32 0.0, %v6047
      %6049 = vmatmul.f32.gmra.mxu0 %v5938
      %v6050 = vpop.f32.mrf.mxu0
      %v6051 = vadd.f32 0.0, %v6050
      %6052 = vmatmul.f32.gmra.mxu0 %v5941
      %v6053 = vpop.f32.mrf.mxu0
      %v6054 = vadd.f32 0.0, %v6053
      %6055 = vmatmul.f32.gmra.mxu0 %v5944
      %v6056 = vpop.f32.mrf.mxu0
      %v6057 = vadd.f32 0.0, %v6056
      %6058 = vmatmul.f32.gmra.mxu0 %v5947
      %v6059 = vpop.f32.mrf.mxu0
      %v6060 = vadd.f32 0.0, %v6059
      %6061 = vmatmul.f32.gmra.mxu0 %v5950
      %v6062 = vpop.f32.mrf.mxu0
      %v6063 = vadd.f32 0.0, %v6062
      %6064 = vmatmul.f32.gmra.mxu0 %v5953
      %v6065 = vpop.f32.mrf.mxu0
      %v6066 = vadd.f32 0.0, %v6065
      %6067 = vmatmul.f32.gmra.mxu0 %v5956
      %v6068 = vpop.f32.mrf.mxu0
      %v6069 = vadd.f32 0.0, %v6068
      %6070 = vmatmul.f32.gmra.mxu0 %v5959
      %v6071 = vpop.f32.mrf.mxu0
      %v6072 = vadd.f32 0.0, %v6071
      %6073 = vmatmul.f32.gmra.mxu0 %v5962
      %v6074 = vpop.f32.mrf.mxu0
      %v6075 = vadd.f32 0.0, %v6074
      %6076 = vmatmul.f32.gmra.mxu0 %v5965
      %v6077 = vpop.f32.mrf.mxu0
      %v6078 = vadd.f32 0.0, %v6077
      %6079 = vmatmul.f32.gmra.mxu0 %v5968
      %v6080 = vpop.f32.mrf.mxu0
      %v6081 = vadd.f32 0.0, %v6080
      %6082 = vmatmul.f32.gmra.mxu0 %v5971
      %v6083 = vpop.f32.mrf.mxu0
      %v6084 = vadd.f32 0.0, %v6083
      %6085 = vmatmul.f32.gmra.mxu0 %v5974
      %v6086 = vpop.f32.mrf.mxu0
      %v6087 = vadd.f32 0.0, %v6086
      %6088 = vmatmul.f32.gmra.mxu0 %v5977
      %v6089 = vpop.f32.mrf.mxu0
      %v6090 = vadd.f32 0.0, %v6089
      %6091 = vmatmul.f32.gmra.mxu0 %v5980
      %v6092 = vpop.f32.mrf.mxu0
      %v6093 = vadd.f32 0.0, %v6092
      %6094 = vmatmul.f32.gmra.mxu0 %v5983
      %v6095 = vpop.f32.mrf.mxu0
      %v6096 = vadd.f32 0.0, %v6095
      %6097 = vdwg.mxu0
      %v6099 = vsel %vm333, %v5816, 0
      %v6102 = vsel %vm333, %v5817, 0
      %v6105 = vsel %vm333, %v5818, 0
      %v6108 = vsel %vm333, %v5819, 0
      %v6111 = vsel %vm333, %v5820, 0
      %v6114 = vsel %vm333, %v5821, 0
      %v6117 = vsel %vm333, %v5822, 0
      %v6120 = vsel %vm333, %v5823, 0
      %v6123 = vsel %vm333, %v5824, 0
      %v6126 = vsel %vm333, %v5825, 0
      %v6129 = vsel %vm333, %v5826, 0
      %v6132 = vsel %vm333, %v5827, 0
      %v6135 = vsel %vm333, %v5828, 0
      %v6138 = vsel %vm333, %v5829, 0
      %v6141 = vsel %vm333, %v5830, 0
      %v6144 = vsel %vm333, %v5831, 0
      %v6147 = vsel %vm333, %v5832, 0
      %v6150 = vsel %vm333, %v5833, 0
      %v6153 = vsel %vm333, %v5834, 0
      %v6156 = vsel %vm333, %v5835, 0
      %v6159 = vsel %vm333, %v5836, 0
      %v6162 = vsel %vm333, %v5837, 0
      %v6165 = vsel %vm333, %v5838, 0
      %v6168 = vsel %vm333, %v5839, 0
      %v6171 = vsel %vm333, %v5840, 0
      %v6174 = vsel %vm333, %v5841, 0
      %v6177 = vsel %vm333, %v5842, 0
      %v6180 = vsel %vm333, %v5843, 0
      %v6183 = vsel %vm333, %v5844, 0
      %v6186 = vsel %vm333, %v5845, 0
      %v6189 = vsel %vm333, %v5846, 0
      %v6192 = vsel %vm333, %v5847, 0
      %6194 = vmatpush.msra.mxu0 0.0
      %6195 = vmatpush.msra.mxu0 0.0
      %6196 = vmatpush.msra.mxu0 0.0
      %6197 = vmatpush.msra.mxu0 0.0
      %6198 = vmatpush.msra.mxu0 0.0
      %6199 = vmatpush.msra.mxu0 0.0
      %6200 = vmatpush.msra.mxu0 0.0
      %6201 = vmatpush.msra.mxu0 0.0
      %6202 = vmatpush.msra.mxu0 0.0
      %6203 = vmatpush.msra.mxu0 0.0
      %6204 = vmatpush.msra.mxu0 0.0
      %6205 = vmatpush.msra.mxu0 0.0
      %6206 = vmatpush.msra.mxu0 %v5851
      %6207 = vmatpush.msra.mxu0 %v5850
      %6208 = vmatpush.msra.mxu0 %v5849
      %6209 = vmatpush.msra.mxu0 %v5848
      %6210 = vmatmul.f32.gmra.mxu0 %v6099
      %v6211 = vpop.f32.mrf.mxu0
      %v6212 = vadd.f32 %v6003, %v6211
      %6213 = vmatmul.f32.gmra.mxu0 %v6102
      %v6214 = vpop.f32.mrf.mxu0
      %v6215 = vadd.f32 %v6006, %v6214
      %6216 = vmatmul.f32.gmra.mxu0 %v6105
      %v6217 = vpop.f32.mrf.mxu0
      %v6218 = vadd.f32 %v6009, %v6217
      %6219 = vmatmul.f32.gmra.mxu0 %v6108
      %v6220 = vpop.f32.mrf.mxu0
      %v6221 = vadd.f32 %v6012, %v6220
      %6222 = vmatmul.f32.gmra.mxu0 %v6111
      %v6223 = vpop.f32.mrf.mxu0
      %v6224 = vadd.f32 %v6015, %v6223
      %6225 = vmatmul.f32.gmra.mxu0 %v6114
      %v6226 = vpop.f32.mrf.mxu0
      %v6227 = vadd.f32 %v6018, %v6226
      %6228 = vmatmul.f32.gmra.mxu0 %v6117
      %v6229 = vpop.f32.mrf.mxu0
      %v6230 = vadd.f32 %v6021, %v6229
      %6231 = vmatmul.f32.gmra.mxu0 %v6120
      %v6232 = vpop.f32.mrf.mxu0
      %v6233 = vadd.f32 %v6024, %v6232
      %6234 = vmatmul.f32.gmra.mxu0 %v6123
      %v6235 = vpop.f32.mrf.mxu0
      %v6236 = vadd.f32 %v6027, %v6235
      %6237 = vmatmul.f32.gmra.mxu0 %v6126
      %v6238 = vpop.f32.mrf.mxu0
      %v6239 = vadd.f32 %v6030, %v6238
      %6240 = vmatmul.f32.gmra.mxu0 %v6129
      %v6241 = vpop.f32.mrf.mxu0
      %v6242 = vadd.f32 %v6033, %v6241
      %6243 = vmatmul.f32.gmra.mxu0 %v6132
      %v6244 = vpop.f32.mrf.mxu0
      %v6245 = vadd.f32 %v6036, %v6244
      %6246 = vmatmul.f32.gmra.mxu0 %v6135
      %v6247 = vpop.f32.mrf.mxu0
      %v6248 = vadd.f32 %v6039, %v6247
      %6249 = vmatmul.f32.gmra.mxu0 %v6138
      %v6250 = vpop.f32.mrf.mxu0
      %v6251 = vadd.f32 %v6042, %v6250
      %6252 = vmatmul.f32.gmra.mxu0 %v6141
      %v6253 = vpop.f32.mrf.mxu0
      %v6254 = vadd.f32 %v6045, %v6253
      %6255 = vmatmul.f32.gmra.mxu0 %v6144
      %v6256 = vpop.f32.mrf.mxu0
      %v6257 = vadd.f32 %v6048, %v6256
      %6258 = vmatmul.f32.gmra.mxu0 %v6147
      %v6259 = vpop.f32.mrf.mxu0
      %v6260 = vadd.f32 %v6051, %v6259
      %6261 = vmatmul.f32.gmra.mxu0 %v6150
      %v6262 = vpop.f32.mrf.mxu0
      %v6263 = vadd.f32 %v6054, %v6262
      %6264 = vmatmul.f32.gmra.mxu0 %v6153
      %v6265 = vpop.f32.mrf.mxu0
      %v6266 = vadd.f32 %v6057, %v6265
      %6267 = vmatmul.f32.gmra.mxu0 %v6156
      %v6268 = vpop.f32.mrf.mxu0
      %v6269 = vadd.f32 %v6060, %v6268
      %6270 = vmatmul.f32.gmra.mxu0 %v6159
      %v6271 = vpop.f32.mrf.mxu0
      %v6272 = vadd.f32 %v6063, %v6271
      %6273 = vmatmul.f32.gmra.mxu0 %v6162
      %v6274 = vpop.f32.mrf.mxu0
      %v6275 = vadd.f32 %v6066, %v6274
      %6276 = vmatmul.f32.gmra.mxu0 %v6165
      %v6277 = vpop.f32.mrf.mxu0
      %v6278 = vadd.f32 %v6069, %v6277
      %6279 = vmatmul.f32.gmra.mxu0 %v6168
      %v6280 = vpop.f32.mrf.mxu0
      %v6281 = vadd.f32 %v6072, %v6280
      %6282 = vmatmul.f32.gmra.mxu0 %v6171
      %v6283 = vpop.f32.mrf.mxu0
      %v6284 = vadd.f32 %v6075, %v6283
      %6285 = vmatmul.f32.gmra.mxu0 %v6174
      %v6286 = vpop.f32.mrf.mxu0
      %v6287 = vadd.f32 %v6078, %v6286
      %6288 = vmatmul.f32.gmra.mxu0 %v6177
      %v6289 = vpop.f32.mrf.mxu0
      %v6290 = vadd.f32 %v6081, %v6289
      %6291 = vmatmul.f32.gmra.mxu0 %v6180
      %v6292 = vpop.f32.mrf.mxu0
      %v6293 = vadd.f32 %v6084, %v6292
      %6294 = vmatmul.f32.gmra.mxu0 %v6183
      %v6295 = vpop.f32.mrf.mxu0
      %v6296 = vadd.f32 %v6087, %v6295
      %6297 = vmatmul.f32.gmra.mxu0 %v6186
      %v6298 = vpop.f32.mrf.mxu0
      %v6299 = vadd.f32 %v6090, %v6298
      %6300 = vmatmul.f32.gmra.mxu0 %v6189
      %v6301 = vpop.f32.mrf.mxu0
      %v6302 = vadd.f32 %v6093, %v6301
      %6303 = vmatmul.f32.gmra.mxu0 %v6192
      %v6304 = vpop.f32.mrf.mxu0
      %v6305 = vadd.f32 %v6096, %v6304
      %6306 = vdwg.mxu0
      %v6307 = vld [vmem:[#allocation2 + $0x2] sm:$0xff]
      %v6308 = vld [vmem:[#allocation2 + $0xa] sm:$0xff]
      %v6309 = vld [vmem:[#allocation2 + $0x1a] sm:$0xff]
      %v6310 = vld [vmem:[#allocation2 + $0x22] sm:$0xff]
      %v6311 = vld [vmem:[#allocation2 + $0x32] sm:$0xff]
      %v6312 = vld [vmem:[#allocation2 + $0x3a] sm:$0xff]
      %v6313 = vld [vmem:[#allocation2 + $0x4a] sm:$0xff]
      %v6314 = vld [vmem:[#allocation2 + $0x52] sm:$0xff]
      %v6315 = vld [vmem:[#allocation2 + $0x62] sm:$0xff]
      %v6316 = vld [vmem:[#allocation2 + $0x6a] sm:$0xff]
      %v6317 = vld [vmem:[#allocation2 + $0x7a] sm:$0xff]
      %v6318 = vld [vmem:[#allocation2 + $0x82] sm:$0xff]
      %v6319 = vld [vmem:[#allocation2 + $0x92] sm:$0xff]
      %v6320 = vld [vmem:[#allocation2 + $0x9a] sm:$0xff]
      %v6321 = vld [vmem:[#allocation2 + $0xaa] sm:$0xff]
      %v6322 = vld [vmem:[#allocation2 + $0xb2] sm:$0xff]
      %v6323 = vld [vmem:[#allocation2 + $0xc2] sm:$0xff]
      %v6324 = vld [vmem:[#allocation2 + $0xca] sm:$0xff]
      %v6325 = vld [vmem:[#allocation2 + $0xda] sm:$0xff]
      %v6326 = vld [vmem:[#allocation2 + $0xe2] sm:$0xff]
      %v6327 = vld [vmem:[#allocation2 + $0xf2] sm:$0xff]
      %v6328 = vld [vmem:[#allocation2 + $0xfa] sm:$0xff]
      %v6329 = vld [vmem:[#allocation2 + $0x10a] sm:$0xff]
      %v6330 = vld [vmem:[#allocation2 + $0x112] sm:$0xff]
      %v6331 = vld [vmem:[#allocation2 + $0x122] sm:$0xff]
      %v6332 = vld [vmem:[#allocation2 + $0x12a] sm:$0xff]
      %v6333 = vld [vmem:[#allocation2 + $0x13a] sm:$0xff]
      %v6334 = vld [vmem:[#allocation2 + $0x142] sm:$0xff]
      %v6335 = vld [vmem:[#allocation2 + $0x152] sm:$0xff]
      %v6336 = vld [vmem:[#allocation2 + $0x15a] sm:$0xff]
      %v6337 = vld [vmem:[#allocation2 + $0x16a] sm:$0xff]
      %v6338 = vld [vmem:[#allocation2 + $0x172] sm:$0xff]
      %s6339 = scalar_lea.vmem %s7, 64
      %v6340 = vld [vmem:[%s6339] sm:$0xff]
      %v6341 = vld [vmem:[%s6339 + $0x8] sm:$0xff]
      %v6342 = vld [vmem:[%s6339 + $0x10] sm:$0xff]
      %v6343 = vld [vmem:[%s6339 + $0x18] sm:$0xff]
      %v6345 = vsel %vm333, %v6307, 0
      %v6348 = vsel %vm333, %v6308, 0
      %v6351 = vsel %vm333, %v6309, 0
      %v6354 = vsel %vm333, %v6310, 0
      %v6357 = vsel %vm333, %v6311, 0
      %v6360 = vsel %vm333, %v6312, 0
      %v6363 = vsel %vm333, %v6313, 0
      %v6366 = vsel %vm333, %v6314, 0
      %v6369 = vsel %vm333, %v6315, 0
      %v6372 = vsel %vm333, %v6316, 0
      %v6375 = vsel %vm333, %v6317, 0
      %v6378 = vsel %vm333, %v6318, 0
      %v6381 = vsel %vm333, %v6319, 0
      %v6384 = vsel %vm333, %v6320, 0
      %v6387 = vsel %vm333, %v6321, 0
      %v6390 = vsel %vm333, %v6322, 0
      %v6393 = vsel %vm333, %v6323, 0
      %v6396 = vsel %vm333, %v6324, 0
      %v6399 = vsel %vm333, %v6325, 0
      %v6402 = vsel %vm333, %v6326, 0
      %v6405 = vsel %vm333, %v6327, 0
      %v6408 = vsel %vm333, %v6328, 0
      %v6411 = vsel %vm333, %v6329, 0
      %v6414 = vsel %vm333, %v6330, 0
      %v6417 = vsel %vm333, %v6331, 0
      %v6420 = vsel %vm333, %v6332, 0
      %v6423 = vsel %vm333, %v6333, 0
      %v6426 = vsel %vm333, %v6334, 0
      %v6429 = vsel %vm333, %v6335, 0
      %v6432 = vsel %vm333, %v6336, 0
      %v6435 = vsel %vm333, %v6337, 0
      %v6438 = vsel %vm333, %v6338, 0
      %6440 = vmatpush.msra.mxu0 0.0
      %6441 = vmatpush.msra.mxu0 0.0
      %6442 = vmatpush.msra.mxu0 0.0
      %6443 = vmatpush.msra.mxu0 0.0
      %6444 = vmatpush.msra.mxu0 0.0
      %6445 = vmatpush.msra.mxu0 0.0
      %6446 = vmatpush.msra.mxu0 0.0
      %6447 = vmatpush.msra.mxu0 0.0
      %6448 = vmatpush.msra.mxu0 0.0
      %6449 = vmatpush.msra.mxu0 0.0
      %6450 = vmatpush.msra.mxu0 0.0
      %6451 = vmatpush.msra.mxu0 0.0
      %6452 = vmatpush.msra.mxu0 %v6343
      %6453 = vmatpush.msra.mxu0 %v6342
      %6454 = vmatpush.msra.mxu0 %v6341
      %6455 = vmatpush.msra.mxu0 %v6340
      %6456 = vmatmul.f32.gmra.mxu0 %v6345
      %v6457 = vpop.f32.mrf.mxu0
      %v6458 = vadd.f32 0.0, %v6457
      %6459 = vmatmul.f32.gmra.mxu0 %v6348
      %v6460 = vpop.f32.mrf.mxu0
      %v6461 = vadd.f32 0.0, %v6460
      %6462 = vmatmul.f32.gmra.mxu0 %v6351
      %v6463 = vpop.f32.mrf.mxu0
      %v6464 = vadd.f32 0.0, %v6463
      %6465 = vmatmul.f32.gmra.mxu0 %v6354
      %v6466 = vpop.f32.mrf.mxu0
      %v6467 = vadd.f32 0.0, %v6466
      %6468 = vmatmul.f32.gmra.mxu0 %v6357
      %v6469 = vpop.f32.mrf.mxu0
      %v6470 = vadd.f32 0.0, %v6469
      %6471 = vmatmul.f32.gmra.mxu0 %v6360
      %v6472 = vpop.f32.mrf.mxu0
      %v6473 = vadd.f32 0.0, %v6472
      %6474 = vmatmul.f32.gmra.mxu0 %v6363
      %v6475 = vpop.f32.mrf.mxu0
      %v6476 = vadd.f32 0.0, %v6475
      %6477 = vmatmul.f32.gmra.mxu0 %v6366
      %v6478 = vpop.f32.mrf.mxu0
      %v6479 = vadd.f32 0.0, %v6478
      %6480 = vmatmul.f32.gmra.mxu0 %v6369
      %v6481 = vpop.f32.mrf.mxu0
      %v6482 = vadd.f32 0.0, %v6481
      %6483 = vmatmul.f32.gmra.mxu0 %v6372
      %v6484 = vpop.f32.mrf.mxu0
      %v6485 = vadd.f32 0.0, %v6484
      %6486 = vmatmul.f32.gmra.mxu0 %v6375
      %v6487 = vpop.f32.mrf.mxu0
      %v6488 = vadd.f32 0.0, %v6487
      %6489 = vmatmul.f32.gmra.mxu0 %v6378
      %v6490 = vpop.f32.mrf.mxu0
      %v6491 = vadd.f32 0.0, %v6490
      %6492 = vmatmul.f32.gmra.mxu0 %v6381
      %v6493 = vpop.f32.mrf.mxu0
      %v6494 = vadd.f32 0.0, %v6493
      %6495 = vmatmul.f32.gmra.mxu0 %v6384
      %v6496 = vpop.f32.mrf.mxu0
      %v6497 = vadd.f32 0.0, %v6496
      %6498 = vmatmul.f32.gmra.mxu0 %v6387
      %v6499 = vpop.f32.mrf.mxu0
      %v6500 = vadd.f32 0.0, %v6499
      %6501 = vmatmul.f32.gmra.mxu0 %v6390
      %v6502 = vpop.f32.mrf.mxu0
      %v6503 = vadd.f32 0.0, %v6502
      %6504 = vmatmul.f32.gmra.mxu0 %v6393
      %v6505 = vpop.f32.mrf.mxu0
      %v6506 = vadd.f32 0.0, %v6505
      %6507 = vmatmul.f32.gmra.mxu0 %v6396
      %v6508 = vpop.f32.mrf.mxu0
      %v6509 = vadd.f32 0.0, %v6508
      %6510 = vmatmul.f32.gmra.mxu0 %v6399
      %v6511 = vpop.f32.mrf.mxu0
      %v6512 = vadd.f32 0.0, %v6511
      %6513 = vmatmul.f32.gmra.mxu0 %v6402
      %v6514 = vpop.f32.mrf.mxu0
      %v6515 = vadd.f32 0.0, %v6514
      %6516 = vmatmul.f32.gmra.mxu0 %v6405
      %v6517 = vpop.f32.mrf.mxu0
      %v6518 = vadd.f32 0.0, %v6517
      %6519 = vmatmul.f32.gmra.mxu0 %v6408
      %v6520 = vpop.f32.mrf.mxu0
      %v6521 = vadd.f32 0.0, %v6520
      %6522 = vmatmul.f32.gmra.mxu0 %v6411
      %v6523 = vpop.f32.mrf.mxu0
      %v6524 = vadd.f32 0.0, %v6523
      %6525 = vmatmul.f32.gmra.mxu0 %v6414
      %v6526 = vpop.f32.mrf.mxu0
      %v6527 = vadd.f32 0.0, %v6526
      %6528 = vmatmul.f32.gmra.mxu0 %v6417
      %v6529 = vpop.f32.mrf.mxu0
      %v6530 = vadd.f32 0.0, %v6529
      %6531 = vmatmul.f32.gmra.mxu0 %v6420
      %v6532 = vpop.f32.mrf.mxu0
      %v6533 = vadd.f32 0.0, %v6532
      %6534 = vmatmul.f32.gmra.mxu0 %v6423
      %v6535 = vpop.f32.mrf.mxu0
      %v6536 = vadd.f32 0.0, %v6535
      %6537 = vmatmul.f32.gmra.mxu0 %v6426
      %v6538 = vpop.f32.mrf.mxu0
      %v6539 = vadd.f32 0.0, %v6538
      %6540 = vmatmul.f32.gmra.mxu0 %v6429
      %v6541 = vpop.f32.mrf.mxu0
      %v6542 = vadd.f32 0.0, %v6541
      %6543 = vmatmul.f32.gmra.mxu0 %v6432
      %v6544 = vpop.f32.mrf.mxu0
      %v6545 = vadd.f32 0.0, %v6544
      %6546 = vmatmul.f32.gmra.mxu0 %v6435
      %v6547 = vpop.f32.mrf.mxu0
      %v6548 = vadd.f32 0.0, %v6547
      %6549 = vmatmul.f32.gmra.mxu0 %v6438
      %v6550 = vpop.f32.mrf.mxu0
      %v6551 = vadd.f32 0.0, %v6550
      %6552 = vdwg.mxu0
      %v6553 = vadd.f32 %v6212, %v6458
      %v6554 = vadd.f32 %v6215, %v6461
      %v6555 = vadd.f32 %v6218, %v6464
      %v6556 = vadd.f32 %v6221, %v6467
      %v6557 = vadd.f32 %v6224, %v6470
      %v6558 = vadd.f32 %v6227, %v6473
      %v6559 = vadd.f32 %v6230, %v6476
      %v6560 = vadd.f32 %v6233, %v6479
      %v6561 = vadd.f32 %v6236, %v6482
      %v6562 = vadd.f32 %v6239, %v6485
      %v6563 = vadd.f32 %v6242, %v6488
      %v6564 = vadd.f32 %v6245, %v6491
      %v6565 = vadd.f32 %v6248, %v6494
      %v6566 = vadd.f32 %v6251, %v6497
      %v6567 = vadd.f32 %v6254, %v6500
      %v6568 = vadd.f32 %v6257, %v6503
      %v6569 = vadd.f32 %v6260, %v6506
      %v6570 = vadd.f32 %v6263, %v6509
      %v6571 = vadd.f32 %v6266, %v6512
      %v6572 = vadd.f32 %v6269, %v6515
      %v6573 = vadd.f32 %v6272, %v6518
      %v6574 = vadd.f32 %v6275, %v6521
      %v6575 = vadd.f32 %v6278, %v6524
      %v6576 = vadd.f32 %v6281, %v6527
      %v6577 = vadd.f32 %v6284, %v6530
      %v6578 = vadd.f32 %v6287, %v6533
      %v6579 = vadd.f32 %v6290, %v6536
      %v6580 = vadd.f32 %v6293, %v6539
      %v6581 = vadd.f32 %v6296, %v6542
      %v6582 = vadd.f32 %v6299, %v6545
      %v6583 = vadd.f32 %v6302, %v6548
      %v6584 = vadd.f32 %v6305, %v6551
      %v6585 = vld [vmem:[%s706] sm:$0xff]
      %v6586 = vld [vmem:[%s706 + $0x8] sm:$0xff]
      %v6587 = vld [vmem:[%s706 + $0x18] sm:$0xff]
      %v6588 = vld [vmem:[%s706 + $0x20] sm:$0xff]
      %v6589 = vld [vmem:[%s706 + $0x30] sm:$0xff]
      %v6590 = vld [vmem:[%s706 + $0x38] sm:$0xff]
      %v6591 = vld [vmem:[%s706 + $0x48] sm:$0xff]
      %v6592 = vld [vmem:[%s706 + $0x50] sm:$0xff]
      %v6593 = vld [vmem:[%s706 + $0x60] sm:$0xff]
      %v6594 = vld [vmem:[%s706 + $0x68] sm:$0xff]
      %v6595 = vld [vmem:[%s706 + $0x78] sm:$0xff]
      %v6596 = vld [vmem:[%s706 + $0x80] sm:$0xff]
      %v6597 = vld [vmem:[%s706 + $0x90] sm:$0xff]
      %v6598 = vld [vmem:[%s706 + $0x98] sm:$0xff]
      %v6599 = vld [vmem:[%s706 + $0xa8] sm:$0xff]
      %v6600 = vld [vmem:[%s706 + $0xb0] sm:$0xff]
      %v6601 = vld [vmem:[%s706 + $0xc0] sm:$0xff]
      %v6602 = vld [vmem:[%s706 + $0xc8] sm:$0xff]
      %v6603 = vld [vmem:[%s706 + $0xd8] sm:$0xff]
      %v6604 = vld [vmem:[%s706 + $0xe0] sm:$0xff]
      %v6605 = vld [vmem:[%s706 + $0xf0] sm:$0xff]
      %v6606 = vld [vmem:[%s706 + $0xf8] sm:$0xff]
      %v6607 = vld [vmem:[%s706 + $0x108] sm:$0xff]
      %v6608 = vld [vmem:[%s706 + $0x110] sm:$0xff]
      %v6609 = vld [vmem:[%s706 + $0x120] sm:$0xff]
      %v6610 = vld [vmem:[%s706 + $0x128] sm:$0xff]
      %v6611 = vld [vmem:[%s706 + $0x138] sm:$0xff]
      %v6612 = vld [vmem:[%s706 + $0x140] sm:$0xff]
      %v6613 = vld [vmem:[%s706 + $0x150] sm:$0xff]
      %v6614 = vld [vmem:[%s706 + $0x158] sm:$0xff]
      %v6615 = vld [vmem:[%s706 + $0x168] sm:$0xff]
      %v6616 = vld [vmem:[%s706 + $0x170] sm:$0xff]
      %s6617 = scalar_lea.vmem %s7, 96
      %v6618 = vld [vmem:[%s6617] sm:$0xff]
      %v6619 = vld [vmem:[%s6617 + $0x8] sm:$0xff]
      %v6620 = vld [vmem:[%s6617 + $0x10] sm:$0xff]
      %v6621 = vld [vmem:[%s6617 + $0x18] sm:$0xff]
      %v6623 = vsel %vm333, %v6585, 0
      %v6626 = vsel %vm333, %v6586, 0
      %v6629 = vsel %vm333, %v6587, 0
      %v6632 = vsel %vm333, %v6588, 0
      %v6635 = vsel %vm333, %v6589, 0
      %v6638 = vsel %vm333, %v6590, 0
      %v6641 = vsel %vm333, %v6591, 0
      %v6644 = vsel %vm333, %v6592, 0
      %v6647 = vsel %vm333, %v6593, 0
      %v6650 = vsel %vm333, %v6594, 0
      %v6653 = vsel %vm333, %v6595, 0
      %v6656 = vsel %vm333, %v6596, 0
      %v6659 = vsel %vm333, %v6597, 0
      %v6662 = vsel %vm333, %v6598, 0
      %v6665 = vsel %vm333, %v6599, 0
      %v6668 = vsel %vm333, %v6600, 0
      %v6671 = vsel %vm333, %v6601, 0
      %v6674 = vsel %vm333, %v6602, 0
      %v6677 = vsel %vm333, %v6603, 0
      %v6680 = vsel %vm333, %v6604, 0
      %v6683 = vsel %vm333, %v6605, 0
      %v6686 = vsel %vm333, %v6606, 0
      %v6689 = vsel %vm333, %v6607, 0
      %v6692 = vsel %vm333, %v6608, 0
      %v6695 = vsel %vm333, %v6609, 0
      %v6698 = vsel %vm333, %v6610, 0
      %v6701 = vsel %vm333, %v6611, 0
      %v6704 = vsel %vm333, %v6612, 0
      %v6707 = vsel %vm333, %v6613, 0
      %v6710 = vsel %vm333, %v6614, 0
      %v6713 = vsel %vm333, %v6615, 0
      %v6716 = vsel %vm333, %v6616, 0
      %6718 = vmatpush.msra.mxu0 0.0
      %6719 = vmatpush.msra.mxu0 0.0
      %6720 = vmatpush.msra.mxu0 0.0
      %6721 = vmatpush.msra.mxu0 0.0
      %6722 = vmatpush.msra.mxu0 0.0
      %6723 = vmatpush.msra.mxu0 0.0
      %6724 = vmatpush.msra.mxu0 0.0
      %6725 = vmatpush.msra.mxu0 0.0
      %6726 = vmatpush.msra.mxu0 0.0
      %6727 = vmatpush.msra.mxu0 0.0
      %6728 = vmatpush.msra.mxu0 0.0
      %6729 = vmatpush.msra.mxu0 0.0
      %6730 = vmatpush.msra.mxu0 %v6621
      %6731 = vmatpush.msra.mxu0 %v6620
      %6732 = vmatpush.msra.mxu0 %v6619
      %6733 = vmatpush.msra.mxu0 %v6618
      %6734 = vmatmul.f32.gmra.mxu0 %v6623
      %v6735 = vpop.f32.mrf.mxu0
      %v6736 = vadd.f32 0.0, %v6735
      %6737 = vmatmul.f32.gmra.mxu0 %v6626
      %v6738 = vpop.f32.mrf.mxu0
      %v6739 = vadd.f32 0.0, %v6738
      %6740 = vmatmul.f32.gmra.mxu0 %v6629
      %v6741 = vpop.f32.mrf.mxu0
      %v6742 = vadd.f32 0.0, %v6741
      %6743 = vmatmul.f32.gmra.mxu0 %v6632
      %v6744 = vpop.f32.mrf.mxu0
      %v6745 = vadd.f32 0.0, %v6744
      %6746 = vmatmul.f32.gmra.mxu0 %v6635
      %v6747 = vpop.f32.mrf.mxu0
      %v6748 = vadd.f32 0.0, %v6747
      %6749 = vmatmul.f32.gmra.mxu0 %v6638
      %v6750 = vpop.f32.mrf.mxu0
      %v6751 = vadd.f32 0.0, %v6750
      %6752 = vmatmul.f32.gmra.mxu0 %v6641
      %v6753 = vpop.f32.mrf.mxu0
      %v6754 = vadd.f32 0.0, %v6753
      %6755 = vmatmul.f32.gmra.mxu0 %v6644
      %v6756 = vpop.f32.mrf.mxu0
      %v6757 = vadd.f32 0.0, %v6756
      %6758 = vmatmul.f32.gmra.mxu0 %v6647
      %v6759 = vpop.f32.mrf.mxu0
      %v6760 = vadd.f32 0.0, %v6759
      %6761 = vmatmul.f32.gmra.mxu0 %v6650
      %v6762 = vpop.f32.mrf.mxu0
      %v6763 = vadd.f32 0.0, %v6762
      %6764 = vmatmul.f32.gmra.mxu0 %v6653
      %v6765 = vpop.f32.mrf.mxu0
      %v6766 = vadd.f32 0.0, %v6765
      %6767 = vmatmul.f32.gmra.mxu0 %v6656
      %v6768 = vpop.f32.mrf.mxu0
      %v6769 = vadd.f32 0.0, %v6768
      %6770 = vmatmul.f32.gmra.mxu0 %v6659
      %v6771 = vpop.f32.mrf.mxu0
      %v6772 = vadd.f32 0.0, %v6771
      %6773 = vmatmul.f32.gmra.mxu0 %v6662
      %v6774 = vpop.f32.mrf.mxu0
      %v6775 = vadd.f32 0.0, %v6774
      %6776 = vmatmul.f32.gmra.mxu0 %v6665
      %v6777 = vpop.f32.mrf.mxu0
      %v6778 = vadd.f32 0.0, %v6777
      %6779 = vmatmul.f32.gmra.mxu0 %v6668
      %v6780 = vpop.f32.mrf.mxu0
      %v6781 = vadd.f32 0.0, %v6780
      %6782 = vmatmul.f32.gmra.mxu0 %v6671
      %v6783 = vpop.f32.mrf.mxu0
      %v6784 = vadd.f32 0.0, %v6783
      %6785 = vmatmul.f32.gmra.mxu0 %v6674
      %v6786 = vpop.f32.mrf.mxu0
      %v6787 = vadd.f32 0.0, %v6786
      %6788 = vmatmul.f32.gmra.mxu0 %v6677
      %v6789 = vpop.f32.mrf.mxu0
      %v6790 = vadd.f32 0.0, %v6789
      %6791 = vmatmul.f32.gmra.mxu0 %v6680
      %v6792 = vpop.f32.mrf.mxu0
      %v6793 = vadd.f32 0.0, %v6792
      %6794 = vmatmul.f32.gmra.mxu0 %v6683
      %v6795 = vpop.f32.mrf.mxu0
      %v6796 = vadd.f32 0.0, %v6795
      %6797 = vmatmul.f32.gmra.mxu0 %v6686
      %v6798 = vpop.f32.mrf.mxu0
      %v6799 = vadd.f32 0.0, %v6798
      %6800 = vmatmul.f32.gmra.mxu0 %v6689
      %v6801 = vpop.f32.mrf.mxu0
      %v6802 = vadd.f32 0.0, %v6801
      %6803 = vmatmul.f32.gmra.mxu0 %v6692
      %v6804 = vpop.f32.mrf.mxu0
      %v6805 = vadd.f32 0.0, %v6804
      %6806 = vmatmul.f32.gmra.mxu0 %v6695
      %v6807 = vpop.f32.mrf.mxu0
      %v6808 = vadd.f32 0.0, %v6807
      %6809 = vmatmul.f32.gmra.mxu0 %v6698
      %v6810 = vpop.f32.mrf.mxu0
      %v6811 = vadd.f32 0.0, %v6810
      %6812 = vmatmul.f32.gmra.mxu0 %v6701
      %v6813 = vpop.f32.mrf.mxu0
      %v6814 = vadd.f32 0.0, %v6813
      %6815 = vmatmul.f32.gmra.mxu0 %v6704
      %v6816 = vpop.f32.mrf.mxu0
      %v6817 = vadd.f32 0.0, %v6816
      %6818 = vmatmul.f32.gmra.mxu0 %v6707
      %v6819 = vpop.f32.mrf.mxu0
      %v6820 = vadd.f32 0.0, %v6819
      %6821 = vmatmul.f32.gmra.mxu0 %v6710
      %v6822 = vpop.f32.mrf.mxu0
      %v6823 = vadd.f32 0.0, %v6822
      %6824 = vmatmul.f32.gmra.mxu0 %v6713
      %v6825 = vpop.f32.mrf.mxu0
      %v6826 = vadd.f32 0.0, %v6825
      %6827 = vmatmul.f32.gmra.mxu0 %v6716
      %v6828 = vpop.f32.mrf.mxu0
      %v6829 = vadd.f32 0.0, %v6828
      %6830 = vdwg.mxu0
      %v6831 = vadd.f32 %v6553, %v6736
      %v6832 = vadd.f32 %v6554, %v6739
      %v6833 = vadd.f32 %v6555, %v6742
      %v6834 = vadd.f32 %v6556, %v6745
      %v6835 = vadd.f32 %v6557, %v6748
      %v6836 = vadd.f32 %v6558, %v6751
      %v6837 = vadd.f32 %v6559, %v6754
      %v6838 = vadd.f32 %v6560, %v6757
      %v6839 = vadd.f32 %v6561, %v6760
      %v6840 = vadd.f32 %v6562, %v6763
      %v6841 = vadd.f32 %v6563, %v6766
      %v6842 = vadd.f32 %v6564, %v6769
      %v6843 = vadd.f32 %v6565, %v6772
      %v6844 = vadd.f32 %v6566, %v6775
      %v6845 = vadd.f32 %v6567, %v6778
      %v6846 = vadd.f32 %v6568, %v6781
      %v6847 = vadd.f32 %v6569, %v6784
      %v6848 = vadd.f32 %v6570, %v6787
      %v6849 = vadd.f32 %v6571, %v6790
      %v6850 = vadd.f32 %v6572, %v6793
      %v6851 = vadd.f32 %v6573, %v6796
      %v6852 = vadd.f32 %v6574, %v6799
      %v6853 = vadd.f32 %v6575, %v6802
      %v6854 = vadd.f32 %v6576, %v6805
      %v6855 = vadd.f32 %v6577, %v6808
      %v6856 = vadd.f32 %v6578, %v6811
      %v6857 = vadd.f32 %v6579, %v6814
      %v6858 = vadd.f32 %v6580, %v6817
      %v6859 = vadd.f32 %v6581, %v6820
      %v6860 = vadd.f32 %v6582, %v6823
      %v6861 = vadd.f32 %v6583, %v6826
      %v6862 = vadd.f32 %v6584, %v6829
      %v6863 = vld [vmem:[%s706 + $0x1] sm:$0xff]
      %v6864 = vld [vmem:[%s706 + $0x9] sm:$0xff]
      %v6865 = vld [vmem:[%s706 + $0x19] sm:$0xff]
      %v6866 = vld [vmem:[%s706 + $0x21] sm:$0xff]
      %v6867 = vld [vmem:[%s706 + $0x31] sm:$0xff]
      %v6868 = vld [vmem:[%s706 + $0x39] sm:$0xff]
      %v6869 = vld [vmem:[%s706 + $0x49] sm:$0xff]
      %v6870 = vld [vmem:[%s706 + $0x51] sm:$0xff]
      %v6871 = vld [vmem:[%s706 + $0x61] sm:$0xff]
      %v6872 = vld [vmem:[%s706 + $0x69] sm:$0xff]
      %v6873 = vld [vmem:[%s706 + $0x79] sm:$0xff]
      %v6874 = vld [vmem:[%s706 + $0x81] sm:$0xff]
      %v6875 = vld [vmem:[%s706 + $0x91] sm:$0xff]
      %v6876 = vld [vmem:[%s706 + $0x99] sm:$0xff]
      %v6877 = vld [vmem:[%s706 + $0xa9] sm:$0xff]
      %v6878 = vld [vmem:[%s706 + $0xb1] sm:$0xff]
      %v6879 = vld [vmem:[%s706 + $0xc1] sm:$0xff]
      %v6880 = vld [vmem:[%s706 + $0xc9] sm:$0xff]
      %v6881 = vld [vmem:[%s706 + $0xd9] sm:$0xff]
      %v6882 = vld [vmem:[%s706 + $0xe1] sm:$0xff]
      %v6883 = vld [vmem:[%s706 + $0xf1] sm:$0xff]
      %v6884 = vld [vmem:[%s706 + $0xf9] sm:$0xff]
      %v6885 = vld [vmem:[%s706 + $0x109] sm:$0xff]
      %v6886 = vld [vmem:[%s706 + $0x111] sm:$0xff]
      %v6887 = vld [vmem:[%s706 + $0x121] sm:$0xff]
      %v6888 = vld [vmem:[%s706 + $0x129] sm:$0xff]
      %v6889 = vld [vmem:[%s706 + $0x139] sm:$0xff]
      %v6890 = vld [vmem:[%s706 + $0x141] sm:$0xff]
      %v6891 = vld [vmem:[%s706 + $0x151] sm:$0xff]
      %v6892 = vld [vmem:[%s706 + $0x159] sm:$0xff]
      %v6893 = vld [vmem:[%s706 + $0x169] sm:$0xff]
      %v6894 = vld [vmem:[%s706 + $0x171] sm:$0xff]
      %s6895 = scalar_lea.vmem %s7, 128
      %v6896 = vld [vmem:[%s6895] sm:$0xff]
      %v6897 = vld [vmem:[%s6895 + $0x8] sm:$0xff]
      %v6898 = vld [vmem:[%s6895 + $0x10] sm:$0xff]
      %v6899 = vld [vmem:[%s6895 + $0x18] sm:$0xff]
      %v6901 = vsel %vm333, %v6863, 0
      %v6904 = vsel %vm333, %v6864, 0
      %v6907 = vsel %vm333, %v6865, 0
      %v6910 = vsel %vm333, %v6866, 0
      %v6913 = vsel %vm333, %v6867, 0
      %v6916 = vsel %vm333, %v6868, 0
      %v6919 = vsel %vm333, %v6869, 0
      %v6922 = vsel %vm333, %v6870, 0
      %v6925 = vsel %vm333, %v6871, 0
      %v6928 = vsel %vm333, %v6872, 0
      %v6931 = vsel %vm333, %v6873, 0
      %v6934 = vsel %vm333, %v6874, 0
      %v6937 = vsel %vm333, %v6875, 0
      %v6940 = vsel %vm333, %v6876, 0
      %v6943 = vsel %vm333, %v6877, 0
      %v6946 = vsel %vm333, %v6878, 0
      %v6949 = vsel %vm333, %v6879, 0
      %v6952 = vsel %vm333, %v6880, 0
      %v6955 = vsel %vm333, %v6881, 0
      %v6958 = vsel %vm333, %v6882, 0
      %v6961 = vsel %vm333, %v6883, 0
      %v6964 = vsel %vm333, %v6884, 0
      %v6967 = vsel %vm333, %v6885, 0
      %v6970 = vsel %vm333, %v6886, 0
      %v6973 = vsel %vm333, %v6887, 0
      %v6976 = vsel %vm333, %v6888, 0
      %v6979 = vsel %vm333, %v6889, 0
      %v6982 = vsel %vm333, %v6890, 0
      %v6985 = vsel %vm333, %v6891, 0
      %v6988 = vsel %vm333, %v6892, 0
      %v6991 = vsel %vm333, %v6893, 0
      %v6994 = vsel %vm333, %v6894, 0
      %6996 = vmatpush.msra.mxu0 0.0
      %6997 = vmatpush.msra.mxu0 0.0
      %6998 = vmatpush.msra.mxu0 0.0
      %6999 = vmatpush.msra.mxu0 0.0
      %7000 = vmatpush.msra.mxu0 0.0
      %7001 = vmatpush.msra.mxu0 0.0
      %7002 = vmatpush.msra.mxu0 0.0
      %7003 = vmatpush.msra.mxu0 0.0
      %7004 = vmatpush.msra.mxu0 0.0
      %7005 = vmatpush.msra.mxu0 0.0
      %7006 = vmatpush.msra.mxu0 0.0
      %7007 = vmatpush.msra.mxu0 0.0
      %7008 = vmatpush.msra.mxu0 %v6899
      %7009 = vmatpush.msra.mxu0 %v6898
      %7010 = vmatpush.msra.mxu0 %v6897
      %7011 = vmatpush.msra.mxu0 %v6896
      %7012 = vmatmul.f32.gmra.mxu0 %v6901
      %v7013 = vpop.f32.mrf.mxu0
      %v7014 = vadd.f32 0.0, %v7013
      %7015 = vmatmul.f32.gmra.mxu0 %v6904
      %v7016 = vpop.f32.mrf.mxu0
      %v7017 = vadd.f32 0.0, %v7016
      %7018 = vmatmul.f32.gmra.mxu0 %v6907
      %v7019 = vpop.f32.mrf.mxu0
      %v7020 = vadd.f32 0.0, %v7019
      %7021 = vmatmul.f32.gmra.mxu0 %v6910
      %v7022 = vpop.f32.mrf.mxu0
      %v7023 = vadd.f32 0.0, %v7022
      %7024 = vmatmul.f32.gmra.mxu0 %v6913
      %v7025 = vpop.f32.mrf.mxu0
      %v7026 = vadd.f32 0.0, %v7025
      %7027 = vmatmul.f32.gmra.mxu0 %v6916
      %v7028 = vpop.f32.mrf.mxu0
      %v7029 = vadd.f32 0.0, %v7028
      %7030 = vmatmul.f32.gmra.mxu0 %v6919
      %v7031 = vpop.f32.mrf.mxu0
      %v7032 = vadd.f32 0.0, %v7031
      %7033 = vmatmul.f32.gmra.mxu0 %v6922
      %v7034 = vpop.f32.mrf.mxu0
      %v7035 = vadd.f32 0.0, %v7034
      %7036 = vmatmul.f32.gmra.mxu0 %v6925
      %v7037 = vpop.f32.mrf.mxu0
      %v7038 = vadd.f32 0.0, %v7037
      %7039 = vmatmul.f32.gmra.mxu0 %v6928
      %v7040 = vpop.f32.mrf.mxu0
      %v7041 = vadd.f32 0.0, %v7040
      %7042 = vmatmul.f32.gmra.mxu0 %v6931
      %v7043 = vpop.f32.mrf.mxu0
      %v7044 = vadd.f32 0.0, %v7043
      %7045 = vmatmul.f32.gmra.mxu0 %v6934
      %v7046 = vpop.f32.mrf.mxu0
      %v7047 = vadd.f32 0.0, %v7046
      %7048 = vmatmul.f32.gmra.mxu0 %v6937
      %v7049 = vpop.f32.mrf.mxu0
      %v7050 = vadd.f32 0.0, %v7049
      %7051 = vmatmul.f32.gmra.mxu0 %v6940
      %v7052 = vpop.f32.mrf.mxu0
      %v7053 = vadd.f32 0.0, %v7052
      %7054 = vmatmul.f32.gmra.mxu0 %v6943
      %v7055 = vpop.f32.mrf.mxu0
      %v7056 = vadd.f32 0.0, %v7055
      %7057 = vmatmul.f32.gmra.mxu0 %v6946
      %v7058 = vpop.f32.mrf.mxu0
      %v7059 = vadd.f32 0.0, %v7058
      %7060 = vmatmul.f32.gmra.mxu0 %v6949
      %v7061 = vpop.f32.mrf.mxu0
      %v7062 = vadd.f32 0.0, %v7061
      %7063 = vmatmul.f32.gmra.mxu0 %v6952
      %v7064 = vpop.f32.mrf.mxu0
      %v7065 = vadd.f32 0.0, %v7064
      %7066 = vmatmul.f32.gmra.mxu0 %v6955
      %v7067 = vpop.f32.mrf.mxu0
      %v7068 = vadd.f32 0.0, %v7067
      %7069 = vmatmul.f32.gmra.mxu0 %v6958
      %v7070 = vpop.f32.mrf.mxu0
      %v7071 = vadd.f32 0.0, %v7070
      %7072 = vmatmul.f32.gmra.mxu0 %v6961
      %v7073 = vpop.f32.mrf.mxu0
      %v7074 = vadd.f32 0.0, %v7073
      %7075 = vmatmul.f32.gmra.mxu0 %v6964
      %v7076 = vpop.f32.mrf.mxu0
      %v7077 = vadd.f32 0.0, %v7076
      %7078 = vmatmul.f32.gmra.mxu0 %v6967
      %v7079 = vpop.f32.mrf.mxu0
      %v7080 = vadd.f32 0.0, %v7079
      %7081 = vmatmul.f32.gmra.mxu0 %v6970
      %v7082 = vpop.f32.mrf.mxu0
      %v7083 = vadd.f32 0.0, %v7082
      %7084 = vmatmul.f32.gmra.mxu0 %v6973
      %v7085 = vpop.f32.mrf.mxu0
      %v7086 = vadd.f32 0.0, %v7085
      %7087 = vmatmul.f32.gmra.mxu0 %v6976
      %v7088 = vpop.f32.mrf.mxu0
      %v7089 = vadd.f32 0.0, %v7088
      %7090 = vmatmul.f32.gmra.mxu0 %v6979
      %v7091 = vpop.f32.mrf.mxu0
      %v7092 = vadd.f32 0.0, %v7091
      %7093 = vmatmul.f32.gmra.mxu0 %v6982
      %v7094 = vpop.f32.mrf.mxu0
      %v7095 = vadd.f32 0.0, %v7094
      %7096 = vmatmul.f32.gmra.mxu0 %v6985
      %v7097 = vpop.f32.mrf.mxu0
      %v7098 = vadd.f32 0.0, %v7097
      %7099 = vmatmul.f32.gmra.mxu0 %v6988
      %v7100 = vpop.f32.mrf.mxu0
      %v7101 = vadd.f32 0.0, %v7100
      %7102 = vmatmul.f32.gmra.mxu0 %v6991
      %v7103 = vpop.f32.mrf.mxu0
      %v7104 = vadd.f32 0.0, %v7103
      %7105 = vmatmul.f32.gmra.mxu0 %v6994
      %v7106 = vpop.f32.mrf.mxu0
      %v7107 = vadd.f32 0.0, %v7106
      %7108 = vdwg.mxu0
      %v7109 = vadd.f32 %v6831, %v7014
      %v7110 = vadd.f32 %v6832, %v7017
      %v7111 = vadd.f32 %v6833, %v7020
      %v7112 = vadd.f32 %v6834, %v7023
      %v7113 = vadd.f32 %v6835, %v7026
      %v7114 = vadd.f32 %v6836, %v7029
      %v7115 = vadd.f32 %v6837, %v7032
      %v7116 = vadd.f32 %v6838, %v7035
      %v7117 = vadd.f32 %v6839, %v7038
      %v7118 = vadd.f32 %v6840, %v7041
      %v7119 = vadd.f32 %v6841, %v7044
      %v7120 = vadd.f32 %v6842, %v7047
      %v7121 = vadd.f32 %v6843, %v7050
      %v7122 = vadd.f32 %v6844, %v7053
      %v7123 = vadd.f32 %v6845, %v7056
      %v7124 = vadd.f32 %v6846, %v7059
      %v7125 = vadd.f32 %v6847, %v7062
      %v7126 = vadd.f32 %v6848, %v7065
      %v7127 = vadd.f32 %v6849, %v7068
      %v7128 = vadd.f32 %v6850, %v7071
      %v7129 = vadd.f32 %v6851, %v7074
      %v7130 = vadd.f32 %v6852, %v7077
      %v7131 = vadd.f32 %v6853, %v7080
      %v7132 = vadd.f32 %v6854, %v7083
      %v7133 = vadd.f32 %v6855, %v7086
      %v7134 = vadd.f32 %v6856, %v7089
      %v7135 = vadd.f32 %v6857, %v7092
      %v7136 = vadd.f32 %v6858, %v7095
      %v7137 = vadd.f32 %v6859, %v7098
      %v7138 = vadd.f32 %v6860, %v7101
      %v7139 = vadd.f32 %v6861, %v7104
      %v7140 = vadd.f32 %v6862, %v7107
      %v7141 = vld [vmem:[%s706 + $0x2] sm:$0xff]
      %v7142 = vld [vmem:[%s706 + $0xa] sm:$0xff]
      %v7143 = vld [vmem:[%s706 + $0x1a] sm:$0xff]
      %v7144 = vld [vmem:[%s706 + $0x22] sm:$0xff]
      %v7145 = vld [vmem:[%s706 + $0x32] sm:$0xff]
      %v7146 = vld [vmem:[%s706 + $0x3a] sm:$0xff]
      %v7147 = vld [vmem:[%s706 + $0x4a] sm:$0xff]
      %v7148 = vld [vmem:[%s706 + $0x52] sm:$0xff]
      %v7149 = vld [vmem:[%s706 + $0x62] sm:$0xff]
      %v7150 = vld [vmem:[%s706 + $0x6a] sm:$0xff]
      %v7151 = vld [vmem:[%s706 + $0x7a] sm:$0xff]
      %v7152 = vld [vmem:[%s706 + $0x82] sm:$0xff]
      %v7153 = vld [vmem:[%s706 + $0x92] sm:$0xff]
      %v7154 = vld [vmem:[%s706 + $0x9a] sm:$0xff]
      %v7155 = vld [vmem:[%s706 + $0xaa] sm:$0xff]
      %v7156 = vld [vmem:[%s706 + $0xb2] sm:$0xff]
      %v7157 = vld [vmem:[%s706 + $0xc2] sm:$0xff]
      %v7158 = vld [vmem:[%s706 + $0xca] sm:$0xff]
      %v7159 = vld [vmem:[%s706 + $0xda] sm:$0xff]
      %v7160 = vld [vmem:[%s706 + $0xe2] sm:$0xff]
      %v7161 = vld [vmem:[%s706 + $0xf2] sm:$0xff]
      %v7162 = vld [vmem:[%s706 + $0xfa] sm:$0xff]
      %v7163 = vld [vmem:[%s706 + $0x10a] sm:$0xff]
      %v7164 = vld [vmem:[%s706 + $0x112] sm:$0xff]
      %v7165 = vld [vmem:[%s706 + $0x122] sm:$0xff]
      %v7166 = vld [vmem:[%s706 + $0x12a] sm:$0xff]
      %v7167 = vld [vmem:[%s706 + $0x13a] sm:$0xff]
      %v7168 = vld [vmem:[%s706 + $0x142] sm:$0xff]
      %v7169 = vld [vmem:[%s706 + $0x152] sm:$0xff]
      %v7170 = vld [vmem:[%s706 + $0x15a] sm:$0xff]
      %v7171 = vld [vmem:[%s706 + $0x16a] sm:$0xff]
      %v7172 = vld [vmem:[%s706 + $0x172] sm:$0xff]
      %s7173 = scalar_lea.vmem %s7, 160
      %v7174 = vld [vmem:[%s7173] sm:$0xff]
      %v7175 = vld [vmem:[%s7173 + $0x8] sm:$0xff]
      %v7176 = vld [vmem:[%s7173 + $0x10] sm:$0xff]
      %v7177 = vld [vmem:[%s7173 + $0x18] sm:$0xff]
      %v7179 = vsel %vm333, %v7141, 0
      %v7182 = vsel %vm333, %v7142, 0
      %v7185 = vsel %vm333, %v7143, 0
      %v7188 = vsel %vm333, %v7144, 0
      %v7191 = vsel %vm333, %v7145, 0
      %v7194 = vsel %vm333, %v7146, 0
      %v7197 = vsel %vm333, %v7147, 0
      %v7200 = vsel %vm333, %v7148, 0
      %v7203 = vsel %vm333, %v7149, 0
      %v7206 = vsel %vm333, %v7150, 0
      %v7209 = vsel %vm333, %v7151, 0
      %v7212 = vsel %vm333, %v7152, 0
      %v7215 = vsel %vm333, %v7153, 0
      %v7218 = vsel %vm333, %v7154, 0
      %v7221 = vsel %vm333, %v7155, 0
      %v7224 = vsel %vm333, %v7156, 0
      %v7227 = vsel %vm333, %v7157, 0
      %v7230 = vsel %vm333, %v7158, 0
      %v7233 = vsel %vm333, %v7159, 0
      %v7236 = vsel %vm333, %v7160, 0
      %v7239 = vsel %vm333, %v7161, 0
      %v7242 = vsel %vm333, %v7162, 0
      %v7245 = vsel %vm333, %v7163, 0
      %v7248 = vsel %vm333, %v7164, 0
      %v7251 = vsel %vm333, %v7165, 0
      %v7254 = vsel %vm333, %v7166, 0
      %v7257 = vsel %vm333, %v7167, 0
      %v7260 = vsel %vm333, %v7168, 0
      %v7263 = vsel %vm333, %v7169, 0
      %v7266 = vsel %vm333, %v7170, 0
      %v7269 = vsel %vm333, %v7171, 0
      %v7272 = vsel %vm333, %v7172, 0
      %7274 = vmatpush.msra.mxu0 0.0
      %7275 = vmatpush.msra.mxu0 0.0
      %7276 = vmatpush.msra.mxu0 0.0
      %7277 = vmatpush.msra.mxu0 0.0
      %7278 = vmatpush.msra.mxu0 0.0
      %7279 = vmatpush.msra.mxu0 0.0
      %7280 = vmatpush.msra.mxu0 0.0
      %7281 = vmatpush.msra.mxu0 0.0
      %7282 = vmatpush.msra.mxu0 0.0
      %7283 = vmatpush.msra.mxu0 0.0
      %7284 = vmatpush.msra.mxu0 0.0
      %7285 = vmatpush.msra.mxu0 0.0
      %7286 = vmatpush.msra.mxu0 %v7177
      %7287 = vmatpush.msra.mxu0 %v7176
      %7288 = vmatpush.msra.mxu0 %v7175
      %7289 = vmatpush.msra.mxu0 %v7174
      %7290 = vmatmul.f32.gmra.mxu0 %v7179
      %v7291 = vpop.f32.mrf.mxu0
      %v7292 = vadd.f32 0.0, %v7291
      %7293 = vmatmul.f32.gmra.mxu0 %v7182
      %v7294 = vpop.f32.mrf.mxu0
      %v7295 = vadd.f32 0.0, %v7294
      %7296 = vmatmul.f32.gmra.mxu0 %v7185
      %v7297 = vpop.f32.mrf.mxu0
      %v7298 = vadd.f32 0.0, %v7297
      %7299 = vmatmul.f32.gmra.mxu0 %v7188
      %v7300 = vpop.f32.mrf.mxu0
      %v7301 = vadd.f32 0.0, %v7300
      %7302 = vmatmul.f32.gmra.mxu0 %v7191
      %v7303 = vpop.f32.mrf.mxu0
      %v7304 = vadd.f32 0.0, %v7303
      %7305 = vmatmul.f32.gmra.mxu0 %v7194
      %v7306 = vpop.f32.mrf.mxu0
      %v7307 = vadd.f32 0.0, %v7306
      %7308 = vmatmul.f32.gmra.mxu0 %v7197
      %v7309 = vpop.f32.mrf.mxu0
      %v7310 = vadd.f32 0.0, %v7309
      %7311 = vmatmul.f32.gmra.mxu0 %v7200
      %v7312 = vpop.f32.mrf.mxu0
      %v7313 = vadd.f32 0.0, %v7312
      %7314 = vmatmul.f32.gmra.mxu0 %v7203
      %v7315 = vpop.f32.mrf.mxu0
      %v7316 = vadd.f32 0.0, %v7315
      %7317 = vmatmul.f32.gmra.mxu0 %v7206
      %v7318 = vpop.f32.mrf.mxu0
      %v7319 = vadd.f32 0.0, %v7318
      %7320 = vmatmul.f32.gmra.mxu0 %v7209
      %v7321 = vpop.f32.mrf.mxu0
      %v7322 = vadd.f32 0.0, %v7321
      %7323 = vmatmul.f32.gmra.mxu0 %v7212
      %v7324 = vpop.f32.mrf.mxu0
      %v7325 = vadd.f32 0.0, %v7324
      %7326 = vmatmul.f32.gmra.mxu0 %v7215
      %v7327 = vpop.f32.mrf.mxu0
      %v7328 = vadd.f32 0.0, %v7327
      %7329 = vmatmul.f32.gmra.mxu0 %v7218
      %v7330 = vpop.f32.mrf.mxu0
      %v7331 = vadd.f32 0.0, %v7330
      %7332 = vmatmul.f32.gmra.mxu0 %v7221
      %v7333 = vpop.f32.mrf.mxu0
      %v7334 = vadd.f32 0.0, %v7333
      %7335 = vmatmul.f32.gmra.mxu0 %v7224
      %v7336 = vpop.f32.mrf.mxu0
      %v7337 = vadd.f32 0.0, %v7336
      %7338 = vmatmul.f32.gmra.mxu0 %v7227
      %v7339 = vpop.f32.mrf.mxu0
      %v7340 = vadd.f32 0.0, %v7339
      %7341 = vmatmul.f32.gmra.mxu0 %v7230
      %v7342 = vpop.f32.mrf.mxu0
      %v7343 = vadd.f32 0.0, %v7342
      %7344 = vmatmul.f32.gmra.mxu0 %v7233
      %v7345 = vpop.f32.mrf.mxu0
      %v7346 = vadd.f32 0.0, %v7345
      %7347 = vmatmul.f32.gmra.mxu0 %v7236
      %v7348 = vpop.f32.mrf.mxu0
      %v7349 = vadd.f32 0.0, %v7348
      %7350 = vmatmul.f32.gmra.mxu0 %v7239
      %v7351 = vpop.f32.mrf.mxu0
      %v7352 = vadd.f32 0.0, %v7351
      %7353 = vmatmul.f32.gmra.mxu0 %v7242
      %v7354 = vpop.f32.mrf.mxu0
      %v7355 = vadd.f32 0.0, %v7354
      %7356 = vmatmul.f32.gmra.mxu0 %v7245
      %v7357 = vpop.f32.mrf.mxu0
      %v7358 = vadd.f32 0.0, %v7357
      %7359 = vmatmul.f32.gmra.mxu0 %v7248
      %v7360 = vpop.f32.mrf.mxu0
      %v7361 = vadd.f32 0.0, %v7360
      %7362 = vmatmul.f32.gmra.mxu0 %v7251
      %v7363 = vpop.f32.mrf.mxu0
      %v7364 = vadd.f32 0.0, %v7363
      %7365 = vmatmul.f32.gmra.mxu0 %v7254
      %v7366 = vpop.f32.mrf.mxu0
      %v7367 = vadd.f32 0.0, %v7366
      %7368 = vmatmul.f32.gmra.mxu0 %v7257
      %v7369 = vpop.f32.mrf.mxu0
      %v7370 = vadd.f32 0.0, %v7369
      %7371 = vmatmul.f32.gmra.mxu0 %v7260
      %v7372 = vpop.f32.mrf.mxu0
      %v7373 = vadd.f32 0.0, %v7372
      %7374 = vmatmul.f32.gmra.mxu0 %v7263
      %v7375 = vpop.f32.mrf.mxu0
      %v7376 = vadd.f32 0.0, %v7375
      %7377 = vmatmul.f32.gmra.mxu0 %v7266
      %v7378 = vpop.f32.mrf.mxu0
      %v7379 = vadd.f32 0.0, %v7378
      %7380 = vmatmul.f32.gmra.mxu0 %v7269
      %v7381 = vpop.f32.mrf.mxu0
      %v7382 = vadd.f32 0.0, %v7381
      %7383 = vmatmul.f32.gmra.mxu0 %v7272
      %v7384 = vpop.f32.mrf.mxu0
      %v7385 = vadd.f32 0.0, %v7384
      %7386 = vdwg.mxu0
      %v7387 = vadd.f32 %v7109, %v7292
      %v7388 = vadd.f32 %v7110, %v7295
      %v7389 = vadd.f32 %v7111, %v7298
      %v7390 = vadd.f32 %v7112, %v7301
      %v7391 = vadd.f32 %v7113, %v7304
      %v7392 = vadd.f32 %v7114, %v7307
      %v7393 = vadd.f32 %v7115, %v7310
      %v7394 = vadd.f32 %v7116, %v7313
      %v7395 = vadd.f32 %v7117, %v7316
      %v7396 = vadd.f32 %v7118, %v7319
      %v7397 = vadd.f32 %v7119, %v7322
      %v7398 = vadd.f32 %v7120, %v7325
      %v7399 = vadd.f32 %v7121, %v7328
      %v7400 = vadd.f32 %v7122, %v7331
      %v7401 = vadd.f32 %v7123, %v7334
      %v7402 = vadd.f32 %v7124, %v7337
      %v7403 = vadd.f32 %v7125, %v7340
      %v7404 = vadd.f32 %v7126, %v7343
      %v7405 = vadd.f32 %v7127, %v7346
      %v7406 = vadd.f32 %v7128, %v7349
      %v7407 = vadd.f32 %v7129, %v7352
      %v7408 = vadd.f32 %v7130, %v7355
      %v7409 = vadd.f32 %v7131, %v7358
      %v7410 = vadd.f32 %v7132, %v7361
      %v7411 = vadd.f32 %v7133, %v7364
      %v7412 = vadd.f32 %v7134, %v7367
      %v7413 = vadd.f32 %v7135, %v7370
      %v7414 = vadd.f32 %v7136, %v7373
      %v7415 = vadd.f32 %v7137, %v7376
      %v7416 = vadd.f32 %v7138, %v7379
      %v7417 = vadd.f32 %v7139, %v7382
      %v7418 = vadd.f32 %v7140, %v7385
      %v7419 = vld [vmem:[%s2342] sm:$0xff]
      %v7420 = vld [vmem:[%s2342 + $0x8] sm:$0xff]
      %v7421 = vld [vmem:[%s2342 + $0x18] sm:$0xff]
      %v7422 = vld [vmem:[%s2342 + $0x20] sm:$0xff]
      %v7423 = vld [vmem:[%s2342 + $0x30] sm:$0xff]
      %v7424 = vld [vmem:[%s2342 + $0x38] sm:$0xff]
      %v7425 = vld [vmem:[%s2342 + $0x48] sm:$0xff]
      %v7426 = vld [vmem:[%s2342 + $0x50] sm:$0xff]
      %v7427 = vld [vmem:[%s2342 + $0x60] sm:$0xff]
      %v7428 = vld [vmem:[%s2342 + $0x68] sm:$0xff]
      %v7429 = vld [vmem:[%s2342 + $0x78] sm:$0xff]
      %v7430 = vld [vmem:[%s2342 + $0x80] sm:$0xff]
      %v7431 = vld [vmem:[%s2342 + $0x90] sm:$0xff]
      %v7432 = vld [vmem:[%s2342 + $0x98] sm:$0xff]
      %v7433 = vld [vmem:[%s2342 + $0xa8] sm:$0xff]
      %v7434 = vld [vmem:[%s2342 + $0xb0] sm:$0xff]
      %v7435 = vld [vmem:[%s2342 + $0xc0] sm:$0xff]
      %v7436 = vld [vmem:[%s2342 + $0xc8] sm:$0xff]
      %v7437 = vld [vmem:[%s2342 + $0xd8] sm:$0xff]
      %v7438 = vld [vmem:[%s2342 + $0xe0] sm:$0xff]
      %v7439 = vld [vmem:[%s2342 + $0xf0] sm:$0xff]
      %v7440 = vld [vmem:[%s2342 + $0xf8] sm:$0xff]
      %v7441 = vld [vmem:[%s2342 + $0x108] sm:$0xff]
      %v7442 = vld [vmem:[%s2342 + $0x110] sm:$0xff]
      %v7443 = vld [vmem:[%s2342 + $0x120] sm:$0xff]
      %v7444 = vld [vmem:[%s2342 + $0x128] sm:$0xff]
      %v7445 = vld [vmem:[%s2342 + $0x138] sm:$0xff]
      %v7446 = vld [vmem:[%s2342 + $0x140] sm:$0xff]
      %v7447 = vld [vmem:[%s2342 + $0x150] sm:$0xff]
      %v7448 = vld [vmem:[%s2342 + $0x158] sm:$0xff]
      %v7449 = vld [vmem:[%s2342 + $0x168] sm:$0xff]
      %v7450 = vld [vmem:[%s2342 + $0x170] sm:$0xff]
      %s7451 = scalar_lea.vmem %s7, 192
      %v7452 = vld [vmem:[%s7451] sm:$0xff]
      %v7453 = vld [vmem:[%s7451 + $0x8] sm:$0xff]
      %v7454 = vld [vmem:[%s7451 + $0x10] sm:$0xff]
      %v7455 = vld [vmem:[%s7451 + $0x18] sm:$0xff]
      %v7457 = vsel %vm333, %v7419, 0
      %v7460 = vsel %vm333, %v7420, 0
      %v7463 = vsel %vm333, %v7421, 0
      %v7466 = vsel %vm333, %v7422, 0
      %v7469 = vsel %vm333, %v7423, 0
      %v7472 = vsel %vm333, %v7424, 0
      %v7475 = vsel %vm333, %v7425, 0
      %v7478 = vsel %vm333, %v7426, 0
      %v7481 = vsel %vm333, %v7427, 0
      %v7484 = vsel %vm333, %v7428, 0
      %v7487 = vsel %vm333, %v7429, 0
      %v7490 = vsel %vm333, %v7430, 0
      %v7493 = vsel %vm333, %v7431, 0
      %v7496 = vsel %vm333, %v7432, 0
      %v7499 = vsel %vm333, %v7433, 0
      %v7502 = vsel %vm333, %v7434, 0
      %v7505 = vsel %vm333, %v7435, 0
      %v7508 = vsel %vm333, %v7436, 0
      %v7511 = vsel %vm333, %v7437, 0
      %v7514 = vsel %vm333, %v7438, 0
      %v7517 = vsel %vm333, %v7439, 0
      %v7520 = vsel %vm333, %v7440, 0
      %v7523 = vsel %vm333, %v7441, 0
      %v7526 = vsel %vm333, %v7442, 0
      %v7529 = vsel %vm333, %v7443, 0
      %v7532 = vsel %vm333, %v7444, 0
      %v7535 = vsel %vm333, %v7445, 0
      %v7538 = vsel %vm333, %v7446, 0
      %v7541 = vsel %vm333, %v7447, 0
      %v7544 = vsel %vm333, %v7448, 0
      %v7547 = vsel %vm333, %v7449, 0
      %v7550 = vsel %vm333, %v7450, 0
      %7552 = vmatpush.msra.mxu0 0.0
      %7553 = vmatpush.msra.mxu0 0.0
      %7554 = vmatpush.msra.mxu0 0.0
      %7555 = vmatpush.msra.mxu0 0.0
      %7556 = vmatpush.msra.mxu0 0.0
      %7557 = vmatpush.msra.mxu0 0.0
      %7558 = vmatpush.msra.mxu0 0.0
      %7559 = vmatpush.msra.mxu0 0.0
      %7560 = vmatpush.msra.mxu0 0.0
      %7561 = vmatpush.msra.mxu0 0.0
      %7562 = vmatpush.msra.mxu0 0.0
      %7563 = vmatpush.msra.mxu0 0.0
      %7564 = vmatpush.msra.mxu0 %v7455
      %7565 = vmatpush.msra.mxu0 %v7454
      %7566 = vmatpush.msra.mxu0 %v7453
      %7567 = vmatpush.msra.mxu0 %v7452
      %7568 = vmatmul.f32.gmra.mxu0 %v7457
      %v7569 = vpop.f32.mrf.mxu0
      %v7570 = vadd.f32 0.0, %v7569
      %7571 = vmatmul.f32.gmra.mxu0 %v7460
      %v7572 = vpop.f32.mrf.mxu0
      %v7573 = vadd.f32 0.0, %v7572
      %7574 = vmatmul.f32.gmra.mxu0 %v7463
      %v7575 = vpop.f32.mrf.mxu0
      %v7576 = vadd.f32 0.0, %v7575
      %7577 = vmatmul.f32.gmra.mxu0 %v7466
      %v7578 = vpop.f32.mrf.mxu0
      %v7579 = vadd.f32 0.0, %v7578
      %7580 = vmatmul.f32.gmra.mxu0 %v7469
      %v7581 = vpop.f32.mrf.mxu0
      %v7582 = vadd.f32 0.0, %v7581
      %7583 = vmatmul.f32.gmra.mxu0 %v7472
      %v7584 = vpop.f32.mrf.mxu0
      %v7585 = vadd.f32 0.0, %v7584
      %7586 = vmatmul.f32.gmra.mxu0 %v7475
      %v7587 = vpop.f32.mrf.mxu0
      %v7588 = vadd.f32 0.0, %v7587
      %7589 = vmatmul.f32.gmra.mxu0 %v7478
      %v7590 = vpop.f32.mrf.mxu0
      %v7591 = vadd.f32 0.0, %v7590
      %7592 = vmatmul.f32.gmra.mxu0 %v7481
      %v7593 = vpop.f32.mrf.mxu0
      %v7594 = vadd.f32 0.0, %v7593
      %7595 = vmatmul.f32.gmra.mxu0 %v7484
      %v7596 = vpop.f32.mrf.mxu0
      %v7597 = vadd.f32 0.0, %v7596
      %7598 = vmatmul.f32.gmra.mxu0 %v7487
      %v7599 = vpop.f32.mrf.mxu0
      %v7600 = vadd.f32 0.0, %v7599
      %7601 = vmatmul.f32.gmra.mxu0 %v7490
      %v7602 = vpop.f32.mrf.mxu0
      %v7603 = vadd.f32 0.0, %v7602
      %7604 = vmatmul.f32.gmra.mxu0 %v7493
      %v7605 = vpop.f32.mrf.mxu0
      %v7606 = vadd.f32 0.0, %v7605
      %7607 = vmatmul.f32.gmra.mxu0 %v7496
      %v7608 = vpop.f32.mrf.mxu0
      %v7609 = vadd.f32 0.0, %v7608
      %7610 = vmatmul.f32.gmra.mxu0 %v7499
      %v7611 = vpop.f32.mrf.mxu0
      %v7612 = vadd.f32 0.0, %v7611
      %7613 = vmatmul.f32.gmra.mxu0 %v7502
      %v7614 = vpop.f32.mrf.mxu0
      %v7615 = vadd.f32 0.0, %v7614
      %7616 = vmatmul.f32.gmra.mxu0 %v7505
      %v7617 = vpop.f32.mrf.mxu0
      %v7618 = vadd.f32 0.0, %v7617
      %7619 = vmatmul.f32.gmra.mxu0 %v7508
      %v7620 = vpop.f32.mrf.mxu0
      %v7621 = vadd.f32 0.0, %v7620
      %7622 = vmatmul.f32.gmra.mxu0 %v7511
      %v7623 = vpop.f32.mrf.mxu0
      %v7624 = vadd.f32 0.0, %v7623
      %7625 = vmatmul.f32.gmra.mxu0 %v7514
      %v7626 = vpop.f32.mrf.mxu0
      %v7627 = vadd.f32 0.0, %v7626
      %7628 = vmatmul.f32.gmra.mxu0 %v7517
      %v7629 = vpop.f32.mrf.mxu0
      %v7630 = vadd.f32 0.0, %v7629
      %7631 = vmatmul.f32.gmra.mxu0 %v7520
      %v7632 = vpop.f32.mrf.mxu0
      %v7633 = vadd.f32 0.0, %v7632
      %7634 = vmatmul.f32.gmra.mxu0 %v7523
      %v7635 = vpop.f32.mrf.mxu0
      %v7636 = vadd.f32 0.0, %v7635
      %7637 = vmatmul.f32.gmra.mxu0 %v7526
      %v7638 = vpop.f32.mrf.mxu0
      %v7639 = vadd.f32 0.0, %v7638
      %7640 = vmatmul.f32.gmra.mxu0 %v7529
      %v7641 = vpop.f32.mrf.mxu0
      %v7642 = vadd.f32 0.0, %v7641
      %7643 = vmatmul.f32.gmra.mxu0 %v7532
      %v7644 = vpop.f32.mrf.mxu0
      %v7645 = vadd.f32 0.0, %v7644
      %7646 = vmatmul.f32.gmra.mxu0 %v7535
      %v7647 = vpop.f32.mrf.mxu0
      %v7648 = vadd.f32 0.0, %v7647
      %7649 = vmatmul.f32.gmra.mxu0 %v7538
      %v7650 = vpop.f32.mrf.mxu0
      %v7651 = vadd.f32 0.0, %v7650
      %7652 = vmatmul.f32.gmra.mxu0 %v7541
      %v7653 = vpop.f32.mrf.mxu0
      %v7654 = vadd.f32 0.0, %v7653
      %7655 = vmatmul.f32.gmra.mxu0 %v7544
      %v7656 = vpop.f32.mrf.mxu0
      %v7657 = vadd.f32 0.0, %v7656
      %7658 = vmatmul.f32.gmra.mxu0 %v7547
      %v7659 = vpop.f32.mrf.mxu0
      %v7660 = vadd.f32 0.0, %v7659
      %7661 = vmatmul.f32.gmra.mxu0 %v7550
      %v7662 = vpop.f32.mrf.mxu0
      %v7663 = vadd.f32 0.0, %v7662
      %7664 = vdwg.mxu0
      %v7665 = vadd.f32 %v7387, %v7570
      %v7666 = vadd.f32 %v7388, %v7573
      %v7667 = vadd.f32 %v7389, %v7576
      %v7668 = vadd.f32 %v7390, %v7579
      %v7669 = vadd.f32 %v7391, %v7582
      %v7670 = vadd.f32 %v7392, %v7585
      %v7671 = vadd.f32 %v7393, %v7588
      %v7672 = vadd.f32 %v7394, %v7591
      %v7673 = vadd.f32 %v7395, %v7594
      %v7674 = vadd.f32 %v7396, %v7597
      %v7675 = vadd.f32 %v7397, %v7600
      %v7676 = vadd.f32 %v7398, %v7603
      %v7677 = vadd.f32 %v7399, %v7606
      %v7678 = vadd.f32 %v7400, %v7609
      %v7679 = vadd.f32 %v7401, %v7612
      %v7680 = vadd.f32 %v7402, %v7615
      %v7681 = vadd.f32 %v7403, %v7618
      %v7682 = vadd.f32 %v7404, %v7621
      %v7683 = vadd.f32 %v7405, %v7624
      %v7684 = vadd.f32 %v7406, %v7627
      %v7685 = vadd.f32 %v7407, %v7630
      %v7686 = vadd.f32 %v7408, %v7633
      %v7687 = vadd.f32 %v7409, %v7636
      %v7688 = vadd.f32 %v7410, %v7639
      %v7689 = vadd.f32 %v7411, %v7642
      %v7690 = vadd.f32 %v7412, %v7645
      %v7691 = vadd.f32 %v7413, %v7648
      %v7692 = vadd.f32 %v7414, %v7651
      %v7693 = vadd.f32 %v7415, %v7654
      %v7694 = vadd.f32 %v7416, %v7657
      %v7695 = vadd.f32 %v7417, %v7660
      %v7696 = vadd.f32 %v7418, %v7663
      %v7697 = vld [vmem:[%s2342 + $0x1] sm:$0xff]
      %v7698 = vld [vmem:[%s2342 + $0x9] sm:$0xff]
      %v7699 = vld [vmem:[%s2342 + $0x19] sm:$0xff]
      %v7700 = vld [vmem:[%s2342 + $0x21] sm:$0xff]
      %v7701 = vld [vmem:[%s2342 + $0x31] sm:$0xff]
      %v7702 = vld [vmem:[%s2342 + $0x39] sm:$0xff]
      %v7703 = vld [vmem:[%s2342 + $0x49] sm:$0xff]
      %v7704 = vld [vmem:[%s2342 + $0x51] sm:$0xff]
      %v7705 = vld [vmem:[%s2342 + $0x61] sm:$0xff]
      %v7706 = vld [vmem:[%s2342 + $0x69] sm:$0xff]
      %v7707 = vld [vmem:[%s2342 + $0x79] sm:$0xff]
      %v7708 = vld [vmem:[%s2342 + $0x81] sm:$0xff]
      %v7709 = vld [vmem:[%s2342 + $0x91] sm:$0xff]
      %v7710 = vld [vmem:[%s2342 + $0x99] sm:$0xff]
      %v7711 = vld [vmem:[%s2342 + $0xa9] sm:$0xff]
      %v7712 = vld [vmem:[%s2342 + $0xb1] sm:$0xff]
      %v7713 = vld [vmem:[%s2342 + $0xc1] sm:$0xff]
      %v7714 = vld [vmem:[%s2342 + $0xc9] sm:$0xff]
      %v7715 = vld [vmem:[%s2342 + $0xd9] sm:$0xff]
      %v7716 = vld [vmem:[%s2342 + $0xe1] sm:$0xff]
      %v7717 = vld [vmem:[%s2342 + $0xf1] sm:$0xff]
      %v7718 = vld [vmem:[%s2342 + $0xf9] sm:$0xff]
      %v7719 = vld [vmem:[%s2342 + $0x109] sm:$0xff]
      %v7720 = vld [vmem:[%s2342 + $0x111] sm:$0xff]
      %v7721 = vld [vmem:[%s2342 + $0x121] sm:$0xff]
      %v7722 = vld [vmem:[%s2342 + $0x129] sm:$0xff]
      %v7723 = vld [vmem:[%s2342 + $0x139] sm:$0xff]
      %v7724 = vld [vmem:[%s2342 + $0x141] sm:$0xff]
      %v7725 = vld [vmem:[%s2342 + $0x151] sm:$0xff]
      %v7726 = vld [vmem:[%s2342 + $0x159] sm:$0xff]
      %v7727 = vld [vmem:[%s2342 + $0x169] sm:$0xff]
      %v7728 = vld [vmem:[%s2342 + $0x171] sm:$0xff]
      %s7729 = scalar_lea.vmem %s7, 224
      %v7730 = vld [vmem:[%s7729] sm:$0xff]
      %v7731 = vld [vmem:[%s7729 + $0x8] sm:$0xff]
      %v7732 = vld [vmem:[%s7729 + $0x10] sm:$0xff]
      %v7733 = vld [vmem:[%s7729 + $0x18] sm:$0xff]
      %v7735 = vsel %vm333, %v7697, 0
      %v7738 = vsel %vm333, %v7698, 0
      %v7741 = vsel %vm333, %v7699, 0
      %v7744 = vsel %vm333, %v7700, 0
      %v7747 = vsel %vm333, %v7701, 0
      %v7750 = vsel %vm333, %v7702, 0
      %v7753 = vsel %vm333, %v7703, 0
      %v7756 = vsel %vm333, %v7704, 0
      %v7759 = vsel %vm333, %v7705, 0
      %v7762 = vsel %vm333, %v7706, 0
      %v7765 = vsel %vm333, %v7707, 0
      %v7768 = vsel %vm333, %v7708, 0
      %v7771 = vsel %vm333, %v7709, 0
      %v7774 = vsel %vm333, %v7710, 0
      %v7777 = vsel %vm333, %v7711, 0
      %v7780 = vsel %vm333, %v7712, 0
      %v7783 = vsel %vm333, %v7713, 0
      %v7786 = vsel %vm333, %v7714, 0
      %v7789 = vsel %vm333, %v7715, 0
      %v7792 = vsel %vm333, %v7716, 0
      %v7795 = vsel %vm333, %v7717, 0
      %v7798 = vsel %vm333, %v7718, 0
      %v7801 = vsel %vm333, %v7719, 0
      %v7804 = vsel %vm333, %v7720, 0
      %v7807 = vsel %vm333, %v7721, 0
      %v7810 = vsel %vm333, %v7722, 0
      %v7813 = vsel %vm333, %v7723, 0
      %v7816 = vsel %vm333, %v7724, 0
      %v7819 = vsel %vm333, %v7725, 0
      %v7822 = vsel %vm333, %v7726, 0
      %v7825 = vsel %vm333, %v7727, 0
      %v7828 = vsel %vm333, %v7728, 0
      %7830 = vmatpush.msra.mxu0 0.0
      %7831 = vmatpush.msra.mxu0 0.0
      %7832 = vmatpush.msra.mxu0 0.0
      %7833 = vmatpush.msra.mxu0 0.0
      %7834 = vmatpush.msra.mxu0 0.0
      %7835 = vmatpush.msra.mxu0 0.0
      %7836 = vmatpush.msra.mxu0 0.0
      %7837 = vmatpush.msra.mxu0 0.0
      %7838 = vmatpush.msra.mxu0 0.0
      %7839 = vmatpush.msra.mxu0 0.0
      %7840 = vmatpush.msra.mxu0 0.0
      %7841 = vmatpush.msra.mxu0 0.0
      %7842 = vmatpush.msra.mxu0 %v7733
      %7843 = vmatpush.msra.mxu0 %v7732
      %7844 = vmatpush.msra.mxu0 %v7731
      %7845 = vmatpush.msra.mxu0 %v7730
      %7846 = vmatmul.f32.gmra.mxu0 %v7735
      %v7847 = vpop.f32.mrf.mxu0
      %v7848 = vadd.f32 0.0, %v7847
      %7849 = vmatmul.f32.gmra.mxu0 %v7738
      %v7850 = vpop.f32.mrf.mxu0
      %v7851 = vadd.f32 0.0, %v7850
      %7852 = vmatmul.f32.gmra.mxu0 %v7741
      %v7853 = vpop.f32.mrf.mxu0
      %v7854 = vadd.f32 0.0, %v7853
      %7855 = vmatmul.f32.gmra.mxu0 %v7744
      %v7856 = vpop.f32.mrf.mxu0
      %v7857 = vadd.f32 0.0, %v7856
      %7858 = vmatmul.f32.gmra.mxu0 %v7747
      %v7859 = vpop.f32.mrf.mxu0
      %v7860 = vadd.f32 0.0, %v7859
      %7861 = vmatmul.f32.gmra.mxu0 %v7750
      %v7862 = vpop.f32.mrf.mxu0
      %v7863 = vadd.f32 0.0, %v7862
      %7864 = vmatmul.f32.gmra.mxu0 %v7753
      %v7865 = vpop.f32.mrf.mxu0
      %v7866 = vadd.f32 0.0, %v7865
      %7867 = vmatmul.f32.gmra.mxu0 %v7756
      %v7868 = vpop.f32.mrf.mxu0
      %v7869 = vadd.f32 0.0, %v7868
      %7870 = vmatmul.f32.gmra.mxu0 %v7759
      %v7871 = vpop.f32.mrf.mxu0
      %v7872 = vadd.f32 0.0, %v7871
      %7873 = vmatmul.f32.gmra.mxu0 %v7762
      %v7874 = vpop.f32.mrf.mxu0
      %v7875 = vadd.f32 0.0, %v7874
      %7876 = vmatmul.f32.gmra.mxu0 %v7765
      %v7877 = vpop.f32.mrf.mxu0
      %v7878 = vadd.f32 0.0, %v7877
      %7879 = vmatmul.f32.gmra.mxu0 %v7768
      %v7880 = vpop.f32.mrf.mxu0
      %v7881 = vadd.f32 0.0, %v7880
      %7882 = vmatmul.f32.gmra.mxu0 %v7771
      %v7883 = vpop.f32.mrf.mxu0
      %v7884 = vadd.f32 0.0, %v7883
      %7885 = vmatmul.f32.gmra.mxu0 %v7774
      %v7886 = vpop.f32.mrf.mxu0
      %v7887 = vadd.f32 0.0, %v7886
      %7888 = vmatmul.f32.gmra.mxu0 %v7777
      %v7889 = vpop.f32.mrf.mxu0
      %v7890 = vadd.f32 0.0, %v7889
      %7891 = vmatmul.f32.gmra.mxu0 %v7780
      %v7892 = vpop.f32.mrf.mxu0
      %v7893 = vadd.f32 0.0, %v7892
      %7894 = vmatmul.f32.gmra.mxu0 %v7783
      %v7895 = vpop.f32.mrf.mxu0
      %v7896 = vadd.f32 0.0, %v7895
      %7897 = vmatmul.f32.gmra.mxu0 %v7786
      %v7898 = vpop.f32.mrf.mxu0
      %v7899 = vadd.f32 0.0, %v7898
      %7900 = vmatmul.f32.gmra.mxu0 %v7789
      %v7901 = vpop.f32.mrf.mxu0
      %v7902 = vadd.f32 0.0, %v7901
      %7903 = vmatmul.f32.gmra.mxu0 %v7792
      %v7904 = vpop.f32.mrf.mxu0
      %v7905 = vadd.f32 0.0, %v7904
      %7906 = vmatmul.f32.gmra.mxu0 %v7795
      %v7907 = vpop.f32.mrf.mxu0
      %v7908 = vadd.f32 0.0, %v7907
      %7909 = vmatmul.f32.gmra.mxu0 %v7798
      %v7910 = vpop.f32.mrf.mxu0
      %v7911 = vadd.f32 0.0, %v7910
      %7912 = vmatmul.f32.gmra.mxu0 %v7801
      %v7913 = vpop.f32.mrf.mxu0
      %v7914 = vadd.f32 0.0, %v7913
      %7915 = vmatmul.f32.gmra.mxu0 %v7804
      %v7916 = vpop.f32.mrf.mxu0
      %v7917 = vadd.f32 0.0, %v7916
      %7918 = vmatmul.f32.gmra.mxu0 %v7807
      %v7919 = vpop.f32.mrf.mxu0
      %v7920 = vadd.f32 0.0, %v7919
      %7921 = vmatmul.f32.gmra.mxu0 %v7810
      %v7922 = vpop.f32.mrf.mxu0
      %v7923 = vadd.f32 0.0, %v7922
      %7924 = vmatmul.f32.gmra.mxu0 %v7813
      %v7925 = vpop.f32.mrf.mxu0
      %v7926 = vadd.f32 0.0, %v7925
      %7927 = vmatmul.f32.gmra.mxu0 %v7816
      %v7928 = vpop.f32.mrf.mxu0
      %v7929 = vadd.f32 0.0, %v7928
      %7930 = vmatmul.f32.gmra.mxu0 %v7819
      %v7931 = vpop.f32.mrf.mxu0
      %v7932 = vadd.f32 0.0, %v7931
      %7933 = vmatmul.f32.gmra.mxu0 %v7822
      %v7934 = vpop.f32.mrf.mxu0
      %v7935 = vadd.f32 0.0, %v7934
      %7936 = vmatmul.f32.gmra.mxu0 %v7825
      %v7937 = vpop.f32.mrf.mxu0
      %v7938 = vadd.f32 0.0, %v7937
      %7939 = vmatmul.f32.gmra.mxu0 %v7828
      %v7940 = vpop.f32.mrf.mxu0
      %v7941 = vadd.f32 0.0, %v7940
      %7942 = vdwg.mxu0
      %v7943 = vadd.f32 %v7665, %v7848
      %v7944 = vadd.f32 %v7666, %v7851
      %v7945 = vadd.f32 %v7667, %v7854
      %v7946 = vadd.f32 %v7668, %v7857
      %v7947 = vadd.f32 %v7669, %v7860
      %v7948 = vadd.f32 %v7670, %v7863
      %v7949 = vadd.f32 %v7671, %v7866
      %v7950 = vadd.f32 %v7672, %v7869
      %v7951 = vadd.f32 %v7673, %v7872
      %v7952 = vadd.f32 %v7674, %v7875
      %v7953 = vadd.f32 %v7675, %v7878
      %v7954 = vadd.f32 %v7676, %v7881
      %v7955 = vadd.f32 %v7677, %v7884
      %v7956 = vadd.f32 %v7678, %v7887
      %v7957 = vadd.f32 %v7679, %v7890
      %v7958 = vadd.f32 %v7680, %v7893
      %v7959 = vadd.f32 %v7681, %v7896
      %v7960 = vadd.f32 %v7682, %v7899
      %v7961 = vadd.f32 %v7683, %v7902
      %v7962 = vadd.f32 %v7684, %v7905
      %v7963 = vadd.f32 %v7685, %v7908
      %v7964 = vadd.f32 %v7686, %v7911
      %v7965 = vadd.f32 %v7687, %v7914
      %v7966 = vadd.f32 %v7688, %v7917
      %v7967 = vadd.f32 %v7689, %v7920
      %v7968 = vadd.f32 %v7690, %v7923
      %v7969 = vadd.f32 %v7691, %v7926
      %v7970 = vadd.f32 %v7692, %v7929
      %v7971 = vadd.f32 %v7693, %v7932
      %v7972 = vadd.f32 %v7694, %v7935
      %v7973 = vadd.f32 %v7695, %v7938
      %v7974 = vadd.f32 %v7696, %v7941
      %v7975 = vld [vmem:[%s2342 + $0x2] sm:$0xff]
      %v7976 = vld [vmem:[%s2342 + $0xa] sm:$0xff]
      %v7977 = vld [vmem:[%s2342 + $0x1a] sm:$0xff]
      %v7978 = vld [vmem:[%s2342 + $0x22] sm:$0xff]
      %v7979 = vld [vmem:[%s2342 + $0x32] sm:$0xff]
      %v7980 = vld [vmem:[%s2342 + $0x3a] sm:$0xff]
      %v7981 = vld [vmem:[%s2342 + $0x4a] sm:$0xff]
      %v7982 = vld [vmem:[%s2342 + $0x52] sm:$0xff]
      %v7983 = vld [vmem:[%s2342 + $0x62] sm:$0xff]
      %v7984 = vld [vmem:[%s2342 + $0x6a] sm:$0xff]
      %v7985 = vld [vmem:[%s2342 + $0x7a] sm:$0xff]
      %v7986 = vld [vmem:[%s2342 + $0x82] sm:$0xff]
      %v7987 = vld [vmem:[%s2342 + $0x92] sm:$0xff]
      %v7988 = vld [vmem:[%s2342 + $0x9a] sm:$0xff]
      %v7989 = vld [vmem:[%s2342 + $0xaa] sm:$0xff]
      %v7990 = vld [vmem:[%s2342 + $0xb2] sm:$0xff]
      %v7991 = vld [vmem:[%s2342 + $0xc2] sm:$0xff]
      %v7992 = vld [vmem:[%s2342 + $0xca] sm:$0xff]
      %v7993 = vld [vmem:[%s2342 + $0xda] sm:$0xff]
      %v7994 = vld [vmem:[%s2342 + $0xe2] sm:$0xff]
      %v7995 = vld [vmem:[%s2342 + $0xf2] sm:$0xff]
      %v7996 = vld [vmem:[%s2342 + $0xfa] sm:$0xff]
      %v7997 = vld [vmem:[%s2342 + $0x10a] sm:$0xff]
      %v7998 = vld [vmem:[%s2342 + $0x112] sm:$0xff]
      %v7999 = vld [vmem:[%s2342 + $0x122] sm:$0xff]
      %v8000 = vld [vmem:[%s2342 + $0x12a] sm:$0xff]
      %v8001 = vld [vmem:[%s2342 + $0x13a] sm:$0xff]
      %v8002 = vld [vmem:[%s2342 + $0x142] sm:$0xff]
      %v8003 = vld [vmem:[%s2342 + $0x152] sm:$0xff]
      %v8004 = vld [vmem:[%s2342 + $0x15a] sm:$0xff]
      %v8005 = vld [vmem:[%s2342 + $0x16a] sm:$0xff]
      %v8006 = vld [vmem:[%s2342 + $0x172] sm:$0xff]
      %s8007 = scalar_lea.vmem %s7, 256
      %v8008 = vld [vmem:[%s8007] sm:$0xff]
      %v8009 = vld [vmem:[%s8007 + $0x8] sm:$0xff]
      %v8010 = vld [vmem:[%s8007 + $0x10] sm:$0xff]
      %v8011 = vld [vmem:[%s8007 + $0x18] sm:$0xff]
      %v8013 = vsel %vm333, %v7975, 0
      %v8016 = vsel %vm333, %v7976, 0
      %v8019 = vsel %vm333, %v7977, 0
      %v8022 = vsel %vm333, %v7978, 0
      %v8025 = vsel %vm333, %v7979, 0
      %v8028 = vsel %vm333, %v7980, 0
      %v8031 = vsel %vm333, %v7981, 0
      %v8034 = vsel %vm333, %v7982, 0
      %v8037 = vsel %vm333, %v7983, 0
      %v8040 = vsel %vm333, %v7984, 0
      %v8043 = vsel %vm333, %v7985, 0
      %v8046 = vsel %vm333, %v7986, 0
      %v8049 = vsel %vm333, %v7987, 0
      %v8052 = vsel %vm333, %v7988, 0
      %v8055 = vsel %vm333, %v7989, 0
      %v8058 = vsel %vm333, %v7990, 0
      %v8061 = vsel %vm333, %v7991, 0
      %v8064 = vsel %vm333, %v7992, 0
      %v8067 = vsel %vm333, %v7993, 0
      %v8070 = vsel %vm333, %v7994, 0
      %v8073 = vsel %vm333, %v7995, 0
      %v8076 = vsel %vm333, %v7996, 0
      %v8079 = vsel %vm333, %v7997, 0
      %v8082 = vsel %vm333, %v7998, 0
      %v8085 = vsel %vm333, %v7999, 0
      %v8088 = vsel %vm333, %v8000, 0
      %v8091 = vsel %vm333, %v8001, 0
      %v8094 = vsel %vm333, %v8002, 0
      %v8097 = vsel %vm333, %v8003, 0
      %v8100 = vsel %vm333, %v8004, 0
      %v8103 = vsel %vm333, %v8005, 0
      %v8106 = vsel %vm333, %v8006, 0
      %8108 = vmatpush.msra.mxu0 0.0
      %8109 = vmatpush.msra.mxu0 0.0
      %8110 = vmatpush.msra.mxu0 0.0
      %8111 = vmatpush.msra.mxu0 0.0
      %8112 = vmatpush.msra.mxu0 0.0
      %8113 = vmatpush.msra.mxu0 0.0
      %8114 = vmatpush.msra.mxu0 0.0
      %8115 = vmatpush.msra.mxu0 0.0
      %8116 = vmatpush.msra.mxu0 0.0
      %8117 = vmatpush.msra.mxu0 0.0
      %8118 = vmatpush.msra.mxu0 0.0
      %8119 = vmatpush.msra.mxu0 0.0
      %8120 = vmatpush.msra.mxu0 %v8011
      %8121 = vmatpush.msra.mxu0 %v8010
      %8122 = vmatpush.msra.mxu0 %v8009
      %8123 = vmatpush.msra.mxu0 %v8008
      %8124 = vmatmul.f32.gmra.mxu0 %v8013
      %v8125 = vpop.f32.mrf.mxu0
      %v8126 = vadd.f32 0.0, %v8125
      %8127 = vmatmul.f32.gmra.mxu0 %v8016
      %v8128 = vpop.f32.mrf.mxu0
      %v8129 = vadd.f32 0.0, %v8128
      %8130 = vmatmul.f32.gmra.mxu0 %v8019
      %v8131 = vpop.f32.mrf.mxu0
      %v8132 = vadd.f32 0.0, %v8131
      %8133 = vmatmul.f32.gmra.mxu0 %v8022
      %v8134 = vpop.f32.mrf.mxu0
      %v8135 = vadd.f32 0.0, %v8134
      %8136 = vmatmul.f32.gmra.mxu0 %v8025
      %v8137 = vpop.f32.mrf.mxu0
      %v8138 = vadd.f32 0.0, %v8137
      %8139 = vmatmul.f32.gmra.mxu0 %v8028
      %v8140 = vpop.f32.mrf.mxu0
      %v8141 = vadd.f32 0.0, %v8140
      %8142 = vmatmul.f32.gmra.mxu0 %v8031
      %v8143 = vpop.f32.mrf.mxu0
      %v8144 = vadd.f32 0.0, %v8143
      %8145 = vmatmul.f32.gmra.mxu0 %v8034
      %v8146 = vpop.f32.mrf.mxu0
      %v8147 = vadd.f32 0.0, %v8146
      %8148 = vmatmul.f32.gmra.mxu0 %v8037
      %v8149 = vpop.f32.mrf.mxu0
      %v8150 = vadd.f32 0.0, %v8149
      %8151 = vmatmul.f32.gmra.mxu0 %v8040
      %v8152 = vpop.f32.mrf.mxu0
      %v8153 = vadd.f32 0.0, %v8152
      %8154 = vmatmul.f32.gmra.mxu0 %v8043
      %v8155 = vpop.f32.mrf.mxu0
      %v8156 = vadd.f32 0.0, %v8155
      %8157 = vmatmul.f32.gmra.mxu0 %v8046
      %v8158 = vpop.f32.mrf.mxu0
      %v8159 = vadd.f32 0.0, %v8158
      %8160 = vmatmul.f32.gmra.mxu0 %v8049
      %v8161 = vpop.f32.mrf.mxu0
      %v8162 = vadd.f32 0.0, %v8161
      %8163 = vmatmul.f32.gmra.mxu0 %v8052
      %v8164 = vpop.f32.mrf.mxu0
      %v8165 = vadd.f32 0.0, %v8164
      %8166 = vmatmul.f32.gmra.mxu0 %v8055
      %v8167 = vpop.f32.mrf.mxu0
      %v8168 = vadd.f32 0.0, %v8167
      %8169 = vmatmul.f32.gmra.mxu0 %v8058
      %v8170 = vpop.f32.mrf.mxu0
      %v8171 = vadd.f32 0.0, %v8170
      %8172 = vmatmul.f32.gmra.mxu0 %v8061
      %v8173 = vpop.f32.mrf.mxu0
      %v8174 = vadd.f32 0.0, %v8173
      %8175 = vmatmul.f32.gmra.mxu0 %v8064
      %v8176 = vpop.f32.mrf.mxu0
      %v8177 = vadd.f32 0.0, %v8176
      %8178 = vmatmul.f32.gmra.mxu0 %v8067
      %v8179 = vpop.f32.mrf.mxu0
      %v8180 = vadd.f32 0.0, %v8179
      %8181 = vmatmul.f32.gmra.mxu0 %v8070
      %v8182 = vpop.f32.mrf.mxu0
      %v8183 = vadd.f32 0.0, %v8182
      %8184 = vmatmul.f32.gmra.mxu0 %v8073
      %v8185 = vpop.f32.mrf.mxu0
      %v8186 = vadd.f32 0.0, %v8185
      %8187 = vmatmul.f32.gmra.mxu0 %v8076
      %v8188 = vpop.f32.mrf.mxu0
      %v8189 = vadd.f32 0.0, %v8188
      %8190 = vmatmul.f32.gmra.mxu0 %v8079
      %v8191 = vpop.f32.mrf.mxu0
      %v8192 = vadd.f32 0.0, %v8191
      %8193 = vmatmul.f32.gmra.mxu0 %v8082
      %v8194 = vpop.f32.mrf.mxu0
      %v8195 = vadd.f32 0.0, %v8194
      %8196 = vmatmul.f32.gmra.mxu0 %v8085
      %v8197 = vpop.f32.mrf.mxu0
      %v8198 = vadd.f32 0.0, %v8197
      %8199 = vmatmul.f32.gmra.mxu0 %v8088
      %v8200 = vpop.f32.mrf.mxu0
      %v8201 = vadd.f32 0.0, %v8200
      %8202 = vmatmul.f32.gmra.mxu0 %v8091
      %v8203 = vpop.f32.mrf.mxu0
      %v8204 = vadd.f32 0.0, %v8203
      %8205 = vmatmul.f32.gmra.mxu0 %v8094
      %v8206 = vpop.f32.mrf.mxu0
      %v8207 = vadd.f32 0.0, %v8206
      %8208 = vmatmul.f32.gmra.mxu0 %v8097
      %v8209 = vpop.f32.mrf.mxu0
      %v8210 = vadd.f32 0.0, %v8209
      %8211 = vmatmul.f32.gmra.mxu0 %v8100
      %v8212 = vpop.f32.mrf.mxu0
      %v8213 = vadd.f32 0.0, %v8212
      %8214 = vmatmul.f32.gmra.mxu0 %v8103
      %v8215 = vpop.f32.mrf.mxu0
      %v8216 = vadd.f32 0.0, %v8215
      %8217 = vmatmul.f32.gmra.mxu0 %v8106
      %v8218 = vpop.f32.mrf.mxu0
      %v8219 = vadd.f32 0.0, %v8218
      %8220 = vdwg.mxu0
      %v8221 = vadd.f32 %v7943, %v8126
      %v8222 = vadd.f32 %v7944, %v8129
      %v8223 = vadd.f32 %v7945, %v8132
      %v8224 = vadd.f32 %v7946, %v8135
      %v8225 = vadd.f32 %v7947, %v8138
      %v8226 = vadd.f32 %v7948, %v8141
      %v8227 = vadd.f32 %v7949, %v8144
      %v8228 = vadd.f32 %v7950, %v8147
      %v8229 = vadd.f32 %v7951, %v8150
      %v8230 = vadd.f32 %v7952, %v8153
      %v8231 = vadd.f32 %v7953, %v8156
      %v8232 = vadd.f32 %v7954, %v8159
      %v8233 = vadd.f32 %v7955, %v8162
      %v8234 = vadd.f32 %v7956, %v8165
      %v8235 = vadd.f32 %v7957, %v8168
      %v8236 = vadd.f32 %v7958, %v8171
      %v8237 = vadd.f32 %v7959, %v8174
      %v8238 = vadd.f32 %v7960, %v8177
      %v8239 = vadd.f32 %v7961, %v8180
      %v8240 = vadd.f32 %v7962, %v8183
      %v8241 = vadd.f32 %v7963, %v8186
      %v8242 = vadd.f32 %v7964, %v8189
      %v8243 = vadd.f32 %v7965, %v8192
      %v8244 = vadd.f32 %v7966, %v8195
      %v8245 = vadd.f32 %v7967, %v8198
      %v8246 = vadd.f32 %v7968, %v8201
      %v8247 = vadd.f32 %v7969, %v8204
      %v8248 = vadd.f32 %v7970, %v8207
      %v8249 = vadd.f32 %v7971, %v8210
      %v8250 = vadd.f32 %v7972, %v8213
      %v8251 = vadd.f32 %v7973, %v8216
      %v8252 = vadd.f32 %v7974, %v8219
      %v8253 = vld [vmem:[%s8] sm:$0x1]
      %v8255 = vperm.slane %v8253, 0
      %v8257 = vadd.f32 %v8221, %v8255
      %v8258 = vadd.f32 %v8222, %v8255
      %v8259 = vadd.f32 %v8223, %v8255
      %v8260 = vadd.f32 %v8224, %v8255
      %v8261 = vadd.f32 %v8225, %v8255
      %v8262 = vadd.f32 %v8226, %v8255
      %v8263 = vadd.f32 %v8227, %v8255
      %v8264 = vadd.f32 %v8228, %v8255
      %v8265 = vadd.f32 %v8229, %v8255
      %v8266 = vadd.f32 %v8230, %v8255
      %v8267 = vadd.f32 %v8231, %v8255
      %v8268 = vadd.f32 %v8232, %v8255
      %v8269 = vadd.f32 %v8233, %v8255
      %v8270 = vadd.f32 %v8234, %v8255
      %v8271 = vadd.f32 %v8235, %v8255
      %v8272 = vadd.f32 %v8236, %v8255
      %v8273 = vadd.f32 %v8237, %v8255
      %v8274 = vadd.f32 %v8238, %v8255
      %v8275 = vadd.f32 %v8239, %v8255
      %v8276 = vadd.f32 %v8240, %v8255
      %v8277 = vadd.f32 %v8241, %v8255
      %v8278 = vadd.f32 %v8242, %v8255
      %v8279 = vadd.f32 %v8243, %v8255
      %v8280 = vadd.f32 %v8244, %v8255
      %v8281 = vadd.f32 %v8245, %v8255
      %v8282 = vadd.f32 %v8246, %v8255
      %v8283 = vadd.f32 %v8247, %v8255
      %v8284 = vadd.f32 %v8248, %v8255
      %v8285 = vadd.f32 %v8249, %v8255
      %v8286 = vadd.f32 %v8250, %v8255
      %v8287 = vadd.f32 %v8251, %v8255
      %v8288 = vadd.f32 %v8252, %v8255
      %v8289 = vmax.f32 %v8257, 0.0
      %v8290 = vmax.f32 %v8258, 0.0
      %v8291 = vmax.f32 %v8259, 0.0
      %v8292 = vmax.f32 %v8260, 0.0
      %v8293 = vmax.f32 %v8261, 0.0
      %v8294 = vmax.f32 %v8262, 0.0
      %v8295 = vmax.f32 %v8263, 0.0
      %v8296 = vmax.f32 %v8264, 0.0
      %v8297 = vmax.f32 %v8265, 0.0
      %v8298 = vmax.f32 %v8266, 0.0
      %v8299 = vmax.f32 %v8267, 0.0
      %v8300 = vmax.f32 %v8268, 0.0
      %v8301 = vmax.f32 %v8269, 0.0
      %v8302 = vmax.f32 %v8270, 0.0
      %v8303 = vmax.f32 %v8271, 0.0
      %v8304 = vmax.f32 %v8272, 0.0
      %v8305 = vmax.f32 %v8273, 0.0
      %v8306 = vmax.f32 %v8274, 0.0
      %v8307 = vmax.f32 %v8275, 0.0
      %v8308 = vmax.f32 %v8276, 0.0
      %v8309 = vmax.f32 %v8277, 0.0
      %v8310 = vmax.f32 %v8278, 0.0
      %v8311 = vmax.f32 %v8279, 0.0
      %v8312 = vmax.f32 %v8280, 0.0
      %v8313 = vmax.f32 %v8281, 0.0
      %v8314 = vmax.f32 %v8282, 0.0
      %v8315 = vmax.f32 %v8283, 0.0
      %v8316 = vmax.f32 %v8284, 0.0
      %v8317 = vmax.f32 %v8285, 0.0
      %v8318 = vmax.f32 %v8286, 0.0
      %v8319 = vmax.f32 %v8287, 0.0
      %v8320 = vmax.f32 %v8288, 0.0
      %v8321 = vmax.f32 %v8289, %v8291
      %v8322 = vmax.f32 %v8290, %v8292
      %v8323 = vmax.f32 %v8293, %v8295
      %v8324 = vmax.f32 %v8294, %v8296
      %v8325 = vmax.f32 %v8297, %v8299
      %v8326 = vmax.f32 %v8298, %v8300
      %v8327 = vmax.f32 %v8301, %v8303
      %v8328 = vmax.f32 %v8302, %v8304
      %v8329 = vmax.f32 %v8305, %v8307
      %v8330 = vmax.f32 %v8306, %v8308
      %v8331 = vmax.f32 %v8309, %v8311
      %v8332 = vmax.f32 %v8310, %v8312
      %v8333 = vmax.f32 %v8313, %v8315
      %v8334 = vmax.f32 %v8314, %v8316
      %v8335 = vmax.f32 %v8317, %v8319
      %v8336 = vmax.f32 %v8318, %v8320
      %8337 = vst.msk [vmem:[#allocation4] sm:$0xff] %vm333, %v8321
      %8338 = vst.msk [vmem:[#allocation4 + $0x8] sm:$0xff] %vm333, %v8322
      %8339 = vst.msk [vmem:[#allocation4 + $0x10] sm:$0xff] %vm333, %v8323
      %8340 = vst.msk [vmem:[#allocation4 + $0x18] sm:$0xff] %vm333, %v8324
      %8341 = vst.msk [vmem:[#allocation4 + $0x20] sm:$0xff] %vm333, %v8325
      %8342 = vst.msk [vmem:[#allocation4 + $0x28] sm:$0xff] %vm333, %v8326
      %8343 = vst.msk [vmem:[#allocation4 + $0x30] sm:$0xff] %vm333, %v8327
      %8344 = vst.msk [vmem:[#allocation4 + $0x38] sm:$0xff] %vm333, %v8328
      %8345 = vst.msk [vmem:[#allocation4 + $0x40] sm:$0xff] %vm333, %v8329
      %8346 = vst.msk [vmem:[#allocation4 + $0x48] sm:$0xff] %vm333, %v8330
      %8347 = vst.msk [vmem:[#allocation4 + $0x50] sm:$0xff] %vm333, %v8331
      %8348 = vst.msk [vmem:[#allocation4 + $0x58] sm:$0xff] %vm333, %v8332
      %8349 = vst.msk [vmem:[#allocation4 + $0x60] sm:$0xff] %vm333, %v8333
      %8350 = vst.msk [vmem:[#allocation4 + $0x68] sm:$0xff] %vm333, %v8334
      %8351 = vst.msk [vmem:[#allocation4 + $0x70] sm:$0xff] %vm333, %v8335
      %8352 = vst.msk [vmem:[#allocation4 + $0x78] sm:$0xff] %vm333, %v8336
      %v8353 = vld [vmem:[#allocation4] ss:$2 sm:$0xff]
      %s8354 = scalar_lea.vmem [#allocation4], 16
      %v8355 = vld [vmem:[%s8354] ss:$2 sm:$0xff]
      %s8356 = scalar_lea.vmem [#allocation4], 32
      %v8357 = vld [vmem:[%s8356] ss:$2 sm:$0xff]
      %s8358 = scalar_lea.vmem [#allocation4], 48
      %v8359 = vld [vmem:[%s8358] ss:$2 sm:$0xff]
      %s8360 = scalar_lea.vmem [#allocation4], 64
      %v8361 = vld [vmem:[%s8360] ss:$2 sm:$0xff]
      %s8362 = scalar_lea.vmem [#allocation4], 80
      %v8363 = vld [vmem:[%s8362] ss:$2 sm:$0xff]
      %s8364 = scalar_lea.vmem [#allocation4], 96
      %v8365 = vld [vmem:[%s8364] ss:$2 sm:$0xff]
      %s8366 = scalar_lea.vmem [#allocation4], 112
      %v8367 = vld [vmem:[%s8366] ss:$2 sm:$0xff]
      %s8368 = scalar_lea.vmem [#allocation4], 1
      %v8369 = vld [vmem:[%s8368] ss:$2 sm:$0xff]
      %s8370 = scalar_lea.vmem [#allocation4], 17
      %v8371 = vld [vmem:[%s8370] ss:$2 sm:$0xff]
      %s8372 = scalar_lea.vmem [#allocation4], 33
      %v8373 = vld [vmem:[%s8372] ss:$2 sm:$0xff]
      %s8374 = scalar_lea.vmem [#allocation4], 49
      %v8375 = vld [vmem:[%s8374] ss:$2 sm:$0xff]
      %s8376 = scalar_lea.vmem [#allocation4], 65
      %v8377 = vld [vmem:[%s8376] ss:$2 sm:$0xff]
      %s8378 = scalar_lea.vmem [#allocation4], 81
      %v8379 = vld [vmem:[%s8378] ss:$2 sm:$0xff]
      %s8380 = scalar_lea.vmem [#allocation4], 97
      %v8381 = vld [vmem:[%s8380] ss:$2 sm:$0xff]
      %s8382 = scalar_lea.vmem [#allocation4], 113
      %v8383 = vld [vmem:[%s8382] ss:$2 sm:$0xff]
      %v8384 = vmax.f32 %v8353, %v8369
      %v8385 = vmax.f32 %v8355, %v8371
      %v8386 = vmax.f32 %v8357, %v8373
      %v8387 = vmax.f32 %v8359, %v8375
      %v8388 = vmax.f32 %v8361, %v8377
      %v8389 = vmax.f32 %v8363, %v8379
      %v8390 = vmax.f32 %v8365, %v8381
      %v8391 = vmax.f32 %v8367, %v8383
      %8392 = vst.msk [vmem:[%s332] sm:$0xff] %vm333, %v8384
      %8393 = vst.msk [vmem:[%s332 + $0x8] sm:$0xff] %vm333, %v8385
      %8394 = vst.msk [vmem:[%s332 + $0x10] sm:$0xff] %vm333, %v8386
      %8395 = vst.msk [vmem:[%s332 + $0x18] sm:$0xff] %vm333, %v8387
      %8396 = vst.msk [vmem:[%s332 + $0x20] sm:$0xff] %vm333, %v8388
      %8397 = vst.msk [vmem:[%s332 + $0x28] sm:$0xff] %vm333, %v8389
      %8398 = vst.msk [vmem:[%s332 + $0x30] sm:$0xff] %vm333, %v8390
      %8399 = vst.msk [vmem:[%s332 + $0x38] sm:$0xff] %vm333, %v8391
      %p8400 = scmp.lt.s32.totalorder %s20, 1
      %s8401 = scalar_select %p8400, %s20, 1
      %s8402 = smul.addr %s8401, 8
      %s8403 = smul.addr %s8402, 8
      %s8404 = scalar_lea.vmem %s9, %s8403
      // Predicated region
      $region57: #{cnn_forward.2} parent=55 // pred_check
        %p8405 = pneg %p232
      $region58: #{cnn_forward.2} parent=55 // pred_check_branch
        %8407 = sbr.rel (%p8405) target = $region60
      $region59: #{cnn_forward.2} parent=55 // pred_region
        _
      $region60: #{cnn_forward.2} parent=55 // pred_fallthru
        _
    $region56: #{cnn_forward.2} parent=5 // pred_fallthru
      _
    %p8408 = scmp.le.s32.totalorder 2, %s15
    // Predicated region
    $region61: #{cnn_forward.2} parent=5 // pred_check
      %p8409 = pneg %p8408
    $region62: #{cnn_forward.2} parent=5 // pred_check_branch
      %8411 = sbr.rel (%p8409) target = $region64
    $region63: #{cnn_forward.2} parent=5 // pred_region
      %s8412 = ssub.s32 %s15, 2
      // Predicated region
      $region65: #{cnn_forward.2} parent=63 // pred_check
        %p8413 = pneg %p238
      $region66: #{cnn_forward.2} parent=63 // pred_check_branch
        %8415 = sbr.rel (%p8413) target = $region68
      $region67: #{cnn_forward.2} parent=63 // pred_region
        %p8416 = scmp.lt.s32.totalorder %s21, 1
        %s8417 = scalar_select %p8416, %s21, 1
        %s8418 = smul.addr %s8417, 8
        %s8419 = smul.addr %s8418, 8
        %s8420 = scalar_lea.vmem %s9, %s8419
      $region68: #{cnn_forward.2} parent=63 // pred_fallthru
        _
    $region64: #{cnn_forward.2} parent=5 // pred_fallthru
      _
  $region6: #{cnn_forward.2} parent=0 // loop_footer
    %s19 = sadd.s32 1, %s15
  $region7: #{cnn_forward.2} parent=0 // loop_footer_branch
    %14 = sbr.rel target = $region3
  $region8: #{cnn_forward.2} parent=0 // loop_exit
    _

</llo_original>
